<compile_context>
chip_gen: v7x
topology: tpu7x:2x2x1
jax: 0.10.0
libtpu: 0.0.40
codegen_flags: <defaults>
</compile_context>

<pallas_src>
import math

import jax
import jax.numpy as jnp
from jax import lax
from jax.experimental import pallas as pl
from jax.experimental.pallas import tpu as pltpu

# ---- problem sizes (small, consistent with the module) ----
B     = 2       # batch
S_DEC = 8       # decoder sequence length
S_ENC = 12      # encoder sequence length
E     = 32      # embedding_size (== hidden_size)
H     = 4       # num_heads
DH    = E // H  # per-head dim
N     = B * H   # fused batch*heads dim used inside the kernel
FFN   = 64      # ffn_hidden_size

NEG = -1000000.0   # masked_softmax fill value
EPS = 1e-5         # nn.LayerNorm default eps


def _softmax(x):
    m = jnp.max(x, axis=-1, keepdims=True)
    e = jnp.exp(x - m)
    # divide -> EUP reciprocal (its own bundle slot)
    return e * pl.reciprocal(jnp.sum(e, axis=-1, keepdims=True), approx=True)


def _layernorm(x, g, b):
    mu = jnp.mean(x, axis=-1, keepdims=True)
    xc = x - mu
    var = jnp.mean(xc * xc, axis=-1, keepdims=True)
    return xc * lax.rsqrt(var + EPS) * g + b


def decoder_block_kernel(
    x_ref, enc_ref, vl_ref,                                   # (B,Sd,E) (B,Se,E) (N,1,1)
    wq1_ref, wk1_ref, wv1_ref, wo1_ref, g1_ref, b1_ref,        # self-attn + LN1
    wq2_ref, wk2_ref, wv2_ref, wo2_ref, g2_ref, b2_ref,        # cross-attn + LN2
    wf1_ref, bf1_ref, wf2_ref, bf2_ref, g3_ref, b3_ref,        # FFN + LN3
    out_ref,                                                   # (B,Sd,E)
):
    scale = 1.0 / math.sqrt(DH)

    x = x_ref[...]        # (B, S_DEC, E)
    enc = enc_ref[...]    # (B, S_ENC, E)
    vl = vl_ref[...]      # (N, 1, 1) int32, np.tile ordering, n = b*H + h

    # All helpers below only touch *leading* dims (broadcast / merge / split),
    # so no lane/sublane relayouts are generated.
    def rep_heads(a):
        # (B, S, E) -> (N, S, E), replicating each batch row over heads (n = b*H + h)
        s = a.shape[1]
        return jnp.broadcast_to(a[:, None], (B, H, s, E)).reshape(N, s, E)

    def rep_batch(w):
        # per-head weight (H, a, b) -> (N, a, b), replicated over batch (n = b*H + h)
        return jnp.broadcast_to(w[None], (B,) + w.shape).reshape((N,) + w.shape[1:])

    def rep_b(w):
        # (a, b) -> (B, a, b)
        return jnp.broadcast_to(w[None], (B,) + w.shape)

    def mha(q_in, kv_in, wq, wk, wv, wo, mask):
        # q_in (B,Sq,E), kv_in (B,Sk,E); wq/wk/wv (H,E,DH); wo (H,DH,E)
        # mask (N,Sq,Sk) bool, True => masked.  Returns (B,Sq,E).
        sq = q_in.shape[1]
        qn = rep_heads(q_in)                          # (N, Sq, E)
        kn = rep_heads(kv_in)                         # (N, Sk, E)
        q = jnp.einsum('nse,ned->nsd', qn, rep_batch(wq),
                       preferred_element_type=jnp.float32)        # (N,Sq,DH)
        k = jnp.einsum('nse,ned->nsd', kn, rep_batch(wk),
                       preferred_element_type=jnp.float32)        # (N,Sk,DH)
        v = jnp.einsum('nse,ned->nsd', kn, rep_batch(wv),
                       preferred_element_type=jnp.float32)        # (N,Sk,DH)
        s = jnp.einsum('nqd,nkd->nqk', q, k,
                       preferred_element_type=jnp.float32) * scale
        p = _softmax(jnp.where(mask, NEG, s))
        o = jnp.einsum('nqk,nkd->nqd', p, v,
                       preferred_element_type=jnp.float32)        # (N,Sq,DH)
        oe = jnp.einsum('nqd,nde->nqe', o, rep_batch(wo),
                        preferred_element_type=jnp.float32)       # (N,Sq,E)
        # concat over heads followed by Wo == sum over heads of per-head Wo blocks
        return jnp.sum(oe.reshape(B, H, sq, E), axis=1)           # (B,Sq,E)

    # ---------- self attention with causal (training-mode) mask ----------
    rows = lax.broadcasted_iota(jnp.int32, (N, S_DEC, S_DEC), 1)
    cols = lax.broadcasted_iota(jnp.int32, (N, S_DEC, S_DEC), 2)
    causal = cols > rows                              # col >= row + 1  => masked
    a1 = mha(x, x, wq1_ref[...], wk1_ref[...], wv1_ref[...], wo1_ref[...], causal)
    y1 = _layernorm(a1 + x, g1_ref[...], b1_ref[...])

    # ---------- cross attention over encoder output ----------
    kcols = lax.broadcasted_iota(jnp.int32, (N, S_DEC, S_ENC), 2)
    enc_mask = kcols >= vl                            # one compare for all heads/batches
    a2 = mha(y1, enc, wq2_ref[...], wk2_ref[...], wv2_ref[...], wo2_ref[...], enc_mask)
    y2 = _layernorm(a2 + y1, g2_ref[...], b2_ref[...])

    # ---------- position-wise FFN ----------
    h1 = jnp.maximum(
        jnp.einsum('bse,bef->bsf', y2, rep_b(wf1_ref[...]),
                   preferred_element_type=jnp.float32) + bf1_ref[...], 0.0)
    f = jnp.einsum('bsf,bfe->bse', h1, rep_b(wf2_ref[...]),
                   preferred_element_type=jnp.float32) + bf2_ref[...]
    out_ref[...] = _layernorm(f + y2, g3_ref[...], b3_ref[...])


def decoder_block_pallas(X, enc_output, enc_valid_tiled, params):
    """X: (B,S_DEC,E) f32; enc_output: (B,S_ENC,E) f32; enc_valid_tiled: (B*H,) i32."""
    (wq1, wk1, wv1, wo1, g1, b1,
     wq2, wk2, wv2, wo2, g2, b2,
     wf1, bf1, wf2, bf2, g3, b3) = params

    # Head split applied to weights on the host side (free): kernel then only
    # needs leading-batch-dim einsums, no in-kernel transposes/lane reshapes.
    def qkv_heads(w):   # (E, E) -> (H, E, DH): head h uses output cols h*DH:(h+1)*DH
        return jnp.transpose(w.reshape(E, H, DH), (1, 0, 2))

    def out_heads(w):   # (E, E) -> (H, DH, E): head h uses input rows h*DH:(h+1)*DH
        return w.reshape(H, DH, E)

    def row3(v):        # (1, C) -> (1, 1, C) so broadcasting is rank-matched
        return v.reshape(1, 1, -1)

    kernel_params = (
        qkv_heads(wq1), qkv_heads(wk1), qkv_heads(wv1), out_heads(wo1), row3(g1), row3(b1),
        qkv_heads(wq2), qkv_heads(wk2), qkv_heads(wv2), out_heads(wo2), row3(g2), row3(b2),
        wf1, row3(bf1), wf2, row3(bf2), row3(g3), row3(b3),
    )
    vl = enc_valid_tiled.astype(jnp.int32).reshape(N, 1, 1)

    n_inputs = 3 + len(kernel_params)
    in_specs = [pl.BlockSpec(memory_space=pltpu.MemorySpace.VMEM)
                for _ in range(n_inputs)]

    return pl.pallas_call(
        decoder_block_kernel,
        out_shape=jax.ShapeDtypeStruct((B, S_DEC, E), jnp.float32),
        in_specs=in_specs,
        out_specs=pl.BlockSpec(memory_space=pltpu.MemorySpace.VMEM),
    )(X, enc_output, vl, *kernel_params)


# ----------------------- pure-JAX reference -----------------------
def ref_decoder_block(X, enc_output, enc_valid_tiled, params):
    (wq1, wk1, wv1, wo1, g1, b1,
     wq2, wk2, wv2, wo2, g2, b2,
     wf1, bf1, wf2, bf2, g3, b3) = params

    def ln(x, g, b):
        mu = jnp.mean(x, axis=-1, keepdims=True)
        var = jnp.mean((x - mu) ** 2, axis=-1, keepdims=True)
        return (x - mu) / jnp.sqrt(var + EPS) * g[0] + b[0]

    def mha(q_in, k_in, v_in, wq, wk, wv, wo, mask):
        Q = q_in @ wq; K = k_in @ wk; V = v_in @ wv
        Sq, Sk = Q.shape[1], K.shape[1]
        Qh = Q.reshape(B, Sq, H, DH).transpose(0, 2, 1, 3)
        Kh = K.reshape(B, Sk, H, DH).transpose(0, 2, 1, 3)
        Vh = V.reshape(B, Sk, H, DH).transpose(0, 2, 1, 3)
        s = jnp.einsum("bhqd,bhkd->bhqk", Qh, Kh) / math.sqrt(DH)
        s = jnp.where(mask, NEG, s)
        p = jax.nn.softmax(s, axis=-1)
        o = jnp.einsum("bhqk,bhkd->bhqd", p, Vh)
        return o.transpose(0, 2, 1, 3).reshape(B, Sq, E) @ wo

    # causal mask (training-mode dec_valid_length)
    j = jnp.arange(S_DEC)
    causal = (j[None, :] >= (jnp.arange(S_DEC)[:, None] + 1))[None, None]
    a1 = mha(X, X, X, wq1, wk1, wv1, wo1, causal)
    y1 = ln(a1 + X, g1, b1)

    # encoder mask: valid length for (b, h) is enc_valid_tiled[b*H + h]
    vl = enc_valid_tiled.reshape(B, H).astype(jnp.int32)        # (B, H)
    enc_mask = jnp.arange(S_ENC)[None, None, None, :] >= vl[:, :, None, None]
    a2 = mha(y1, enc_output, enc_output, wq2, wk2, wv2, wo2, enc_mask)
    y2 = ln(a2 + y1, g2, b2)

    f = jnp.maximum(y2 @ wf1 + bf1[0], 0.0) @ wf2 + bf2[0]
    return ln(f + y2, g3, b3)


if __name__ == "__main__":
    key = jax.random.PRNGKey(0)
    ks = jax.random.split(key, 24)

    def nrm(k, shape, s=0.1):
        return (s * jax.random.normal(k, shape)).astype(jnp.float32)

    # weights are stored pre-transposed to (in, out) so the math is x @ W
    params = (
        nrm(ks[0], (E, E)), nrm(ks[1], (E, E)), nrm(ks[2], (E, E)), nrm(ks[3], (E, E)),
        1.0 + nrm(ks[4], (1, E)), nrm(ks[5], (1, E)),                       # LN1
        nrm(ks[6], (E, E)), nrm(ks[7], (E, E)), nrm(ks[8], (E, E)), nrm(ks[9], (E, E)),
        1.0 + nrm(ks[10], (1, E)), nrm(ks[11], (1, E)),                     # LN2
        nrm(ks[12], (E, FFN)), nrm(ks[13], (1, FFN)),                       # FFN1
        nrm(ks[14], (FFN, E)), nrm(ks[15], (1, E)),                         # FFN2
        1.0 + nrm(ks[16], (1, E)), nrm(ks[17], (1, E)),                     # LN3
    )

    X = jax.random.normal(ks[18], (B, S_DEC, E), dtype=jnp.float32)
    enc_output = jax.random.normal(ks[19], (B, S_ENC, E), dtype=jnp.float32)
    enc_valid = jnp.array([9, 12], dtype=jnp.int32)             # per-batch valid lens
    # replicate torch's np.tile(valid_length, num_heads) ordering exactly
    enc_valid_tiled = jnp.tile(enc_valid, H).astype(jnp.int32)  # (B*H,)

    out = decoder_block_pallas(X, enc_output, enc_valid_tiled, params)
    out = jax.block_until_ready(out)

    ref = ref_decoder_block(X, enc_output, enc_valid_tiled, params)
    assert out.shape == (B, S_DEC, E)
    err = float(jnp.max(jnp.abs(out - ref)))
    # tolerance relaxed slightly vs f32-exact because the kernel uses the EUP
    # approximate reciprocal for the softmax denominator.
    assert jnp.allclose(out, ref, atol=2e-3, rtol=2e-3), f"max abs err = {err}"
    print("KERNEL_OK")
</pallas_src>

<mosaic_0001>
module attributes {stable_mosaic.version = 11 : i64} {
  func.func @decoder_block_kernel(%arg0: memref<2x8x32xf32, #tpu.memory_space<vmem>>, %arg1: memref<2x12x32xf32, #tpu.memory_space<vmem>>, %arg2: memref<8x1x1xi32, #tpu.memory_space<vmem>>, %arg3: memref<4x32x8xf32, #tpu.memory_space<vmem>>, %arg4: memref<4x32x8xf32, #tpu.memory_space<vmem>>, %arg5: memref<4x32x8xf32, #tpu.memory_space<vmem>>, %arg6: memref<4x8x32xf32, #tpu.memory_space<vmem>>, %arg7: memref<1x1x32xf32, #tpu.memory_space<vmem>>, %arg8: memref<1x1x32xf32, #tpu.memory_space<vmem>>, %arg9: memref<4x32x8xf32, #tpu.memory_space<vmem>>, %arg10: memref<4x32x8xf32, #tpu.memory_space<vmem>>, %arg11: memref<4x32x8xf32, #tpu.memory_space<vmem>>, %arg12: memref<4x8x32xf32, #tpu.memory_space<vmem>>, %arg13: memref<1x1x32xf32, #tpu.memory_space<vmem>>, %arg14: memref<1x1x32xf32, #tpu.memory_space<vmem>>, %arg15: memref<32x64xf32, #tpu.memory_space<vmem>>, %arg16: memref<1x1x64xf32, #tpu.memory_space<vmem>>, %arg17: memref<64x32xf32, #tpu.memory_space<vmem>>, %arg18: memref<1x1x32xf32, #tpu.memory_space<vmem>>, %arg19: memref<1x1x32xf32, #tpu.memory_space<vmem>>, %arg20: memref<1x1x32xf32, #tpu.memory_space<vmem>>, %arg21: memref<2x8x32xf32, #tpu.memory_space<vmem>>) attributes {dimension_semantics = [], scalar_prefetch = 0 : i64, scratch_operands = 0 : i64, tpu.core_type = #tpu.core_type<tc>} {
    %c0 = arith.constant 0 : index
    %c0_0 = arith.constant 0 : index
    %c0_1 = arith.constant 0 : index
    %0 = vector.load %arg0[%c0, %c0_0, %c0_1] : memref<2x8x32xf32, #tpu.memory_space<vmem>>, vector<2x8x32xf32>
    %c0_2 = arith.constant 0 : index
    %c0_3 = arith.constant 0 : index
    %c0_4 = arith.constant 0 : index
    %1 = vector.load %arg1[%c0_2, %c0_3, %c0_4] : memref<2x12x32xf32, #tpu.memory_space<vmem>>, vector<2x12x32xf32>
    %c0_5 = arith.constant 0 : index
    %c0_6 = arith.constant 0 : index
    %c0_7 = arith.constant 0 : index
    %2 = vector.load %arg2[%c0_5, %c0_6, %c0_7] : memref<8x1x1xi32, #tpu.memory_space<vmem>>, vector<8x1x1xi32>
    %3 = tpu.iota {dimensions = array<i32: 1>} : vector<8x8x8xi32>
    %4 = tpu.iota {dimensions = array<i32: 2>} : vector<8x8x8xi32>
    %5 = arith.cmpi sgt, %4, %3 : vector<8x8x8xi32>
    %c0_8 = arith.constant 0 : index
    %c0_9 = arith.constant 0 : index
    %c0_10 = arith.constant 0 : index
    %6 = vector.load %arg3[%c0_8, %c0_9, %c0_10] : memref<4x32x8xf32, #tpu.memory_space<vmem>>, vector<4x32x8xf32>
    %c0_11 = arith.constant 0 : index
    %c0_12 = arith.constant 0 : index
    %c0_13 = arith.constant 0 : index
    %7 = vector.load %arg4[%c0_11, %c0_12, %c0_13] : memref<4x32x8xf32, #tpu.memory_space<vmem>>, vector<4x32x8xf32>
    %c0_14 = arith.constant 0 : index
    %c0_15 = arith.constant 0 : index
    %c0_16 = arith.constant 0 : index
    %8 = vector.load %arg5[%c0_14, %c0_15, %c0_16] : memref<4x32x8xf32, #tpu.memory_space<vmem>>, vector<4x32x8xf32>
    %c0_17 = arith.constant 0 : index
    %c0_18 = arith.constant 0 : index
    %c0_19 = arith.constant 0 : index
    %9 = vector.load %arg6[%c0_17, %c0_18, %c0_19] : memref<4x8x32xf32, #tpu.memory_space<vmem>>, vector<4x8x32xf32>
    %10 = vector.shape_cast %0 : vector<2x8x32xf32> to vector<2x1x8x32xf32>
    %11 = vector.shape_cast %10 : vector<2x1x8x32xf32> to vector<2x1x8x32xf32>
    %12 = vector.broadcast %11 : vector<2x1x8x32xf32> to vector<2x4x8x32xf32>
    %13 = vector.shape_cast %12 : vector<2x4x8x32xf32> to vector<8x8x32xf32>
    %14 = vector.shape_cast %0 : vector<2x8x32xf32> to vector<2x1x8x32xf32>
    %15 = vector.shape_cast %14 : vector<2x1x8x32xf32> to vector<2x1x8x32xf32>
    %16 = vector.broadcast %15 : vector<2x1x8x32xf32> to vector<2x4x8x32xf32>
    %17 = vector.shape_cast %16 : vector<2x4x8x32xf32> to vector<8x8x32xf32>
    %18 = vector.shape_cast %6 : vector<4x32x8xf32> to vector<1x4x32x8xf32>
    %19 = vector.shape_cast %18 : vector<1x4x32x8xf32> to vector<1x4x32x8xf32>
    %20 = vector.broadcast %19 : vector<1x4x32x8xf32> to vector<2x4x32x8xf32>
    %21 = vector.shape_cast %20 : vector<2x4x32x8xf32> to vector<8x32x8xf32>
    "tpu.trace_start"() <{level = 10 : i32, message = "nse,ned->nsd"}> : () -> ()
    %cst = arith.constant dense<0.000000e+00> : vector<8x8x8xf32>
    %22 = tpu.matmul %13, %21, %cst {dimension_numbers = #tpu.dot_dimension_numbers<[2], [1], [1], [2], [0, 0, 0, 1, 1, 2], [0], [0]>} : vector<8x8x32xf32>, vector<8x32x8xf32>, vector<8x8x8xf32> -> vector<8x8x8xf32>
    "tpu.trace_stop"() : () -> ()
    %23 = vector.shape_cast %7 : vector<4x32x8xf32> to vector<1x4x32x8xf32>
    %24 = vector.shape_cast %23 : vector<1x4x32x8xf32> to vector<1x4x32x8xf32>
    %25 = vector.broadcast %24 : vector<1x4x32x8xf32> to vector<2x4x32x8xf32>
    %26 = vector.shape_cast %25 : vector<2x4x32x8xf32> to vector<8x32x8xf32>
    "tpu.trace_start"() <{level = 10 : i32, message = "nse,ned->nsd"}> : () -> ()
    %cst_20 = arith.constant dense<0.000000e+00> : vector<8x8x8xf32>
    %27 = tpu.matmul %17, %26, %cst_20 {dimension_numbers = #tpu.dot_dimension_numbers<[2], [1], [1], [2], [0, 0, 0, 1, 1, 2], [0], [0]>} : vector<8x8x32xf32>, vector<8x32x8xf32>, vector<8x8x8xf32> -> vector<8x8x8xf32>
    "tpu.trace_stop"() : () -> ()
    %28 = vector.shape_cast %8 : vector<4x32x8xf32> to vector<1x4x32x8xf32>
    %29 = vector.shape_cast %28 : vector<1x4x32x8xf32> to vector<1x4x32x8xf32>
    %30 = vector.broadcast %29 : vector<1x4x32x8xf32> to vector<2x4x32x8xf32>
    %31 = vector.shape_cast %30 : vector<2x4x32x8xf32> to vector<8x32x8xf32>
    "tpu.trace_start"() <{level = 10 : i32, message = "nse,ned->nsd"}> : () -> ()
    %cst_21 = arith.constant dense<0.000000e+00> : vector<8x8x8xf32>
    %32 = tpu.matmul %17, %31, %cst_21 {dimension_numbers = #tpu.dot_dimension_numbers<[2], [1], [1], [2], [0, 0, 0, 1, 1, 2], [0], [0]>} : vector<8x8x32xf32>, vector<8x32x8xf32>, vector<8x8x8xf32> -> vector<8x8x8xf32>
    "tpu.trace_stop"() : () -> ()
    "tpu.trace_start"() <{level = 10 : i32, message = "nqd,nkd->nqk"}> : () -> ()
    %cst_22 = arith.constant dense<0.000000e+00> : vector<8x8x8xf32>
    %33 = tpu.matmul %22, %27, %cst_22 {dimension_numbers = #tpu.dot_dimension_numbers<[2], [2], [1], [1], [0, 0, 0, 1, 1, 1], [0], [0]>} : vector<8x8x8xf32>, vector<8x8x8xf32>, vector<8x8x8xf32> -> vector<8x8x8xf32>
    "tpu.trace_stop"() : () -> ()
    %cst_23 = arith.constant 0.353553385 : f32
    %34 = vector.broadcast %cst_23 : f32 to vector<8x8x8xf32>
    %35 = arith.mulf %33, %34 : vector<8x8x8xf32>
    %cst_24 = arith.constant -1.000000e+06 : f32
    %36 = vector.broadcast %cst_24 : f32 to vector<8x8x8xf32>
    %37 = arith.select %5, %36, %35 : vector<8x8x8xi1>, vector<8x8x8xf32>
    %cst_25 = arith.constant dense<0xFF800000> : vector<8x8xf32>
    %38 = vector.multi_reduction <maximumf>, %37, %cst_25 [2] : vector<8x8x8xf32> to vector<8x8xf32>
    %39 = vector.shape_cast %38 : vector<8x8xf32> to vector<8x8x1xf32>
    %40 = vector.broadcast %39 : vector<8x8x1xf32> to vector<8x8x8xf32>
    %41 = arith.subf %37, %40 : vector<8x8x8xf32>
    %42 = math.exp %41 : vector<8x8x8xf32>
    %cst_26 = arith.constant dense<0.000000e+00> : vector<8x8xf32>
    %43 = vector.multi_reduction <add>, %42, %cst_26 [2] : vector<8x8x8xf32> to vector<8x8xf32>
    %44 = vector.shape_cast %43 : vector<8x8xf32> to vector<8x8x1xf32>
    %45 = tpu.reciprocal %44 {approx = true} : vector<8x8x1xf32> -> vector<8x8x1xf32>
    %46 = vector.broadcast %45 : vector<8x8x1xf32> to vector<8x8x8xf32>
    %47 = arith.mulf %42, %46 : vector<8x8x8xf32>
    "tpu.trace_start"() <{level = 10 : i32, message = "nqk,nkd->nqd"}> : () -> ()
    %cst_27 = arith.constant dense<0.000000e+00> : vector<8x8x8xf32>
    %48 = tpu.matmul %47, %32, %cst_27 {dimension_numbers = #tpu.dot_dimension_numbers<[2], [1], [1], [2], [0, 0, 0, 1, 1, 2], [0], [0]>} : vector<8x8x8xf32>, vector<8x8x8xf32>, vector<8x8x8xf32> -> vector<8x8x8xf32>
    "tpu.trace_stop"() : () -> ()
    %49 = vector.shape_cast %9 : vector<4x8x32xf32> to vector<1x4x8x32xf32>
    %50 = vector.shape_cast %49 : vector<1x4x8x32xf32> to vector<1x4x8x32xf32>
    %51 = vector.broadcast %50 : vector<1x4x8x32xf32> to vector<2x4x8x32xf32>
    %52 = vector.shape_cast %51 : vector<2x4x8x32xf32> to vector<8x8x32xf32>
    "tpu.trace_start"() <{level = 10 : i32, message = "nqd,nde->nqe"}> : () -> ()
    %cst_28 = arith.constant dense<0.000000e+00> : vector<8x8x32xf32>
    %53 = tpu.matmul %48, %52, %cst_28 {dimension_numbers = #tpu.dot_dimension_numbers<[2], [1], [1], [2], [0, 0, 0, 1, 1, 2], [0], [0]>} : vector<8x8x8xf32>, vector<8x8x32xf32>, vector<8x8x32xf32> -> vector<8x8x32xf32>
    "tpu.trace_stop"() : () -> ()
    %54 = vector.shape_cast %53 : vector<8x8x32xf32> to vector<2x4x8x32xf32>
    %cst_29 = arith.constant dense<0.000000e+00> : vector<2x8x32xf32>
    %55 = vector.multi_reduction <add>, %54, %cst_29 [1] : vector<2x4x8x32xf32> to vector<2x8x32xf32>
    %56 = arith.addf %55, %0 : vector<2x8x32xf32>
    %c0_30 = arith.constant 0 : index
    %c0_31 = arith.constant 0 : index
    %c0_32 = arith.constant 0 : index
    %57 = vector.load %arg7[%c0_30, %c0_31, %c0_32] : memref<1x1x32xf32, #tpu.memory_space<vmem>>, vector<1x1x32xf32>
    %c0_33 = arith.constant 0 : index
    %c0_34 = arith.constant 0 : index
    %c0_35 = arith.constant 0 : index
    %58 = vector.load %arg8[%c0_33, %c0_34, %c0_35] : memref<1x1x32xf32, #tpu.memory_space<vmem>>, vector<1x1x32xf32>
    %cst_36 = arith.constant dense<0.000000e+00> : vector<2x8xf32>
    %59 = vector.multi_reduction <add>, %56, %cst_36 [2] : vector<2x8x32xf32> to vector<2x8xf32>
    %60 = vector.shape_cast %59 : vector<2x8xf32> to vector<2x8x1xf32>
    %cst_37 = arith.constant 3.200000e+01 : f32
    %61 = vector.broadcast %cst_37 : f32 to vector<2x8x1xf32>
    %62 = arith.divf %60, %61 : vector<2x8x1xf32>
    %63 = vector.broadcast %62 : vector<2x8x1xf32> to vector<2x8x32xf32>
    %64 = arith.subf %56, %63 : vector<2x8x32xf32>
    %65 = arith.mulf %64, %64 : vector<2x8x32xf32>
    %cst_38 = arith.constant dense<0.000000e+00> : vector<2x8xf32>
    %66 = vector.multi_reduction <add>, %65, %cst_38 [2] : vector<2x8x32xf32> to vector<2x8xf32>
    %67 = vector.shape_cast %66 : vector<2x8xf32> to vector<2x8x1xf32>
    %cst_39 = arith.constant 3.200000e+01 : f32
    %68 = vector.broadcast %cst_39 : f32 to vector<2x8x1xf32>
    %69 = arith.divf %67, %68 : vector<2x8x1xf32>
    %cst_40 = arith.constant 9.99999974E-6 : f32
    %70 = vector.broadcast %cst_40 : f32 to vector<2x8x1xf32>
    %71 = arith.addf %69, %70 : vector<2x8x1xf32>
    %72 = math.rsqrt %71 : vector<2x8x1xf32>
    %73 = vector.broadcast %72 : vector<2x8x1xf32> to vector<2x8x32xf32>
    %74 = arith.mulf %64, %73 : vector<2x8x32xf32>
    %75 = vector.broadcast %57 : vector<1x1x32xf32> to vector<2x8x32xf32>
    %76 = arith.mulf %74, %75 : vector<2x8x32xf32>
    %77 = vector.broadcast %58 : vector<1x1x32xf32> to vector<2x8x32xf32>
    %78 = arith.addf %76, %77 : vector<2x8x32xf32>
    %79 = tpu.iota {dimensions = array<i32: 2>} : vector<8x8x12xi32>
    %80 = vector.broadcast %2 : vector<8x1x1xi32> to vector<8x8x12xi32>
    %81 = arith.cmpi sge, %79, %80 : vector<8x8x12xi32>
    %c0_41 = arith.constant 0 : index
    %c0_42 = arith.constant 0 : index
    %c0_43 = arith.constant 0 : index
    %82 = vector.load %arg9[%c0_41, %c0_42, %c0_43] : memref<4x32x8xf32, #tpu.memory_space<vmem>>, vector<4x32x8xf32>
    %c0_44 = arith.constant 0 : index
    %c0_45 = arith.constant 0 : index
    %c0_46 = arith.constant 0 : index
    %83 = vector.load %arg10[%c0_44, %c0_45, %c0_46] : memref<4x32x8xf32, #tpu.memory_space<vmem>>, vector<4x32x8xf32>
    %c0_47 = arith.constant 0 : index
    %c0_48 = arith.constant 0 : index
    %c0_49 = arith.constant 0 : index
    %84 = vector.load %arg11[%c0_47, %c0_48, %c0_49] : memref<4x32x8xf32, #tpu.memory_space<vmem>>, vector<4x32x8xf32>
    %c0_50 = arith.constant 0 : index
    %c0_51 = arith.constant 0 : index
    %c0_52 = arith.constant 0 : index
    %85 = vector.load %arg12[%c0_50, %c0_51, %c0_52] : memref<4x8x32xf32, #tpu.memory_space<vmem>>, vector<4x8x32xf32>
    %86 = vector.shape_cast %78 : vector<2x8x32xf32> to vector<2x1x8x32xf32>
    %87 = vector.shape_cast %86 : vector<2x1x8x32xf32> to vector<2x1x8x32xf32>
    %88 = vector.broadcast %87 : vector<2x1x8x32xf32> to vector<2x4x8x32xf32>
    %89 = vector.shape_cast %88 : vector<2x4x8x32xf32> to vector<8x8x32xf32>
    %90 = vector.shape_cast %1 : vector<2x12x32xf32> to vector<2x1x12x32xf32>
    %91 = vector.shape_cast %90 : vector<2x1x12x32xf32> to vector<2x1x12x32xf32>
    %92 = vector.broadcast %91 : vector<2x1x12x32xf32> to vector<2x4x12x32xf32>
    %93 = vector.shape_cast %92 : vector<2x4x12x32xf32> to vector<8x12x32xf32>
    %94 = vector.shape_cast %82 : vector<4x32x8xf32> to vector<1x4x32x8xf32>
    %95 = vector.shape_cast %94 : vector<1x4x32x8xf32> to vector<1x4x32x8xf32>
    %96 = vector.broadcast %95 : vector<1x4x32x8xf32> to vector<2x4x32x8xf32>
    %97 = vector.shape_cast %96 : vector<2x4x32x8xf32> to vector<8x32x8xf32>
    "tpu.trace_start"() <{level = 10 : i32, message = "nse,ned->nsd"}> : () -> ()
    %cst_53 = arith.constant dense<0.000000e+00> : vector<8x8x8xf32>
    %98 = tpu.matmul %89, %97, %cst_53 {dimension_numbers = #tpu.dot_dimension_numbers<[2], [1], [1], [2], [0, 0, 0, 1, 1, 2], [0], [0]>} : vector<8x8x32xf32>, vector<8x32x8xf32>, vector<8x8x8xf32> -> vector<8x8x8xf32>
    "tpu.trace_stop"() : () -> ()
    %99 = vector.shape_cast %83 : vector<4x32x8xf32> to vector<1x4x32x8xf32>
    %100 = vector.shape_cast %99 : vector<1x4x32x8xf32> to vector<1x4x32x8xf32>
    %101 = vector.broadcast %100 : vector<1x4x32x8xf32> to vector<2x4x32x8xf32>
    %102 = vector.shape_cast %101 : vector<2x4x32x8xf32> to vector<8x32x8xf32>
    "tpu.trace_start"() <{level = 10 : i32, message = "nse,ned->nsd"}> : () -> ()
    %cst_54 = arith.constant dense<0.000000e+00> : vector<8x12x8xf32>
    %103 = tpu.matmul %93, %102, %cst_54 {dimension_numbers = #tpu.dot_dimension_numbers<[2], [1], [1], [2], [0, 0, 0, 1, 1, 2], [0], [0]>} : vector<8x12x32xf32>, vector<8x32x8xf32>, vector<8x12x8xf32> -> vector<8x12x8xf32>
    "tpu.trace_stop"() : () -> ()
    %104 = vector.shape_cast %84 : vector<4x32x8xf32> to vector<1x4x32x8xf32>
    %105 = vector.shape_cast %104 : vector<1x4x32x8xf32> to vector<1x4x32x8xf32>
    %106 = vector.broadcast %105 : vector<1x4x32x8xf32> to vector<2x4x32x8xf32>
    %107 = vector.shape_cast %106 : vector<2x4x32x8xf32> to vector<8x32x8xf32>
    "tpu.trace_start"() <{level = 10 : i32, message = "nse,ned->nsd"}> : () -> ()
    %cst_55 = arith.constant dense<0.000000e+00> : vector<8x12x8xf32>
    %108 = tpu.matmul %93, %107, %cst_55 {dimension_numbers = #tpu.dot_dimension_numbers<[2], [1], [1], [2], [0, 0, 0, 1, 1, 2], [0], [0]>} : vector<8x12x32xf32>, vector<8x32x8xf32>, vector<8x12x8xf32> -> vector<8x12x8xf32>
    "tpu.trace_stop"() : () -> ()
    "tpu.trace_start"() <{level = 10 : i32, message = "nqd,nkd->nqk"}> : () -> ()
    %cst_56 = arith.constant dense<0.000000e+00> : vector<8x8x12xf32>
    %109 = tpu.matmul %98, %103, %cst_56 {dimension_numbers = #tpu.dot_dimension_numbers<[2], [2], [1], [1], [0, 0, 0, 1, 1, 1], [0], [0]>} : vector<8x8x8xf32>, vector<8x12x8xf32>, vector<8x8x12xf32> -> vector<8x8x12xf32>
    "tpu.trace_stop"() : () -> ()
    %cst_57 = arith.constant 0.353553385 : f32
    %110 = vector.broadcast %cst_57 : f32 to vector<8x8x12xf32>
    %111 = arith.mulf %109, %110 : vector<8x8x12xf32>
    %cst_58 = arith.constant -1.000000e+06 : f32
    %112 = vector.broadcast %cst_58 : f32 to vector<8x8x12xf32>
    %113 = arith.select %81, %112, %111 : vector<8x8x12xi1>, vector<8x8x12xf32>
    %cst_59 = arith.constant dense<0xFF800000> : vector<8x8xf32>
    %114 = vector.multi_reduction <maximumf>, %113, %cst_59 [2] : vector<8x8x12xf32> to vector<8x8xf32>
    %115 = vector.shape_cast %114 : vector<8x8xf32> to vector<8x8x1xf32>
    %116 = vector.broadcast %115 : vector<8x8x1xf32> to vector<8x8x12xf32>
    %117 = arith.subf %113, %116 : vector<8x8x12xf32>
    %118 = math.exp %117 : vector<8x8x12xf32>
    %cst_60 = arith.constant dense<0.000000e+00> : vector<8x8xf32>
    %119 = vector.multi_reduction <add>, %118, %cst_60 [2] : vector<8x8x12xf32> to vector<8x8xf32>
    %120 = vector.shape_cast %119 : vector<8x8xf32> to vector<8x8x1xf32>
    %121 = tpu.reciprocal %120 {approx = true} : vector<8x8x1xf32> -> vector<8x8x1xf32>
    %122 = vector.broadcast %121 : vector<8x8x1xf32> to vector<8x8x12xf32>
    %123 = arith.mulf %118, %122 : vector<8x8x12xf32>
    "tpu.trace_start"() <{level = 10 : i32, message = "nqk,nkd->nqd"}> : () -> ()
    %cst_61 = arith.constant dense<0.000000e+00> : vector<8x8x8xf32>
    %124 = tpu.matmul %123, %108, %cst_61 {dimension_numbers = #tpu.dot_dimension_numbers<[2], [1], [1], [2], [0, 0, 0, 1, 1, 2], [0], [0]>} : vector<8x8x12xf32>, vector<8x12x8xf32>, vector<8x8x8xf32> -> vector<8x8x8xf32>
    "tpu.trace_stop"() : () -> ()
    %125 = vector.shape_cast %85 : vector<4x8x32xf32> to vector<1x4x8x32xf32>
    %126 = vector.shape_cast %125 : vector<1x4x8x32xf32> to vector<1x4x8x32xf32>
    %127 = vector.broadcast %126 : vector<1x4x8x32xf32> to vector<2x4x8x32xf32>
    %128 = vector.shape_cast %127 : vector<2x4x8x32xf32> to vector<8x8x32xf32>
    "tpu.trace_start"() <{level = 10 : i32, message = "nqd,nde->nqe"}> : () -> ()
    %cst_62 = arith.constant dense<0.000000e+00> : vector<8x8x32xf32>
    %129 = tpu.matmul %124, %128, %cst_62 {dimension_numbers = #tpu.dot_dimension_numbers<[2], [1], [1], [2], [0, 0, 0, 1, 1, 2], [0], [0]>} : vector<8x8x8xf32>, vector<8x8x32xf32>, vector<8x8x32xf32> -> vector<8x8x32xf32>
    "tpu.trace_stop"() : () -> ()
    %130 = vector.shape_cast %129 : vector<8x8x32xf32> to vector<2x4x8x32xf32>
    %cst_63 = arith.constant dense<0.000000e+00> : vector<2x8x32xf32>
    %131 = vector.multi_reduction <add>, %130, %cst_63 [1] : vector<2x4x8x32xf32> to vector<2x8x32xf32>
    %132 = arith.addf %131, %78 : vector<2x8x32xf32>
    %c0_64 = arith.constant 0 : index
    %c0_65 = arith.constant 0 : index
    %c0_66 = arith.constant 0 : index
    %133 = vector.load %arg13[%c0_64, %c0_65, %c0_66] : memref<1x1x32xf32, #tpu.memory_space<vmem>>, vector<1x1x32xf32>
    %c0_67 = arith.constant 0 : index
    %c0_68 = arith.constant 0 : index
    %c0_69 = arith.constant 0 : index
    %134 = vector.load %arg14[%c0_67, %c0_68, %c0_69] : memref<1x1x32xf32, #tpu.memory_space<vmem>>, vector<1x1x32xf32>
    %cst_70 = arith.constant dense<0.000000e+00> : vector<2x8xf32>
    %135 = vector.multi_reduction <add>, %132, %cst_70 [2] : vector<2x8x32xf32> to vector<2x8xf32>
    %136 = vector.shape_cast %135 : vector<2x8xf32> to vector<2x8x1xf32>
    %cst_71 = arith.constant 3.200000e+01 : f32
    %137 = vector.broadcast %cst_71 : f32 to vector<2x8x1xf32>
    %138 = arith.divf %136, %137 : vector<2x8x1xf32>
    %139 = vector.broadcast %138 : vector<2x8x1xf32> to vector<2x8x32xf32>
    %140 = arith.subf %132, %139 : vector<2x8x32xf32>
    %141 = arith.mulf %140, %140 : vector<2x8x32xf32>
    %cst_72 = arith.constant dense<0.000000e+00> : vector<2x8xf32>
    %142 = vector.multi_reduction <add>, %141, %cst_72 [2] : vector<2x8x32xf32> to vector<2x8xf32>
    %143 = vector.shape_cast %142 : vector<2x8xf32> to vector<2x8x1xf32>
    %cst_73 = arith.constant 3.200000e+01 : f32
    %144 = vector.broadcast %cst_73 : f32 to vector<2x8x1xf32>
    %145 = arith.divf %143, %144 : vector<2x8x1xf32>
    %cst_74 = arith.constant 9.99999974E-6 : f32
    %146 = vector.broadcast %cst_74 : f32 to vector<2x8x1xf32>
    %147 = arith.addf %145, %146 : vector<2x8x1xf32>
    %148 = math.rsqrt %147 : vector<2x8x1xf32>
    %149 = vector.broadcast %148 : vector<2x8x1xf32> to vector<2x8x32xf32>
    %150 = arith.mulf %140, %149 : vector<2x8x32xf32>
    %151 = vector.broadcast %133 : vector<1x1x32xf32> to vector<2x8x32xf32>
    %152 = arith.mulf %150, %151 : vector<2x8x32xf32>
    %153 = vector.broadcast %134 : vector<1x1x32xf32> to vector<2x8x32xf32>
    %154 = arith.addf %152, %153 : vector<2x8x32xf32>
    %c0_75 = arith.constant 0 : index
    %c0_76 = arith.constant 0 : index
    %155 = vector.load %arg15[%c0_75, %c0_76] : memref<32x64xf32, #tpu.memory_space<vmem>>, vector<32x64xf32>
    %156 = vector.shape_cast %155 : vector<32x64xf32> to vector<1x32x64xf32>
    %157 = vector.shape_cast %156 : vector<1x32x64xf32> to vector<1x32x64xf32>
    %158 = vector.broadcast %157 : vector<1x32x64xf32> to vector<2x32x64xf32>
    "tpu.trace_start"() <{level = 10 : i32, message = "bse,bef->bsf"}> : () -> ()
    %cst_77 = arith.constant dense<0.000000e+00> : vector<2x8x64xf32>
    %159 = tpu.matmul %154, %158, %cst_77 {dimension_numbers = #tpu.dot_dimension_numbers<[2], [1], [1], [2], [0, 0, 0, 1, 1, 2], [0], [0]>} : vector<2x8x32xf32>, vector<2x32x64xf32>, vector<2x8x64xf32> -> vector<2x8x64xf32>
    "tpu.trace_stop"() : () -> ()
    %c0_78 = arith.constant 0 : index
    %c0_79 = arith.constant 0 : index
    %c0_80 = arith.constant 0 : index
    %160 = vector.load %arg16[%c0_78, %c0_79, %c0_80] : memref<1x1x64xf32, #tpu.memory_space<vmem>>, vector<1x1x64xf32>
    %161 = vector.broadcast %160 : vector<1x1x64xf32> to vector<2x8x64xf32>
    %162 = arith.addf %159, %161 : vector<2x8x64xf32>
    %cst_81 = arith.constant 0.000000e+00 : f32
    %163 = vector.broadcast %cst_81 : f32 to vector<2x8x64xf32>
    %164 = arith.maximumf %162, %163 : vector<2x8x64xf32>
    %c0_82 = arith.constant 0 : index
    %c0_83 = arith.constant 0 : index
    %165 = vector.load %arg17[%c0_82, %c0_83] : memref<64x32xf32, #tpu.memory_space<vmem>>, vector<64x32xf32>
    %166 = vector.shape_cast %165 : vector<64x32xf32> to vector<1x64x32xf32>
    %167 = vector.shape_cast %166 : vector<1x64x32xf32> to vector<1x64x32xf32>
    %168 = vector.broadcast %167 : vector<1x64x32xf32> to vector<2x64x32xf32>
    "tpu.trace_start"() <{level = 10 : i32, message = "bsf,bfe->bse"}> : () -> ()
    %cst_84 = arith.constant dense<0.000000e+00> : vector<2x8x32xf32>
    %169 = tpu.matmul %164, %168, %cst_84 {dimension_numbers = #tpu.dot_dimension_numbers<[2], [1], [1], [2], [0, 0, 0, 1, 1, 2], [0], [0]>} : vector<2x8x64xf32>, vector<2x64x32xf32>, vector<2x8x32xf32> -> vector<2x8x32xf32>
    "tpu.trace_stop"() : () -> ()
    %c0_85 = arith.constant 0 : index
    %c0_86 = arith.constant 0 : index
    %c0_87 = arith.constant 0 : index
    %170 = vector.load %arg18[%c0_85, %c0_86, %c0_87] : memref<1x1x32xf32, #tpu.memory_space<vmem>>, vector<1x1x32xf32>
    %171 = vector.broadcast %170 : vector<1x1x32xf32> to vector<2x8x32xf32>
    %172 = arith.addf %169, %171 : vector<2x8x32xf32>
    %173 = arith.addf %172, %154 : vector<2x8x32xf32>
    %c0_88 = arith.constant 0 : index
    %c0_89 = arith.constant 0 : index
    %c0_90 = arith.constant 0 : index
    %174 = vector.load %arg19[%c0_88, %c0_89, %c0_90] : memref<1x1x32xf32, #tpu.memory_space<vmem>>, vector<1x1x32xf32>
    %c0_91 = arith.constant 0 : index
    %c0_92 = arith.constant 0 : index
    %c0_93 = arith.constant 0 : index
    %175 = vector.load %arg20[%c0_91, %c0_92, %c0_93] : memref<1x1x32xf32, #tpu.memory_space<vmem>>, vector<1x1x32xf32>
    %cst_94 = arith.constant dense<0.000000e+00> : vector<2x8xf32>
    %176 = vector.multi_reduction <add>, %173, %cst_94 [2] : vector<2x8x32xf32> to vector<2x8xf32>
    %177 = vector.shape_cast %176 : vector<2x8xf32> to vector<2x8x1xf32>
    %cst_95 = arith.constant 3.200000e+01 : f32
    %178 = vector.broadcast %cst_95 : f32 to vector<2x8x1xf32>
    %179 = arith.divf %177, %178 : vector<2x8x1xf32>
    %180 = vector.broadcast %179 : vector<2x8x1xf32> to vector<2x8x32xf32>
    %181 = arith.subf %173, %180 : vector<2x8x32xf32>
    %182 = arith.mulf %181, %181 : vector<2x8x32xf32>
    %cst_96 = arith.constant dense<0.000000e+00> : vector<2x8xf32>
    %183 = vector.multi_reduction <add>, %182, %cst_96 [2] : vector<2x8x32xf32> to vector<2x8xf32>
    %184 = vector.shape_cast %183 : vector<2x8xf32> to vector<2x8x1xf32>
    %cst_97 = arith.constant 3.200000e+01 : f32
    %185 = vector.broadcast %cst_97 : f32 to vector<2x8x1xf32>
    %186 = arith.divf %184, %185 : vector<2x8x1xf32>
    %cst_98 = arith.constant 9.99999974E-6 : f32
    %187 = vector.broadcast %cst_98 : f32 to vector<2x8x1xf32>
    %188 = arith.addf %186, %187 : vector<2x8x1xf32>
    %189 = math.rsqrt %188 : vector<2x8x1xf32>
    %190 = vector.broadcast %189 : vector<2x8x1xf32> to vector<2x8x32xf32>
    %191 = arith.mulf %181, %190 : vector<2x8x32xf32>
    %192 = vector.broadcast %174 : vector<1x1x32xf32> to vector<2x8x32xf32>
    %193 = arith.mulf %191, %192 : vector<2x8x32xf32>
    %194 = vector.broadcast %175 : vector<1x1x32xf32> to vector<2x8x32xf32>
    %195 = arith.addf %193, %194 : vector<2x8x32xf32>
    %c0_99 = arith.constant 0 : index
    %c0_100 = arith.constant 0 : index
    %c0_101 = arith.constant 0 : index
    %196 = vector.load %arg21[%c0_99, %c0_100, %c0_101] : memref<2x8x32xf32, #tpu.memory_space<vmem>>, vector<2x8x32xf32>
    tpu.vector_store %arg21[%c0_99, %c0_100, %c0_101], %195 {strides = array<i32>} : memref<2x8x32xf32, #tpu.memory_space<vmem>>, vector<2x8x32xf32>,
    return
  }
}

</mosaic_0001>

<llo_original>
// kernel: tpu_custom_call.1
$region0: #{tpu_custom_call.1}
  #allocation0 [shape = 'u32[]', space=smem, size = 0x4, offset = 0x4, fixed_abs, tag = 'smem constant byte address 0x4 - core index']
  #allocation1 [shape = 'u32[144,128]{1,0:T(1,128)}', space=vmem, size = 0x12000, scoped, tag = 'internal scratch']
  %s0 = inlined_call_operand.vmem [shape: f32[2,8,32], index: 0, kind: input, shape index: {}]
  %s1 = inlined_call_operand.vmem [shape: f32[2,12,32], index: 1, kind: input, shape index: {}]
  %s2 = inlined_call_operand.vmem [shape: s32[8,1,1], index: 2, kind: input, shape index: {}]
  %s3 = inlined_call_operand.vmem [shape: f32[4,32,8], index: 3, kind: input, shape index: {}]
  %s4 = inlined_call_operand.vmem [shape: f32[4,32,8], index: 4, kind: input, shape index: {}]
  %s5 = inlined_call_operand.vmem [shape: f32[4,32,8], index: 5, kind: input, shape index: {}]
  %s6 = inlined_call_operand.vmem [shape: f32[4,8,32], index: 6, kind: input, shape index: {}]
  %s7 = inlined_call_operand.vmem [shape: f32[1,1,32], index: 7, kind: input, shape index: {}]
  %s8 = inlined_call_operand.vmem [shape: f32[1,1,32], index: 8, kind: input, shape index: {}]
  %s9 = inlined_call_operand.vmem [shape: f32[4,32,8], index: 9, kind: input, shape index: {}]
  %s10 = inlined_call_operand.vmem [shape: f32[4,32,8], index: 10, kind: input, shape index: {}]
  %s11 = inlined_call_operand.vmem [shape: f32[4,32,8], index: 11, kind: input, shape index: {}]
  %s12 = inlined_call_operand.vmem [shape: f32[4,8,32], index: 12, kind: input, shape index: {}]
  %s13 = inlined_call_operand.vmem [shape: f32[1,1,32], index: 13, kind: input, shape index: {}]
  %s14 = inlined_call_operand.vmem [shape: f32[1,1,32], index: 14, kind: input, shape index: {}]
  %s15 = inlined_call_operand.vmem [shape: f32[32,64], index: 15, kind: input, shape index: {}]
  %s16 = inlined_call_operand.vmem [shape: f32[1,1,64], index: 16, kind: input, shape index: {}]
  %s17 = inlined_call_operand.vmem [shape: f32[64,32], index: 17, kind: input, shape index: {}]
  %s18 = inlined_call_operand.vmem [shape: f32[1,1,32], index: 18, kind: input, shape index: {}]
  %s19 = inlined_call_operand.vmem [shape: f32[1,1,32], index: 19, kind: input, shape index: {}]
  %s20 = inlined_call_operand.vmem [shape: f32[1,1,32], index: 20, kind: input, shape index: {}]
  %s21 = inlined_call_operand.hbm [shape: f32[2,8,32], index: 21, kind: output, shape index: {}]
  %s22 = sld [smem:[#allocation0]]
  $region94: #{tpu_custom_call.1} parent=0
    _
  %s24 = ssub.s32 1, %s22
  %s25 = scalar_select 0, %s24, %s22
  $region1: #{tpu_custom_call.1} parent=0
    #allocation2 [shape = 'u8[8192]{0}', space=vmem, size = 0x2000, scoped, tag = 'output window, operand 0, single buffered']
    #allocation3 [shape = 's32[1]{0}', space=sflag, size = 0x4, scoped, tag = 'scoped memory for tpu_custom_call.1']
    %26 = vsyncpa [#allocation3], 0
    // Predicated region
    $region2: #{tpu_custom_call.1} parent=1 // pred_check
      _
    $region3: #{tpu_custom_call.1} parent=1 // pred_check_branch
      %28 = sbr.rel (0) target = $region5
    $region4: #{tpu_custom_call.1} parent=1 // pred_region
      _
    $region5: #{tpu_custom_call.1} parent=1 // pred_fallthru
      _
    // Predicated region
    $region6: #{tpu_custom_call.1} parent=1 // pred_check
      _
    $region7: #{tpu_custom_call.1} parent=1 // pred_check_branch
      %30 = sbr.rel (0) target = $region9
    $region8: #{tpu_custom_call.1} parent=1 // pred_region
      _
    $region9: #{tpu_custom_call.1} parent=1 // pred_fallthru
      _
    // Predicated region
    $region10: #{tpu_custom_call.1} parent=1 // pred_check
      _
    $region11: #{tpu_custom_call.1} parent=1 // pred_check_branch
      %32 = sbr.rel (0) target = $region13
    $region12: #{tpu_custom_call.1} parent=1 // pred_region
      _
    $region13: #{tpu_custom_call.1} parent=1 // pred_fallthru
      _
    // Predicated region
    $region14: #{tpu_custom_call.1} parent=1 // pred_check
      _
    $region15: #{tpu_custom_call.1} parent=1 // pred_check_branch
      %34 = sbr.rel (0) target = $region17
    $region16: #{tpu_custom_call.1} parent=1 // pred_region
      _
    $region17: #{tpu_custom_call.1} parent=1 // pred_fallthru
      _
    // Predicated region
    $region18: #{tpu_custom_call.1} parent=1 // pred_check
      _
    $region19: #{tpu_custom_call.1} parent=1 // pred_check_branch
      %36 = sbr.rel (0) target = $region21
    $region20: #{tpu_custom_call.1} parent=1 // pred_region
      _
    $region21: #{tpu_custom_call.1} parent=1 // pred_fallthru
      _
    // Predicated region
    $region22: #{tpu_custom_call.1} parent=1 // pred_check
      _
    $region23: #{tpu_custom_call.1} parent=1 // pred_check_branch
      %38 = sbr.rel (0) target = $region25
    $region24: #{tpu_custom_call.1} parent=1 // pred_region
      _
    $region25: #{tpu_custom_call.1} parent=1 // pred_fallthru
      _
    // Predicated region
    $region26: #{tpu_custom_call.1} parent=1 // pred_check
      _
    $region27: #{tpu_custom_call.1} parent=1 // pred_check_branch
      %40 = sbr.rel (0) target = $region29
    $region28: #{tpu_custom_call.1} parent=1 // pred_region
      _
    $region29: #{tpu_custom_call.1} parent=1 // pred_fallthru
      _
    // Predicated region
    $region30: #{tpu_custom_call.1} parent=1 // pred_check
      _
    $region31: #{tpu_custom_call.1} parent=1 // pred_check_branch
      %42 = sbr.rel (0) target = $region33
    $region32: #{tpu_custom_call.1} parent=1 // pred_region
      _
    $region33: #{tpu_custom_call.1} parent=1 // pred_fallthru
      _
    // Predicated region
    $region34: #{tpu_custom_call.1} parent=1 // pred_check
      _
    $region35: #{tpu_custom_call.1} parent=1 // pred_check_branch
      %44 = sbr.rel (0) target = $region37
    $region36: #{tpu_custom_call.1} parent=1 // pred_region
      _
    $region37: #{tpu_custom_call.1} parent=1 // pred_fallthru
      _
    // Predicated region
    $region38: #{tpu_custom_call.1} parent=1 // pred_check
      _
    $region39: #{tpu_custom_call.1} parent=1 // pred_check_branch
      %46 = sbr.rel (0) target = $region41
    $region40: #{tpu_custom_call.1} parent=1 // pred_region
      _
    $region41: #{tpu_custom_call.1} parent=1 // pred_fallthru
      _
    // Predicated region
    $region42: #{tpu_custom_call.1} parent=1 // pred_check
      _
    $region43: #{tpu_custom_call.1} parent=1 // pred_check_branch
      %48 = sbr.rel (0) target = $region45
    $region44: #{tpu_custom_call.1} parent=1 // pred_region
      _
    $region45: #{tpu_custom_call.1} parent=1 // pred_fallthru
      _
    // Predicated region
    $region46: #{tpu_custom_call.1} parent=1 // pred_check
      _
    $region47: #{tpu_custom_call.1} parent=1 // pred_check_branch
      %50 = sbr.rel (0) target = $region49
    $region48: #{tpu_custom_call.1} parent=1 // pred_region
      _
    $region49: #{tpu_custom_call.1} parent=1 // pred_fallthru
      _
    // Predicated region
    $region50: #{tpu_custom_call.1} parent=1 // pred_check
      _
    $region51: #{tpu_custom_call.1} parent=1 // pred_check_branch
      %52 = sbr.rel (0) target = $region53
    $region52: #{tpu_custom_call.1} parent=1 // pred_region
      _
    $region53: #{tpu_custom_call.1} parent=1 // pred_fallthru
      _
    // Predicated region
    $region54: #{tpu_custom_call.1} parent=1 // pred_check
      _
    $region55: #{tpu_custom_call.1} parent=1 // pred_check_branch
      %54 = sbr.rel (0) target = $region57
    $region56: #{tpu_custom_call.1} parent=1 // pred_region
      _
    $region57: #{tpu_custom_call.1} parent=1 // pred_fallthru
      _
    // Predicated region
    $region58: #{tpu_custom_call.1} parent=1 // pred_check
      _
    $region59: #{tpu_custom_call.1} parent=1 // pred_check_branch
      %56 = sbr.rel (0) target = $region61
    $region60: #{tpu_custom_call.1} parent=1 // pred_region
      _
    $region61: #{tpu_custom_call.1} parent=1 // pred_fallthru
      _
    // Predicated region
    $region62: #{tpu_custom_call.1} parent=1 // pred_check
      _
    $region63: #{tpu_custom_call.1} parent=1 // pred_check_branch
      %58 = sbr.rel (0) target = $region65
    $region64: #{tpu_custom_call.1} parent=1 // pred_region
      _
    $region65: #{tpu_custom_call.1} parent=1 // pred_fallthru
      _
    // Predicated region
    $region66: #{tpu_custom_call.1} parent=1 // pred_check
      _
    $region67: #{tpu_custom_call.1} parent=1 // pred_check_branch
      %60 = sbr.rel (0) target = $region69
    $region68: #{tpu_custom_call.1} parent=1 // pred_region
      _
    $region69: #{tpu_custom_call.1} parent=1 // pred_fallthru
      _
    // Predicated region
    $region70: #{tpu_custom_call.1} parent=1 // pred_check
      _
    $region71: #{tpu_custom_call.1} parent=1 // pred_check_branch
      %62 = sbr.rel (0) target = $region73
    $region72: #{tpu_custom_call.1} parent=1 // pred_region
      _
    $region73: #{tpu_custom_call.1} parent=1 // pred_fallthru
      _
    // Predicated region
    $region74: #{tpu_custom_call.1} parent=1 // pred_check
      _
    $region75: #{tpu_custom_call.1} parent=1 // pred_check_branch
      %64 = sbr.rel (0) target = $region77
    $region76: #{tpu_custom_call.1} parent=1 // pred_region
      _
    $region77: #{tpu_custom_call.1} parent=1 // pred_fallthru
      _
    // Predicated region
    $region78: #{tpu_custom_call.1} parent=1 // pred_check
      _
    $region79: #{tpu_custom_call.1} parent=1 // pred_check_branch
      %66 = sbr.rel (0) target = $region81
    $region80: #{tpu_custom_call.1} parent=1 // pred_region
      _
    $region81: #{tpu_custom_call.1} parent=1 // pred_fallthru
      _
    // Predicated region
    $region82: #{tpu_custom_call.1} parent=1 // pred_check
      _
    $region83: #{tpu_custom_call.1} parent=1 // pred_check_branch
      %68 = sbr.rel (0) target = $region85
    $region84: #{tpu_custom_call.1} parent=1 // pred_region
      _
    $region85: #{tpu_custom_call.1} parent=1 // pred_fallthru
      _
    %v69 = vld [vmem:[%s0] sm:$0xff]
    %v70 = vld [vmem:[%s0 + $0x8] sm:$0xff]
    %v71 = vld [vmem:[%s1] sm:$0xff]
    %v72 = vld [vmem:[%s1 + $0x8] sm:$0xf]
    %v73 = vld [vmem:[%s1 + $0x10] sm:$0xff]
    %v74 = vld [vmem:[%s1 + $0x18] sm:$0xf]
    %v75 = vld [vmem:[%s2] sm:$0x1]
    %v76 = vld [vmem:[%s2 + $0x1] sm:$0x1]
    %v77 = vld [vmem:[%s2 + $0x2] sm:$0x1]
    %v78 = vld [vmem:[%s2 + $0x3] sm:$0x1]
    %v79 = vld [vmem:[%s2 + $0x4] sm:$0x1]
    %v80 = vld [vmem:[%s2 + $0x5] sm:$0x1]
    %v81 = vld [vmem:[%s2 + $0x6] sm:$0x1]
    %v82 = vld [vmem:[%s2 + $0x7] sm:$0x1]
    %v83 = vlaneseq
    %v84 = vshrl.u32 %v83, 7
    %v85 = vlaneseq
    %v86 = vand.u32 %v85, 127
    %vm87 = vcmp.gt.s32.totalorder %v86, %v84
    %v88 = vld [vmem:[%s3] sm:$0xff]
    %v89 = vld [vmem:[%s3 + $0x8] sm:$0xff]
    %v90 = vld [vmem:[%s3 + $0x10] sm:$0xff]
    %v91 = vld [vmem:[%s3 + $0x18] sm:$0xff]
    %v92 = vld [vmem:[%s3 + $0x20] sm:$0xff]
    %v93 = vld [vmem:[%s3 + $0x28] sm:$0xff]
    %v94 = vld [vmem:[%s3 + $0x30] sm:$0xff]
    %v95 = vld [vmem:[%s3 + $0x38] sm:$0xff]
    %v96 = vld [vmem:[%s3 + $0x40] sm:$0xff]
    %v97 = vld [vmem:[%s3 + $0x48] sm:$0xff]
    %v98 = vld [vmem:[%s3 + $0x50] sm:$0xff]
    %v99 = vld [vmem:[%s3 + $0x58] sm:$0xff]
    %v100 = vld [vmem:[%s3 + $0x60] sm:$0xff]
    %v101 = vld [vmem:[%s3 + $0x68] sm:$0xff]
    %v102 = vld [vmem:[%s3 + $0x70] sm:$0xff]
    %v103 = vld [vmem:[%s3 + $0x78] sm:$0xff]
    %v104 = vld [vmem:[%s4] sm:$0xff]
    %v105 = vld [vmem:[%s4 + $0x8] sm:$0xff]
    %v106 = vld [vmem:[%s4 + $0x10] sm:$0xff]
    %v107 = vld [vmem:[%s4 + $0x18] sm:$0xff]
    %v108 = vld [vmem:[%s4 + $0x20] sm:$0xff]
    %v109 = vld [vmem:[%s4 + $0x28] sm:$0xff]
    %v110 = vld [vmem:[%s4 + $0x30] sm:$0xff]
    %v111 = vld [vmem:[%s4 + $0x38] sm:$0xff]
    %v112 = vld [vmem:[%s4 + $0x40] sm:$0xff]
    %v113 = vld [vmem:[%s4 + $0x48] sm:$0xff]
    %v114 = vld [vmem:[%s4 + $0x50] sm:$0xff]
    %v115 = vld [vmem:[%s4 + $0x58] sm:$0xff]
    %v116 = vld [vmem:[%s4 + $0x60] sm:$0xff]
    %v117 = vld [vmem:[%s4 + $0x68] sm:$0xff]
    %v118 = vld [vmem:[%s4 + $0x70] sm:$0xff]
    %v119 = vld [vmem:[%s4 + $0x78] sm:$0xff]
    %v120 = vld [vmem:[%s5] sm:$0xff]
    %v121 = vld [vmem:[%s5 + $0x8] sm:$0xff]
    %v122 = vld [vmem:[%s5 + $0x10] sm:$0xff]
    %v123 = vld [vmem:[%s5 + $0x18] sm:$0xff]
    %v124 = vld [vmem:[%s5 + $0x20] sm:$0xff]
    %v125 = vld [vmem:[%s5 + $0x28] sm:$0xff]
    %v126 = vld [vmem:[%s5 + $0x30] sm:$0xff]
    %v127 = vld [vmem:[%s5 + $0x38] sm:$0xff]
    %v128 = vld [vmem:[%s5 + $0x40] sm:$0xff]
    %v129 = vld [vmem:[%s5 + $0x48] sm:$0xff]
    %v130 = vld [vmem:[%s5 + $0x50] sm:$0xff]
    %v131 = vld [vmem:[%s5 + $0x58] sm:$0xff]
    %v132 = vld [vmem:[%s5 + $0x60] sm:$0xff]
    %v133 = vld [vmem:[%s5 + $0x68] sm:$0xff]
    %v134 = vld [vmem:[%s5 + $0x70] sm:$0xff]
    %v135 = vld [vmem:[%s5 + $0x78] sm:$0xff]
    %v136 = vld [vmem:[%s6] sm:$0xff]
    %v137 = vld [vmem:[%s6 + $0x8] sm:$0xff]
    %v138 = vld [vmem:[%s6 + $0x10] sm:$0xff]
    %v139 = vld [vmem:[%s6 + $0x18] sm:$0xff]
    %vm140 = vcmask 261120
    %v142 = vsel %vm140, %v69, 0
    %144 = vmatprep.subr.mxu0 0.0
    %145 = vmatpush1.msra.mxu0 %v88
    %146 = vmatprep.subr.mxu0 0.0
    %147 = vmatpush1.msra.mxu0 %v89
    %148 = vmatprep.subr.mxu0 0.0
    %149 = vmatpush1.msra.mxu0 %v90
    %150 = vmatprep.subr.mxu0 0.0
    %151 = vmatpush1.msra.mxu0 %v91
    %152 = vmatprep.subr.mxu0 0.0
    %153 = vmatpush1.msra.mxu0 0.0
    %154 = vmatprep.subr.mxu0 0.0
    %155 = vmatpush1.msra.mxu0 0.0
    %156 = vmatprep.subr.mxu0 0.0
    %157 = vmatpush1.msra.mxu0 0.0
    %158 = vmatprep.subr.mxu0 0.0
    %159 = vmatpush1.msra.mxu0 0.0
    %160 = vmatprep.subr.mxu0 0.0
    %161 = vmatpush1.msra.mxu0 0.0
    %162 = vmatprep.subr.mxu0 0.0
    %163 = vmatpush1.msra.mxu0 0.0
    %164 = vmatprep.subr.mxu0 0.0
    %165 = vmatpush1.msra.mxu0 0.0
    %166 = vmatprep.subr.mxu0 0.0
    %167 = vmatpush1.msra.mxu0 0.0
    %168 = vmatprep.subr.mxu0 0.0
    %169 = vmatpush1.msra.mxu0 0.0
    %170 = vmatprep.subr.mxu0 0.0
    %171 = vmatpush1.msra.mxu0 0.0
    %172 = vmatprep.subr.mxu0 0.0
    %173 = vmatpush1.msra.mxu0 0.0
    %174 = vmatprep.subr.mxu0 0.0
    %175 = vmatpush1.msra.mxu0 0.0
    %176 = vmatprep.subr.mxu0 0.0
    %177 = vmatpush1.msra.mxu0 0.0
    %178 = vmatprep.subr.mxu0 0.0
    %179 = vmatpush1.msra.mxu0 0.0
    %180 = vmatprep.subr.mxu0 0.0
    %181 = vmatpush1.msra.mxu0 0.0
    %182 = vmatprep.subr.mxu0 0.0
    %183 = vmatpush1.msra.mxu0 0.0
    %184 = vmatprep.subr.mxu0 0.0
    %185 = vmatpush1.msra.mxu0 0.0
    %186 = vmatprep.subr.mxu0 0.0
    %187 = vmatpush1.msra.mxu0 0.0
    %188 = vmatprep.subr.mxu0 0.0
    %189 = vmatpush1.msra.mxu0 0.0
    %190 = vmatprep.subr.mxu0 0.0
    %191 = vmatpush1.msra.mxu0 0.0
    %192 = vmatprep.subr.mxu0 0.0
    %193 = vmatpush1.msra.mxu0 0.0
    %194 = vmatprep.subr.mxu0 0.0
    %195 = vmatpush1.msra.mxu0 0.0
    %196 = vmatprep.subr.mxu0 0.0
    %197 = vmatpush1.msra.mxu0 0.0
    %198 = vmatprep.subr.mxu0 0.0
    %199 = vmatpush1.msra.mxu0 0.0
    %200 = vmatprep.subr.mxu0 0.0
    %201 = vmatpush1.msra.mxu0 0.0
    %202 = vmatprep.subr.mxu0 0.0
    %203 = vmatpush1.msra.mxu0 0.0
    %204 = vmatprep.subr.mxu0 0.0
    %205 = vmatpush1.msra.mxu0 0.0
    %206 = vmatprep.subr.mxu0 0.0
    %207 = vmatpush1.msra.mxu0 0.0
    %208 = vmatprep.mubr.f32.mxu0 0.0
    %209 = vmatmul.mubr.f32.gmra.mrb[0].mxu0 %v142
    %v210 = vpop.f32.mrb[0].mxu0
    %v211 = vadd.f32 0.0, %v210
    %v212 = vpop.f32.mrb[0].mxu0
    %213 = vdwg.mxu0
    %214 = vmatprep.subr.mxu0 0.0
    %215 = vmatpush1.msra.mxu0 %v92
    %216 = vmatprep.subr.mxu0 0.0
    %217 = vmatpush1.msra.mxu0 %v93
    %218 = vmatprep.subr.mxu0 0.0
    %219 = vmatpush1.msra.mxu0 %v94
    %220 = vmatprep.subr.mxu0 0.0
    %221 = vmatpush1.msra.mxu0 %v95
    %222 = vmatprep.subr.mxu0 0.0
    %223 = vmatpush1.msra.mxu0 0.0
    %224 = vmatprep.subr.mxu0 0.0
    %225 = vmatpush1.msra.mxu0 0.0
    %226 = vmatprep.subr.mxu0 0.0
    %227 = vmatpush1.msra.mxu0 0.0
    %228 = vmatprep.subr.mxu0 0.0
    %229 = vmatpush1.msra.mxu0 0.0
    %230 = vmatprep.subr.mxu0 0.0
    %231 = vmatpush1.msra.mxu0 0.0
    %232 = vmatprep.subr.mxu0 0.0
    %233 = vmatpush1.msra.mxu0 0.0
    %234 = vmatprep.subr.mxu0 0.0
    %235 = vmatpush1.msra.mxu0 0.0
    %236 = vmatprep.subr.mxu0 0.0
    %237 = vmatpush1.msra.mxu0 0.0
    %238 = vmatprep.subr.mxu0 0.0
    %239 = vmatpush1.msra.mxu0 0.0
    %240 = vmatprep.subr.mxu0 0.0
    %241 = vmatpush1.msra.mxu0 0.0
    %242 = vmatprep.subr.mxu0 0.0
    %243 = vmatpush1.msra.mxu0 0.0
    %244 = vmatprep.subr.mxu0 0.0
    %245 = vmatpush1.msra.mxu0 0.0
    %246 = vmatprep.subr.mxu0 0.0
    %247 = vmatpush1.msra.mxu0 0.0
    %248 = vmatprep.subr.mxu0 0.0
    %249 = vmatpush1.msra.mxu0 0.0
    %250 = vmatprep.subr.mxu0 0.0
    %251 = vmatpush1.msra.mxu0 0.0
    %252 = vmatprep.subr.mxu0 0.0
    %253 = vmatpush1.msra.mxu0 0.0
    %254 = vmatprep.subr.mxu0 0.0
    %255 = vmatpush1.msra.mxu0 0.0
    %256 = vmatprep.subr.mxu0 0.0
    %257 = vmatpush1.msra.mxu0 0.0
    %258 = vmatprep.subr.mxu0 0.0
    %259 = vmatpush1.msra.mxu0 0.0
    %260 = vmatprep.subr.mxu0 0.0
    %261 = vmatpush1.msra.mxu0 0.0
    %262 = vmatprep.subr.mxu0 0.0
    %263 = vmatpush1.msra.mxu0 0.0
    %264 = vmatprep.subr.mxu0 0.0
    %265 = vmatpush1.msra.mxu0 0.0
    %266 = vmatprep.subr.mxu0 0.0
    %267 = vmatpush1.msra.mxu0 0.0
    %268 = vmatprep.subr.mxu0 0.0
    %269 = vmatpush1.msra.mxu0 0.0
    %270 = vmatprep.subr.mxu0 0.0
    %271 = vmatpush1.msra.mxu0 0.0
    %272 = vmatprep.subr.mxu0 0.0
    %273 = vmatpush1.msra.mxu0 0.0
    %274 = vmatprep.subr.mxu0 0.0
    %275 = vmatpush1.msra.mxu0 0.0
    %276 = vmatprep.subr.mxu0 0.0
    %277 = vmatpush1.msra.mxu0 0.0
    %278 = vmatprep.mubr.f32.mxu0 0.0
    %279 = vmatmul.mubr.f32.gmra.mrb[0].mxu0 %v142
    %v280 = vpop.f32.mrb[0].mxu0
    %v281 = vadd.f32 0.0, %v280
    %v282 = vpop.f32.mrb[0].mxu0
    %283 = vdwg.mxu0
    %284 = vmatprep.subr.mxu0 0.0
    %285 = vmatpush1.msra.mxu0 %v96
    %286 = vmatprep.subr.mxu0 0.0
    %287 = vmatpush1.msra.mxu0 %v97
    %288 = vmatprep.subr.mxu0 0.0
    %289 = vmatpush1.msra.mxu0 %v98
    %290 = vmatprep.subr.mxu0 0.0
    %291 = vmatpush1.msra.mxu0 %v99
    %292 = vmatprep.subr.mxu0 0.0
    %293 = vmatpush1.msra.mxu0 0.0
    %294 = vmatprep.subr.mxu0 0.0
    %295 = vmatpush1.msra.mxu0 0.0
    %296 = vmatprep.subr.mxu0 0.0
    %297 = vmatpush1.msra.mxu0 0.0
    %298 = vmatprep.subr.mxu0 0.0
    %299 = vmatpush1.msra.mxu0 0.0
    %300 = vmatprep.subr.mxu0 0.0
    %301 = vmatpush1.msra.mxu0 0.0
    %302 = vmatprep.subr.mxu0 0.0
    %303 = vmatpush1.msra.mxu0 0.0
    %304 = vmatprep.subr.mxu0 0.0
    %305 = vmatpush1.msra.mxu0 0.0
    %306 = vmatprep.subr.mxu0 0.0
    %307 = vmatpush1.msra.mxu0 0.0
    %308 = vmatprep.subr.mxu0 0.0
    %309 = vmatpush1.msra.mxu0 0.0
    %310 = vmatprep.subr.mxu0 0.0
    %311 = vmatpush1.msra.mxu0 0.0
    %312 = vmatprep.subr.mxu0 0.0
    %313 = vmatpush1.msra.mxu0 0.0
    %314 = vmatprep.subr.mxu0 0.0
    %315 = vmatpush1.msra.mxu0 0.0
    %316 = vmatprep.subr.mxu0 0.0
    %317 = vmatpush1.msra.mxu0 0.0
    %318 = vmatprep.subr.mxu0 0.0
    %319 = vmatpush1.msra.mxu0 0.0
    %320 = vmatprep.subr.mxu0 0.0
    %321 = vmatpush1.msra.mxu0 0.0
    %322 = vmatprep.subr.mxu0 0.0
    %323 = vmatpush1.msra.mxu0 0.0
    %324 = vmatprep.subr.mxu0 0.0
    %325 = vmatpush1.msra.mxu0 0.0
    %326 = vmatprep.subr.mxu0 0.0
    %327 = vmatpush1.msra.mxu0 0.0
    %328 = vmatprep.subr.mxu0 0.0
    %329 = vmatpush1.msra.mxu0 0.0
    %330 = vmatprep.subr.mxu0 0.0
    %331 = vmatpush1.msra.mxu0 0.0
    %332 = vmatprep.subr.mxu0 0.0
    %333 = vmatpush1.msra.mxu0 0.0
    %334 = vmatprep.subr.mxu0 0.0
    %335 = vmatpush1.msra.mxu0 0.0
    %336 = vmatprep.subr.mxu0 0.0
    %337 = vmatpush1.msra.mxu0 0.0
    %338 = vmatprep.subr.mxu0 0.0
    %339 = vmatpush1.msra.mxu0 0.0
    %340 = vmatprep.subr.mxu0 0.0
    %341 = vmatpush1.msra.mxu0 0.0
    %342 = vmatprep.subr.mxu0 0.0
    %343 = vmatpush1.msra.mxu0 0.0
    %344 = vmatprep.subr.mxu0 0.0
    %345 = vmatpush1.msra.mxu0 0.0
    %346 = vmatprep.subr.mxu0 0.0
    %347 = vmatpush1.msra.mxu0 0.0
    %348 = vmatprep.mubr.f32.mxu0 0.0
    %349 = vmatmul.mubr.f32.gmra.mrb[0].mxu0 %v142
    %v350 = vpop.f32.mrb[0].mxu0
    %v351 = vadd.f32 0.0, %v350
    %v352 = vpop.f32.mrb[0].mxu0
    %353 = vdwg.mxu0
    %354 = vmatprep.subr.mxu0 0.0
    %355 = vmatpush1.msra.mxu0 %v100
    %356 = vmatprep.subr.mxu0 0.0
    %357 = vmatpush1.msra.mxu0 %v101
    %358 = vmatprep.subr.mxu0 0.0
    %359 = vmatpush1.msra.mxu0 %v102
    %360 = vmatprep.subr.mxu0 0.0
    %361 = vmatpush1.msra.mxu0 %v103
    %362 = vmatprep.subr.mxu0 0.0
    %363 = vmatpush1.msra.mxu0 0.0
    %364 = vmatprep.subr.mxu0 0.0
    %365 = vmatpush1.msra.mxu0 0.0
    %366 = vmatprep.subr.mxu0 0.0
    %367 = vmatpush1.msra.mxu0 0.0
    %368 = vmatprep.subr.mxu0 0.0
    %369 = vmatpush1.msra.mxu0 0.0
    %370 = vmatprep.subr.mxu0 0.0
    %371 = vmatpush1.msra.mxu0 0.0
    %372 = vmatprep.subr.mxu0 0.0
    %373 = vmatpush1.msra.mxu0 0.0
    %374 = vmatprep.subr.mxu0 0.0
    %375 = vmatpush1.msra.mxu0 0.0
    %376 = vmatprep.subr.mxu0 0.0
    %377 = vmatpush1.msra.mxu0 0.0
    %378 = vmatprep.subr.mxu0 0.0
    %379 = vmatpush1.msra.mxu0 0.0
    %380 = vmatprep.subr.mxu0 0.0
    %381 = vmatpush1.msra.mxu0 0.0
    %382 = vmatprep.subr.mxu0 0.0
    %383 = vmatpush1.msra.mxu0 0.0
    %384 = vmatprep.subr.mxu0 0.0
    %385 = vmatpush1.msra.mxu0 0.0
    %386 = vmatprep.subr.mxu0 0.0
    %387 = vmatpush1.msra.mxu0 0.0
    %388 = vmatprep.subr.mxu0 0.0
    %389 = vmatpush1.msra.mxu0 0.0
    %390 = vmatprep.subr.mxu0 0.0
    %391 = vmatpush1.msra.mxu0 0.0
    %392 = vmatprep.subr.mxu0 0.0
    %393 = vmatpush1.msra.mxu0 0.0
    %394 = vmatprep.subr.mxu0 0.0
    %395 = vmatpush1.msra.mxu0 0.0
    %396 = vmatprep.subr.mxu0 0.0
    %397 = vmatpush1.msra.mxu0 0.0
    %398 = vmatprep.subr.mxu0 0.0
    %399 = vmatpush1.msra.mxu0 0.0
    %400 = vmatprep.subr.mxu0 0.0
    %401 = vmatpush1.msra.mxu0 0.0
    %402 = vmatprep.subr.mxu0 0.0
    %403 = vmatpush1.msra.mxu0 0.0
    %404 = vmatprep.subr.mxu0 0.0
    %405 = vmatpush1.msra.mxu0 0.0
    %406 = vmatprep.subr.mxu0 0.0
    %407 = vmatpush1.msra.mxu0 0.0
    %408 = vmatprep.subr.mxu0 0.0
    %409 = vmatpush1.msra.mxu0 0.0
    %410 = vmatprep.subr.mxu0 0.0
    %411 = vmatpush1.msra.mxu0 0.0
    %412 = vmatprep.subr.mxu0 0.0
    %413 = vmatpush1.msra.mxu0 0.0
    %414 = vmatprep.subr.mxu0 0.0
    %415 = vmatpush1.msra.mxu0 0.0
    %416 = vmatprep.subr.mxu0 0.0
    %417 = vmatpush1.msra.mxu0 0.0
    %418 = vmatprep.mubr.f32.mxu0 0.0
    %419 = vmatmul.mubr.f32.gmra.mrb[0].mxu0 %v142
    %v420 = vpop.f32.mrb[0].mxu0
    %v421 = vadd.f32 0.0, %v420
    %v422 = vpop.f32.mrb[0].mxu0
    %423 = vdwg.mxu0
    %v425 = vsel %vm140, %v70, 0
    %427 = vmatprep.subr.mxu0 0.0
    %428 = vmatpush1.msra.mxu0 %v88
    %429 = vmatprep.subr.mxu0 0.0
    %430 = vmatpush1.msra.mxu0 %v89
    %431 = vmatprep.subr.mxu0 0.0
    %432 = vmatpush1.msra.mxu0 %v90
    %433 = vmatprep.subr.mxu0 0.0
    %434 = vmatpush1.msra.mxu0 %v91
    %435 = vmatprep.subr.mxu0 0.0
    %436 = vmatpush1.msra.mxu0 0.0
    %437 = vmatprep.subr.mxu0 0.0
    %438 = vmatpush1.msra.mxu0 0.0
    %439 = vmatprep.subr.mxu0 0.0
    %440 = vmatpush1.msra.mxu0 0.0
    %441 = vmatprep.subr.mxu0 0.0
    %442 = vmatpush1.msra.mxu0 0.0
    %443 = vmatprep.subr.mxu0 0.0
    %444 = vmatpush1.msra.mxu0 0.0
    %445 = vmatprep.subr.mxu0 0.0
    %446 = vmatpush1.msra.mxu0 0.0
    %447 = vmatprep.subr.mxu0 0.0
    %448 = vmatpush1.msra.mxu0 0.0
    %449 = vmatprep.subr.mxu0 0.0
    %450 = vmatpush1.msra.mxu0 0.0
    %451 = vmatprep.subr.mxu0 0.0
    %452 = vmatpush1.msra.mxu0 0.0
    %453 = vmatprep.subr.mxu0 0.0
    %454 = vmatpush1.msra.mxu0 0.0
    %455 = vmatprep.subr.mxu0 0.0
    %456 = vmatpush1.msra.mxu0 0.0
    %457 = vmatprep.subr.mxu0 0.0
    %458 = vmatpush1.msra.mxu0 0.0
    %459 = vmatprep.subr.mxu0 0.0
    %460 = vmatpush1.msra.mxu0 0.0
    %461 = vmatprep.subr.mxu0 0.0
    %462 = vmatpush1.msra.mxu0 0.0
    %463 = vmatprep.subr.mxu0 0.0
    %464 = vmatpush1.msra.mxu0 0.0
    %465 = vmatprep.subr.mxu0 0.0
    %466 = vmatpush1.msra.mxu0 0.0
    %467 = vmatprep.subr.mxu0 0.0
    %468 = vmatpush1.msra.mxu0 0.0
    %469 = vmatprep.subr.mxu0 0.0
    %470 = vmatpush1.msra.mxu0 0.0
    %471 = vmatprep.subr.mxu0 0.0
    %472 = vmatpush1.msra.mxu0 0.0
    %473 = vmatprep.subr.mxu0 0.0
    %474 = vmatpush1.msra.mxu0 0.0
    %475 = vmatprep.subr.mxu0 0.0
    %476 = vmatpush1.msra.mxu0 0.0
    %477 = vmatprep.subr.mxu0 0.0
    %478 = vmatpush1.msra.mxu0 0.0
    %479 = vmatprep.subr.mxu0 0.0
    %480 = vmatpush1.msra.mxu0 0.0
    %481 = vmatprep.subr.mxu0 0.0
    %482 = vmatpush1.msra.mxu0 0.0
    %483 = vmatprep.subr.mxu0 0.0
    %484 = vmatpush1.msra.mxu0 0.0
    %485 = vmatprep.subr.mxu0 0.0
    %486 = vmatpush1.msra.mxu0 0.0
    %487 = vmatprep.subr.mxu0 0.0
    %488 = vmatpush1.msra.mxu0 0.0
    %489 = vmatprep.subr.mxu0 0.0
    %490 = vmatpush1.msra.mxu0 0.0
    %491 = vmatprep.mubr.f32.mxu0 0.0
    %492 = vmatmul.mubr.f32.gmra.mrb[0].mxu0 %v425
    %v493 = vpop.f32.mrb[0].mxu0
    %v494 = vadd.f32 0.0, %v493
    %v495 = vpop.f32.mrb[0].mxu0
    %496 = vdwg.mxu0
    %497 = vmatprep.subr.mxu0 0.0
    %498 = vmatpush1.msra.mxu0 %v92
    %499 = vmatprep.subr.mxu0 0.0
    %500 = vmatpush1.msra.mxu0 %v93
    %501 = vmatprep.subr.mxu0 0.0
    %502 = vmatpush1.msra.mxu0 %v94
    %503 = vmatprep.subr.mxu0 0.0
    %504 = vmatpush1.msra.mxu0 %v95
    %505 = vmatprep.subr.mxu0 0.0
    %506 = vmatpush1.msra.mxu0 0.0
    %507 = vmatprep.subr.mxu0 0.0
    %508 = vmatpush1.msra.mxu0 0.0
    %509 = vmatprep.subr.mxu0 0.0
    %510 = vmatpush1.msra.mxu0 0.0
    %511 = vmatprep.subr.mxu0 0.0
    %512 = vmatpush1.msra.mxu0 0.0
    %513 = vmatprep.subr.mxu0 0.0
    %514 = vmatpush1.msra.mxu0 0.0
    %515 = vmatprep.subr.mxu0 0.0
    %516 = vmatpush1.msra.mxu0 0.0
    %517 = vmatprep.subr.mxu0 0.0
    %518 = vmatpush1.msra.mxu0 0.0
    %519 = vmatprep.subr.mxu0 0.0
    %520 = vmatpush1.msra.mxu0 0.0
    %521 = vmatprep.subr.mxu0 0.0
    %522 = vmatpush1.msra.mxu0 0.0
    %523 = vmatprep.subr.mxu0 0.0
    %524 = vmatpush1.msra.mxu0 0.0
    %525 = vmatprep.subr.mxu0 0.0
    %526 = vmatpush1.msra.mxu0 0.0
    %527 = vmatprep.subr.mxu0 0.0
    %528 = vmatpush1.msra.mxu0 0.0
    %529 = vmatprep.subr.mxu0 0.0
    %530 = vmatpush1.msra.mxu0 0.0
    %531 = vmatprep.subr.mxu0 0.0
    %532 = vmatpush1.msra.mxu0 0.0
    %533 = vmatprep.subr.mxu0 0.0
    %534 = vmatpush1.msra.mxu0 0.0
    %535 = vmatprep.subr.mxu0 0.0
    %536 = vmatpush1.msra.mxu0 0.0
    %537 = vmatprep.subr.mxu0 0.0
    %538 = vmatpush1.msra.mxu0 0.0
    %539 = vmatprep.subr.mxu0 0.0
    %540 = vmatpush1.msra.mxu0 0.0
    %541 = vmatprep.subr.mxu0 0.0
    %542 = vmatpush1.msra.mxu0 0.0
    %543 = vmatprep.subr.mxu0 0.0
    %544 = vmatpush1.msra.mxu0 0.0
    %545 = vmatprep.subr.mxu0 0.0
    %546 = vmatpush1.msra.mxu0 0.0
    %547 = vmatprep.subr.mxu0 0.0
    %548 = vmatpush1.msra.mxu0 0.0
    %549 = vmatprep.subr.mxu0 0.0
    %550 = vmatpush1.msra.mxu0 0.0
    %551 = vmatprep.subr.mxu0 0.0
    %552 = vmatpush1.msra.mxu0 0.0
    %553 = vmatprep.subr.mxu0 0.0
    %554 = vmatpush1.msra.mxu0 0.0
    %555 = vmatprep.subr.mxu0 0.0
    %556 = vmatpush1.msra.mxu0 0.0
    %557 = vmatprep.subr.mxu0 0.0
    %558 = vmatpush1.msra.mxu0 0.0
    %559 = vmatprep.subr.mxu0 0.0
    %560 = vmatpush1.msra.mxu0 0.0
    %561 = vmatprep.mubr.f32.mxu0 0.0
    %562 = vmatmul.mubr.f32.gmra.mrb[0].mxu0 %v425
    %v563 = vpop.f32.mrb[0].mxu0
    %v564 = vadd.f32 0.0, %v563
    %v565 = vpop.f32.mrb[0].mxu0
    %566 = vdwg.mxu0
    %567 = vmatprep.subr.mxu0 0.0
    %568 = vmatpush1.msra.mxu0 %v96
    %569 = vmatprep.subr.mxu0 0.0
    %570 = vmatpush1.msra.mxu0 %v97
    %571 = vmatprep.subr.mxu0 0.0
    %572 = vmatpush1.msra.mxu0 %v98
    %573 = vmatprep.subr.mxu0 0.0
    %574 = vmatpush1.msra.mxu0 %v99
    %575 = vmatprep.subr.mxu0 0.0
    %576 = vmatpush1.msra.mxu0 0.0
    %577 = vmatprep.subr.mxu0 0.0
    %578 = vmatpush1.msra.mxu0 0.0
    %579 = vmatprep.subr.mxu0 0.0
    %580 = vmatpush1.msra.mxu0 0.0
    %581 = vmatprep.subr.mxu0 0.0
    %582 = vmatpush1.msra.mxu0 0.0
    %583 = vmatprep.subr.mxu0 0.0
    %584 = vmatpush1.msra.mxu0 0.0
    %585 = vmatprep.subr.mxu0 0.0
    %586 = vmatpush1.msra.mxu0 0.0
    %587 = vmatprep.subr.mxu0 0.0
    %588 = vmatpush1.msra.mxu0 0.0
    %589 = vmatprep.subr.mxu0 0.0
    %590 = vmatpush1.msra.mxu0 0.0
    %591 = vmatprep.subr.mxu0 0.0
    %592 = vmatpush1.msra.mxu0 0.0
    %593 = vmatprep.subr.mxu0 0.0
    %594 = vmatpush1.msra.mxu0 0.0
    %595 = vmatprep.subr.mxu0 0.0
    %596 = vmatpush1.msra.mxu0 0.0
    %597 = vmatprep.subr.mxu0 0.0
    %598 = vmatpush1.msra.mxu0 0.0
    %599 = vmatprep.subr.mxu0 0.0
    %600 = vmatpush1.msra.mxu0 0.0
    %601 = vmatprep.subr.mxu0 0.0
    %602 = vmatpush1.msra.mxu0 0.0
    %603 = vmatprep.subr.mxu0 0.0
    %604 = vmatpush1.msra.mxu0 0.0
    %605 = vmatprep.subr.mxu0 0.0
    %606 = vmatpush1.msra.mxu0 0.0
    %607 = vmatprep.subr.mxu0 0.0
    %608 = vmatpush1.msra.mxu0 0.0
    %609 = vmatprep.subr.mxu0 0.0
    %610 = vmatpush1.msra.mxu0 0.0
    %611 = vmatprep.subr.mxu0 0.0
    %612 = vmatpush1.msra.mxu0 0.0
    %613 = vmatprep.subr.mxu0 0.0
    %614 = vmatpush1.msra.mxu0 0.0
    %615 = vmatprep.subr.mxu0 0.0
    %616 = vmatpush1.msra.mxu0 0.0
    %617 = vmatprep.subr.mxu0 0.0
    %618 = vmatpush1.msra.mxu0 0.0
    %619 = vmatprep.subr.mxu0 0.0
    %620 = vmatpush1.msra.mxu0 0.0
    %621 = vmatprep.subr.mxu0 0.0
    %622 = vmatpush1.msra.mxu0 0.0
    %623 = vmatprep.subr.mxu0 0.0
    %624 = vmatpush1.msra.mxu0 0.0
    %625 = vmatprep.subr.mxu0 0.0
    %626 = vmatpush1.msra.mxu0 0.0
    %627 = vmatprep.subr.mxu0 0.0
    %628 = vmatpush1.msra.mxu0 0.0
    %629 = vmatprep.subr.mxu0 0.0
    %630 = vmatpush1.msra.mxu0 0.0
    %631 = vmatprep.mubr.f32.mxu0 0.0
    %632 = vmatmul.mubr.f32.gmra.mrb[0].mxu0 %v425
    %v633 = vpop.f32.mrb[0].mxu0
    %v634 = vadd.f32 0.0, %v633
    %v635 = vpop.f32.mrb[0].mxu0
    %636 = vdwg.mxu0
    %637 = vmatprep.subr.mxu0 0.0
    %638 = vmatpush1.msra.mxu0 %v100
    %639 = vmatprep.subr.mxu0 0.0
    %640 = vmatpush1.msra.mxu0 %v101
    %641 = vmatprep.subr.mxu0 0.0
    %642 = vmatpush1.msra.mxu0 %v102
    %643 = vmatprep.subr.mxu0 0.0
    %644 = vmatpush1.msra.mxu0 %v103
    %645 = vmatprep.subr.mxu0 0.0
    %646 = vmatpush1.msra.mxu0 0.0
    %647 = vmatprep.subr.mxu0 0.0
    %648 = vmatpush1.msra.mxu0 0.0
    %649 = vmatprep.subr.mxu0 0.0
    %650 = vmatpush1.msra.mxu0 0.0
    %651 = vmatprep.subr.mxu0 0.0
    %652 = vmatpush1.msra.mxu0 0.0
    %653 = vmatprep.subr.mxu0 0.0
    %654 = vmatpush1.msra.mxu0 0.0
    %655 = vmatprep.subr.mxu0 0.0
    %656 = vmatpush1.msra.mxu0 0.0
    %657 = vmatprep.subr.mxu0 0.0
    %658 = vmatpush1.msra.mxu0 0.0
    %659 = vmatprep.subr.mxu0 0.0
    %660 = vmatpush1.msra.mxu0 0.0
    %661 = vmatprep.subr.mxu0 0.0
    %662 = vmatpush1.msra.mxu0 0.0
    %663 = vmatprep.subr.mxu0 0.0
    %664 = vmatpush1.msra.mxu0 0.0
    %665 = vmatprep.subr.mxu0 0.0
    %666 = vmatpush1.msra.mxu0 0.0
    %667 = vmatprep.subr.mxu0 0.0
    %668 = vmatpush1.msra.mxu0 0.0
    %669 = vmatprep.subr.mxu0 0.0
    %670 = vmatpush1.msra.mxu0 0.0
    %671 = vmatprep.subr.mxu0 0.0
    %672 = vmatpush1.msra.mxu0 0.0
    %673 = vmatprep.subr.mxu0 0.0
    %674 = vmatpush1.msra.mxu0 0.0
    %675 = vmatprep.subr.mxu0 0.0
    %676 = vmatpush1.msra.mxu0 0.0
    %677 = vmatprep.subr.mxu0 0.0
    %678 = vmatpush1.msra.mxu0 0.0
    %679 = vmatprep.subr.mxu0 0.0
    %680 = vmatpush1.msra.mxu0 0.0
    %681 = vmatprep.subr.mxu0 0.0
    %682 = vmatpush1.msra.mxu0 0.0
    %683 = vmatprep.subr.mxu0 0.0
    %684 = vmatpush1.msra.mxu0 0.0
    %685 = vmatprep.subr.mxu0 0.0
    %686 = vmatpush1.msra.mxu0 0.0
    %687 = vmatprep.subr.mxu0 0.0
    %688 = vmatpush1.msra.mxu0 0.0
    %689 = vmatprep.subr.mxu0 0.0
    %690 = vmatpush1.msra.mxu0 0.0
    %691 = vmatprep.subr.mxu0 0.0
    %692 = vmatpush1.msra.mxu0 0.0
    %693 = vmatprep.subr.mxu0 0.0
    %694 = vmatpush1.msra.mxu0 0.0
    %695 = vmatprep.subr.mxu0 0.0
    %696 = vmatpush1.msra.mxu0 0.0
    %697 = vmatprep.subr.mxu0 0.0
    %698 = vmatpush1.msra.mxu0 0.0
    %699 = vmatprep.subr.mxu0 0.0
    %700 = vmatpush1.msra.mxu0 0.0
    %701 = vmatprep.mubr.f32.mxu0 0.0
    %702 = vmatmul.mubr.f32.gmra.mrb[0].mxu0 %v425
    %v703 = vpop.f32.mrb[0].mxu0
    %v704 = vadd.f32 0.0, %v703
    %v705 = vpop.f32.mrb[0].mxu0
    %706 = vdwg.mxu0
    %707 = vmatprep.subr.mxu0 0.0
    %708 = vmatpush1.msra.mxu0 %v104
    %709 = vmatprep.subr.mxu0 0.0
    %710 = vmatpush1.msra.mxu0 %v105
    %711 = vmatprep.subr.mxu0 0.0
    %712 = vmatpush1.msra.mxu0 %v106
    %713 = vmatprep.subr.mxu0 0.0
    %714 = vmatpush1.msra.mxu0 %v107
    %715 = vmatprep.subr.mxu0 0.0
    %716 = vmatpush1.msra.mxu0 0.0
    %717 = vmatprep.subr.mxu0 0.0
    %718 = vmatpush1.msra.mxu0 0.0
    %719 = vmatprep.subr.mxu0 0.0
    %720 = vmatpush1.msra.mxu0 0.0
    %721 = vmatprep.subr.mxu0 0.0
    %722 = vmatpush1.msra.mxu0 0.0
    %723 = vmatprep.subr.mxu0 0.0
    %724 = vmatpush1.msra.mxu0 0.0
    %725 = vmatprep.subr.mxu0 0.0
    %726 = vmatpush1.msra.mxu0 0.0
    %727 = vmatprep.subr.mxu0 0.0
    %728 = vmatpush1.msra.mxu0 0.0
    %729 = vmatprep.subr.mxu0 0.0
    %730 = vmatpush1.msra.mxu0 0.0
    %731 = vmatprep.subr.mxu0 0.0
    %732 = vmatpush1.msra.mxu0 0.0
    %733 = vmatprep.subr.mxu0 0.0
    %734 = vmatpush1.msra.mxu0 0.0
    %735 = vmatprep.subr.mxu0 0.0
    %736 = vmatpush1.msra.mxu0 0.0
    %737 = vmatprep.subr.mxu0 0.0
    %738 = vmatpush1.msra.mxu0 0.0
    %739 = vmatprep.subr.mxu0 0.0
    %740 = vmatpush1.msra.mxu0 0.0
    %741 = vmatprep.subr.mxu0 0.0
    %742 = vmatpush1.msra.mxu0 0.0
    %743 = vmatprep.subr.mxu0 0.0
    %744 = vmatpush1.msra.mxu0 0.0
    %745 = vmatprep.subr.mxu0 0.0
    %746 = vmatpush1.msra.mxu0 0.0
    %747 = vmatprep.subr.mxu0 0.0
    %748 = vmatpush1.msra.mxu0 0.0
    %749 = vmatprep.subr.mxu0 0.0
    %750 = vmatpush1.msra.mxu0 0.0
    %751 = vmatprep.subr.mxu0 0.0
    %752 = vmatpush1.msra.mxu0 0.0
    %753 = vmatprep.subr.mxu0 0.0
    %754 = vmatpush1.msra.mxu0 0.0
    %755 = vmatprep.subr.mxu0 0.0
    %756 = vmatpush1.msra.mxu0 0.0
    %757 = vmatprep.subr.mxu0 0.0
    %758 = vmatpush1.msra.mxu0 0.0
    %759 = vmatprep.subr.mxu0 0.0
    %760 = vmatpush1.msra.mxu0 0.0
    %761 = vmatprep.subr.mxu0 0.0
    %762 = vmatpush1.msra.mxu0 0.0
    %763 = vmatprep.subr.mxu0 0.0
    %764 = vmatpush1.msra.mxu0 0.0
    %765 = vmatprep.subr.mxu0 0.0
    %766 = vmatpush1.msra.mxu0 0.0
    %767 = vmatprep.subr.mxu0 0.0
    %768 = vmatpush1.msra.mxu0 0.0
    %769 = vmatprep.subr.mxu0 0.0
    %770 = vmatpush1.msra.mxu0 0.0
    %771 = vmatprep.mubr.f32.mxu0 0.0
    %772 = vmatmul.mubr.f32.gmra.mrb[0].mxu0 %v142
    %v773 = vpop.f32.mrb[0].mxu0
    %v774 = vadd.f32 0.0, %v773
    %v775 = vpop.f32.mrb[0].mxu0
    %776 = vdwg.mxu0
    %777 = vmatprep.subr.mxu0 0.0
    %778 = vmatpush1.msra.mxu0 %v108
    %779 = vmatprep.subr.mxu0 0.0
    %780 = vmatpush1.msra.mxu0 %v109
    %781 = vmatprep.subr.mxu0 0.0
    %782 = vmatpush1.msra.mxu0 %v110
    %783 = vmatprep.subr.mxu0 0.0
    %784 = vmatpush1.msra.mxu0 %v111
    %785 = vmatprep.subr.mxu0 0.0
    %786 = vmatpush1.msra.mxu0 0.0
    %787 = vmatprep.subr.mxu0 0.0
    %788 = vmatpush1.msra.mxu0 0.0
    %789 = vmatprep.subr.mxu0 0.0
    %790 = vmatpush1.msra.mxu0 0.0
    %791 = vmatprep.subr.mxu0 0.0
    %792 = vmatpush1.msra.mxu0 0.0
    %793 = vmatprep.subr.mxu0 0.0
    %794 = vmatpush1.msra.mxu0 0.0
    %795 = vmatprep.subr.mxu0 0.0
    %796 = vmatpush1.msra.mxu0 0.0
    %797 = vmatprep.subr.mxu0 0.0
    %798 = vmatpush1.msra.mxu0 0.0
    %799 = vmatprep.subr.mxu0 0.0
    %800 = vmatpush1.msra.mxu0 0.0
    %801 = vmatprep.subr.mxu0 0.0
    %802 = vmatpush1.msra.mxu0 0.0
    %803 = vmatprep.subr.mxu0 0.0
    %804 = vmatpush1.msra.mxu0 0.0
    %805 = vmatprep.subr.mxu0 0.0
    %806 = vmatpush1.msra.mxu0 0.0
    %807 = vmatprep.subr.mxu0 0.0
    %808 = vmatpush1.msra.mxu0 0.0
    %809 = vmatprep.subr.mxu0 0.0
    %810 = vmatpush1.msra.mxu0 0.0
    %811 = vmatprep.subr.mxu0 0.0
    %812 = vmatpush1.msra.mxu0 0.0
    %813 = vmatprep.subr.mxu0 0.0
    %814 = vmatpush1.msra.mxu0 0.0
    %815 = vmatprep.subr.mxu0 0.0
    %816 = vmatpush1.msra.mxu0 0.0
    %817 = vmatprep.subr.mxu0 0.0
    %818 = vmatpush1.msra.mxu0 0.0
    %819 = vmatprep.subr.mxu0 0.0
    %820 = vmatpush1.msra.mxu0 0.0
    %821 = vmatprep.subr.mxu0 0.0
    %822 = vmatpush1.msra.mxu0 0.0
    %823 = vmatprep.subr.mxu0 0.0
    %824 = vmatpush1.msra.mxu0 0.0
    %825 = vmatprep.subr.mxu0 0.0
    %826 = vmatpush1.msra.mxu0 0.0
    %827 = vmatprep.subr.mxu0 0.0
    %828 = vmatpush1.msra.mxu0 0.0
    %829 = vmatprep.subr.mxu0 0.0
    %830 = vmatpush1.msra.mxu0 0.0
    %831 = vmatprep.subr.mxu0 0.0
    %832 = vmatpush1.msra.mxu0 0.0
    %833 = vmatprep.subr.mxu0 0.0
    %834 = vmatpush1.msra.mxu0 0.0
    %835 = vmatprep.subr.mxu0 0.0
    %836 = vmatpush1.msra.mxu0 0.0
    %837 = vmatprep.subr.mxu0 0.0
    %838 = vmatpush1.msra.mxu0 0.0
    %839 = vmatprep.subr.mxu0 0.0
    %840 = vmatpush1.msra.mxu0 0.0
    %841 = vmatprep.mubr.f32.mxu0 0.0
    %842 = vmatmul.mubr.f32.gmra.mrb[0].mxu0 %v142
    %v843 = vpop.f32.mrb[0].mxu0
    %v844 = vadd.f32 0.0, %v843
    %v845 = vpop.f32.mrb[0].mxu0
    %846 = vdwg.mxu0
    %847 = vmatprep.subr.mxu0 0.0
    %848 = vmatpush1.msra.mxu0 %v112
    %849 = vmatprep.subr.mxu0 0.0
    %850 = vmatpush1.msra.mxu0 %v113
    %851 = vmatprep.subr.mxu0 0.0
    %852 = vmatpush1.msra.mxu0 %v114
    %853 = vmatprep.subr.mxu0 0.0
    %854 = vmatpush1.msra.mxu0 %v115
    %855 = vmatprep.subr.mxu0 0.0
    %856 = vmatpush1.msra.mxu0 0.0
    %857 = vmatprep.subr.mxu0 0.0
    %858 = vmatpush1.msra.mxu0 0.0
    %859 = vmatprep.subr.mxu0 0.0
    %860 = vmatpush1.msra.mxu0 0.0
    %861 = vmatprep.subr.mxu0 0.0
    %862 = vmatpush1.msra.mxu0 0.0
    %863 = vmatprep.subr.mxu0 0.0
    %864 = vmatpush1.msra.mxu0 0.0
    %865 = vmatprep.subr.mxu0 0.0
    %866 = vmatpush1.msra.mxu0 0.0
    %867 = vmatprep.subr.mxu0 0.0
    %868 = vmatpush1.msra.mxu0 0.0
    %869 = vmatprep.subr.mxu0 0.0
    %870 = vmatpush1.msra.mxu0 0.0
    %871 = vmatprep.subr.mxu0 0.0
    %872 = vmatpush1.msra.mxu0 0.0
    %873 = vmatprep.subr.mxu0 0.0
    %874 = vmatpush1.msra.mxu0 0.0
    %875 = vmatprep.subr.mxu0 0.0
    %876 = vmatpush1.msra.mxu0 0.0
    %877 = vmatprep.subr.mxu0 0.0
    %878 = vmatpush1.msra.mxu0 0.0
    %879 = vmatprep.subr.mxu0 0.0
    %880 = vmatpush1.msra.mxu0 0.0
    %881 = vmatprep.subr.mxu0 0.0
    %882 = vmatpush1.msra.mxu0 0.0
    %883 = vmatprep.subr.mxu0 0.0
    %884 = vmatpush1.msra.mxu0 0.0
    %885 = vmatprep.subr.mxu0 0.0
    %886 = vmatpush1.msra.mxu0 0.0
    %887 = vmatprep.subr.mxu0 0.0
    %888 = vmatpush1.msra.mxu0 0.0
    %889 = vmatprep.subr.mxu0 0.0
    %890 = vmatpush1.msra.mxu0 0.0
    %891 = vmatprep.subr.mxu0 0.0
    %892 = vmatpush1.msra.mxu0 0.0
    %893 = vmatprep.subr.mxu0 0.0
    %894 = vmatpush1.msra.mxu0 0.0
    %895 = vmatprep.subr.mxu0 0.0
    %896 = vmatpush1.msra.mxu0 0.0
    %897 = vmatprep.subr.mxu0 0.0
    %898 = vmatpush1.msra.mxu0 0.0
    %899 = vmatprep.subr.mxu0 0.0
    %900 = vmatpush1.msra.mxu0 0.0
    %901 = vmatprep.subr.mxu0 0.0
    %902 = vmatpush1.msra.mxu0 0.0
    %903 = vmatprep.subr.mxu0 0.0
    %904 = vmatpush1.msra.mxu0 0.0
    %905 = vmatprep.subr.mxu0 0.0
    %906 = vmatpush1.msra.mxu0 0.0
    %907 = vmatprep.subr.mxu0 0.0
    %908 = vmatpush1.msra.mxu0 0.0
    %909 = vmatprep.subr.mxu0 0.0
    %910 = vmatpush1.msra.mxu0 0.0
    %911 = vmatprep.mubr.f32.mxu0 0.0
    %912 = vmatmul.mubr.f32.gmra.mrb[0].mxu0 %v142
    %v913 = vpop.f32.mrb[0].mxu0
    %v914 = vadd.f32 0.0, %v913
    %v915 = vpop.f32.mrb[0].mxu0
    %916 = vdwg.mxu0
    %917 = vmatprep.subr.mxu0 0.0
    %918 = vmatpush1.msra.mxu0 %v116
    %919 = vmatprep.subr.mxu0 0.0
    %920 = vmatpush1.msra.mxu0 %v117
    %921 = vmatprep.subr.mxu0 0.0
    %922 = vmatpush1.msra.mxu0 %v118
    %923 = vmatprep.subr.mxu0 0.0
    %924 = vmatpush1.msra.mxu0 %v119
    %925 = vmatprep.subr.mxu0 0.0
    %926 = vmatpush1.msra.mxu0 0.0
    %927 = vmatprep.subr.mxu0 0.0
    %928 = vmatpush1.msra.mxu0 0.0
    %929 = vmatprep.subr.mxu0 0.0
    %930 = vmatpush1.msra.mxu0 0.0
    %931 = vmatprep.subr.mxu0 0.0
    %932 = vmatpush1.msra.mxu0 0.0
    %933 = vmatprep.subr.mxu0 0.0
    %934 = vmatpush1.msra.mxu0 0.0
    %935 = vmatprep.subr.mxu0 0.0
    %936 = vmatpush1.msra.mxu0 0.0
    %937 = vmatprep.subr.mxu0 0.0
    %938 = vmatpush1.msra.mxu0 0.0
    %939 = vmatprep.subr.mxu0 0.0
    %940 = vmatpush1.msra.mxu0 0.0
    %941 = vmatprep.subr.mxu0 0.0
    %942 = vmatpush1.msra.mxu0 0.0
    %943 = vmatprep.subr.mxu0 0.0
    %944 = vmatpush1.msra.mxu0 0.0
    %945 = vmatprep.subr.mxu0 0.0
    %946 = vmatpush1.msra.mxu0 0.0
    %947 = vmatprep.subr.mxu0 0.0
    %948 = vmatpush1.msra.mxu0 0.0
    %949 = vmatprep.subr.mxu0 0.0
    %950 = vmatpush1.msra.mxu0 0.0
    %951 = vmatprep.subr.mxu0 0.0
    %952 = vmatpush1.msra.mxu0 0.0
    %953 = vmatprep.subr.mxu0 0.0
    %954 = vmatpush1.msra.mxu0 0.0
    %955 = vmatprep.subr.mxu0 0.0
    %956 = vmatpush1.msra.mxu0 0.0
    %957 = vmatprep.subr.mxu0 0.0
    %958 = vmatpush1.msra.mxu0 0.0
    %959 = vmatprep.subr.mxu0 0.0
    %960 = vmatpush1.msra.mxu0 0.0
    %961 = vmatprep.subr.mxu0 0.0
    %962 = vmatpush1.msra.mxu0 0.0
    %963 = vmatprep.subr.mxu0 0.0
    %964 = vmatpush1.msra.mxu0 0.0
    %965 = vmatprep.subr.mxu0 0.0
    %966 = vmatpush1.msra.mxu0 0.0
    %967 = vmatprep.subr.mxu0 0.0
    %968 = vmatpush1.msra.mxu0 0.0
    %969 = vmatprep.subr.mxu0 0.0
    %970 = vmatpush1.msra.mxu0 0.0
    %971 = vmatprep.subr.mxu0 0.0
    %972 = vmatpush1.msra.mxu0 0.0
    %973 = vmatprep.subr.mxu0 0.0
    %974 = vmatpush1.msra.mxu0 0.0
    %975 = vmatprep.subr.mxu0 0.0
    %976 = vmatpush1.msra.mxu0 0.0
    %977 = vmatprep.subr.mxu0 0.0
    %978 = vmatpush1.msra.mxu0 0.0
    %979 = vmatprep.subr.mxu0 0.0
    %980 = vmatpush1.msra.mxu0 0.0
    %981 = vmatprep.mubr.f32.mxu0 0.0
    %982 = vmatmul.mubr.f32.gmra.mrb[0].mxu0 %v142
    %v983 = vpop.f32.mrb[0].mxu0
    %v984 = vadd.f32 0.0, %v983
    %v985 = vpop.f32.mrb[0].mxu0
    %986 = vdwg.mxu0
    %987 = vmatprep.subr.mxu0 0.0
    %988 = vmatpush1.msra.mxu0 %v104
    %989 = vmatprep.subr.mxu0 0.0
    %990 = vmatpush1.msra.mxu0 %v105
    %991 = vmatprep.subr.mxu0 0.0
    %992 = vmatpush1.msra.mxu0 %v106
    %993 = vmatprep.subr.mxu0 0.0
    %994 = vmatpush1.msra.mxu0 %v107
    %995 = vmatprep.subr.mxu0 0.0
    %996 = vmatpush1.msra.mxu0 0.0
    %997 = vmatprep.subr.mxu0 0.0
    %998 = vmatpush1.msra.mxu0 0.0
    %999 = vmatprep.subr.mxu0 0.0
    %1000 = vmatpush1.msra.mxu0 0.0
    %1001 = vmatprep.subr.mxu0 0.0
    %1002 = vmatpush1.msra.mxu0 0.0
    %1003 = vmatprep.subr.mxu0 0.0
    %1004 = vmatpush1.msra.mxu0 0.0
    %1005 = vmatprep.subr.mxu0 0.0
    %1006 = vmatpush1.msra.mxu0 0.0
    %1007 = vmatprep.subr.mxu0 0.0
    %1008 = vmatpush1.msra.mxu0 0.0
    %1009 = vmatprep.subr.mxu0 0.0
    %1010 = vmatpush1.msra.mxu0 0.0
    %1011 = vmatprep.subr.mxu0 0.0
    %1012 = vmatpush1.msra.mxu0 0.0
    %1013 = vmatprep.subr.mxu0 0.0
    %1014 = vmatpush1.msra.mxu0 0.0
    %1015 = vmatprep.subr.mxu0 0.0
    %1016 = vmatpush1.msra.mxu0 0.0
    %1017 = vmatprep.subr.mxu0 0.0
    %1018 = vmatpush1.msra.mxu0 0.0
    %1019 = vmatprep.subr.mxu0 0.0
    %1020 = vmatpush1.msra.mxu0 0.0
    %1021 = vmatprep.subr.mxu0 0.0
    %1022 = vmatpush1.msra.mxu0 0.0
    %1023 = vmatprep.subr.mxu0 0.0
    %1024 = vmatpush1.msra.mxu0 0.0
    %1025 = vmatprep.subr.mxu0 0.0
    %1026 = vmatpush1.msra.mxu0 0.0
    %1027 = vmatprep.subr.mxu0 0.0
    %1028 = vmatpush1.msra.mxu0 0.0
    %1029 = vmatprep.subr.mxu0 0.0
    %1030 = vmatpush1.msra.mxu0 0.0
    %1031 = vmatprep.subr.mxu0 0.0
    %1032 = vmatpush1.msra.mxu0 0.0
    %1033 = vmatprep.subr.mxu0 0.0
    %1034 = vmatpush1.msra.mxu0 0.0
    %1035 = vmatprep.subr.mxu0 0.0
    %1036 = vmatpush1.msra.mxu0 0.0
    %1037 = vmatprep.subr.mxu0 0.0
    %1038 = vmatpush1.msra.mxu0 0.0
    %1039 = vmatprep.subr.mxu0 0.0
    %1040 = vmatpush1.msra.mxu0 0.0
    %1041 = vmatprep.subr.mxu0 0.0
    %1042 = vmatpush1.msra.mxu0 0.0
    %1043 = vmatprep.subr.mxu0 0.0
    %1044 = vmatpush1.msra.mxu0 0.0
    %1045 = vmatprep.subr.mxu0 0.0
    %1046 = vmatpush1.msra.mxu0 0.0
    %1047 = vmatprep.subr.mxu0 0.0
    %1048 = vmatpush1.msra.mxu0 0.0
    %1049 = vmatprep.subr.mxu0 0.0
    %1050 = vmatpush1.msra.mxu0 0.0
    %1051 = vmatprep.mubr.f32.mxu0 0.0
    %1052 = vmatmul.mubr.f32.gmra.mrb[0].mxu0 %v425
    %v1053 = vpop.f32.mrb[0].mxu0
    %v1054 = vadd.f32 0.0, %v1053
    %v1055 = vpop.f32.mrb[0].mxu0
    %1056 = vdwg.mxu0
    %1057 = vmatprep.subr.mxu0 0.0
    %1058 = vmatpush1.msra.mxu0 %v108
    %1059 = vmatprep.subr.mxu0 0.0
    %1060 = vmatpush1.msra.mxu0 %v109
    %1061 = vmatprep.subr.mxu0 0.0
    %1062 = vmatpush1.msra.mxu0 %v110
    %1063 = vmatprep.subr.mxu0 0.0
    %1064 = vmatpush1.msra.mxu0 %v111
    %1065 = vmatprep.subr.mxu0 0.0
    %1066 = vmatpush1.msra.mxu0 0.0
    %1067 = vmatprep.subr.mxu0 0.0
    %1068 = vmatpush1.msra.mxu0 0.0
    %1069 = vmatprep.subr.mxu0 0.0
    %1070 = vmatpush1.msra.mxu0 0.0
    %1071 = vmatprep.subr.mxu0 0.0
    %1072 = vmatpush1.msra.mxu0 0.0
    %1073 = vmatprep.subr.mxu0 0.0
    %1074 = vmatpush1.msra.mxu0 0.0
    %1075 = vmatprep.subr.mxu0 0.0
    %1076 = vmatpush1.msra.mxu0 0.0
    %1077 = vmatprep.subr.mxu0 0.0
    %1078 = vmatpush1.msra.mxu0 0.0
    %1079 = vmatprep.subr.mxu0 0.0
    %1080 = vmatpush1.msra.mxu0 0.0
    %1081 = vmatprep.subr.mxu0 0.0
    %1082 = vmatpush1.msra.mxu0 0.0
    %1083 = vmatprep.subr.mxu0 0.0
    %1084 = vmatpush1.msra.mxu0 0.0
    %1085 = vmatprep.subr.mxu0 0.0
    %1086 = vmatpush1.msra.mxu0 0.0
    %1087 = vmatprep.subr.mxu0 0.0
    %1088 = vmatpush1.msra.mxu0 0.0
    %1089 = vmatprep.subr.mxu0 0.0
    %1090 = vmatpush1.msra.mxu0 0.0
    %1091 = vmatprep.subr.mxu0 0.0
    %1092 = vmatpush1.msra.mxu0 0.0
    %1093 = vmatprep.subr.mxu0 0.0
    %1094 = vmatpush1.msra.mxu0 0.0
    %1095 = vmatprep.subr.mxu0 0.0
    %1096 = vmatpush1.msra.mxu0 0.0
    %1097 = vmatprep.subr.mxu0 0.0
    %1098 = vmatpush1.msra.mxu0 0.0
    %1099 = vmatprep.subr.mxu0 0.0
    %1100 = vmatpush1.msra.mxu0 0.0
    %1101 = vmatprep.subr.mxu0 0.0
    %1102 = vmatpush1.msra.mxu0 0.0
    %1103 = vmatprep.subr.mxu0 0.0
    %1104 = vmatpush1.msra.mxu0 0.0
    %1105 = vmatprep.subr.mxu0 0.0
    %1106 = vmatpush1.msra.mxu0 0.0
    %1107 = vmatprep.subr.mxu0 0.0
    %1108 = vmatpush1.msra.mxu0 0.0
    %1109 = vmatprep.subr.mxu0 0.0
    %1110 = vmatpush1.msra.mxu0 0.0
    %1111 = vmatprep.subr.mxu0 0.0
    %1112 = vmatpush1.msra.mxu0 0.0
    %1113 = vmatprep.subr.mxu0 0.0
    %1114 = vmatpush1.msra.mxu0 0.0
    %1115 = vmatprep.subr.mxu0 0.0
    %1116 = vmatpush1.msra.mxu0 0.0
    %1117 = vmatprep.subr.mxu0 0.0
    %1118 = vmatpush1.msra.mxu0 0.0
    %1119 = vmatprep.subr.mxu0 0.0
    %1120 = vmatpush1.msra.mxu0 0.0
    %1121 = vmatprep.mubr.f32.mxu0 0.0
    %1122 = vmatmul.mubr.f32.gmra.mrb[0].mxu0 %v425
    %v1123 = vpop.f32.mrb[0].mxu0
    %v1124 = vadd.f32 0.0, %v1123
    %v1125 = vpop.f32.mrb[0].mxu0
    %1126 = vdwg.mxu0
    %1127 = vmatprep.subr.mxu0 0.0
    %1128 = vmatpush1.msra.mxu0 %v112
    %1129 = vmatprep.subr.mxu0 0.0
    %1130 = vmatpush1.msra.mxu0 %v113
    %1131 = vmatprep.subr.mxu0 0.0
    %1132 = vmatpush1.msra.mxu0 %v114
    %1133 = vmatprep.subr.mxu0 0.0
    %1134 = vmatpush1.msra.mxu0 %v115
    %1135 = vmatprep.subr.mxu0 0.0
    %1136 = vmatpush1.msra.mxu0 0.0
    %1137 = vmatprep.subr.mxu0 0.0
    %1138 = vmatpush1.msra.mxu0 0.0
    %1139 = vmatprep.subr.mxu0 0.0
    %1140 = vmatpush1.msra.mxu0 0.0
    %1141 = vmatprep.subr.mxu0 0.0
    %1142 = vmatpush1.msra.mxu0 0.0
    %1143 = vmatprep.subr.mxu0 0.0
    %1144 = vmatpush1.msra.mxu0 0.0
    %1145 = vmatprep.subr.mxu0 0.0
    %1146 = vmatpush1.msra.mxu0 0.0
    %1147 = vmatprep.subr.mxu0 0.0
    %1148 = vmatpush1.msra.mxu0 0.0
    %1149 = vmatprep.subr.mxu0 0.0
    %1150 = vmatpush1.msra.mxu0 0.0
    %1151 = vmatprep.subr.mxu0 0.0
    %1152 = vmatpush1.msra.mxu0 0.0
    %1153 = vmatprep.subr.mxu0 0.0
    %1154 = vmatpush1.msra.mxu0 0.0
    %1155 = vmatprep.subr.mxu0 0.0
    %1156 = vmatpush1.msra.mxu0 0.0
    %1157 = vmatprep.subr.mxu0 0.0
    %1158 = vmatpush1.msra.mxu0 0.0
    %1159 = vmatprep.subr.mxu0 0.0
    %1160 = vmatpush1.msra.mxu0 0.0
    %1161 = vmatprep.subr.mxu0 0.0
    %1162 = vmatpush1.msra.mxu0 0.0
    %1163 = vmatprep.subr.mxu0 0.0
    %1164 = vmatpush1.msra.mxu0 0.0
    %1165 = vmatprep.subr.mxu0 0.0
    %1166 = vmatpush1.msra.mxu0 0.0
    %1167 = vmatprep.subr.mxu0 0.0
    %1168 = vmatpush1.msra.mxu0 0.0
    %1169 = vmatprep.subr.mxu0 0.0
    %1170 = vmatpush1.msra.mxu0 0.0
    %1171 = vmatprep.subr.mxu0 0.0
    %1172 = vmatpush1.msra.mxu0 0.0
    %1173 = vmatprep.subr.mxu0 0.0
    %1174 = vmatpush1.msra.mxu0 0.0
    %1175 = vmatprep.subr.mxu0 0.0
    %1176 = vmatpush1.msra.mxu0 0.0
    %1177 = vmatprep.subr.mxu0 0.0
    %1178 = vmatpush1.msra.mxu0 0.0
    %1179 = vmatprep.subr.mxu0 0.0
    %1180 = vmatpush1.msra.mxu0 0.0
    %1181 = vmatprep.subr.mxu0 0.0
    %1182 = vmatpush1.msra.mxu0 0.0
    %1183 = vmatprep.subr.mxu0 0.0
    %1184 = vmatpush1.msra.mxu0 0.0
    %1185 = vmatprep.subr.mxu0 0.0
    %1186 = vmatpush1.msra.mxu0 0.0
    %1187 = vmatprep.subr.mxu0 0.0
    %1188 = vmatpush1.msra.mxu0 0.0
    %1189 = vmatprep.subr.mxu0 0.0
    %1190 = vmatpush1.msra.mxu0 0.0
    %1191 = vmatprep.mubr.f32.mxu0 0.0
    %1192 = vmatmul.mubr.f32.gmra.mrb[0].mxu0 %v425
    %v1193 = vpop.f32.mrb[0].mxu0
    %v1194 = vadd.f32 0.0, %v1193
    %v1195 = vpop.f32.mrb[0].mxu0
    %1196 = vdwg.mxu0
    %1197 = vmatprep.subr.mxu0 0.0
    %1198 = vmatpush1.msra.mxu0 %v116
    %1199 = vmatprep.subr.mxu0 0.0
    %1200 = vmatpush1.msra.mxu0 %v117
    %1201 = vmatprep.subr.mxu0 0.0
    %1202 = vmatpush1.msra.mxu0 %v118
    %1203 = vmatprep.subr.mxu0 0.0
    %1204 = vmatpush1.msra.mxu0 %v119
    %1205 = vmatprep.subr.mxu0 0.0
    %1206 = vmatpush1.msra.mxu0 0.0
    %1207 = vmatprep.subr.mxu0 0.0
    %1208 = vmatpush1.msra.mxu0 0.0
    %1209 = vmatprep.subr.mxu0 0.0
    %1210 = vmatpush1.msra.mxu0 0.0
    %1211 = vmatprep.subr.mxu0 0.0
    %1212 = vmatpush1.msra.mxu0 0.0
    %1213 = vmatprep.subr.mxu0 0.0
    %1214 = vmatpush1.msra.mxu0 0.0
    %1215 = vmatprep.subr.mxu0 0.0
    %1216 = vmatpush1.msra.mxu0 0.0
    %1217 = vmatprep.subr.mxu0 0.0
    %1218 = vmatpush1.msra.mxu0 0.0
    %1219 = vmatprep.subr.mxu0 0.0
    %1220 = vmatpush1.msra.mxu0 0.0
    %1221 = vmatprep.subr.mxu0 0.0
    %1222 = vmatpush1.msra.mxu0 0.0
    %1223 = vmatprep.subr.mxu0 0.0
    %1224 = vmatpush1.msra.mxu0 0.0
    %1225 = vmatprep.subr.mxu0 0.0
    %1226 = vmatpush1.msra.mxu0 0.0
    %1227 = vmatprep.subr.mxu0 0.0
    %1228 = vmatpush1.msra.mxu0 0.0
    %1229 = vmatprep.subr.mxu0 0.0
    %1230 = vmatpush1.msra.mxu0 0.0
    %1231 = vmatprep.subr.mxu0 0.0
    %1232 = vmatpush1.msra.mxu0 0.0
    %1233 = vmatprep.subr.mxu0 0.0
    %1234 = vmatpush1.msra.mxu0 0.0
    %1235 = vmatprep.subr.mxu0 0.0
    %1236 = vmatpush1.msra.mxu0 0.0
    %1237 = vmatprep.subr.mxu0 0.0
    %1238 = vmatpush1.msra.mxu0 0.0
    %1239 = vmatprep.subr.mxu0 0.0
    %1240 = vmatpush1.msra.mxu0 0.0
    %1241 = vmatprep.subr.mxu0 0.0
    %1242 = vmatpush1.msra.mxu0 0.0
    %1243 = vmatprep.subr.mxu0 0.0
    %1244 = vmatpush1.msra.mxu0 0.0
    %1245 = vmatprep.subr.mxu0 0.0
    %1246 = vmatpush1.msra.mxu0 0.0
    %1247 = vmatprep.subr.mxu0 0.0
    %1248 = vmatpush1.msra.mxu0 0.0
    %1249 = vmatprep.subr.mxu0 0.0
    %1250 = vmatpush1.msra.mxu0 0.0
    %1251 = vmatprep.subr.mxu0 0.0
    %1252 = vmatpush1.msra.mxu0 0.0
    %1253 = vmatprep.subr.mxu0 0.0
    %1254 = vmatpush1.msra.mxu0 0.0
    %1255 = vmatprep.subr.mxu0 0.0
    %1256 = vmatpush1.msra.mxu0 0.0
    %1257 = vmatprep.subr.mxu0 0.0
    %1258 = vmatpush1.msra.mxu0 0.0
    %1259 = vmatprep.subr.mxu0 0.0
    %1260 = vmatpush1.msra.mxu0 0.0
    %1261 = vmatprep.mubr.f32.mxu0 0.0
    %1262 = vmatmul.mubr.f32.gmra.mrb[0].mxu0 %v425
    %v1263 = vpop.f32.mrb[0].mxu0
    %v1264 = vadd.f32 0.0, %v1263
    %v1265 = vpop.f32.mrb[0].mxu0
    %1266 = vdwg.mxu0
    %1267 = vmatprep.subr.mxu0 0.0
    %1268 = vmatpush1.msra.mxu0 %v120
    %1269 = vmatprep.subr.mxu0 0.0
    %1270 = vmatpush1.msra.mxu0 %v121
    %1271 = vmatprep.subr.mxu0 0.0
    %1272 = vmatpush1.msra.mxu0 %v122
    %1273 = vmatprep.subr.mxu0 0.0
    %1274 = vmatpush1.msra.mxu0 %v123
    %1275 = vmatprep.subr.mxu0 0.0
    %1276 = vmatpush1.msra.mxu0 0.0
    %1277 = vmatprep.subr.mxu0 0.0
    %1278 = vmatpush1.msra.mxu0 0.0
    %1279 = vmatprep.subr.mxu0 0.0
    %1280 = vmatpush1.msra.mxu0 0.0
    %1281 = vmatprep.subr.mxu0 0.0
    %1282 = vmatpush1.msra.mxu0 0.0
    %1283 = vmatprep.subr.mxu0 0.0
    %1284 = vmatpush1.msra.mxu0 0.0
    %1285 = vmatprep.subr.mxu0 0.0
    %1286 = vmatpush1.msra.mxu0 0.0
    %1287 = vmatprep.subr.mxu0 0.0
    %1288 = vmatpush1.msra.mxu0 0.0
    %1289 = vmatprep.subr.mxu0 0.0
    %1290 = vmatpush1.msra.mxu0 0.0
    %1291 = vmatprep.subr.mxu0 0.0
    %1292 = vmatpush1.msra.mxu0 0.0
    %1293 = vmatprep.subr.mxu0 0.0
    %1294 = vmatpush1.msra.mxu0 0.0
    %1295 = vmatprep.subr.mxu0 0.0
    %1296 = vmatpush1.msra.mxu0 0.0
    %1297 = vmatprep.subr.mxu0 0.0
    %1298 = vmatpush1.msra.mxu0 0.0
    %1299 = vmatprep.subr.mxu0 0.0
    %1300 = vmatpush1.msra.mxu0 0.0
    %1301 = vmatprep.subr.mxu0 0.0
    %1302 = vmatpush1.msra.mxu0 0.0
    %1303 = vmatprep.subr.mxu0 0.0
    %1304 = vmatpush1.msra.mxu0 0.0
    %1305 = vmatprep.subr.mxu0 0.0
    %1306 = vmatpush1.msra.mxu0 0.0
    %1307 = vmatprep.subr.mxu0 0.0
    %1308 = vmatpush1.msra.mxu0 0.0
    %1309 = vmatprep.subr.mxu0 0.0
    %1310 = vmatpush1.msra.mxu0 0.0
    %1311 = vmatprep.subr.mxu0 0.0
    %1312 = vmatpush1.msra.mxu0 0.0
    %1313 = vmatprep.subr.mxu0 0.0
    %1314 = vmatpush1.msra.mxu0 0.0
    %1315 = vmatprep.subr.mxu0 0.0
    %1316 = vmatpush1.msra.mxu0 0.0
    %1317 = vmatprep.subr.mxu0 0.0
    %1318 = vmatpush1.msra.mxu0 0.0
    %1319 = vmatprep.subr.mxu0 0.0
    %1320 = vmatpush1.msra.mxu0 0.0
    %1321 = vmatprep.subr.mxu0 0.0
    %1322 = vmatpush1.msra.mxu0 0.0
    %1323 = vmatprep.subr.mxu0 0.0
    %1324 = vmatpush1.msra.mxu0 0.0
    %1325 = vmatprep.subr.mxu0 0.0
    %1326 = vmatpush1.msra.mxu0 0.0
    %1327 = vmatprep.subr.mxu0 0.0
    %1328 = vmatpush1.msra.mxu0 0.0
    %1329 = vmatprep.subr.mxu0 0.0
    %1330 = vmatpush1.msra.mxu0 0.0
    %1331 = vmatprep.mubr.f32.mxu0 0.0
    %1332 = vmatmul.mubr.f32.gmra.mrb[0].mxu0 %v142
    %v1333 = vpop.f32.mrb[0].mxu0
    %v1334 = vadd.f32 0.0, %v1333
    %v1335 = vpop.f32.mrb[0].mxu0
    %1336 = vdwg.mxu0
    %1337 = vmatprep.subr.mxu0 0.0
    %1338 = vmatpush1.msra.mxu0 %v124
    %1339 = vmatprep.subr.mxu0 0.0
    %1340 = vmatpush1.msra.mxu0 %v125
    %1341 = vmatprep.subr.mxu0 0.0
    %1342 = vmatpush1.msra.mxu0 %v126
    %1343 = vmatprep.subr.mxu0 0.0
    %1344 = vmatpush1.msra.mxu0 %v127
    %1345 = vmatprep.subr.mxu0 0.0
    %1346 = vmatpush1.msra.mxu0 0.0
    %1347 = vmatprep.subr.mxu0 0.0
    %1348 = vmatpush1.msra.mxu0 0.0
    %1349 = vmatprep.subr.mxu0 0.0
    %1350 = vmatpush1.msra.mxu0 0.0
    %1351 = vmatprep.subr.mxu0 0.0
    %1352 = vmatpush1.msra.mxu0 0.0
    %1353 = vmatprep.subr.mxu0 0.0
    %1354 = vmatpush1.msra.mxu0 0.0
    %1355 = vmatprep.subr.mxu0 0.0
    %1356 = vmatpush1.msra.mxu0 0.0
    %1357 = vmatprep.subr.mxu0 0.0
    %1358 = vmatpush1.msra.mxu0 0.0
    %1359 = vmatprep.subr.mxu0 0.0
    %1360 = vmatpush1.msra.mxu0 0.0
    %1361 = vmatprep.subr.mxu0 0.0
    %1362 = vmatpush1.msra.mxu0 0.0
    %1363 = vmatprep.subr.mxu0 0.0
    %1364 = vmatpush1.msra.mxu0 0.0
    %1365 = vmatprep.subr.mxu0 0.0
    %1366 = vmatpush1.msra.mxu0 0.0
    %1367 = vmatprep.subr.mxu0 0.0
    %1368 = vmatpush1.msra.mxu0 0.0
    %1369 = vmatprep.subr.mxu0 0.0
    %1370 = vmatpush1.msra.mxu0 0.0
    %1371 = vmatprep.subr.mxu0 0.0
    %1372 = vmatpush1.msra.mxu0 0.0
    %1373 = vmatprep.subr.mxu0 0.0
    %1374 = vmatpush1.msra.mxu0 0.0
    %1375 = vmatprep.subr.mxu0 0.0
    %1376 = vmatpush1.msra.mxu0 0.0
    %1377 = vmatprep.subr.mxu0 0.0
    %1378 = vmatpush1.msra.mxu0 0.0
    %1379 = vmatprep.subr.mxu0 0.0
    %1380 = vmatpush1.msra.mxu0 0.0
    %1381 = vmatprep.subr.mxu0 0.0
    %1382 = vmatpush1.msra.mxu0 0.0
    %1383 = vmatprep.subr.mxu0 0.0
    %1384 = vmatpush1.msra.mxu0 0.0
    %1385 = vmatprep.subr.mxu0 0.0
    %1386 = vmatpush1.msra.mxu0 0.0
    %1387 = vmatprep.subr.mxu0 0.0
    %1388 = vmatpush1.msra.mxu0 0.0
    %1389 = vmatprep.subr.mxu0 0.0
    %1390 = vmatpush1.msra.mxu0 0.0
    %1391 = vmatprep.subr.mxu0 0.0
    %1392 = vmatpush1.msra.mxu0 0.0
    %1393 = vmatprep.subr.mxu0 0.0
    %1394 = vmatpush1.msra.mxu0 0.0
    %1395 = vmatprep.subr.mxu0 0.0
    %1396 = vmatpush1.msra.mxu0 0.0
    %1397 = vmatprep.subr.mxu0 0.0
    %1398 = vmatpush1.msra.mxu0 0.0
    %1399 = vmatprep.subr.mxu0 0.0
    %1400 = vmatpush1.msra.mxu0 0.0
    %1401 = vmatprep.mubr.f32.mxu0 0.0
    %1402 = vmatmul.mubr.f32.gmra.mrb[0].mxu0 %v142
    %v1403 = vpop.f32.mrb[0].mxu0
    %v1404 = vadd.f32 0.0, %v1403
    %v1405 = vpop.f32.mrb[0].mxu0
    %1406 = vdwg.mxu0
    %1407 = vmatprep.subr.mxu0 0.0
    %1408 = vmatpush1.msra.mxu0 %v128
    %1409 = vmatprep.subr.mxu0 0.0
    %1410 = vmatpush1.msra.mxu0 %v129
    %1411 = vmatprep.subr.mxu0 0.0
    %1412 = vmatpush1.msra.mxu0 %v130
    %1413 = vmatprep.subr.mxu0 0.0
    %1414 = vmatpush1.msra.mxu0 %v131
    %1415 = vmatprep.subr.mxu0 0.0
    %1416 = vmatpush1.msra.mxu0 0.0
    %1417 = vmatprep.subr.mxu0 0.0
    %1418 = vmatpush1.msra.mxu0 0.0
    %1419 = vmatprep.subr.mxu0 0.0
    %1420 = vmatpush1.msra.mxu0 0.0
    %1421 = vmatprep.subr.mxu0 0.0
    %1422 = vmatpush1.msra.mxu0 0.0
    %1423 = vmatprep.subr.mxu0 0.0
    %1424 = vmatpush1.msra.mxu0 0.0
    %1425 = vmatprep.subr.mxu0 0.0
    %1426 = vmatpush1.msra.mxu0 0.0
    %1427 = vmatprep.subr.mxu0 0.0
    %1428 = vmatpush1.msra.mxu0 0.0
    %1429 = vmatprep.subr.mxu0 0.0
    %1430 = vmatpush1.msra.mxu0 0.0
    %1431 = vmatprep.subr.mxu0 0.0
    %1432 = vmatpush1.msra.mxu0 0.0
    %1433 = vmatprep.subr.mxu0 0.0
    %1434 = vmatpush1.msra.mxu0 0.0
    %1435 = vmatprep.subr.mxu0 0.0
    %1436 = vmatpush1.msra.mxu0 0.0
    %1437 = vmatprep.subr.mxu0 0.0
    %1438 = vmatpush1.msra.mxu0 0.0
    %1439 = vmatprep.subr.mxu0 0.0
    %1440 = vmatpush1.msra.mxu0 0.0
    %1441 = vmatprep.subr.mxu0 0.0
    %1442 = vmatpush1.msra.mxu0 0.0
    %1443 = vmatprep.subr.mxu0 0.0
    %1444 = vmatpush1.msra.mxu0 0.0
    %1445 = vmatprep.subr.mxu0 0.0
    %1446 = vmatpush1.msra.mxu0 0.0
    %1447 = vmatprep.subr.mxu0 0.0
    %1448 = vmatpush1.msra.mxu0 0.0
    %1449 = vmatprep.subr.mxu0 0.0
    %1450 = vmatpush1.msra.mxu0 0.0
    %1451 = vmatprep.subr.mxu0 0.0
    %1452 = vmatpush1.msra.mxu0 0.0
    %1453 = vmatprep.subr.mxu0 0.0
    %1454 = vmatpush1.msra.mxu0 0.0
    %1455 = vmatprep.subr.mxu0 0.0
    %1456 = vmatpush1.msra.mxu0 0.0
    %1457 = vmatprep.subr.mxu0 0.0
    %1458 = vmatpush1.msra.mxu0 0.0
    %1459 = vmatprep.subr.mxu0 0.0
    %1460 = vmatpush1.msra.mxu0 0.0
    %1461 = vmatprep.subr.mxu0 0.0
    %1462 = vmatpush1.msra.mxu0 0.0
    %1463 = vmatprep.subr.mxu0 0.0
    %1464 = vmatpush1.msra.mxu0 0.0
    %1465 = vmatprep.subr.mxu0 0.0
    %1466 = vmatpush1.msra.mxu0 0.0
    %1467 = vmatprep.subr.mxu0 0.0
    %1468 = vmatpush1.msra.mxu0 0.0
    %1469 = vmatprep.subr.mxu0 0.0
    %1470 = vmatpush1.msra.mxu0 0.0
    %1471 = vmatprep.mubr.f32.mxu0 0.0
    %1472 = vmatmul.mubr.f32.gmra.mrb[0].mxu0 %v142
    %v1473 = vpop.f32.mrb[0].mxu0
    %v1474 = vadd.f32 0.0, %v1473
    %v1475 = vpop.f32.mrb[0].mxu0
    %1476 = vdwg.mxu0
    %1477 = vmatprep.subr.mxu0 0.0
    %1478 = vmatpush1.msra.mxu0 %v132
    %1479 = vmatprep.subr.mxu0 0.0
    %1480 = vmatpush1.msra.mxu0 %v133
    %1481 = vmatprep.subr.mxu0 0.0
    %1482 = vmatpush1.msra.mxu0 %v134
    %1483 = vmatprep.subr.mxu0 0.0
    %1484 = vmatpush1.msra.mxu0 %v135
    %1485 = vmatprep.subr.mxu0 0.0
    %1486 = vmatpush1.msra.mxu0 0.0
    %1487 = vmatprep.subr.mxu0 0.0
    %1488 = vmatpush1.msra.mxu0 0.0
    %1489 = vmatprep.subr.mxu0 0.0
    %1490 = vmatpush1.msra.mxu0 0.0
    %1491 = vmatprep.subr.mxu0 0.0
    %1492 = vmatpush1.msra.mxu0 0.0
    %1493 = vmatprep.subr.mxu0 0.0
    %1494 = vmatpush1.msra.mxu0 0.0
    %1495 = vmatprep.subr.mxu0 0.0
    %1496 = vmatpush1.msra.mxu0 0.0
    %1497 = vmatprep.subr.mxu0 0.0
    %1498 = vmatpush1.msra.mxu0 0.0
    %1499 = vmatprep.subr.mxu0 0.0
    %1500 = vmatpush1.msra.mxu0 0.0
    %1501 = vmatprep.subr.mxu0 0.0
    %1502 = vmatpush1.msra.mxu0 0.0
    %1503 = vmatprep.subr.mxu0 0.0
    %1504 = vmatpush1.msra.mxu0 0.0
    %1505 = vmatprep.subr.mxu0 0.0
    %1506 = vmatpush1.msra.mxu0 0.0
    %1507 = vmatprep.subr.mxu0 0.0
    %1508 = vmatpush1.msra.mxu0 0.0
    %1509 = vmatprep.subr.mxu0 0.0
    %1510 = vmatpush1.msra.mxu0 0.0
    %1511 = vmatprep.subr.mxu0 0.0
    %1512 = vmatpush1.msra.mxu0 0.0
    %1513 = vmatprep.subr.mxu0 0.0
    %1514 = vmatpush1.msra.mxu0 0.0
    %1515 = vmatprep.subr.mxu0 0.0
    %1516 = vmatpush1.msra.mxu0 0.0
    %1517 = vmatprep.subr.mxu0 0.0
    %1518 = vmatpush1.msra.mxu0 0.0
    %1519 = vmatprep.subr.mxu0 0.0
    %1520 = vmatpush1.msra.mxu0 0.0
    %1521 = vmatprep.subr.mxu0 0.0
    %1522 = vmatpush1.msra.mxu0 0.0
    %1523 = vmatprep.subr.mxu0 0.0
    %1524 = vmatpush1.msra.mxu0 0.0
    %1525 = vmatprep.subr.mxu0 0.0
    %1526 = vmatpush1.msra.mxu0 0.0
    %1527 = vmatprep.subr.mxu0 0.0
    %1528 = vmatpush1.msra.mxu0 0.0
    %1529 = vmatprep.subr.mxu0 0.0
    %1530 = vmatpush1.msra.mxu0 0.0
    %1531 = vmatprep.subr.mxu0 0.0
    %1532 = vmatpush1.msra.mxu0 0.0
    %1533 = vmatprep.subr.mxu0 0.0
    %1534 = vmatpush1.msra.mxu0 0.0
    %1535 = vmatprep.subr.mxu0 0.0
    %1536 = vmatpush1.msra.mxu0 0.0
    %1537 = vmatprep.subr.mxu0 0.0
    %1538 = vmatpush1.msra.mxu0 0.0
    %1539 = vmatprep.subr.mxu0 0.0
    %1540 = vmatpush1.msra.mxu0 0.0
    %1541 = vmatprep.mubr.f32.mxu0 0.0
    %1542 = vmatmul.mubr.f32.gmra.mrb[0].mxu0 %v142
    %v1543 = vpop.f32.mrb[0].mxu0
    %v1544 = vadd.f32 0.0, %v1543
    %v1545 = vpop.f32.mrb[0].mxu0
    %1546 = vdwg.mxu0
    %1547 = vmatprep.subr.mxu0 0.0
    %1548 = vmatpush1.msra.mxu0 %v120
    %1549 = vmatprep.subr.mxu0 0.0
    %1550 = vmatpush1.msra.mxu0 %v121
    %1551 = vmatprep.subr.mxu0 0.0
    %1552 = vmatpush1.msra.mxu0 %v122
    %1553 = vmatprep.subr.mxu0 0.0
    %1554 = vmatpush1.msra.mxu0 %v123
    %1555 = vmatprep.subr.mxu0 0.0
    %1556 = vmatpush1.msra.mxu0 0.0
    %1557 = vmatprep.subr.mxu0 0.0
    %1558 = vmatpush1.msra.mxu0 0.0
    %1559 = vmatprep.subr.mxu0 0.0
    %1560 = vmatpush1.msra.mxu0 0.0
    %1561 = vmatprep.subr.mxu0 0.0
    %1562 = vmatpush1.msra.mxu0 0.0
    %1563 = vmatprep.subr.mxu0 0.0
    %1564 = vmatpush1.msra.mxu0 0.0
    %1565 = vmatprep.subr.mxu0 0.0
    %1566 = vmatpush1.msra.mxu0 0.0
    %1567 = vmatprep.subr.mxu0 0.0
    %1568 = vmatpush1.msra.mxu0 0.0
    %1569 = vmatprep.subr.mxu0 0.0
    %1570 = vmatpush1.msra.mxu0 0.0
    %1571 = vmatprep.subr.mxu0 0.0
    %1572 = vmatpush1.msra.mxu0 0.0
    %1573 = vmatprep.subr.mxu0 0.0
    %1574 = vmatpush1.msra.mxu0 0.0
    %1575 = vmatprep.subr.mxu0 0.0
    %1576 = vmatpush1.msra.mxu0 0.0
    %1577 = vmatprep.subr.mxu0 0.0
    %1578 = vmatpush1.msra.mxu0 0.0
    %1579 = vmatprep.subr.mxu0 0.0
    %1580 = vmatpush1.msra.mxu0 0.0
    %1581 = vmatprep.subr.mxu0 0.0
    %1582 = vmatpush1.msra.mxu0 0.0
    %1583 = vmatprep.subr.mxu0 0.0
    %1584 = vmatpush1.msra.mxu0 0.0
    %1585 = vmatprep.subr.mxu0 0.0
    %1586 = vmatpush1.msra.mxu0 0.0
    %1587 = vmatprep.subr.mxu0 0.0
    %1588 = vmatpush1.msra.mxu0 0.0
    %1589 = vmatprep.subr.mxu0 0.0
    %1590 = vmatpush1.msra.mxu0 0.0
    %1591 = vmatprep.subr.mxu0 0.0
    %1592 = vmatpush1.msra.mxu0 0.0
    %1593 = vmatprep.subr.mxu0 0.0
    %1594 = vmatpush1.msra.mxu0 0.0
    %1595 = vmatprep.subr.mxu0 0.0
    %1596 = vmatpush1.msra.mxu0 0.0
    %1597 = vmatprep.subr.mxu0 0.0
    %1598 = vmatpush1.msra.mxu0 0.0
    %1599 = vmatprep.subr.mxu0 0.0
    %1600 = vmatpush1.msra.mxu0 0.0
    %1601 = vmatprep.subr.mxu0 0.0
    %1602 = vmatpush1.msra.mxu0 0.0
    %1603 = vmatprep.subr.mxu0 0.0
    %1604 = vmatpush1.msra.mxu0 0.0
    %1605 = vmatprep.subr.mxu0 0.0
    %1606 = vmatpush1.msra.mxu0 0.0
    %1607 = vmatprep.subr.mxu0 0.0
    %1608 = vmatpush1.msra.mxu0 0.0
    %1609 = vmatprep.subr.mxu0 0.0
    %1610 = vmatpush1.msra.mxu0 0.0
    %1611 = vmatprep.mubr.f32.mxu0 0.0
    %1612 = vmatmul.mubr.f32.gmra.mrb[0].mxu0 %v425
    %v1613 = vpop.f32.mrb[0].mxu0
    %v1614 = vadd.f32 0.0, %v1613
    %v1615 = vpop.f32.mrb[0].mxu0
    %1616 = vdwg.mxu0
    %1617 = vmatprep.subr.mxu0 0.0
    %1618 = vmatpush1.msra.mxu0 %v124
    %1619 = vmatprep.subr.mxu0 0.0
    %1620 = vmatpush1.msra.mxu0 %v125
    %1621 = vmatprep.subr.mxu0 0.0
    %1622 = vmatpush1.msra.mxu0 %v126
    %1623 = vmatprep.subr.mxu0 0.0
    %1624 = vmatpush1.msra.mxu0 %v127
    %1625 = vmatprep.subr.mxu0 0.0
    %1626 = vmatpush1.msra.mxu0 0.0
    %1627 = vmatprep.subr.mxu0 0.0
    %1628 = vmatpush1.msra.mxu0 0.0
    %1629 = vmatprep.subr.mxu0 0.0
    %1630 = vmatpush1.msra.mxu0 0.0
    %1631 = vmatprep.subr.mxu0 0.0
    %1632 = vmatpush1.msra.mxu0 0.0
    %1633 = vmatprep.subr.mxu0 0.0
    %1634 = vmatpush1.msra.mxu0 0.0
    %1635 = vmatprep.subr.mxu0 0.0
    %1636 = vmatpush1.msra.mxu0 0.0
    %1637 = vmatprep.subr.mxu0 0.0
    %1638 = vmatpush1.msra.mxu0 0.0
    %1639 = vmatprep.subr.mxu0 0.0
    %1640 = vmatpush1.msra.mxu0 0.0
    %1641 = vmatprep.subr.mxu0 0.0
    %1642 = vmatpush1.msra.mxu0 0.0
    %1643 = vmatprep.subr.mxu0 0.0
    %1644 = vmatpush1.msra.mxu0 0.0
    %1645 = vmatprep.subr.mxu0 0.0
    %1646 = vmatpush1.msra.mxu0 0.0
    %1647 = vmatprep.subr.mxu0 0.0
    %1648 = vmatpush1.msra.mxu0 0.0
    %1649 = vmatprep.subr.mxu0 0.0
    %1650 = vmatpush1.msra.mxu0 0.0
    %1651 = vmatprep.subr.mxu0 0.0
    %1652 = vmatpush1.msra.mxu0 0.0
    %1653 = vmatprep.subr.mxu0 0.0
    %1654 = vmatpush1.msra.mxu0 0.0
    %1655 = vmatprep.subr.mxu0 0.0
    %1656 = vmatpush1.msra.mxu0 0.0
    %1657 = vmatprep.subr.mxu0 0.0
    %1658 = vmatpush1.msra.mxu0 0.0
    %1659 = vmatprep.subr.mxu0 0.0
    %1660 = vmatpush1.msra.mxu0 0.0
    %1661 = vmatprep.subr.mxu0 0.0
    %1662 = vmatpush1.msra.mxu0 0.0
    %1663 = vmatprep.subr.mxu0 0.0
    %1664 = vmatpush1.msra.mxu0 0.0
    %1665 = vmatprep.subr.mxu0 0.0
    %1666 = vmatpush1.msra.mxu0 0.0
    %1667 = vmatprep.subr.mxu0 0.0
    %1668 = vmatpush1.msra.mxu0 0.0
    %1669 = vmatprep.subr.mxu0 0.0
    %1670 = vmatpush1.msra.mxu0 0.0
    %1671 = vmatprep.subr.mxu0 0.0
    %1672 = vmatpush1.msra.mxu0 0.0
    %1673 = vmatprep.subr.mxu0 0.0
    %1674 = vmatpush1.msra.mxu0 0.0
    %1675 = vmatprep.subr.mxu0 0.0
    %1676 = vmatpush1.msra.mxu0 0.0
    %1677 = vmatprep.subr.mxu0 0.0
    %1678 = vmatpush1.msra.mxu0 0.0
    %1679 = vmatprep.subr.mxu0 0.0
    %1680 = vmatpush1.msra.mxu0 0.0
    %1681 = vmatprep.mubr.f32.mxu0 0.0
    %1682 = vmatmul.mubr.f32.gmra.mrb[0].mxu0 %v425
    %v1683 = vpop.f32.mrb[0].mxu0
    %v1684 = vadd.f32 0.0, %v1683
    %v1685 = vpop.f32.mrb[0].mxu0
    %1686 = vdwg.mxu0
    %1687 = vmatprep.subr.mxu0 0.0
    %1688 = vmatpush1.msra.mxu0 %v128
    %1689 = vmatprep.subr.mxu0 0.0
    %1690 = vmatpush1.msra.mxu0 %v129
    %1691 = vmatprep.subr.mxu0 0.0
    %1692 = vmatpush1.msra.mxu0 %v130
    %1693 = vmatprep.subr.mxu0 0.0
    %1694 = vmatpush1.msra.mxu0 %v131
    %1695 = vmatprep.subr.mxu0 0.0
    %1696 = vmatpush1.msra.mxu0 0.0
    %1697 = vmatprep.subr.mxu0 0.0
    %1698 = vmatpush1.msra.mxu0 0.0
    %1699 = vmatprep.subr.mxu0 0.0
    %1700 = vmatpush1.msra.mxu0 0.0
    %1701 = vmatprep.subr.mxu0 0.0
    %1702 = vmatpush1.msra.mxu0 0.0
    %1703 = vmatprep.subr.mxu0 0.0
    %1704 = vmatpush1.msra.mxu0 0.0
    %1705 = vmatprep.subr.mxu0 0.0
    %1706 = vmatpush1.msra.mxu0 0.0
    %1707 = vmatprep.subr.mxu0 0.0
    %1708 = vmatpush1.msra.mxu0 0.0
    %1709 = vmatprep.subr.mxu0 0.0
    %1710 = vmatpush1.msra.mxu0 0.0
    %1711 = vmatprep.subr.mxu0 0.0
    %1712 = vmatpush1.msra.mxu0 0.0
    %1713 = vmatprep.subr.mxu0 0.0
    %1714 = vmatpush1.msra.mxu0 0.0
    %1715 = vmatprep.subr.mxu0 0.0
    %1716 = vmatpush1.msra.mxu0 0.0
    %1717 = vmatprep.subr.mxu0 0.0
    %1718 = vmatpush1.msra.mxu0 0.0
    %1719 = vmatprep.subr.mxu0 0.0
    %1720 = vmatpush1.msra.mxu0 0.0
    %1721 = vmatprep.subr.mxu0 0.0
    %1722 = vmatpush1.msra.mxu0 0.0
    %1723 = vmatprep.subr.mxu0 0.0
    %1724 = vmatpush1.msra.mxu0 0.0
    %1725 = vmatprep.subr.mxu0 0.0
    %1726 = vmatpush1.msra.mxu0 0.0
    %1727 = vmatprep.subr.mxu0 0.0
    %1728 = vmatpush1.msra.mxu0 0.0
    %1729 = vmatprep.subr.mxu0 0.0
    %1730 = vmatpush1.msra.mxu0 0.0
    %1731 = vmatprep.subr.mxu0 0.0
    %1732 = vmatpush1.msra.mxu0 0.0
    %1733 = vmatprep.subr.mxu0 0.0
    %1734 = vmatpush1.msra.mxu0 0.0
    %1735 = vmatprep.subr.mxu0 0.0
    %1736 = vmatpush1.msra.mxu0 0.0
    %1737 = vmatprep.subr.mxu0 0.0
    %1738 = vmatpush1.msra.mxu0 0.0
    %1739 = vmatprep.subr.mxu0 0.0
    %1740 = vmatpush1.msra.mxu0 0.0
    %1741 = vmatprep.subr.mxu0 0.0
    %1742 = vmatpush1.msra.mxu0 0.0
    %1743 = vmatprep.subr.mxu0 0.0
    %1744 = vmatpush1.msra.mxu0 0.0
    %1745 = vmatprep.subr.mxu0 0.0
    %1746 = vmatpush1.msra.mxu0 0.0
    %1747 = vmatprep.subr.mxu0 0.0
    %1748 = vmatpush1.msra.mxu0 0.0
    %1749 = vmatprep.subr.mxu0 0.0
    %1750 = vmatpush1.msra.mxu0 0.0
    %1751 = vmatprep.mubr.f32.mxu0 0.0
    %1752 = vmatmul.mubr.f32.gmra.mrb[0].mxu0 %v425
    %v1753 = vpop.f32.mrb[0].mxu0
    %v1754 = vadd.f32 0.0, %v1753
    %v1755 = vpop.f32.mrb[0].mxu0
    %1756 = vdwg.mxu0
    %1757 = vmatprep.subr.mxu0 0.0
    %1758 = vmatpush1.msra.mxu0 %v132
    %1759 = vmatprep.subr.mxu0 0.0
    %1760 = vmatpush1.msra.mxu0 %v133
    %1761 = vmatprep.subr.mxu0 0.0
    %1762 = vmatpush1.msra.mxu0 %v134
    %1763 = vmatprep.subr.mxu0 0.0
    %1764 = vmatpush1.msra.mxu0 %v135
    %1765 = vmatprep.subr.mxu0 0.0
    %1766 = vmatpush1.msra.mxu0 0.0
    %1767 = vmatprep.subr.mxu0 0.0
    %1768 = vmatpush1.msra.mxu0 0.0
    %1769 = vmatprep.subr.mxu0 0.0
    %1770 = vmatpush1.msra.mxu0 0.0
    %1771 = vmatprep.subr.mxu0 0.0
    %1772 = vmatpush1.msra.mxu0 0.0
    %1773 = vmatprep.subr.mxu0 0.0
    %1774 = vmatpush1.msra.mxu0 0.0
    %1775 = vmatprep.subr.mxu0 0.0
    %1776 = vmatpush1.msra.mxu0 0.0
    %1777 = vmatprep.subr.mxu0 0.0
    %1778 = vmatpush1.msra.mxu0 0.0
    %1779 = vmatprep.subr.mxu0 0.0
    %1780 = vmatpush1.msra.mxu0 0.0
    %1781 = vmatprep.subr.mxu0 0.0
    %1782 = vmatpush1.msra.mxu0 0.0
    %1783 = vmatprep.subr.mxu0 0.0
    %1784 = vmatpush1.msra.mxu0 0.0
    %1785 = vmatprep.subr.mxu0 0.0
    %1786 = vmatpush1.msra.mxu0 0.0
    %1787 = vmatprep.subr.mxu0 0.0
    %1788 = vmatpush1.msra.mxu0 0.0
    %1789 = vmatprep.subr.mxu0 0.0
    %1790 = vmatpush1.msra.mxu0 0.0
    %1791 = vmatprep.subr.mxu0 0.0
    %1792 = vmatpush1.msra.mxu0 0.0
    %1793 = vmatprep.subr.mxu0 0.0
    %1794 = vmatpush1.msra.mxu0 0.0
    %1795 = vmatprep.subr.mxu0 0.0
    %1796 = vmatpush1.msra.mxu0 0.0
    %1797 = vmatprep.subr.mxu0 0.0
    %1798 = vmatpush1.msra.mxu0 0.0
    %1799 = vmatprep.subr.mxu0 0.0
    %1800 = vmatpush1.msra.mxu0 0.0
    %1801 = vmatprep.subr.mxu0 0.0
    %1802 = vmatpush1.msra.mxu0 0.0
    %1803 = vmatprep.subr.mxu0 0.0
    %1804 = vmatpush1.msra.mxu0 0.0
    %1805 = vmatprep.subr.mxu0 0.0
    %1806 = vmatpush1.msra.mxu0 0.0
    %1807 = vmatprep.subr.mxu0 0.0
    %1808 = vmatpush1.msra.mxu0 0.0
    %1809 = vmatprep.subr.mxu0 0.0
    %1810 = vmatpush1.msra.mxu0 0.0
    %1811 = vmatprep.subr.mxu0 0.0
    %1812 = vmatpush1.msra.mxu0 0.0
    %1813 = vmatprep.subr.mxu0 0.0
    %1814 = vmatpush1.msra.mxu0 0.0
    %1815 = vmatprep.subr.mxu0 0.0
    %1816 = vmatpush1.msra.mxu0 0.0
    %1817 = vmatprep.subr.mxu0 0.0
    %1818 = vmatpush1.msra.mxu0 0.0
    %1819 = vmatprep.subr.mxu0 0.0
    %1820 = vmatpush1.msra.mxu0 0.0
    %1821 = vmatprep.mubr.f32.mxu0 0.0
    %1822 = vmatmul.mubr.f32.gmra.mrb[0].mxu0 %v425
    %v1823 = vpop.f32.mrb[0].mxu0
    %v1824 = vadd.f32 0.0, %v1823
    %v1825 = vpop.f32.mrb[0].mxu0
    %1826 = vdwg.mxu0
    %vm1827 = vcmask 64512
    %v1829 = vsel %vm1827, %v211, 0
    %v1832 = vsel %vm1827, %v774, 0
    %1834 = vmatprep.subr.mxu0 0.0
    %1835 = vmatpush1.xpose.msra.mxu0 %v1832
    %1836 = vmatprep.subr.mxu0 0.0
    %1837 = vmatpush1.xpose.msra.mxu0 0.0
    %1838 = vmatprep.subr.mxu0 0.0
    %1839 = vmatpush1.xpose.msra.mxu0 0.0
    %1840 = vmatprep.subr.mxu0 0.0
    %1841 = vmatpush1.xpose.msra.mxu0 0.0
    %1842 = vmatprep.subr.mxu0 0.0
    %1843 = vmatpush1.xpose.msra.mxu0 0.0
    %1844 = vmatprep.subr.mxu0 0.0
    %1845 = vmatpush1.xpose.msra.mxu0 0.0
    %1846 = vmatprep.subr.mxu0 0.0
    %1847 = vmatpush1.xpose.msra.mxu0 0.0
    %1848 = vmatprep.subr.mxu0 0.0
    %1849 = vmatpush1.xpose.msra.mxu0 0.0
    %1850 = vmatprep.subr.mxu0 0.0
    %1851 = vmatpush1.xpose.msra.mxu0 0.0
    %1852 = vmatprep.subr.mxu0 0.0
    %1853 = vmatpush1.xpose.msra.mxu0 0.0
    %1854 = vmatprep.subr.mxu0 0.0
    %1855 = vmatpush1.xpose.msra.mxu0 0.0
    %1856 = vmatprep.subr.mxu0 0.0
    %1857 = vmatpush1.xpose.msra.mxu0 0.0
    %1858 = vmatprep.subr.mxu0 0.0
    %1859 = vmatpush1.xpose.msra.mxu0 0.0
    %1860 = vmatprep.subr.mxu0 0.0
    %1861 = vmatpush1.xpose.msra.mxu0 0.0
    %1862 = vmatprep.subr.mxu0 0.0
    %1863 = vmatpush1.xpose.msra.mxu0 0.0
    %1864 = vmatprep.subr.mxu0 0.0
    %1865 = vmatpush1.xpose.msra.mxu0 0.0
    %1866 = vmatprep.subr.mxu0 0.0
    %1867 = vmatpush1.xpose.msra.mxu0 0.0
    %1868 = vmatprep.subr.mxu0 0.0
    %1869 = vmatpush1.xpose.msra.mxu0 0.0
    %1870 = vmatprep.subr.mxu0 0.0
    %1871 = vmatpush1.xpose.msra.mxu0 0.0
    %1872 = vmatprep.subr.mxu0 0.0
    %1873 = vmatpush1.xpose.msra.mxu0 0.0
    %1874 = vmatprep.subr.mxu0 0.0
    %1875 = vmatpush1.xpose.msra.mxu0 0.0
    %1876 = vmatprep.subr.mxu0 0.0
    %1877 = vmatpush1.xpose.msra.mxu0 0.0
    %1878 = vmatprep.subr.mxu0 0.0
    %1879 = vmatpush1.xpose.msra.mxu0 0.0
    %1880 = vmatprep.subr.mxu0 0.0
    %1881 = vmatpush1.xpose.msra.mxu0 0.0
    %1882 = vmatprep.subr.mxu0 0.0
    %1883 = vmatpush1.xpose.msra.mxu0 0.0
    %1884 = vmatprep.subr.mxu0 0.0
    %1885 = vmatpush1.xpose.msra.mxu0 0.0
    %1886 = vmatprep.subr.mxu0 0.0
    %1887 = vmatpush1.xpose.msra.mxu0 0.0
    %1888 = vmatprep.subr.mxu0 0.0
    %1889 = vmatpush1.xpose.msra.mxu0 0.0
    %1890 = vmatprep.subr.mxu0 0.0
    %1891 = vmatpush1.xpose.msra.mxu0 0.0
    %1892 = vmatprep.subr.mxu0 0.0
    %1893 = vmatpush1.xpose.msra.mxu0 0.0
    %1894 = vmatprep.subr.mxu0 0.0
    %1895 = vmatpush1.xpose.msra.mxu0 0.0
    %1896 = vmatprep.subr.mxu0 0.0
    %1897 = vmatpush1.xpose.msra.mxu0 0.0
    %1898 = vmatprep.mubr.f32.mxu0 0.0
    %1899 = vmatmul.mubr.f32.gmra.mrb[0].mxu0 %v1829
    %v1900 = vpop.f32.mrb[0].mxu0
    %v1901 = vadd.f32 0.0, %v1900
    %v1902 = vpop.f32.mrb[0].mxu0
    %1903 = vdwg.mxu0
    %v1905 = vsel %vm1827, %v281, 0
    %v1908 = vsel %vm1827, %v844, 0
    %1910 = vmatprep.subr.mxu0 0.0
    %1911 = vmatpush1.xpose.msra.mxu0 %v1908
    %1912 = vmatprep.subr.mxu0 0.0
    %1913 = vmatpush1.xpose.msra.mxu0 0.0
    %1914 = vmatprep.subr.mxu0 0.0
    %1915 = vmatpush1.xpose.msra.mxu0 0.0
    %1916 = vmatprep.subr.mxu0 0.0
    %1917 = vmatpush1.xpose.msra.mxu0 0.0
    %1918 = vmatprep.subr.mxu0 0.0
    %1919 = vmatpush1.xpose.msra.mxu0 0.0
    %1920 = vmatprep.subr.mxu0 0.0
    %1921 = vmatpush1.xpose.msra.mxu0 0.0
    %1922 = vmatprep.subr.mxu0 0.0
    %1923 = vmatpush1.xpose.msra.mxu0 0.0
    %1924 = vmatprep.subr.mxu0 0.0
    %1925 = vmatpush1.xpose.msra.mxu0 0.0
    %1926 = vmatprep.subr.mxu0 0.0
    %1927 = vmatpush1.xpose.msra.mxu0 0.0
    %1928 = vmatprep.subr.mxu0 0.0
    %1929 = vmatpush1.xpose.msra.mxu0 0.0
    %1930 = vmatprep.subr.mxu0 0.0
    %1931 = vmatpush1.xpose.msra.mxu0 0.0
    %1932 = vmatprep.subr.mxu0 0.0
    %1933 = vmatpush1.xpose.msra.mxu0 0.0
    %1934 = vmatprep.subr.mxu0 0.0
    %1935 = vmatpush1.xpose.msra.mxu0 0.0
    %1936 = vmatprep.subr.mxu0 0.0
    %1937 = vmatpush1.xpose.msra.mxu0 0.0
    %1938 = vmatprep.subr.mxu0 0.0
    %1939 = vmatpush1.xpose.msra.mxu0 0.0
    %1940 = vmatprep.subr.mxu0 0.0
    %1941 = vmatpush1.xpose.msra.mxu0 0.0
    %1942 = vmatprep.subr.mxu0 0.0
    %1943 = vmatpush1.xpose.msra.mxu0 0.0
    %1944 = vmatprep.subr.mxu0 0.0
    %1945 = vmatpush1.xpose.msra.mxu0 0.0
    %1946 = vmatprep.subr.mxu0 0.0
    %1947 = vmatpush1.xpose.msra.mxu0 0.0
    %1948 = vmatprep.subr.mxu0 0.0
    %1949 = vmatpush1.xpose.msra.mxu0 0.0
    %1950 = vmatprep.subr.mxu0 0.0
    %1951 = vmatpush1.xpose.msra.mxu0 0.0
    %1952 = vmatprep.subr.mxu0 0.0
    %1953 = vmatpush1.xpose.msra.mxu0 0.0
    %1954 = vmatprep.subr.mxu0 0.0
    %1955 = vmatpush1.xpose.msra.mxu0 0.0
    %1956 = vmatprep.subr.mxu0 0.0
    %1957 = vmatpush1.xpose.msra.mxu0 0.0
    %1958 = vmatprep.subr.mxu0 0.0
    %1959 = vmatpush1.xpose.msra.mxu0 0.0
    %1960 = vmatprep.subr.mxu0 0.0
    %1961 = vmatpush1.xpose.msra.mxu0 0.0
    %1962 = vmatprep.subr.mxu0 0.0
    %1963 = vmatpush1.xpose.msra.mxu0 0.0
    %1964 = vmatprep.subr.mxu0 0.0
    %1965 = vmatpush1.xpose.msra.mxu0 0.0
    %1966 = vmatprep.subr.mxu0 0.0
    %1967 = vmatpush1.xpose.msra.mxu0 0.0
    %1968 = vmatprep.subr.mxu0 0.0
    %1969 = vmatpush1.xpose.msra.mxu0 0.0
    %1970 = vmatprep.subr.mxu0 0.0
    %1971 = vmatpush1.xpose.msra.mxu0 0.0
    %1972 = vmatprep.subr.mxu0 0.0
    %1973 = vmatpush1.xpose.msra.mxu0 0.0
    %1974 = vmatprep.mubr.f32.mxu0 0.0
    %1975 = vmatmul.mubr.f32.gmra.mrb[0].mxu0 %v1905
    %v1976 = vpop.f32.mrb[0].mxu0
    %v1977 = vadd.f32 0.0, %v1976
    %v1978 = vpop.f32.mrb[0].mxu0
    %1979 = vdwg.mxu0
    %v1981 = vsel %vm1827, %v351, 0
    %v1984 = vsel %vm1827, %v914, 0
    %1986 = vmatprep.subr.mxu0 0.0
    %1987 = vmatpush1.xpose.msra.mxu0 %v1984
    %1988 = vmatprep.subr.mxu0 0.0
    %1989 = vmatpush1.xpose.msra.mxu0 0.0
    %1990 = vmatprep.subr.mxu0 0.0
    %1991 = vmatpush1.xpose.msra.mxu0 0.0
    %1992 = vmatprep.subr.mxu0 0.0
    %1993 = vmatpush1.xpose.msra.mxu0 0.0
    %1994 = vmatprep.subr.mxu0 0.0
    %1995 = vmatpush1.xpose.msra.mxu0 0.0
    %1996 = vmatprep.subr.mxu0 0.0
    %1997 = vmatpush1.xpose.msra.mxu0 0.0
    %1998 = vmatprep.subr.mxu0 0.0
    %1999 = vmatpush1.xpose.msra.mxu0 0.0
    %2000 = vmatprep.subr.mxu0 0.0
    %2001 = vmatpush1.xpose.msra.mxu0 0.0
    %2002 = vmatprep.subr.mxu0 0.0
    %2003 = vmatpush1.xpose.msra.mxu0 0.0
    %2004 = vmatprep.subr.mxu0 0.0
    %2005 = vmatpush1.xpose.msra.mxu0 0.0
    %2006 = vmatprep.subr.mxu0 0.0
    %2007 = vmatpush1.xpose.msra.mxu0 0.0
    %2008 = vmatprep.subr.mxu0 0.0
    %2009 = vmatpush1.xpose.msra.mxu0 0.0
    %2010 = vmatprep.subr.mxu0 0.0
    %2011 = vmatpush1.xpose.msra.mxu0 0.0
    %2012 = vmatprep.subr.mxu0 0.0
    %2013 = vmatpush1.xpose.msra.mxu0 0.0
    %2014 = vmatprep.subr.mxu0 0.0
    %2015 = vmatpush1.xpose.msra.mxu0 0.0
    %2016 = vmatprep.subr.mxu0 0.0
    %2017 = vmatpush1.xpose.msra.mxu0 0.0
    %2018 = vmatprep.subr.mxu0 0.0
    %2019 = vmatpush1.xpose.msra.mxu0 0.0
    %2020 = vmatprep.subr.mxu0 0.0
    %2021 = vmatpush1.xpose.msra.mxu0 0.0
    %2022 = vmatprep.subr.mxu0 0.0
    %2023 = vmatpush1.xpose.msra.mxu0 0.0
    %2024 = vmatprep.subr.mxu0 0.0
    %2025 = vmatpush1.xpose.msra.mxu0 0.0
    %2026 = vmatprep.subr.mxu0 0.0
    %2027 = vmatpush1.xpose.msra.mxu0 0.0
    %2028 = vmatprep.subr.mxu0 0.0
    %2029 = vmatpush1.xpose.msra.mxu0 0.0
    %2030 = vmatprep.subr.mxu0 0.0
    %2031 = vmatpush1.xpose.msra.mxu0 0.0
    %2032 = vmatprep.subr.mxu0 0.0
    %2033 = vmatpush1.xpose.msra.mxu0 0.0
    %2034 = vmatprep.subr.mxu0 0.0
    %2035 = vmatpush1.xpose.msra.mxu0 0.0
    %2036 = vmatprep.subr.mxu0 0.0
    %2037 = vmatpush1.xpose.msra.mxu0 0.0
    %2038 = vmatprep.subr.mxu0 0.0
    %2039 = vmatpush1.xpose.msra.mxu0 0.0
    %2040 = vmatprep.subr.mxu0 0.0
    %2041 = vmatpush1.xpose.msra.mxu0 0.0
    %2042 = vmatprep.subr.mxu0 0.0
    %2043 = vmatpush1.xpose.msra.mxu0 0.0
    %2044 = vmatprep.subr.mxu0 0.0
    %2045 = vmatpush1.xpose.msra.mxu0 0.0
    %2046 = vmatprep.subr.mxu0 0.0
    %2047 = vmatpush1.xpose.msra.mxu0 0.0
    %2048 = vmatprep.subr.mxu0 0.0
    %2049 = vmatpush1.xpose.msra.mxu0 0.0
    %2050 = vmatprep.mubr.f32.mxu0 0.0
    %2051 = vmatmul.mubr.f32.gmra.mrb[0].mxu0 %v1981
    %v2052 = vpop.f32.mrb[0].mxu0
    %v2053 = vadd.f32 0.0, %v2052
    %v2054 = vpop.f32.mrb[0].mxu0
    %2055 = vdwg.mxu0
    %v2057 = vsel %vm1827, %v421, 0
    %v2060 = vsel %vm1827, %v984, 0
    %2062 = vmatprep.subr.mxu0 0.0
    %2063 = vmatpush1.xpose.msra.mxu0 %v2060
    %2064 = vmatprep.subr.mxu0 0.0
    %2065 = vmatpush1.xpose.msra.mxu0 0.0
    %2066 = vmatprep.subr.mxu0 0.0
    %2067 = vmatpush1.xpose.msra.mxu0 0.0
    %2068 = vmatprep.subr.mxu0 0.0
    %2069 = vmatpush1.xpose.msra.mxu0 0.0
    %2070 = vmatprep.subr.mxu0 0.0
    %2071 = vmatpush1.xpose.msra.mxu0 0.0
    %2072 = vmatprep.subr.mxu0 0.0
    %2073 = vmatpush1.xpose.msra.mxu0 0.0
    %2074 = vmatprep.subr.mxu0 0.0
    %2075 = vmatpush1.xpose.msra.mxu0 0.0
    %2076 = vmatprep.subr.mxu0 0.0
    %2077 = vmatpush1.xpose.msra.mxu0 0.0
    %2078 = vmatprep.subr.mxu0 0.0
    %2079 = vmatpush1.xpose.msra.mxu0 0.0
    %2080 = vmatprep.subr.mxu0 0.0
    %2081 = vmatpush1.xpose.msra.mxu0 0.0
    %2082 = vmatprep.subr.mxu0 0.0
    %2083 = vmatpush1.xpose.msra.mxu0 0.0
    %2084 = vmatprep.subr.mxu0 0.0
    %2085 = vmatpush1.xpose.msra.mxu0 0.0
    %2086 = vmatprep.subr.mxu0 0.0
    %2087 = vmatpush1.xpose.msra.mxu0 0.0
    %2088 = vmatprep.subr.mxu0 0.0
    %2089 = vmatpush1.xpose.msra.mxu0 0.0
    %2090 = vmatprep.subr.mxu0 0.0
    %2091 = vmatpush1.xpose.msra.mxu0 0.0
    %2092 = vmatprep.subr.mxu0 0.0
    %2093 = vmatpush1.xpose.msra.mxu0 0.0
    %2094 = vmatprep.subr.mxu0 0.0
    %2095 = vmatpush1.xpose.msra.mxu0 0.0
    %2096 = vmatprep.subr.mxu0 0.0
    %2097 = vmatpush1.xpose.msra.mxu0 0.0
    %2098 = vmatprep.subr.mxu0 0.0
    %2099 = vmatpush1.xpose.msra.mxu0 0.0
    %2100 = vmatprep.subr.mxu0 0.0
    %2101 = vmatpush1.xpose.msra.mxu0 0.0
    %2102 = vmatprep.subr.mxu0 0.0
    %2103 = vmatpush1.xpose.msra.mxu0 0.0
    %2104 = vmatprep.subr.mxu0 0.0
    %2105 = vmatpush1.xpose.msra.mxu0 0.0
    %2106 = vmatprep.subr.mxu0 0.0
    %2107 = vmatpush1.xpose.msra.mxu0 0.0
    %2108 = vmatprep.subr.mxu0 0.0
    %2109 = vmatpush1.xpose.msra.mxu0 0.0
    %2110 = vmatprep.subr.mxu0 0.0
    %2111 = vmatpush1.xpose.msra.mxu0 0.0
    %2112 = vmatprep.subr.mxu0 0.0
    %2113 = vmatpush1.xpose.msra.mxu0 0.0
    %2114 = vmatprep.subr.mxu0 0.0
    %2115 = vmatpush1.xpose.msra.mxu0 0.0
    %2116 = vmatprep.subr.mxu0 0.0
    %2117 = vmatpush1.xpose.msra.mxu0 0.0
    %2118 = vmatprep.subr.mxu0 0.0
    %2119 = vmatpush1.xpose.msra.mxu0 0.0
    %2120 = vmatprep.subr.mxu0 0.0
    %2121 = vmatpush1.xpose.msra.mxu0 0.0
    %2122 = vmatprep.subr.mxu0 0.0
    %2123 = vmatpush1.xpose.msra.mxu0 0.0
    %2124 = vmatprep.subr.mxu0 0.0
    %2125 = vmatpush1.xpose.msra.mxu0 0.0
    %2126 = vmatprep.mubr.f32.mxu0 0.0
    %2127 = vmatmul.mubr.f32.gmra.mrb[0].mxu0 %v2057
    %v2128 = vpop.f32.mrb[0].mxu0
    %v2129 = vadd.f32 0.0, %v2128
    %v2130 = vpop.f32.mrb[0].mxu0
    %2131 = vdwg.mxu0
    %v2133 = vsel %vm1827, %v494, 0
    %v2136 = vsel %vm1827, %v1054, 0
    %2138 = vmatprep.subr.mxu0 0.0
    %2139 = vmatpush1.xpose.msra.mxu0 %v2136
    %2140 = vmatprep.subr.mxu0 0.0
    %2141 = vmatpush1.xpose.msra.mxu0 0.0
    %2142 = vmatprep.subr.mxu0 0.0
    %2143 = vmatpush1.xpose.msra.mxu0 0.0
    %2144 = vmatprep.subr.mxu0 0.0
    %2145 = vmatpush1.xpose.msra.mxu0 0.0
    %2146 = vmatprep.subr.mxu0 0.0
    %2147 = vmatpush1.xpose.msra.mxu0 0.0
    %2148 = vmatprep.subr.mxu0 0.0
    %2149 = vmatpush1.xpose.msra.mxu0 0.0
    %2150 = vmatprep.subr.mxu0 0.0
    %2151 = vmatpush1.xpose.msra.mxu0 0.0
    %2152 = vmatprep.subr.mxu0 0.0
    %2153 = vmatpush1.xpose.msra.mxu0 0.0
    %2154 = vmatprep.subr.mxu0 0.0
    %2155 = vmatpush1.xpose.msra.mxu0 0.0
    %2156 = vmatprep.subr.mxu0 0.0
    %2157 = vmatpush1.xpose.msra.mxu0 0.0
    %2158 = vmatprep.subr.mxu0 0.0
    %2159 = vmatpush1.xpose.msra.mxu0 0.0
    %2160 = vmatprep.subr.mxu0 0.0
    %2161 = vmatpush1.xpose.msra.mxu0 0.0
    %2162 = vmatprep.subr.mxu0 0.0
    %2163 = vmatpush1.xpose.msra.mxu0 0.0
    %2164 = vmatprep.subr.mxu0 0.0
    %2165 = vmatpush1.xpose.msra.mxu0 0.0
    %2166 = vmatprep.subr.mxu0 0.0
    %2167 = vmatpush1.xpose.msra.mxu0 0.0
    %2168 = vmatprep.subr.mxu0 0.0
    %2169 = vmatpush1.xpose.msra.mxu0 0.0
    %2170 = vmatprep.subr.mxu0 0.0
    %2171 = vmatpush1.xpose.msra.mxu0 0.0
    %2172 = vmatprep.subr.mxu0 0.0
    %2173 = vmatpush1.xpose.msra.mxu0 0.0
    %2174 = vmatprep.subr.mxu0 0.0
    %2175 = vmatpush1.xpose.msra.mxu0 0.0
    %2176 = vmatprep.subr.mxu0 0.0
    %2177 = vmatpush1.xpose.msra.mxu0 0.0
    %2178 = vmatprep.subr.mxu0 0.0
    %2179 = vmatpush1.xpose.msra.mxu0 0.0
    %2180 = vmatprep.subr.mxu0 0.0
    %2181 = vmatpush1.xpose.msra.mxu0 0.0
    %2182 = vmatprep.subr.mxu0 0.0
    %2183 = vmatpush1.xpose.msra.mxu0 0.0
    %2184 = vmatprep.subr.mxu0 0.0
    %2185 = vmatpush1.xpose.msra.mxu0 0.0
    %2186 = vmatprep.subr.mxu0 0.0
    %2187 = vmatpush1.xpose.msra.mxu0 0.0
    %2188 = vmatprep.subr.mxu0 0.0
    %2189 = vmatpush1.xpose.msra.mxu0 0.0
    %2190 = vmatprep.subr.mxu0 0.0
    %2191 = vmatpush1.xpose.msra.mxu0 0.0
    %2192 = vmatprep.subr.mxu0 0.0
    %2193 = vmatpush1.xpose.msra.mxu0 0.0
    %2194 = vmatprep.subr.mxu0 0.0
    %2195 = vmatpush1.xpose.msra.mxu0 0.0
    %2196 = vmatprep.subr.mxu0 0.0
    %2197 = vmatpush1.xpose.msra.mxu0 0.0
    %2198 = vmatprep.subr.mxu0 0.0
    %2199 = vmatpush1.xpose.msra.mxu0 0.0
    %2200 = vmatprep.subr.mxu0 0.0
    %2201 = vmatpush1.xpose.msra.mxu0 0.0
    %2202 = vmatprep.mubr.f32.mxu0 0.0
    %2203 = vmatmul.mubr.f32.gmra.mrb[0].mxu0 %v2133
    %v2204 = vpop.f32.mrb[0].mxu0
    %v2205 = vadd.f32 0.0, %v2204
    %v2206 = vpop.f32.mrb[0].mxu0
    %2207 = vdwg.mxu0
    %v2209 = vsel %vm1827, %v564, 0
    %v2212 = vsel %vm1827, %v1124, 0
    %2214 = vmatprep.subr.mxu0 0.0
    %2215 = vmatpush1.xpose.msra.mxu0 %v2212
    %2216 = vmatprep.subr.mxu0 0.0
    %2217 = vmatpush1.xpose.msra.mxu0 0.0
    %2218 = vmatprep.subr.mxu0 0.0
    %2219 = vmatpush1.xpose.msra.mxu0 0.0
    %2220 = vmatprep.subr.mxu0 0.0
    %2221 = vmatpush1.xpose.msra.mxu0 0.0
    %2222 = vmatprep.subr.mxu0 0.0
    %2223 = vmatpush1.xpose.msra.mxu0 0.0
    %2224 = vmatprep.subr.mxu0 0.0
    %2225 = vmatpush1.xpose.msra.mxu0 0.0
    %2226 = vmatprep.subr.mxu0 0.0
    %2227 = vmatpush1.xpose.msra.mxu0 0.0
    %2228 = vmatprep.subr.mxu0 0.0
    %2229 = vmatpush1.xpose.msra.mxu0 0.0
    %2230 = vmatprep.subr.mxu0 0.0
    %2231 = vmatpush1.xpose.msra.mxu0 0.0
    %2232 = vmatprep.subr.mxu0 0.0
    %2233 = vmatpush1.xpose.msra.mxu0 0.0
    %2234 = vmatprep.subr.mxu0 0.0
    %2235 = vmatpush1.xpose.msra.mxu0 0.0
    %2236 = vmatprep.subr.mxu0 0.0
    %2237 = vmatpush1.xpose.msra.mxu0 0.0
    %2238 = vmatprep.subr.mxu0 0.0
    %2239 = vmatpush1.xpose.msra.mxu0 0.0
    %2240 = vmatprep.subr.mxu0 0.0
    %2241 = vmatpush1.xpose.msra.mxu0 0.0
    %2242 = vmatprep.subr.mxu0 0.0
    %2243 = vmatpush1.xpose.msra.mxu0 0.0
    %2244 = vmatprep.subr.mxu0 0.0
    %2245 = vmatpush1.xpose.msra.mxu0 0.0
    %2246 = vmatprep.subr.mxu0 0.0
    %2247 = vmatpush1.xpose.msra.mxu0 0.0
    %2248 = vmatprep.subr.mxu0 0.0
    %2249 = vmatpush1.xpose.msra.mxu0 0.0
    %2250 = vmatprep.subr.mxu0 0.0
    %2251 = vmatpush1.xpose.msra.mxu0 0.0
    %2252 = vmatprep.subr.mxu0 0.0
    %2253 = vmatpush1.xpose.msra.mxu0 0.0
    %2254 = vmatprep.subr.mxu0 0.0
    %2255 = vmatpush1.xpose.msra.mxu0 0.0
    %2256 = vmatprep.subr.mxu0 0.0
    %2257 = vmatpush1.xpose.msra.mxu0 0.0
    %2258 = vmatprep.subr.mxu0 0.0
    %2259 = vmatpush1.xpose.msra.mxu0 0.0
    %2260 = vmatprep.subr.mxu0 0.0
    %2261 = vmatpush1.xpose.msra.mxu0 0.0
    %2262 = vmatprep.subr.mxu0 0.0
    %2263 = vmatpush1.xpose.msra.mxu0 0.0
    %2264 = vmatprep.subr.mxu0 0.0
    %2265 = vmatpush1.xpose.msra.mxu0 0.0
    %2266 = vmatprep.subr.mxu0 0.0
    %2267 = vmatpush1.xpose.msra.mxu0 0.0
    %2268 = vmatprep.subr.mxu0 0.0
    %2269 = vmatpush1.xpose.msra.mxu0 0.0
    %2270 = vmatprep.subr.mxu0 0.0
    %2271 = vmatpush1.xpose.msra.mxu0 0.0
    %2272 = vmatprep.subr.mxu0 0.0
    %2273 = vmatpush1.xpose.msra.mxu0 0.0
    %2274 = vmatprep.subr.mxu0 0.0
    %2275 = vmatpush1.xpose.msra.mxu0 0.0
    %2276 = vmatprep.subr.mxu0 0.0
    %2277 = vmatpush1.xpose.msra.mxu0 0.0
    %2278 = vmatprep.mubr.f32.mxu0 0.0
    %2279 = vmatmul.mubr.f32.gmra.mrb[0].mxu0 %v2209
    %v2280 = vpop.f32.mrb[0].mxu0
    %v2281 = vadd.f32 0.0, %v2280
    %v2282 = vpop.f32.mrb[0].mxu0
    %2283 = vdwg.mxu0
    %v2285 = vsel %vm1827, %v634, 0
    %v2288 = vsel %vm1827, %v1194, 0
    %2290 = vmatprep.subr.mxu0 0.0
    %2291 = vmatpush1.xpose.msra.mxu0 %v2288
    %2292 = vmatprep.subr.mxu0 0.0
    %2293 = vmatpush1.xpose.msra.mxu0 0.0
    %2294 = vmatprep.subr.mxu0 0.0
    %2295 = vmatpush1.xpose.msra.mxu0 0.0
    %2296 = vmatprep.subr.mxu0 0.0
    %2297 = vmatpush1.xpose.msra.mxu0 0.0
    %2298 = vmatprep.subr.mxu0 0.0
    %2299 = vmatpush1.xpose.msra.mxu0 0.0
    %2300 = vmatprep.subr.mxu0 0.0
    %2301 = vmatpush1.xpose.msra.mxu0 0.0
    %2302 = vmatprep.subr.mxu0 0.0
    %2303 = vmatpush1.xpose.msra.mxu0 0.0
    %2304 = vmatprep.subr.mxu0 0.0
    %2305 = vmatpush1.xpose.msra.mxu0 0.0
    %2306 = vmatprep.subr.mxu0 0.0
    %2307 = vmatpush1.xpose.msra.mxu0 0.0
    %2308 = vmatprep.subr.mxu0 0.0
    %2309 = vmatpush1.xpose.msra.mxu0 0.0
    %2310 = vmatprep.subr.mxu0 0.0
    %2311 = vmatpush1.xpose.msra.mxu0 0.0
    %2312 = vmatprep.subr.mxu0 0.0
    %2313 = vmatpush1.xpose.msra.mxu0 0.0
    %2314 = vmatprep.subr.mxu0 0.0
    %2315 = vmatpush1.xpose.msra.mxu0 0.0
    %2316 = vmatprep.subr.mxu0 0.0
    %2317 = vmatpush1.xpose.msra.mxu0 0.0
    %2318 = vmatprep.subr.mxu0 0.0
    %2319 = vmatpush1.xpose.msra.mxu0 0.0
    %2320 = vmatprep.subr.mxu0 0.0
    %2321 = vmatpush1.xpose.msra.mxu0 0.0
    %2322 = vmatprep.subr.mxu0 0.0
    %2323 = vmatpush1.xpose.msra.mxu0 0.0
    %2324 = vmatprep.subr.mxu0 0.0
    %2325 = vmatpush1.xpose.msra.mxu0 0.0
    %2326 = vmatprep.subr.mxu0 0.0
    %2327 = vmatpush1.xpose.msra.mxu0 0.0
    %2328 = vmatprep.subr.mxu0 0.0
    %2329 = vmatpush1.xpose.msra.mxu0 0.0
    %2330 = vmatprep.subr.mxu0 0.0
    %2331 = vmatpush1.xpose.msra.mxu0 0.0
    %2332 = vmatprep.subr.mxu0 0.0
    %2333 = vmatpush1.xpose.msra.mxu0 0.0
    %2334 = vmatprep.subr.mxu0 0.0
    %2335 = vmatpush1.xpose.msra.mxu0 0.0
    %2336 = vmatprep.subr.mxu0 0.0
    %2337 = vmatpush1.xpose.msra.mxu0 0.0
    %2338 = vmatprep.subr.mxu0 0.0
    %2339 = vmatpush1.xpose.msra.mxu0 0.0
    %2340 = vmatprep.subr.mxu0 0.0
    %2341 = vmatpush1.xpose.msra.mxu0 0.0
    %2342 = vmatprep.subr.mxu0 0.0
    %2343 = vmatpush1.xpose.msra.mxu0 0.0
    %2344 = vmatprep.subr.mxu0 0.0
    %2345 = vmatpush1.xpose.msra.mxu0 0.0
    %2346 = vmatprep.subr.mxu0 0.0
    %2347 = vmatpush1.xpose.msra.mxu0 0.0
    %2348 = vmatprep.subr.mxu0 0.0
    %2349 = vmatpush1.xpose.msra.mxu0 0.0
    %2350 = vmatprep.subr.mxu0 0.0
    %2351 = vmatpush1.xpose.msra.mxu0 0.0
    %2352 = vmatprep.subr.mxu0 0.0
    %2353 = vmatpush1.xpose.msra.mxu0 0.0
    %2354 = vmatprep.mubr.f32.mxu0 0.0
    %2355 = vmatmul.mubr.f32.gmra.mrb[0].mxu0 %v2285
    %v2356 = vpop.f32.mrb[0].mxu0
    %v2357 = vadd.f32 0.0, %v2356
    %v2358 = vpop.f32.mrb[0].mxu0
    %2359 = vdwg.mxu0
    %v2361 = vsel %vm1827, %v704, 0
    %v2364 = vsel %vm1827, %v1264, 0
    %2366 = vmatprep.subr.mxu0 0.0
    %2367 = vmatpush1.xpose.msra.mxu0 %v2364
    %2368 = vmatprep.subr.mxu0 0.0
    %2369 = vmatpush1.xpose.msra.mxu0 0.0
    %2370 = vmatprep.subr.mxu0 0.0
    %2371 = vmatpush1.xpose.msra.mxu0 0.0
    %2372 = vmatprep.subr.mxu0 0.0
    %2373 = vmatpush1.xpose.msra.mxu0 0.0
    %2374 = vmatprep.subr.mxu0 0.0
    %2375 = vmatpush1.xpose.msra.mxu0 0.0
    %2376 = vmatprep.subr.mxu0 0.0
    %2377 = vmatpush1.xpose.msra.mxu0 0.0
    %2378 = vmatprep.subr.mxu0 0.0
    %2379 = vmatpush1.xpose.msra.mxu0 0.0
    %2380 = vmatprep.subr.mxu0 0.0
    %2381 = vmatpush1.xpose.msra.mxu0 0.0
    %2382 = vmatprep.subr.mxu0 0.0
    %2383 = vmatpush1.xpose.msra.mxu0 0.0
    %2384 = vmatprep.subr.mxu0 0.0
    %2385 = vmatpush1.xpose.msra.mxu0 0.0
    %2386 = vmatprep.subr.mxu0 0.0
    %2387 = vmatpush1.xpose.msra.mxu0 0.0
    %2388 = vmatprep.subr.mxu0 0.0
    %2389 = vmatpush1.xpose.msra.mxu0 0.0
    %2390 = vmatprep.subr.mxu0 0.0
    %2391 = vmatpush1.xpose.msra.mxu0 0.0
    %2392 = vmatprep.subr.mxu0 0.0
    %2393 = vmatpush1.xpose.msra.mxu0 0.0
    %2394 = vmatprep.subr.mxu0 0.0
    %2395 = vmatpush1.xpose.msra.mxu0 0.0
    %2396 = vmatprep.subr.mxu0 0.0
    %2397 = vmatpush1.xpose.msra.mxu0 0.0
    %2398 = vmatprep.subr.mxu0 0.0
    %2399 = vmatpush1.xpose.msra.mxu0 0.0
    %2400 = vmatprep.subr.mxu0 0.0
    %2401 = vmatpush1.xpose.msra.mxu0 0.0
    %2402 = vmatprep.subr.mxu0 0.0
    %2403 = vmatpush1.xpose.msra.mxu0 0.0
    %2404 = vmatprep.subr.mxu0 0.0
    %2405 = vmatpush1.xpose.msra.mxu0 0.0
    %2406 = vmatprep.subr.mxu0 0.0
    %2407 = vmatpush1.xpose.msra.mxu0 0.0
    %2408 = vmatprep.subr.mxu0 0.0
    %2409 = vmatpush1.xpose.msra.mxu0 0.0
    %2410 = vmatprep.subr.mxu0 0.0
    %2411 = vmatpush1.xpose.msra.mxu0 0.0
    %2412 = vmatprep.subr.mxu0 0.0
    %2413 = vmatpush1.xpose.msra.mxu0 0.0
    %2414 = vmatprep.subr.mxu0 0.0
    %2415 = vmatpush1.xpose.msra.mxu0 0.0
    %2416 = vmatprep.subr.mxu0 0.0
    %2417 = vmatpush1.xpose.msra.mxu0 0.0
    %2418 = vmatprep.subr.mxu0 0.0
    %2419 = vmatpush1.xpose.msra.mxu0 0.0
    %2420 = vmatprep.subr.mxu0 0.0
    %2421 = vmatpush1.xpose.msra.mxu0 0.0
    %2422 = vmatprep.subr.mxu0 0.0
    %2423 = vmatpush1.xpose.msra.mxu0 0.0
    %2424 = vmatprep.subr.mxu0 0.0
    %2425 = vmatpush1.xpose.msra.mxu0 0.0
    %2426 = vmatprep.subr.mxu0 0.0
    %2427 = vmatpush1.xpose.msra.mxu0 0.0
    %2428 = vmatprep.subr.mxu0 0.0
    %2429 = vmatpush1.xpose.msra.mxu0 0.0
    %2430 = vmatprep.mubr.f32.mxu0 0.0
    %2431 = vmatmul.mubr.f32.gmra.mrb[0].mxu0 %v2361
    %v2432 = vpop.f32.mrb[0].mxu0
    %v2433 = vadd.f32 0.0, %v2432
    %v2434 = vpop.f32.mrb[0].mxu0
    %2435 = vdwg.mxu0
    %v2436 = vmul.f32 %v1901, 0.35355338
    %v2437 = vmul.f32 %v1977, 0.35355338
    %v2438 = vmul.f32 %v2053, 0.35355338
    %v2439 = vmul.f32 %v2129, 0.35355338
    %v2440 = vmul.f32 %v2205, 0.35355338
    %v2441 = vmul.f32 %v2281, 0.35355338
    %v2442 = vmul.f32 %v2357, 0.35355338
    %v2443 = vmul.f32 %v2433, 0.35355338
    %v2444 = vsel %vm87, -1000000.0, %v2436
    %v2445 = vsel %vm87, -1000000.0, %v2437
    %v2446 = vsel %vm87, -1000000.0, %v2438
    %v2447 = vsel %vm87, -1000000.0, %v2439
    %v2448 = vsel %vm87, -1000000.0, %v2440
    %v2449 = vsel %vm87, -1000000.0, %v2441
    %v2450 = vsel %vm87, -1000000.0, %v2442
    %v2451 = vsel %vm87, -1000000.0, %v2443
    %v2452 = vsel %vm1827, %v2444, -inf
    %2453 = vmax.xlane.f32.xlu0 %v2452
    %v2454 = vpop.xlane.xlu0 %2453
    %v2455 = vsel %vm1827, %v2445, -inf
    %2456 = vmax.xlane.f32.xlu0 %v2455
    %v2457 = vpop.xlane.xlu0 %2456
    %v2458 = vsel %vm1827, %v2446, -inf
    %2459 = vmax.xlane.f32.xlu0 %v2458
    %v2460 = vpop.xlane.xlu0 %2459
    %v2461 = vsel %vm1827, %v2447, -inf
    %2462 = vmax.xlane.f32.xlu0 %v2461
    %v2463 = vpop.xlane.xlu0 %2462
    %v2464 = vsel %vm1827, %v2448, -inf
    %2465 = vmax.xlane.f32.xlu0 %v2464
    %v2466 = vpop.xlane.xlu0 %2465
    %v2467 = vsel %vm1827, %v2449, -inf
    %2468 = vmax.xlane.f32.xlu0 %v2467
    %v2469 = vpop.xlane.xlu0 %2468
    %v2470 = vsel %vm1827, %v2450, -inf
    %2471 = vmax.xlane.f32.xlu0 %v2470
    %v2472 = vpop.xlane.xlu0 %2471
    %v2473 = vsel %vm1827, %v2451, -inf
    %2474 = vmax.xlane.f32.xlu0 %v2473
    %v2475 = vpop.xlane.xlu0 %2474
    %v2476 = vsub.f32 %v2444, %v2454
    %v2477 = vsub.f32 %v2445, %v2457
    %v2478 = vsub.f32 %v2446, %v2460
    %v2479 = vsub.f32 %v2447, %v2463
    %v2480 = vsub.f32 %v2448, %v2466
    %v2481 = vsub.f32 %v2449, %v2469
    %v2482 = vsub.f32 %v2450, %v2472
    %v2483 = vsub.f32 %v2451, %v2475
    %v2484 = vmul.f32 %v2476, 1.442695
    %v2485 = vpow.pop %v2484
    %v2486 = vmul.f32 %v2477, 1.442695
    %v2487 = vpow.pop %v2486
    %v2488 = vmul.f32 %v2478, 1.442695
    %v2489 = vpow.pop %v2488
    %v2490 = vmul.f32 %v2479, 1.442695
    %v2491 = vpow.pop %v2490
    %v2492 = vmul.f32 %v2480, 1.442695
    %v2493 = vpow.pop %v2492
    %v2494 = vmul.f32 %v2481, 1.442695
    %v2495 = vpow.pop %v2494
    %v2496 = vmul.f32 %v2482, 1.442695
    %v2497 = vpow.pop %v2496
    %v2498 = vmul.f32 %v2483, 1.442695
    %v2499 = vpow.pop %v2498
    %v2500 = vsel %vm1827, %v2485, 0.0
    %2501 = vadd.xlane.f32.xlu0 %v2500
    %v2502 = vpop.xlane.xlu0 %2501
    %v2503 = vsel %vm1827, %v2487, 0.0
    %2504 = vadd.xlane.f32.xlu0 %v2503
    %v2505 = vpop.xlane.xlu0 %2504
    %v2506 = vsel %vm1827, %v2489, 0.0
    %2507 = vadd.xlane.f32.xlu0 %v2506
    %v2508 = vpop.xlane.xlu0 %2507
    %v2509 = vsel %vm1827, %v2491, 0.0
    %2510 = vadd.xlane.f32.xlu0 %v2509
    %v2511 = vpop.xlane.xlu0 %2510
    %v2512 = vsel %vm1827, %v2493, 0.0
    %2513 = vadd.xlane.f32.xlu0 %v2512
    %v2514 = vpop.xlane.xlu0 %2513
    %v2515 = vsel %vm1827, %v2495, 0.0
    %2516 = vadd.xlane.f32.xlu0 %v2515
    %v2517 = vpop.xlane.xlu0 %2516
    %v2518 = vsel %vm1827, %v2497, 0.0
    %2519 = vadd.xlane.f32.xlu0 %v2518
    %v2520 = vpop.xlane.xlu0 %2519
    %v2521 = vsel %vm1827, %v2499, 0.0
    %2522 = vadd.xlane.f32.xlu0 %v2521
    %v2523 = vpop.xlane.xlu0 %2522
    %v2524 = vrcp.pop %v2502
    %v2525 = vrcp.pop %v2505
    %v2526 = vrcp.pop %v2508
    %v2527 = vrcp.pop %v2511
    %v2528 = vrcp.pop %v2514
    %v2529 = vrcp.pop %v2517
    %v2530 = vrcp.pop %v2520
    %v2531 = vrcp.pop %v2523
    %v2532 = vmul.f32 %v2485, %v2524
    %v2533 = vmul.f32 %v2487, %v2525
    %v2534 = vmul.f32 %v2489, %v2526
    %v2535 = vmul.f32 %v2491, %v2527
    %v2536 = vmul.f32 %v2493, %v2528
    %v2537 = vmul.f32 %v2495, %v2529
    %v2538 = vmul.f32 %v2497, %v2530
    %v2539 = vmul.f32 %v2499, %v2531
    %v2541 = vsel %vm1827, %v2532, 0
    %2543 = vmatprep.subr.mxu0 0.0
    %2544 = vmatpush1.msra.mxu0 %v1334
    %2545 = vmatprep.subr.mxu0 0.0
    %2546 = vmatpush1.msra.mxu0 0.0
    %2547 = vmatprep.subr.mxu0 0.0
    %2548 = vmatpush1.msra.mxu0 0.0
    %2549 = vmatprep.subr.mxu0 0.0
    %2550 = vmatpush1.msra.mxu0 0.0
    %2551 = vmatprep.subr.mxu0 0.0
    %2552 = vmatpush1.msra.mxu0 0.0
    %2553 = vmatprep.subr.mxu0 0.0
    %2554 = vmatpush1.msra.mxu0 0.0
    %2555 = vmatprep.subr.mxu0 0.0
    %2556 = vmatpush1.msra.mxu0 0.0
    %2557 = vmatprep.subr.mxu0 0.0
    %2558 = vmatpush1.msra.mxu0 0.0
    %2559 = vmatprep.subr.mxu0 0.0
    %2560 = vmatpush1.msra.mxu0 0.0
    %2561 = vmatprep.subr.mxu0 0.0
    %2562 = vmatpush1.msra.mxu0 0.0
    %2563 = vmatprep.subr.mxu0 0.0
    %2564 = vmatpush1.msra.mxu0 0.0
    %2565 = vmatprep.subr.mxu0 0.0
    %2566 = vmatpush1.msra.mxu0 0.0
    %2567 = vmatprep.subr.mxu0 0.0
    %2568 = vmatpush1.msra.mxu0 0.0
    %2569 = vmatprep.subr.mxu0 0.0
    %2570 = vmatpush1.msra.mxu0 0.0
    %2571 = vmatprep.subr.mxu0 0.0
    %2572 = vmatpush1.msra.mxu0 0.0
    %2573 = vmatprep.subr.mxu0 0.0
    %2574 = vmatpush1.msra.mxu0 0.0
    %2575 = vmatprep.subr.mxu0 0.0
    %2576 = vmatpush1.msra.mxu0 0.0
    %2577 = vmatprep.subr.mxu0 0.0
    %2578 = vmatpush1.msra.mxu0 0.0
    %2579 = vmatprep.subr.mxu0 0.0
    %2580 = vmatpush1.msra.mxu0 0.0
    %2581 = vmatprep.subr.mxu0 0.0
    %2582 = vmatpush1.msra.mxu0 0.0
    %2583 = vmatprep.subr.mxu0 0.0
    %2584 = vmatpush1.msra.mxu0 0.0
    %2585 = vmatprep.subr.mxu0 0.0
    %2586 = vmatpush1.msra.mxu0 0.0
    %2587 = vmatprep.subr.mxu0 0.0
    %2588 = vmatpush1.msra.mxu0 0.0
    %2589 = vmatprep.subr.mxu0 0.0
    %2590 = vmatpush1.msra.mxu0 0.0
    %2591 = vmatprep.subr.mxu0 0.0
    %2592 = vmatpush1.msra.mxu0 0.0
    %2593 = vmatprep.subr.mxu0 0.0
    %2594 = vmatpush1.msra.mxu0 0.0
    %2595 = vmatprep.subr.mxu0 0.0
    %2596 = vmatpush1.msra.mxu0 0.0
    %2597 = vmatprep.subr.mxu0 0.0
    %2598 = vmatpush1.msra.mxu0 0.0
    %2599 = vmatprep.subr.mxu0 0.0
    %2600 = vmatpush1.msra.mxu0 0.0
    %2601 = vmatprep.subr.mxu0 0.0
    %2602 = vmatpush1.msra.mxu0 0.0
    %2603 = vmatprep.subr.mxu0 0.0
    %2604 = vmatpush1.msra.mxu0 0.0
    %2605 = vmatprep.subr.mxu0 0.0
    %2606 = vmatpush1.msra.mxu0 0.0
    %2607 = vmatprep.mubr.f32.mxu0 0.0
    %2608 = vmatmul.mubr.f32.gmra.mrb[0].mxu0 %v2541
    %v2609 = vpop.f32.mrb[0].mxu0
    %v2610 = vadd.f32 0.0, %v2609
    %v2611 = vpop.f32.mrb[0].mxu0
    %2612 = vdwg.mxu0
    %v2614 = vsel %vm1827, %v2533, 0
    %2616 = vmatprep.subr.mxu0 0.0
    %2617 = vmatpush1.msra.mxu0 %v1404
    %2618 = vmatprep.subr.mxu0 0.0
    %2619 = vmatpush1.msra.mxu0 0.0
    %2620 = vmatprep.subr.mxu0 0.0
    %2621 = vmatpush1.msra.mxu0 0.0
    %2622 = vmatprep.subr.mxu0 0.0
    %2623 = vmatpush1.msra.mxu0 0.0
    %2624 = vmatprep.subr.mxu0 0.0
    %2625 = vmatpush1.msra.mxu0 0.0
    %2626 = vmatprep.subr.mxu0 0.0
    %2627 = vmatpush1.msra.mxu0 0.0
    %2628 = vmatprep.subr.mxu0 0.0
    %2629 = vmatpush1.msra.mxu0 0.0
    %2630 = vmatprep.subr.mxu0 0.0
    %2631 = vmatpush1.msra.mxu0 0.0
    %2632 = vmatprep.subr.mxu0 0.0
    %2633 = vmatpush1.msra.mxu0 0.0
    %2634 = vmatprep.subr.mxu0 0.0
    %2635 = vmatpush1.msra.mxu0 0.0
    %2636 = vmatprep.subr.mxu0 0.0
    %2637 = vmatpush1.msra.mxu0 0.0
    %2638 = vmatprep.subr.mxu0 0.0
    %2639 = vmatpush1.msra.mxu0 0.0
    %2640 = vmatprep.subr.mxu0 0.0
    %2641 = vmatpush1.msra.mxu0 0.0
    %2642 = vmatprep.subr.mxu0 0.0
    %2643 = vmatpush1.msra.mxu0 0.0
    %2644 = vmatprep.subr.mxu0 0.0
    %2645 = vmatpush1.msra.mxu0 0.0
    %2646 = vmatprep.subr.mxu0 0.0
    %2647 = vmatpush1.msra.mxu0 0.0
    %2648 = vmatprep.subr.mxu0 0.0
    %2649 = vmatpush1.msra.mxu0 0.0
    %2650 = vmatprep.subr.mxu0 0.0
    %2651 = vmatpush1.msra.mxu0 0.0
    %2652 = vmatprep.subr.mxu0 0.0
    %2653 = vmatpush1.msra.mxu0 0.0
    %2654 = vmatprep.subr.mxu0 0.0
    %2655 = vmatpush1.msra.mxu0 0.0
    %2656 = vmatprep.subr.mxu0 0.0
    %2657 = vmatpush1.msra.mxu0 0.0
    %2658 = vmatprep.subr.mxu0 0.0
    %2659 = vmatpush1.msra.mxu0 0.0
    %2660 = vmatprep.subr.mxu0 0.0
    %2661 = vmatpush1.msra.mxu0 0.0
    %2662 = vmatprep.subr.mxu0 0.0
    %2663 = vmatpush1.msra.mxu0 0.0
    %2664 = vmatprep.subr.mxu0 0.0
    %2665 = vmatpush1.msra.mxu0 0.0
    %2666 = vmatprep.subr.mxu0 0.0
    %2667 = vmatpush1.msra.mxu0 0.0
    %2668 = vmatprep.subr.mxu0 0.0
    %2669 = vmatpush1.msra.mxu0 0.0
    %2670 = vmatprep.subr.mxu0 0.0
    %2671 = vmatpush1.msra.mxu0 0.0
    %2672 = vmatprep.subr.mxu0 0.0
    %2673 = vmatpush1.msra.mxu0 0.0
    %2674 = vmatprep.subr.mxu0 0.0
    %2675 = vmatpush1.msra.mxu0 0.0
    %2676 = vmatprep.subr.mxu0 0.0
    %2677 = vmatpush1.msra.mxu0 0.0
    %2678 = vmatprep.subr.mxu0 0.0
    %2679 = vmatpush1.msra.mxu0 0.0
    %2680 = vmatprep.mubr.f32.mxu0 0.0
    %2681 = vmatmul.mubr.f32.gmra.mrb[0].mxu0 %v2614
    %v2682 = vpop.f32.mrb[0].mxu0
    %v2683 = vadd.f32 0.0, %v2682
    %v2684 = vpop.f32.mrb[0].mxu0
    %2685 = vdwg.mxu0
    %v2687 = vsel %vm1827, %v2534, 0
    %2689 = vmatprep.subr.mxu0 0.0
    %2690 = vmatpush1.msra.mxu0 %v1474
    %2691 = vmatprep.subr.mxu0 0.0
    %2692 = vmatpush1.msra.mxu0 0.0
    %2693 = vmatprep.subr.mxu0 0.0
    %2694 = vmatpush1.msra.mxu0 0.0
    %2695 = vmatprep.subr.mxu0 0.0
    %2696 = vmatpush1.msra.mxu0 0.0
    %2697 = vmatprep.subr.mxu0 0.0
    %2698 = vmatpush1.msra.mxu0 0.0
    %2699 = vmatprep.subr.mxu0 0.0
    %2700 = vmatpush1.msra.mxu0 0.0
    %2701 = vmatprep.subr.mxu0 0.0
    %2702 = vmatpush1.msra.mxu0 0.0
    %2703 = vmatprep.subr.mxu0 0.0
    %2704 = vmatpush1.msra.mxu0 0.0
    %2705 = vmatprep.subr.mxu0 0.0
    %2706 = vmatpush1.msra.mxu0 0.0
    %2707 = vmatprep.subr.mxu0 0.0
    %2708 = vmatpush1.msra.mxu0 0.0
    %2709 = vmatprep.subr.mxu0 0.0
    %2710 = vmatpush1.msra.mxu0 0.0
    %2711 = vmatprep.subr.mxu0 0.0
    %2712 = vmatpush1.msra.mxu0 0.0
    %2713 = vmatprep.subr.mxu0 0.0
    %2714 = vmatpush1.msra.mxu0 0.0
    %2715 = vmatprep.subr.mxu0 0.0
    %2716 = vmatpush1.msra.mxu0 0.0
    %2717 = vmatprep.subr.mxu0 0.0
    %2718 = vmatpush1.msra.mxu0 0.0
    %2719 = vmatprep.subr.mxu0 0.0
    %2720 = vmatpush1.msra.mxu0 0.0
    %2721 = vmatprep.subr.mxu0 0.0
    %2722 = vmatpush1.msra.mxu0 0.0
    %2723 = vmatprep.subr.mxu0 0.0
    %2724 = vmatpush1.msra.mxu0 0.0
    %2725 = vmatprep.subr.mxu0 0.0
    %2726 = vmatpush1.msra.mxu0 0.0
    %2727 = vmatprep.subr.mxu0 0.0
    %2728 = vmatpush1.msra.mxu0 0.0
    %2729 = vmatprep.subr.mxu0 0.0
    %2730 = vmatpush1.msra.mxu0 0.0
    %2731 = vmatprep.subr.mxu0 0.0
    %2732 = vmatpush1.msra.mxu0 0.0
    %2733 = vmatprep.subr.mxu0 0.0
    %2734 = vmatpush1.msra.mxu0 0.0
    %2735 = vmatprep.subr.mxu0 0.0
    %2736 = vmatpush1.msra.mxu0 0.0
    %2737 = vmatprep.subr.mxu0 0.0
    %2738 = vmatpush1.msra.mxu0 0.0
    %2739 = vmatprep.subr.mxu0 0.0
    %2740 = vmatpush1.msra.mxu0 0.0
    %2741 = vmatprep.subr.mxu0 0.0
    %2742 = vmatpush1.msra.mxu0 0.0
    %2743 = vmatprep.subr.mxu0 0.0
    %2744 = vmatpush1.msra.mxu0 0.0
    %2745 = vmatprep.subr.mxu0 0.0
    %2746 = vmatpush1.msra.mxu0 0.0
    %2747 = vmatprep.subr.mxu0 0.0
    %2748 = vmatpush1.msra.mxu0 0.0
    %2749 = vmatprep.subr.mxu0 0.0
    %2750 = vmatpush1.msra.mxu0 0.0
    %2751 = vmatprep.subr.mxu0 0.0
    %2752 = vmatpush1.msra.mxu0 0.0
    %2753 = vmatprep.mubr.f32.mxu0 0.0
    %2754 = vmatmul.mubr.f32.gmra.mrb[0].mxu0 %v2687
    %v2755 = vpop.f32.mrb[0].mxu0
    %v2756 = vadd.f32 0.0, %v2755
    %v2757 = vpop.f32.mrb[0].mxu0
    %2758 = vdwg.mxu0
    %v2760 = vsel %vm1827, %v2535, 0
    %2762 = vmatprep.subr.mxu0 0.0
    %2763 = vmatpush1.msra.mxu0 %v1544
    %2764 = vmatprep.subr.mxu0 0.0
    %2765 = vmatpush1.msra.mxu0 0.0
    %2766 = vmatprep.subr.mxu0 0.0
    %2767 = vmatpush1.msra.mxu0 0.0
    %2768 = vmatprep.subr.mxu0 0.0
    %2769 = vmatpush1.msra.mxu0 0.0
    %2770 = vmatprep.subr.mxu0 0.0
    %2771 = vmatpush1.msra.mxu0 0.0
    %2772 = vmatprep.subr.mxu0 0.0
    %2773 = vmatpush1.msra.mxu0 0.0
    %2774 = vmatprep.subr.mxu0 0.0
    %2775 = vmatpush1.msra.mxu0 0.0
    %2776 = vmatprep.subr.mxu0 0.0
    %2777 = vmatpush1.msra.mxu0 0.0
    %2778 = vmatprep.subr.mxu0 0.0
    %2779 = vmatpush1.msra.mxu0 0.0
    %2780 = vmatprep.subr.mxu0 0.0
    %2781 = vmatpush1.msra.mxu0 0.0
    %2782 = vmatprep.subr.mxu0 0.0
    %2783 = vmatpush1.msra.mxu0 0.0
    %2784 = vmatprep.subr.mxu0 0.0
    %2785 = vmatpush1.msra.mxu0 0.0
    %2786 = vmatprep.subr.mxu0 0.0
    %2787 = vmatpush1.msra.mxu0 0.0
    %2788 = vmatprep.subr.mxu0 0.0
    %2789 = vmatpush1.msra.mxu0 0.0
    %2790 = vmatprep.subr.mxu0 0.0
    %2791 = vmatpush1.msra.mxu0 0.0
    %2792 = vmatprep.subr.mxu0 0.0
    %2793 = vmatpush1.msra.mxu0 0.0
    %2794 = vmatprep.subr.mxu0 0.0
    %2795 = vmatpush1.msra.mxu0 0.0
    %2796 = vmatprep.subr.mxu0 0.0
    %2797 = vmatpush1.msra.mxu0 0.0
    %2798 = vmatprep.subr.mxu0 0.0
    %2799 = vmatpush1.msra.mxu0 0.0
    %2800 = vmatprep.subr.mxu0 0.0
    %2801 = vmatpush1.msra.mxu0 0.0
    %2802 = vmatprep.subr.mxu0 0.0
    %2803 = vmatpush1.msra.mxu0 0.0
    %2804 = vmatprep.subr.mxu0 0.0
    %2805 = vmatpush1.msra.mxu0 0.0
    %2806 = vmatprep.subr.mxu0 0.0
    %2807 = vmatpush1.msra.mxu0 0.0
    %2808 = vmatprep.subr.mxu0 0.0
    %2809 = vmatpush1.msra.mxu0 0.0
    %2810 = vmatprep.subr.mxu0 0.0
    %2811 = vmatpush1.msra.mxu0 0.0
    %2812 = vmatprep.subr.mxu0 0.0
    %2813 = vmatpush1.msra.mxu0 0.0
    %2814 = vmatprep.subr.mxu0 0.0
    %2815 = vmatpush1.msra.mxu0 0.0
    %2816 = vmatprep.subr.mxu0 0.0
    %2817 = vmatpush1.msra.mxu0 0.0
    %2818 = vmatprep.subr.mxu0 0.0
    %2819 = vmatpush1.msra.mxu0 0.0
    %2820 = vmatprep.subr.mxu0 0.0
    %2821 = vmatpush1.msra.mxu0 0.0
    %2822 = vmatprep.subr.mxu0 0.0
    %2823 = vmatpush1.msra.mxu0 0.0
    %2824 = vmatprep.subr.mxu0 0.0
    %2825 = vmatpush1.msra.mxu0 0.0
    %2826 = vmatprep.mubr.f32.mxu0 0.0
    %2827 = vmatmul.mubr.f32.gmra.mrb[0].mxu0 %v2760
    %v2828 = vpop.f32.mrb[0].mxu0
    %v2829 = vadd.f32 0.0, %v2828
    %v2830 = vpop.f32.mrb[0].mxu0
    %2831 = vdwg.mxu0
    %v2833 = vsel %vm1827, %v2536, 0
    %2835 = vmatprep.subr.mxu0 0.0
    %2836 = vmatpush1.msra.mxu0 %v1614
    %2837 = vmatprep.subr.mxu0 0.0
    %2838 = vmatpush1.msra.mxu0 0.0
    %2839 = vmatprep.subr.mxu0 0.0
    %2840 = vmatpush1.msra.mxu0 0.0
    %2841 = vmatprep.subr.mxu0 0.0
    %2842 = vmatpush1.msra.mxu0 0.0
    %2843 = vmatprep.subr.mxu0 0.0
    %2844 = vmatpush1.msra.mxu0 0.0
    %2845 = vmatprep.subr.mxu0 0.0
    %2846 = vmatpush1.msra.mxu0 0.0
    %2847 = vmatprep.subr.mxu0 0.0
    %2848 = vmatpush1.msra.mxu0 0.0
    %2849 = vmatprep.subr.mxu0 0.0
    %2850 = vmatpush1.msra.mxu0 0.0
    %2851 = vmatprep.subr.mxu0 0.0
    %2852 = vmatpush1.msra.mxu0 0.0
    %2853 = vmatprep.subr.mxu0 0.0
    %2854 = vmatpush1.msra.mxu0 0.0
    %2855 = vmatprep.subr.mxu0 0.0
    %2856 = vmatpush1.msra.mxu0 0.0
    %2857 = vmatprep.subr.mxu0 0.0
    %2858 = vmatpush1.msra.mxu0 0.0
    %2859 = vmatprep.subr.mxu0 0.0
    %2860 = vmatpush1.msra.mxu0 0.0
    %2861 = vmatprep.subr.mxu0 0.0
    %2862 = vmatpush1.msra.mxu0 0.0
    %2863 = vmatprep.subr.mxu0 0.0
    %2864 = vmatpush1.msra.mxu0 0.0
    %2865 = vmatprep.subr.mxu0 0.0
    %2866 = vmatpush1.msra.mxu0 0.0
    %2867 = vmatprep.subr.mxu0 0.0
    %2868 = vmatpush1.msra.mxu0 0.0
    %2869 = vmatprep.subr.mxu0 0.0
    %2870 = vmatpush1.msra.mxu0 0.0
    %2871 = vmatprep.subr.mxu0 0.0
    %2872 = vmatpush1.msra.mxu0 0.0
    %2873 = vmatprep.subr.mxu0 0.0
    %2874 = vmatpush1.msra.mxu0 0.0
    %2875 = vmatprep.subr.mxu0 0.0
    %2876 = vmatpush1.msra.mxu0 0.0
    %2877 = vmatprep.subr.mxu0 0.0
    %2878 = vmatpush1.msra.mxu0 0.0
    %2879 = vmatprep.subr.mxu0 0.0
    %2880 = vmatpush1.msra.mxu0 0.0
    %2881 = vmatprep.subr.mxu0 0.0
    %2882 = vmatpush1.msra.mxu0 0.0
    %2883 = vmatprep.subr.mxu0 0.0
    %2884 = vmatpush1.msra.mxu0 0.0
    %2885 = vmatprep.subr.mxu0 0.0
    %2886 = vmatpush1.msra.mxu0 0.0
    %2887 = vmatprep.subr.mxu0 0.0
    %2888 = vmatpush1.msra.mxu0 0.0
    %2889 = vmatprep.subr.mxu0 0.0
    %2890 = vmatpush1.msra.mxu0 0.0
    %2891 = vmatprep.subr.mxu0 0.0
    %2892 = vmatpush1.msra.mxu0 0.0
    %2893 = vmatprep.subr.mxu0 0.0
    %2894 = vmatpush1.msra.mxu0 0.0
    %2895 = vmatprep.subr.mxu0 0.0
    %2896 = vmatpush1.msra.mxu0 0.0
    %2897 = vmatprep.subr.mxu0 0.0
    %2898 = vmatpush1.msra.mxu0 0.0
    %2899 = vmatprep.mubr.f32.mxu0 0.0
    %2900 = vmatmul.mubr.f32.gmra.mrb[0].mxu0 %v2833
    %v2901 = vpop.f32.mrb[0].mxu0
    %v2902 = vadd.f32 0.0, %v2901
    %v2903 = vpop.f32.mrb[0].mxu0
    %2904 = vdwg.mxu0
    %v2906 = vsel %vm1827, %v2537, 0
    %2908 = vmatprep.subr.mxu0 0.0
    %2909 = vmatpush1.msra.mxu0 %v1684
    %2910 = vmatprep.subr.mxu0 0.0
    %2911 = vmatpush1.msra.mxu0 0.0
    %2912 = vmatprep.subr.mxu0 0.0
    %2913 = vmatpush1.msra.mxu0 0.0
    %2914 = vmatprep.subr.mxu0 0.0
    %2915 = vmatpush1.msra.mxu0 0.0
    %2916 = vmatprep.subr.mxu0 0.0
    %2917 = vmatpush1.msra.mxu0 0.0
    %2918 = vmatprep.subr.mxu0 0.0
    %2919 = vmatpush1.msra.mxu0 0.0
    %2920 = vmatprep.subr.mxu0 0.0
    %2921 = vmatpush1.msra.mxu0 0.0
    %2922 = vmatprep.subr.mxu0 0.0
    %2923 = vmatpush1.msra.mxu0 0.0
    %2924 = vmatprep.subr.mxu0 0.0
    %2925 = vmatpush1.msra.mxu0 0.0
    %2926 = vmatprep.subr.mxu0 0.0
    %2927 = vmatpush1.msra.mxu0 0.0
    %2928 = vmatprep.subr.mxu0 0.0
    %2929 = vmatpush1.msra.mxu0 0.0
    %2930 = vmatprep.subr.mxu0 0.0
    %2931 = vmatpush1.msra.mxu0 0.0
    %2932 = vmatprep.subr.mxu0 0.0
    %2933 = vmatpush1.msra.mxu0 0.0
    %2934 = vmatprep.subr.mxu0 0.0
    %2935 = vmatpush1.msra.mxu0 0.0
    %2936 = vmatprep.subr.mxu0 0.0
    %2937 = vmatpush1.msra.mxu0 0.0
    %2938 = vmatprep.subr.mxu0 0.0
    %2939 = vmatpush1.msra.mxu0 0.0
    %2940 = vmatprep.subr.mxu0 0.0
    %2941 = vmatpush1.msra.mxu0 0.0
    %2942 = vmatprep.subr.mxu0 0.0
    %2943 = vmatpush1.msra.mxu0 0.0
    %2944 = vmatprep.subr.mxu0 0.0
    %2945 = vmatpush1.msra.mxu0 0.0
    %2946 = vmatprep.subr.mxu0 0.0
    %2947 = vmatpush1.msra.mxu0 0.0
    %2948 = vmatprep.subr.mxu0 0.0
    %2949 = vmatpush1.msra.mxu0 0.0
    %2950 = vmatprep.subr.mxu0 0.0
    %2951 = vmatpush1.msra.mxu0 0.0
    %2952 = vmatprep.subr.mxu0 0.0
    %2953 = vmatpush1.msra.mxu0 0.0
    %2954 = vmatprep.subr.mxu0 0.0
    %2955 = vmatpush1.msra.mxu0 0.0
    %2956 = vmatprep.subr.mxu0 0.0
    %2957 = vmatpush1.msra.mxu0 0.0
    %2958 = vmatprep.subr.mxu0 0.0
    %2959 = vmatpush1.msra.mxu0 0.0
    %2960 = vmatprep.subr.mxu0 0.0
    %2961 = vmatpush1.msra.mxu0 0.0
    %2962 = vmatprep.subr.mxu0 0.0
    %2963 = vmatpush1.msra.mxu0 0.0
    %2964 = vmatprep.subr.mxu0 0.0
    %2965 = vmatpush1.msra.mxu0 0.0
    %2966 = vmatprep.subr.mxu0 0.0
    %2967 = vmatpush1.msra.mxu0 0.0
    %2968 = vmatprep.subr.mxu0 0.0
    %2969 = vmatpush1.msra.mxu0 0.0
    %2970 = vmatprep.subr.mxu0 0.0
    %2971 = vmatpush1.msra.mxu0 0.0
    %2972 = vmatprep.mubr.f32.mxu0 0.0
    %2973 = vmatmul.mubr.f32.gmra.mrb[0].mxu0 %v2906
    %v2974 = vpop.f32.mrb[0].mxu0
    %v2975 = vadd.f32 0.0, %v2974
    %v2976 = vpop.f32.mrb[0].mxu0
    %2977 = vdwg.mxu0
    %v2979 = vsel %vm1827, %v2538, 0
    %2981 = vmatprep.subr.mxu0 0.0
    %2982 = vmatpush1.msra.mxu0 %v1754
    %2983 = vmatprep.subr.mxu0 0.0
    %2984 = vmatpush1.msra.mxu0 0.0
    %2985 = vmatprep.subr.mxu0 0.0
    %2986 = vmatpush1.msra.mxu0 0.0
    %2987 = vmatprep.subr.mxu0 0.0
    %2988 = vmatpush1.msra.mxu0 0.0
    %2989 = vmatprep.subr.mxu0 0.0
    %2990 = vmatpush1.msra.mxu0 0.0
    %2991 = vmatprep.subr.mxu0 0.0
    %2992 = vmatpush1.msra.mxu0 0.0
    %2993 = vmatprep.subr.mxu0 0.0
    %2994 = vmatpush1.msra.mxu0 0.0
    %2995 = vmatprep.subr.mxu0 0.0
    %2996 = vmatpush1.msra.mxu0 0.0
    %2997 = vmatprep.subr.mxu0 0.0
    %2998 = vmatpush1.msra.mxu0 0.0
    %2999 = vmatprep.subr.mxu0 0.0
    %3000 = vmatpush1.msra.mxu0 0.0
    %3001 = vmatprep.subr.mxu0 0.0
    %3002 = vmatpush1.msra.mxu0 0.0
    %3003 = vmatprep.subr.mxu0 0.0
    %3004 = vmatpush1.msra.mxu0 0.0
    %3005 = vmatprep.subr.mxu0 0.0
    %3006 = vmatpush1.msra.mxu0 0.0
    %3007 = vmatprep.subr.mxu0 0.0
    %3008 = vmatpush1.msra.mxu0 0.0
    %3009 = vmatprep.subr.mxu0 0.0
    %3010 = vmatpush1.msra.mxu0 0.0
    %3011 = vmatprep.subr.mxu0 0.0
    %3012 = vmatpush1.msra.mxu0 0.0
    %3013 = vmatprep.subr.mxu0 0.0
    %3014 = vmatpush1.msra.mxu0 0.0
    %3015 = vmatprep.subr.mxu0 0.0
    %3016 = vmatpush1.msra.mxu0 0.0
    %3017 = vmatprep.subr.mxu0 0.0
    %3018 = vmatpush1.msra.mxu0 0.0
    %3019 = vmatprep.subr.mxu0 0.0
    %3020 = vmatpush1.msra.mxu0 0.0
    %3021 = vmatprep.subr.mxu0 0.0
    %3022 = vmatpush1.msra.mxu0 0.0
    %3023 = vmatprep.subr.mxu0 0.0
    %3024 = vmatpush1.msra.mxu0 0.0
    %3025 = vmatprep.subr.mxu0 0.0
    %3026 = vmatpush1.msra.mxu0 0.0
    %3027 = vmatprep.subr.mxu0 0.0
    %3028 = vmatpush1.msra.mxu0 0.0
    %3029 = vmatprep.subr.mxu0 0.0
    %3030 = vmatpush1.msra.mxu0 0.0
    %3031 = vmatprep.subr.mxu0 0.0
    %3032 = vmatpush1.msra.mxu0 0.0
    %3033 = vmatprep.subr.mxu0 0.0
    %3034 = vmatpush1.msra.mxu0 0.0
    %3035 = vmatprep.subr.mxu0 0.0
    %3036 = vmatpush1.msra.mxu0 0.0
    %3037 = vmatprep.subr.mxu0 0.0
    %3038 = vmatpush1.msra.mxu0 0.0
    %3039 = vmatprep.subr.mxu0 0.0
    %3040 = vmatpush1.msra.mxu0 0.0
    %3041 = vmatprep.subr.mxu0 0.0
    %3042 = vmatpush1.msra.mxu0 0.0
    %3043 = vmatprep.subr.mxu0 0.0
    %3044 = vmatpush1.msra.mxu0 0.0
    %3045 = vmatprep.mubr.f32.mxu0 0.0
    %3046 = vmatmul.mubr.f32.gmra.mrb[0].mxu0 %v2979
    %v3047 = vpop.f32.mrb[0].mxu0
    %v3048 = vadd.f32 0.0, %v3047
    %v3049 = vpop.f32.mrb[0].mxu0
    %3050 = vdwg.mxu0
    %v3052 = vsel %vm1827, %v2539, 0
    %3054 = vmatprep.subr.mxu0 0.0
    %3055 = vmatpush1.msra.mxu0 %v1824
    %3056 = vmatprep.subr.mxu0 0.0
    %3057 = vmatpush1.msra.mxu0 0.0
    %3058 = vmatprep.subr.mxu0 0.0
    %3059 = vmatpush1.msra.mxu0 0.0
    %3060 = vmatprep.subr.mxu0 0.0
    %3061 = vmatpush1.msra.mxu0 0.0
    %3062 = vmatprep.subr.mxu0 0.0
    %3063 = vmatpush1.msra.mxu0 0.0
    %3064 = vmatprep.subr.mxu0 0.0
    %3065 = vmatpush1.msra.mxu0 0.0
    %3066 = vmatprep.subr.mxu0 0.0
    %3067 = vmatpush1.msra.mxu0 0.0
    %3068 = vmatprep.subr.mxu0 0.0
    %3069 = vmatpush1.msra.mxu0 0.0
    %3070 = vmatprep.subr.mxu0 0.0
    %3071 = vmatpush1.msra.mxu0 0.0
    %3072 = vmatprep.subr.mxu0 0.0
    %3073 = vmatpush1.msra.mxu0 0.0
    %3074 = vmatprep.subr.mxu0 0.0
    %3075 = vmatpush1.msra.mxu0 0.0
    %3076 = vmatprep.subr.mxu0 0.0
    %3077 = vmatpush1.msra.mxu0 0.0
    %3078 = vmatprep.subr.mxu0 0.0
    %3079 = vmatpush1.msra.mxu0 0.0
    %3080 = vmatprep.subr.mxu0 0.0
    %3081 = vmatpush1.msra.mxu0 0.0
    %3082 = vmatprep.subr.mxu0 0.0
    %3083 = vmatpush1.msra.mxu0 0.0
    %3084 = vmatprep.subr.mxu0 0.0
    %3085 = vmatpush1.msra.mxu0 0.0
    %3086 = vmatprep.subr.mxu0 0.0
    %3087 = vmatpush1.msra.mxu0 0.0
    %3088 = vmatprep.subr.mxu0 0.0
    %3089 = vmatpush1.msra.mxu0 0.0
    %3090 = vmatprep.subr.mxu0 0.0
    %3091 = vmatpush1.msra.mxu0 0.0
    %3092 = vmatprep.subr.mxu0 0.0
    %3093 = vmatpush1.msra.mxu0 0.0
    %3094 = vmatprep.subr.mxu0 0.0
    %3095 = vmatpush1.msra.mxu0 0.0
    %3096 = vmatprep.subr.mxu0 0.0
    %3097 = vmatpush1.msra.mxu0 0.0
    %3098 = vmatprep.subr.mxu0 0.0
    %3099 = vmatpush1.msra.mxu0 0.0
    %3100 = vmatprep.subr.mxu0 0.0
    %3101 = vmatpush1.msra.mxu0 0.0
    %3102 = vmatprep.subr.mxu0 0.0
    %3103 = vmatpush1.msra.mxu0 0.0
    %3104 = vmatprep.subr.mxu0 0.0
    %3105 = vmatpush1.msra.mxu0 0.0
    %3106 = vmatprep.subr.mxu0 0.0
    %3107 = vmatpush1.msra.mxu0 0.0
    %3108 = vmatprep.subr.mxu0 0.0
    %3109 = vmatpush1.msra.mxu0 0.0
    %3110 = vmatprep.subr.mxu0 0.0
    %3111 = vmatpush1.msra.mxu0 0.0
    %3112 = vmatprep.subr.mxu0 0.0
    %3113 = vmatpush1.msra.mxu0 0.0
    %3114 = vmatprep.subr.mxu0 0.0
    %3115 = vmatpush1.msra.mxu0 0.0
    %3116 = vmatprep.subr.mxu0 0.0
    %3117 = vmatpush1.msra.mxu0 0.0
    %3118 = vmatprep.mubr.f32.mxu0 0.0
    %3119 = vmatmul.mubr.f32.gmra.mrb[0].mxu0 %v3052
    %v3120 = vpop.f32.mrb[0].mxu0
    %v3121 = vadd.f32 0.0, %v3120
    %v3122 = vpop.f32.mrb[0].mxu0
    %3123 = vdwg.mxu0
    %v3125 = vsel %vm1827, %v2610, 0
    %3127 = vmatprep.subr.mxu0 0.0
    %3128 = vmatpush1.msra.mxu0 %v136
    %3129 = vmatprep.subr.mxu0 0.0
    %3130 = vmatpush1.msra.mxu0 0.0
    %3131 = vmatprep.subr.mxu0 0.0
    %3132 = vmatpush1.msra.mxu0 0.0
    %3133 = vmatprep.subr.mxu0 0.0
    %3134 = vmatpush1.msra.mxu0 0.0
    %3135 = vmatprep.subr.mxu0 0.0
    %3136 = vmatpush1.msra.mxu0 0.0
    %3137 = vmatprep.subr.mxu0 0.0
    %3138 = vmatpush1.msra.mxu0 0.0
    %3139 = vmatprep.subr.mxu0 0.0
    %3140 = vmatpush1.msra.mxu0 0.0
    %3141 = vmatprep.subr.mxu0 0.0
    %3142 = vmatpush1.msra.mxu0 0.0
    %3143 = vmatprep.subr.mxu0 0.0
    %3144 = vmatpush1.msra.mxu0 0.0
    %3145 = vmatprep.subr.mxu0 0.0
    %3146 = vmatpush1.msra.mxu0 0.0
    %3147 = vmatprep.subr.mxu0 0.0
    %3148 = vmatpush1.msra.mxu0 0.0
    %3149 = vmatprep.subr.mxu0 0.0
    %3150 = vmatpush1.msra.mxu0 0.0
    %3151 = vmatprep.subr.mxu0 0.0
    %3152 = vmatpush1.msra.mxu0 0.0
    %3153 = vmatprep.subr.mxu0 0.0
    %3154 = vmatpush1.msra.mxu0 0.0
    %3155 = vmatprep.subr.mxu0 0.0
    %3156 = vmatpush1.msra.mxu0 0.0
    %3157 = vmatprep.subr.mxu0 0.0
    %3158 = vmatpush1.msra.mxu0 0.0
    %3159 = vmatprep.subr.mxu0 0.0
    %3160 = vmatpush1.msra.mxu0 0.0
    %3161 = vmatprep.subr.mxu0 0.0
    %3162 = vmatpush1.msra.mxu0 0.0
    %3163 = vmatprep.subr.mxu0 0.0
    %3164 = vmatpush1.msra.mxu0 0.0
    %3165 = vmatprep.subr.mxu0 0.0
    %3166 = vmatpush1.msra.mxu0 0.0
    %3167 = vmatprep.subr.mxu0 0.0
    %3168 = vmatpush1.msra.mxu0 0.0
    %3169 = vmatprep.subr.mxu0 0.0
    %3170 = vmatpush1.msra.mxu0 0.0
    %3171 = vmatprep.subr.mxu0 0.0
    %3172 = vmatpush1.msra.mxu0 0.0
    %3173 = vmatprep.subr.mxu0 0.0
    %3174 = vmatpush1.msra.mxu0 0.0
    %3175 = vmatprep.subr.mxu0 0.0
    %3176 = vmatpush1.msra.mxu0 0.0
    %3177 = vmatprep.subr.mxu0 0.0
    %3178 = vmatpush1.msra.mxu0 0.0
    %3179 = vmatprep.subr.mxu0 0.0
    %3180 = vmatpush1.msra.mxu0 0.0
    %3181 = vmatprep.subr.mxu0 0.0
    %3182 = vmatpush1.msra.mxu0 0.0
    %3183 = vmatprep.subr.mxu0 0.0
    %3184 = vmatpush1.msra.mxu0 0.0
    %3185 = vmatprep.subr.mxu0 0.0
    %3186 = vmatpush1.msra.mxu0 0.0
    %3187 = vmatprep.subr.mxu0 0.0
    %3188 = vmatpush1.msra.mxu0 0.0
    %3189 = vmatprep.subr.mxu0 0.0
    %3190 = vmatpush1.msra.mxu0 0.0
    %3191 = vmatprep.mubr.f32.mxu0 0.0
    %3192 = vmatmul.mubr.f32.gmra.mrb[0].mxu0 %v3125
    %v3193 = vpop.f32.mrb[0].mxu0
    %v3194 = vadd.f32 0.0, %v3193
    %v3195 = vpop.f32.mrb[0].mxu0
    %3196 = vdwg.mxu0
    %v3198 = vsel %vm1827, %v2683, 0
    %3200 = vmatprep.subr.mxu0 0.0
    %3201 = vmatpush1.msra.mxu0 %v137
    %3202 = vmatprep.subr.mxu0 0.0
    %3203 = vmatpush1.msra.mxu0 0.0
    %3204 = vmatprep.subr.mxu0 0.0
    %3205 = vmatpush1.msra.mxu0 0.0
    %3206 = vmatprep.subr.mxu0 0.0
    %3207 = vmatpush1.msra.mxu0 0.0
    %3208 = vmatprep.subr.mxu0 0.0
    %3209 = vmatpush1.msra.mxu0 0.0
    %3210 = vmatprep.subr.mxu0 0.0
    %3211 = vmatpush1.msra.mxu0 0.0
    %3212 = vmatprep.subr.mxu0 0.0
    %3213 = vmatpush1.msra.mxu0 0.0
    %3214 = vmatprep.subr.mxu0 0.0
    %3215 = vmatpush1.msra.mxu0 0.0
    %3216 = vmatprep.subr.mxu0 0.0
    %3217 = vmatpush1.msra.mxu0 0.0
    %3218 = vmatprep.subr.mxu0 0.0
    %3219 = vmatpush1.msra.mxu0 0.0
    %3220 = vmatprep.subr.mxu0 0.0
    %3221 = vmatpush1.msra.mxu0 0.0
    %3222 = vmatprep.subr.mxu0 0.0
    %3223 = vmatpush1.msra.mxu0 0.0
    %3224 = vmatprep.subr.mxu0 0.0
    %3225 = vmatpush1.msra.mxu0 0.0
    %3226 = vmatprep.subr.mxu0 0.0
    %3227 = vmatpush1.msra.mxu0 0.0
    %3228 = vmatprep.subr.mxu0 0.0
    %3229 = vmatpush1.msra.mxu0 0.0
    %3230 = vmatprep.subr.mxu0 0.0
    %3231 = vmatpush1.msra.mxu0 0.0
    %3232 = vmatprep.subr.mxu0 0.0
    %3233 = vmatpush1.msra.mxu0 0.0
    %3234 = vmatprep.subr.mxu0 0.0
    %3235 = vmatpush1.msra.mxu0 0.0
    %3236 = vmatprep.subr.mxu0 0.0
    %3237 = vmatpush1.msra.mxu0 0.0
    %3238 = vmatprep.subr.mxu0 0.0
    %3239 = vmatpush1.msra.mxu0 0.0
    %3240 = vmatprep.subr.mxu0 0.0
    %3241 = vmatpush1.msra.mxu0 0.0
    %3242 = vmatprep.subr.mxu0 0.0
    %3243 = vmatpush1.msra.mxu0 0.0
    %3244 = vmatprep.subr.mxu0 0.0
    %3245 = vmatpush1.msra.mxu0 0.0
    %3246 = vmatprep.subr.mxu0 0.0
    %3247 = vmatpush1.msra.mxu0 0.0
    %3248 = vmatprep.subr.mxu0 0.0
    %3249 = vmatpush1.msra.mxu0 0.0
    %3250 = vmatprep.subr.mxu0 0.0
    %3251 = vmatpush1.msra.mxu0 0.0
    %3252 = vmatprep.subr.mxu0 0.0
    %3253 = vmatpush1.msra.mxu0 0.0
    %3254 = vmatprep.subr.mxu0 0.0
    %3255 = vmatpush1.msra.mxu0 0.0
    %3256 = vmatprep.subr.mxu0 0.0
    %3257 = vmatpush1.msra.mxu0 0.0
    %3258 = vmatprep.subr.mxu0 0.0
    %3259 = vmatpush1.msra.mxu0 0.0
    %3260 = vmatprep.subr.mxu0 0.0
    %3261 = vmatpush1.msra.mxu0 0.0
    %3262 = vmatprep.subr.mxu0 0.0
    %3263 = vmatpush1.msra.mxu0 0.0
    %3264 = vmatprep.mubr.f32.mxu0 0.0
    %3265 = vmatmul.mubr.f32.gmra.mrb[0].mxu0 %v3198
    %v3266 = vpop.f32.mrb[0].mxu0
    %v3267 = vadd.f32 0.0, %v3266
    %v3268 = vpop.f32.mrb[0].mxu0
    %3269 = vdwg.mxu0
    %v3271 = vsel %vm1827, %v2756, 0
    %3273 = vmatprep.subr.mxu0 0.0
    %3274 = vmatpush1.msra.mxu0 %v138
    %3275 = vmatprep.subr.mxu0 0.0
    %3276 = vmatpush1.msra.mxu0 0.0
    %3277 = vmatprep.subr.mxu0 0.0
    %3278 = vmatpush1.msra.mxu0 0.0
    %3279 = vmatprep.subr.mxu0 0.0
    %3280 = vmatpush1.msra.mxu0 0.0
    %3281 = vmatprep.subr.mxu0 0.0
    %3282 = vmatpush1.msra.mxu0 0.0
    %3283 = vmatprep.subr.mxu0 0.0
    %3284 = vmatpush1.msra.mxu0 0.0
    %3285 = vmatprep.subr.mxu0 0.0
    %3286 = vmatpush1.msra.mxu0 0.0
    %3287 = vmatprep.subr.mxu0 0.0
    %3288 = vmatpush1.msra.mxu0 0.0
    %3289 = vmatprep.subr.mxu0 0.0
    %3290 = vmatpush1.msra.mxu0 0.0
    %3291 = vmatprep.subr.mxu0 0.0
    %3292 = vmatpush1.msra.mxu0 0.0
    %3293 = vmatprep.subr.mxu0 0.0
    %3294 = vmatpush1.msra.mxu0 0.0
    %3295 = vmatprep.subr.mxu0 0.0
    %3296 = vmatpush1.msra.mxu0 0.0
    %3297 = vmatprep.subr.mxu0 0.0
    %3298 = vmatpush1.msra.mxu0 0.0
    %3299 = vmatprep.subr.mxu0 0.0
    %3300 = vmatpush1.msra.mxu0 0.0
    %3301 = vmatprep.subr.mxu0 0.0
    %3302 = vmatpush1.msra.mxu0 0.0
    %3303 = vmatprep.subr.mxu0 0.0
    %3304 = vmatpush1.msra.mxu0 0.0
    %3305 = vmatprep.subr.mxu0 0.0
    %3306 = vmatpush1.msra.mxu0 0.0
    %3307 = vmatprep.subr.mxu0 0.0
    %3308 = vmatpush1.msra.mxu0 0.0
    %3309 = vmatprep.subr.mxu0 0.0
    %3310 = vmatpush1.msra.mxu0 0.0
    %3311 = vmatprep.subr.mxu0 0.0
    %3312 = vmatpush1.msra.mxu0 0.0
    %3313 = vmatprep.subr.mxu0 0.0
    %3314 = vmatpush1.msra.mxu0 0.0
    %3315 = vmatprep.subr.mxu0 0.0
    %3316 = vmatpush1.msra.mxu0 0.0
    %3317 = vmatprep.subr.mxu0 0.0
    %3318 = vmatpush1.msra.mxu0 0.0
    %3319 = vmatprep.subr.mxu0 0.0
    %3320 = vmatpush1.msra.mxu0 0.0
    %3321 = vmatprep.subr.mxu0 0.0
    %3322 = vmatpush1.msra.mxu0 0.0
    %3323 = vmatprep.subr.mxu0 0.0
    %3324 = vmatpush1.msra.mxu0 0.0
    %3325 = vmatprep.subr.mxu0 0.0
    %3326 = vmatpush1.msra.mxu0 0.0
    %3327 = vmatprep.subr.mxu0 0.0
    %3328 = vmatpush1.msra.mxu0 0.0
    %3329 = vmatprep.subr.mxu0 0.0
    %3330 = vmatpush1.msra.mxu0 0.0
    %3331 = vmatprep.subr.mxu0 0.0
    %3332 = vmatpush1.msra.mxu0 0.0
    %3333 = vmatprep.subr.mxu0 0.0
    %3334 = vmatpush1.msra.mxu0 0.0
    %3335 = vmatprep.subr.mxu0 0.0
    %3336 = vmatpush1.msra.mxu0 0.0
    %3337 = vmatprep.mubr.f32.mxu0 0.0
    %3338 = vmatmul.mubr.f32.gmra.mrb[0].mxu0 %v3271
    %v3339 = vpop.f32.mrb[0].mxu0
    %v3340 = vadd.f32 0.0, %v3339
    %v3341 = vpop.f32.mrb[0].mxu0
    %3342 = vdwg.mxu0
    %v3344 = vsel %vm1827, %v2829, 0
    %3346 = vmatprep.subr.mxu0 0.0
    %3347 = vmatpush1.msra.mxu0 %v139
    %3348 = vmatprep.subr.mxu0 0.0
    %3349 = vmatpush1.msra.mxu0 0.0
    %3350 = vmatprep.subr.mxu0 0.0
    %3351 = vmatpush1.msra.mxu0 0.0
    %3352 = vmatprep.subr.mxu0 0.0
    %3353 = vmatpush1.msra.mxu0 0.0
    %3354 = vmatprep.subr.mxu0 0.0
    %3355 = vmatpush1.msra.mxu0 0.0
    %3356 = vmatprep.subr.mxu0 0.0
    %3357 = vmatpush1.msra.mxu0 0.0
    %3358 = vmatprep.subr.mxu0 0.0
    %3359 = vmatpush1.msra.mxu0 0.0
    %3360 = vmatprep.subr.mxu0 0.0
    %3361 = vmatpush1.msra.mxu0 0.0
    %3362 = vmatprep.subr.mxu0 0.0
    %3363 = vmatpush1.msra.mxu0 0.0
    %3364 = vmatprep.subr.mxu0 0.0
    %3365 = vmatpush1.msra.mxu0 0.0
    %3366 = vmatprep.subr.mxu0 0.0
    %3367 = vmatpush1.msra.mxu0 0.0
    %3368 = vmatprep.subr.mxu0 0.0
    %3369 = vmatpush1.msra.mxu0 0.0
    %3370 = vmatprep.subr.mxu0 0.0
    %3371 = vmatpush1.msra.mxu0 0.0
    %3372 = vmatprep.subr.mxu0 0.0
    %3373 = vmatpush1.msra.mxu0 0.0
    %3374 = vmatprep.subr.mxu0 0.0
    %3375 = vmatpush1.msra.mxu0 0.0
    %3376 = vmatprep.subr.mxu0 0.0
    %3377 = vmatpush1.msra.mxu0 0.0
    %3378 = vmatprep.subr.mxu0 0.0
    %3379 = vmatpush1.msra.mxu0 0.0
    %3380 = vmatprep.subr.mxu0 0.0
    %3381 = vmatpush1.msra.mxu0 0.0
    %3382 = vmatprep.subr.mxu0 0.0
    %3383 = vmatpush1.msra.mxu0 0.0
    %3384 = vmatprep.subr.mxu0 0.0
    %3385 = vmatpush1.msra.mxu0 0.0
    %3386 = vmatprep.subr.mxu0 0.0
    %3387 = vmatpush1.msra.mxu0 0.0
    %3388 = vmatprep.subr.mxu0 0.0
    %3389 = vmatpush1.msra.mxu0 0.0
    %3390 = vmatprep.subr.mxu0 0.0
    %3391 = vmatpush1.msra.mxu0 0.0
    %3392 = vmatprep.subr.mxu0 0.0
    %3393 = vmatpush1.msra.mxu0 0.0
    %3394 = vmatprep.subr.mxu0 0.0
    %3395 = vmatpush1.msra.mxu0 0.0
    %3396 = vmatprep.subr.mxu0 0.0
    %3397 = vmatpush1.msra.mxu0 0.0
    %3398 = vmatprep.subr.mxu0 0.0
    %3399 = vmatpush1.msra.mxu0 0.0
    %3400 = vmatprep.subr.mxu0 0.0
    %3401 = vmatpush1.msra.mxu0 0.0
    %3402 = vmatprep.subr.mxu0 0.0
    %3403 = vmatpush1.msra.mxu0 0.0
    %3404 = vmatprep.subr.mxu0 0.0
    %3405 = vmatpush1.msra.mxu0 0.0
    %3406 = vmatprep.subr.mxu0 0.0
    %3407 = vmatpush1.msra.mxu0 0.0
    %3408 = vmatprep.subr.mxu0 0.0
    %3409 = vmatpush1.msra.mxu0 0.0
    %3410 = vmatprep.mubr.f32.mxu0 0.0
    %3411 = vmatmul.mubr.f32.gmra.mrb[0].mxu0 %v3344
    %v3412 = vpop.f32.mrb[0].mxu0
    %v3413 = vadd.f32 0.0, %v3412
    %v3414 = vpop.f32.mrb[0].mxu0
    %3415 = vdwg.mxu0
    %v3417 = vsel %vm1827, %v2902, 0
    %3419 = vmatprep.subr.mxu0 0.0
    %3420 = vmatpush1.msra.mxu0 %v136
    %3421 = vmatprep.subr.mxu0 0.0
    %3422 = vmatpush1.msra.mxu0 0.0
    %3423 = vmatprep.subr.mxu0 0.0
    %3424 = vmatpush1.msra.mxu0 0.0
    %3425 = vmatprep.subr.mxu0 0.0
    %3426 = vmatpush1.msra.mxu0 0.0
    %3427 = vmatprep.subr.mxu0 0.0
    %3428 = vmatpush1.msra.mxu0 0.0
    %3429 = vmatprep.subr.mxu0 0.0
    %3430 = vmatpush1.msra.mxu0 0.0
    %3431 = vmatprep.subr.mxu0 0.0
    %3432 = vmatpush1.msra.mxu0 0.0
    %3433 = vmatprep.subr.mxu0 0.0
    %3434 = vmatpush1.msra.mxu0 0.0
    %3435 = vmatprep.subr.mxu0 0.0
    %3436 = vmatpush1.msra.mxu0 0.0
    %3437 = vmatprep.subr.mxu0 0.0
    %3438 = vmatpush1.msra.mxu0 0.0
    %3439 = vmatprep.subr.mxu0 0.0
    %3440 = vmatpush1.msra.mxu0 0.0
    %3441 = vmatprep.subr.mxu0 0.0
    %3442 = vmatpush1.msra.mxu0 0.0
    %3443 = vmatprep.subr.mxu0 0.0
    %3444 = vmatpush1.msra.mxu0 0.0
    %3445 = vmatprep.subr.mxu0 0.0
    %3446 = vmatpush1.msra.mxu0 0.0
    %3447 = vmatprep.subr.mxu0 0.0
    %3448 = vmatpush1.msra.mxu0 0.0
    %3449 = vmatprep.subr.mxu0 0.0
    %3450 = vmatpush1.msra.mxu0 0.0
    %3451 = vmatprep.subr.mxu0 0.0
    %3452 = vmatpush1.msra.mxu0 0.0
    %3453 = vmatprep.subr.mxu0 0.0
    %3454 = vmatpush1.msra.mxu0 0.0
    %3455 = vmatprep.subr.mxu0 0.0
    %3456 = vmatpush1.msra.mxu0 0.0
    %3457 = vmatprep.subr.mxu0 0.0
    %3458 = vmatpush1.msra.mxu0 0.0
    %3459 = vmatprep.subr.mxu0 0.0
    %3460 = vmatpush1.msra.mxu0 0.0
    %3461 = vmatprep.subr.mxu0 0.0
    %3462 = vmatpush1.msra.mxu0 0.0
    %3463 = vmatprep.subr.mxu0 0.0
    %3464 = vmatpush1.msra.mxu0 0.0
    %3465 = vmatprep.subr.mxu0 0.0
    %3466 = vmatpush1.msra.mxu0 0.0
    %3467 = vmatprep.subr.mxu0 0.0
    %3468 = vmatpush1.msra.mxu0 0.0
    %3469 = vmatprep.subr.mxu0 0.0
    %3470 = vmatpush1.msra.mxu0 0.0
    %3471 = vmatprep.subr.mxu0 0.0
    %3472 = vmatpush1.msra.mxu0 0.0
    %3473 = vmatprep.subr.mxu0 0.0
    %3474 = vmatpush1.msra.mxu0 0.0
    %3475 = vmatprep.subr.mxu0 0.0
    %3476 = vmatpush1.msra.mxu0 0.0
    %3477 = vmatprep.subr.mxu0 0.0
    %3478 = vmatpush1.msra.mxu0 0.0
    %3479 = vmatprep.subr.mxu0 0.0
    %3480 = vmatpush1.msra.mxu0 0.0
    %3481 = vmatprep.subr.mxu0 0.0
    %3482 = vmatpush1.msra.mxu0 0.0
    %3483 = vmatprep.mubr.f32.mxu0 0.0
    %3484 = vmatmul.mubr.f32.gmra.mrb[0].mxu0 %v3417
    %v3485 = vpop.f32.mrb[0].mxu0
    %v3486 = vadd.f32 0.0, %v3485
    %v3487 = vpop.f32.mrb[0].mxu0
    %3488 = vdwg.mxu0
    %v3490 = vsel %vm1827, %v2975, 0
    %3492 = vmatprep.subr.mxu0 0.0
    %3493 = vmatpush1.msra.mxu0 %v137
    %3494 = vmatprep.subr.mxu0 0.0
    %3495 = vmatpush1.msra.mxu0 0.0
    %3496 = vmatprep.subr.mxu0 0.0
    %3497 = vmatpush1.msra.mxu0 0.0
    %3498 = vmatprep.subr.mxu0 0.0
    %3499 = vmatpush1.msra.mxu0 0.0
    %3500 = vmatprep.subr.mxu0 0.0
    %3501 = vmatpush1.msra.mxu0 0.0
    %3502 = vmatprep.subr.mxu0 0.0
    %3503 = vmatpush1.msra.mxu0 0.0
    %3504 = vmatprep.subr.mxu0 0.0
    %3505 = vmatpush1.msra.mxu0 0.0
    %3506 = vmatprep.subr.mxu0 0.0
    %3507 = vmatpush1.msra.mxu0 0.0
    %3508 = vmatprep.subr.mxu0 0.0
    %3509 = vmatpush1.msra.mxu0 0.0
    %3510 = vmatprep.subr.mxu0 0.0
    %3511 = vmatpush1.msra.mxu0 0.0
    %3512 = vmatprep.subr.mxu0 0.0
    %3513 = vmatpush1.msra.mxu0 0.0
    %3514 = vmatprep.subr.mxu0 0.0
    %3515 = vmatpush1.msra.mxu0 0.0
    %3516 = vmatprep.subr.mxu0 0.0
    %3517 = vmatpush1.msra.mxu0 0.0
    %3518 = vmatprep.subr.mxu0 0.0
    %3519 = vmatpush1.msra.mxu0 0.0
    %3520 = vmatprep.subr.mxu0 0.0
    %3521 = vmatpush1.msra.mxu0 0.0
    %3522 = vmatprep.subr.mxu0 0.0
    %3523 = vmatpush1.msra.mxu0 0.0
    %3524 = vmatprep.subr.mxu0 0.0
    %3525 = vmatpush1.msra.mxu0 0.0
    %3526 = vmatprep.subr.mxu0 0.0
    %3527 = vmatpush1.msra.mxu0 0.0
    %3528 = vmatprep.subr.mxu0 0.0
    %3529 = vmatpush1.msra.mxu0 0.0
    %3530 = vmatprep.subr.mxu0 0.0
    %3531 = vmatpush1.msra.mxu0 0.0
    %3532 = vmatprep.subr.mxu0 0.0
    %3533 = vmatpush1.msra.mxu0 0.0
    %3534 = vmatprep.subr.mxu0 0.0
    %3535 = vmatpush1.msra.mxu0 0.0
    %3536 = vmatprep.subr.mxu0 0.0
    %3537 = vmatpush1.msra.mxu0 0.0
    %3538 = vmatprep.subr.mxu0 0.0
    %3539 = vmatpush1.msra.mxu0 0.0
    %3540 = vmatprep.subr.mxu0 0.0
    %3541 = vmatpush1.msra.mxu0 0.0
    %3542 = vmatprep.subr.mxu0 0.0
    %3543 = vmatpush1.msra.mxu0 0.0
    %3544 = vmatprep.subr.mxu0 0.0
    %3545 = vmatpush1.msra.mxu0 0.0
    %3546 = vmatprep.subr.mxu0 0.0
    %3547 = vmatpush1.msra.mxu0 0.0
    %3548 = vmatprep.subr.mxu0 0.0
    %3549 = vmatpush1.msra.mxu0 0.0
    %3550 = vmatprep.subr.mxu0 0.0
    %3551 = vmatpush1.msra.mxu0 0.0
    %3552 = vmatprep.subr.mxu0 0.0
    %3553 = vmatpush1.msra.mxu0 0.0
    %3554 = vmatprep.subr.mxu0 0.0
    %3555 = vmatpush1.msra.mxu0 0.0
    %3556 = vmatprep.mubr.f32.mxu0 0.0
    %3557 = vmatmul.mubr.f32.gmra.mrb[0].mxu0 %v3490
    %v3558 = vpop.f32.mrb[0].mxu0
    %v3559 = vadd.f32 0.0, %v3558
    %v3560 = vpop.f32.mrb[0].mxu0
    %3561 = vdwg.mxu0
    %v3563 = vsel %vm1827, %v3048, 0
    %3565 = vmatprep.subr.mxu0 0.0
    %3566 = vmatpush1.msra.mxu0 %v138
    %3567 = vmatprep.subr.mxu0 0.0
    %3568 = vmatpush1.msra.mxu0 0.0
    %3569 = vmatprep.subr.mxu0 0.0
    %3570 = vmatpush1.msra.mxu0 0.0
    %3571 = vmatprep.subr.mxu0 0.0
    %3572 = vmatpush1.msra.mxu0 0.0
    %3573 = vmatprep.subr.mxu0 0.0
    %3574 = vmatpush1.msra.mxu0 0.0
    %3575 = vmatprep.subr.mxu0 0.0
    %3576 = vmatpush1.msra.mxu0 0.0
    %3577 = vmatprep.subr.mxu0 0.0
    %3578 = vmatpush1.msra.mxu0 0.0
    %3579 = vmatprep.subr.mxu0 0.0
    %3580 = vmatpush1.msra.mxu0 0.0
    %3581 = vmatprep.subr.mxu0 0.0
    %3582 = vmatpush1.msra.mxu0 0.0
    %3583 = vmatprep.subr.mxu0 0.0
    %3584 = vmatpush1.msra.mxu0 0.0
    %3585 = vmatprep.subr.mxu0 0.0
    %3586 = vmatpush1.msra.mxu0 0.0
    %3587 = vmatprep.subr.mxu0 0.0
    %3588 = vmatpush1.msra.mxu0 0.0
    %3589 = vmatprep.subr.mxu0 0.0
    %3590 = vmatpush1.msra.mxu0 0.0
    %3591 = vmatprep.subr.mxu0 0.0
    %3592 = vmatpush1.msra.mxu0 0.0
    %3593 = vmatprep.subr.mxu0 0.0
    %3594 = vmatpush1.msra.mxu0 0.0
    %3595 = vmatprep.subr.mxu0 0.0
    %3596 = vmatpush1.msra.mxu0 0.0
    %3597 = vmatprep.subr.mxu0 0.0
    %3598 = vmatpush1.msra.mxu0 0.0
    %3599 = vmatprep.subr.mxu0 0.0
    %3600 = vmatpush1.msra.mxu0 0.0
    %3601 = vmatprep.subr.mxu0 0.0
    %3602 = vmatpush1.msra.mxu0 0.0
    %3603 = vmatprep.subr.mxu0 0.0
    %3604 = vmatpush1.msra.mxu0 0.0
    %3605 = vmatprep.subr.mxu0 0.0
    %3606 = vmatpush1.msra.mxu0 0.0
    %3607 = vmatprep.subr.mxu0 0.0
    %3608 = vmatpush1.msra.mxu0 0.0
    %3609 = vmatprep.subr.mxu0 0.0
    %3610 = vmatpush1.msra.mxu0 0.0
    %3611 = vmatprep.subr.mxu0 0.0
    %3612 = vmatpush1.msra.mxu0 0.0
    %3613 = vmatprep.subr.mxu0 0.0
    %3614 = vmatpush1.msra.mxu0 0.0
    %3615 = vmatprep.subr.mxu0 0.0
    %3616 = vmatpush1.msra.mxu0 0.0
    %3617 = vmatprep.subr.mxu0 0.0
    %3618 = vmatpush1.msra.mxu0 0.0
    %3619 = vmatprep.subr.mxu0 0.0
    %3620 = vmatpush1.msra.mxu0 0.0
    %3621 = vmatprep.subr.mxu0 0.0
    %3622 = vmatpush1.msra.mxu0 0.0
    %3623 = vmatprep.subr.mxu0 0.0
    %3624 = vmatpush1.msra.mxu0 0.0
    %3625 = vmatprep.subr.mxu0 0.0
    %3626 = vmatpush1.msra.mxu0 0.0
    %3627 = vmatprep.subr.mxu0 0.0
    %3628 = vmatpush1.msra.mxu0 0.0
    %3629 = vmatprep.mubr.f32.mxu0 0.0
    %3630 = vmatmul.mubr.f32.gmra.mrb[0].mxu0 %v3563
    %v3631 = vpop.f32.mrb[0].mxu0
    %v3632 = vadd.f32 0.0, %v3631
    %v3633 = vpop.f32.mrb[0].mxu0
    %3634 = vdwg.mxu0
    %v3636 = vsel %vm1827, %v3121, 0
    %3638 = vmatprep.subr.mxu0 0.0
    %3639 = vmatpush1.msra.mxu0 %v139
    %3640 = vmatprep.subr.mxu0 0.0
    %3641 = vmatpush1.msra.mxu0 0.0
    %3642 = vmatprep.subr.mxu0 0.0
    %3643 = vmatpush1.msra.mxu0 0.0
    %3644 = vmatprep.subr.mxu0 0.0
    %3645 = vmatpush1.msra.mxu0 0.0
    %3646 = vmatprep.subr.mxu0 0.0
    %3647 = vmatpush1.msra.mxu0 0.0
    %3648 = vmatprep.subr.mxu0 0.0
    %3649 = vmatpush1.msra.mxu0 0.0
    %3650 = vmatprep.subr.mxu0 0.0
    %3651 = vmatpush1.msra.mxu0 0.0
    %3652 = vmatprep.subr.mxu0 0.0
    %3653 = vmatpush1.msra.mxu0 0.0
    %3654 = vmatprep.subr.mxu0 0.0
    %3655 = vmatpush1.msra.mxu0 0.0
    %3656 = vmatprep.subr.mxu0 0.0
    %3657 = vmatpush1.msra.mxu0 0.0
    %3658 = vmatprep.subr.mxu0 0.0
    %3659 = vmatpush1.msra.mxu0 0.0
    %3660 = vmatprep.subr.mxu0 0.0
    %3661 = vmatpush1.msra.mxu0 0.0
    %3662 = vmatprep.subr.mxu0 0.0
    %3663 = vmatpush1.msra.mxu0 0.0
    %3664 = vmatprep.subr.mxu0 0.0
    %3665 = vmatpush1.msra.mxu0 0.0
    %3666 = vmatprep.subr.mxu0 0.0
    %3667 = vmatpush1.msra.mxu0 0.0
    %3668 = vmatprep.subr.mxu0 0.0
    %3669 = vmatpush1.msra.mxu0 0.0
    %3670 = vmatprep.subr.mxu0 0.0
    %3671 = vmatpush1.msra.mxu0 0.0
    %3672 = vmatprep.subr.mxu0 0.0
    %3673 = vmatpush1.msra.mxu0 0.0
    %3674 = vmatprep.subr.mxu0 0.0
    %3675 = vmatpush1.msra.mxu0 0.0
    %3676 = vmatprep.subr.mxu0 0.0
    %3677 = vmatpush1.msra.mxu0 0.0
    %3678 = vmatprep.subr.mxu0 0.0
    %3679 = vmatpush1.msra.mxu0 0.0
    %3680 = vmatprep.subr.mxu0 0.0
    %3681 = vmatpush1.msra.mxu0 0.0
    %3682 = vmatprep.subr.mxu0 0.0
    %3683 = vmatpush1.msra.mxu0 0.0
    %3684 = vmatprep.subr.mxu0 0.0
    %3685 = vmatpush1.msra.mxu0 0.0
    %3686 = vmatprep.subr.mxu0 0.0
    %3687 = vmatpush1.msra.mxu0 0.0
    %3688 = vmatprep.subr.mxu0 0.0
    %3689 = vmatpush1.msra.mxu0 0.0
    %3690 = vmatprep.subr.mxu0 0.0
    %3691 = vmatpush1.msra.mxu0 0.0
    %3692 = vmatprep.subr.mxu0 0.0
    %3693 = vmatpush1.msra.mxu0 0.0
    %3694 = vmatprep.subr.mxu0 0.0
    %3695 = vmatpush1.msra.mxu0 0.0
    %3696 = vmatprep.subr.mxu0 0.0
    %3697 = vmatpush1.msra.mxu0 0.0
    %3698 = vmatprep.subr.mxu0 0.0
    %3699 = vmatpush1.msra.mxu0 0.0
    %3700 = vmatprep.subr.mxu0 0.0
    %3701 = vmatpush1.msra.mxu0 0.0
    %3702 = vmatprep.mubr.f32.mxu0 0.0
    %3703 = vmatmul.mubr.f32.gmra.mrb[0].mxu0 %v3636
    %v3704 = vpop.f32.mrb[0].mxu0
    %v3705 = vadd.f32 0.0, %v3704
    %v3706 = vpop.f32.mrb[0].mxu0
    %3707 = vdwg.mxu0
    %v3708 = vsel %vm140, %v3194, 0.0
    %v3709 = vsel %vm140, %v3267, 0.0
    %v3710 = vadd.f32 %v3708, %v3709
    %v3711 = vsel %vm140, %v3340, 0.0
    %v3712 = vadd.f32 %v3710, %v3711
    %v3713 = vsel %vm140, %v3413, 0.0
    %v3714 = vadd.f32 %v3712, %v3713
    %v3715 = vsel %vm140, %v3486, 0.0
    %v3716 = vsel %vm140, %v3559, 0.0
    %v3717 = vadd.f32 %v3715, %v3716
    %v3718 = vsel %vm140, %v3632, 0.0
    %v3719 = vadd.f32 %v3717, %v3718
    %v3720 = vsel %vm140, %v3705, 0.0
    %v3721 = vadd.f32 %v3719, %v3720
    %v3722 = vadd.f32 %v3714, %v69
    %v3723 = vadd.f32 %v3721, %v70
    %v3724 = vld [vmem:[%s7] sm:$0x1]
    %v3725 = vld [vmem:[%s8] sm:$0x1]
    %v3726 = vsel %vm140, %v3722, 0.0
    %3727 = vadd.xlane.f32.xlu0 %v3726
    %v3728 = vpop.xlane.xlu0 %3727
    %v3729 = vsel %vm140, %v3723, 0.0
    %3730 = vadd.xlane.f32.xlu0 %v3729
    %v3731 = vpop.xlane.xlu0 %3730
    %v3732 = vrcp.pop 32.0
    %v3733 = vmul.f32 %v3728, %v3732
    %v3734 = vmul.f32 %v3731, %v3732
    %v3735 = vsub.f32 %v3722, %v3733
    %v3736 = vsub.f32 %v3723, %v3734
    %v3737 = vmul.f32 %v3735, %v3735
    %v3738 = vmul.f32 %v3736, %v3736
    %v3739 = vsel %vm140, %v3737, 0.0
    %3740 = vadd.xlane.f32.xlu0 %v3739
    %v3741 = vpop.xlane.xlu0 %3740
    %v3742 = vsel %vm140, %v3738, 0.0
    %3743 = vadd.xlane.f32.xlu0 %v3742
    %v3744 = vpop.xlane.xlu0 %3743
    %v3745 = vmul.f32 %v3741, %v3732
    %v3746 = vmul.f32 %v3744, %v3732
    %v3747 = vadd.f32 %v3745, 1e-05
    %v3748 = vadd.f32 %v3746, 1e-05
    %v3749 = vrsqrt.pop %v3747
    %v3750 = vrsqrt.pop %v3748
    %v3751 = vmul.f32 %v3735, %v3749
    %v3752 = vmul.f32 %v3736, %v3750
    %v3754 = vlaneseq
    %v3755 = vshrl.u32 %v3754, 7
    %v3756 = vsub.s32 0, %v3755
    %v3757 = vrot.slane %v3724, %v3756
    %v3759 = vmul.f32 %v3751, %v3757
    %v3760 = vmul.f32 %v3752, %v3757
    %v3762 = vlaneseq
    %v3763 = vshrl.u32 %v3762, 7
    %v3764 = vsub.s32 0, %v3763
    %v3765 = vrot.slane %v3725, %v3764
    %v3767 = vadd.f32 %v3759, %v3765
    %v3768 = vadd.f32 %v3760, %v3765
    %v3769 = vlaneseq
    %v3770 = vshrl.u32 %v3769, 7
    %v3771 = vsub.s32 0, %v3770
    %v3772 = vrot.slane %v75, %v3771
    %v3773 = vlaneseq
    %v3774 = vshrl.u32 %v3773, 7
    %v3775 = vsub.s32 0, %v3774
    %v3776 = vrot.slane %v76, %v3775
    %v3777 = vlaneseq
    %v3778 = vshrl.u32 %v3777, 7
    %v3779 = vsub.s32 0, %v3778
    %v3780 = vrot.slane %v77, %v3779
    %v3781 = vlaneseq
    %v3782 = vshrl.u32 %v3781, 7
    %v3783 = vsub.s32 0, %v3782
    %v3784 = vrot.slane %v78, %v3783
    %v3785 = vlaneseq
    %v3786 = vshrl.u32 %v3785, 7
    %v3787 = vsub.s32 0, %v3786
    %v3788 = vrot.slane %v79, %v3787
    %v3789 = vlaneseq
    %v3790 = vshrl.u32 %v3789, 7
    %v3791 = vsub.s32 0, %v3790
    %v3792 = vrot.slane %v80, %v3791
    %v3793 = vlaneseq
    %v3794 = vshrl.u32 %v3793, 7
    %v3795 = vsub.s32 0, %v3794
    %v3796 = vrot.slane %v81, %v3795
    %v3797 = vlaneseq
    %v3798 = vshrl.u32 %v3797, 7
    %v3799 = vsub.s32 0, %v3798
    %v3800 = vrot.slane %v82, %v3799
    %3801 = vset.pattern.permute.xlu0 0
    %3802 = vperm.xlu0 %3801, %v3772
    %v3803 = vpop.permute.xlu0 %3802
    %3804 = vset.pattern.permute.xlu0 0
    %3805 = vperm.xlu0 %3804, %v3776
    %v3806 = vpop.permute.xlu0 %3805
    %3807 = vset.pattern.permute.xlu0 0
    %3808 = vperm.xlu0 %3807, %v3780
    %v3809 = vpop.permute.xlu0 %3808
    %3810 = vset.pattern.permute.xlu0 0
    %3811 = vperm.xlu0 %3810, %v3784
    %v3812 = vpop.permute.xlu0 %3811
    %3813 = vset.pattern.permute.xlu0 0
    %3814 = vperm.xlu0 %3813, %v3788
    %v3815 = vpop.permute.xlu0 %3814
    %3816 = vset.pattern.permute.xlu0 0
    %3817 = vperm.xlu0 %3816, %v3792
    %v3818 = vpop.permute.xlu0 %3817
    %3819 = vset.pattern.permute.xlu0 0
    %3820 = vperm.xlu0 %3819, %v3796
    %v3821 = vpop.permute.xlu0 %3820
    %3822 = vset.pattern.permute.xlu0 0
    %3823 = vperm.xlu0 %3822, %v3800
    %v3824 = vpop.permute.xlu0 %3823
    %vm3825 = vcmp.ge.s32.totalorder %v86, %v3803
    %vm3826 = vcmp.ge.s32.totalorder %v86, %v3806
    %vm3827 = vcmp.ge.s32.totalorder %v86, %v3809
    %vm3828 = vcmp.ge.s32.totalorder %v86, %v3812
    %vm3829 = vcmp.ge.s32.totalorder %v86, %v3815
    %vm3830 = vcmp.ge.s32.totalorder %v86, %v3818
    %vm3831 = vcmp.ge.s32.totalorder %v86, %v3821
    %vm3832 = vcmp.ge.s32.totalorder %v86, %v3824
    %v3833 = vld [vmem:[%s9] sm:$0xff]
    %v3834 = vld [vmem:[%s9 + $0x8] sm:$0xff]
    %v3835 = vld [vmem:[%s9 + $0x10] sm:$0xff]
    %v3836 = vld [vmem:[%s9 + $0x18] sm:$0xff]
    %v3837 = vld [vmem:[%s9 + $0x20] sm:$0xff]
    %v3838 = vld [vmem:[%s9 + $0x28] sm:$0xff]
    %v3839 = vld [vmem:[%s9 + $0x30] sm:$0xff]
    %v3840 = vld [vmem:[%s9 + $0x38] sm:$0xff]
    %v3841 = vld [vmem:[%s9 + $0x40] sm:$0xff]
    %v3842 = vld [vmem:[%s9 + $0x48] sm:$0xff]
    %v3843 = vld [vmem:[%s9 + $0x50] sm:$0xff]
    %v3844 = vld [vmem:[%s9 + $0x58] sm:$0xff]
    %v3845 = vld [vmem:[%s9 + $0x60] sm:$0xff]
    %v3846 = vld [vmem:[%s9 + $0x68] sm:$0xff]
    %v3847 = vld [vmem:[%s9 + $0x70] sm:$0xff]
    %v3848 = vld [vmem:[%s9 + $0x78] sm:$0xff]
    %v3849 = vld [vmem:[%s10] sm:$0xff]
    %v3850 = vld [vmem:[%s10 + $0x8] sm:$0xff]
    %v3851 = vld [vmem:[%s10 + $0x10] sm:$0xff]
    %v3852 = vld [vmem:[%s10 + $0x18] sm:$0xff]
    %v3853 = vld [vmem:[%s10 + $0x20] sm:$0xff]
    %v3854 = vld [vmem:[%s10 + $0x28] sm:$0xff]
    %v3855 = vld [vmem:[%s10 + $0x30] sm:$0xff]
    %v3856 = vld [vmem:[%s10 + $0x38] sm:$0xff]
    %v3857 = vld [vmem:[%s10 + $0x40] sm:$0xff]
    %v3858 = vld [vmem:[%s10 + $0x48] sm:$0xff]
    %v3859 = vld [vmem:[%s10 + $0x50] sm:$0xff]
    %v3860 = vld [vmem:[%s10 + $0x58] sm:$0xff]
    %v3861 = vld [vmem:[%s10 + $0x60] sm:$0xff]
    %v3862 = vld [vmem:[%s10 + $0x68] sm:$0xff]
    %v3863 = vld [vmem:[%s10 + $0x70] sm:$0xff]
    %v3864 = vld [vmem:[%s10 + $0x78] sm:$0xff]
    %v3865 = vld [vmem:[%s11] sm:$0xff]
    %v3866 = vld [vmem:[%s11 + $0x8] sm:$0xff]
    %v3867 = vld [vmem:[%s11 + $0x10] sm:$0xff]
    %v3868 = vld [vmem:[%s11 + $0x18] sm:$0xff]
    %v3869 = vld [vmem:[%s11 + $0x20] sm:$0xff]
    %v3870 = vld [vmem:[%s11 + $0x28] sm:$0xff]
    %v3871 = vld [vmem:[%s11 + $0x30] sm:$0xff]
    %v3872 = vld [vmem:[%s11 + $0x38] sm:$0xff]
    %v3873 = vld [vmem:[%s11 + $0x40] sm:$0xff]
    %v3874 = vld [vmem:[%s11 + $0x48] sm:$0xff]
    %v3875 = vld [vmem:[%s11 + $0x50] sm:$0xff]
    %v3876 = vld [vmem:[%s11 + $0x58] sm:$0xff]
    %v3877 = vld [vmem:[%s11 + $0x60] sm:$0xff]
    %v3878 = vld [vmem:[%s11 + $0x68] sm:$0xff]
    %v3879 = vld [vmem:[%s11 + $0x70] sm:$0xff]
    %v3880 = vld [vmem:[%s11 + $0x78] sm:$0xff]
    %v3881 = vld [vmem:[%s12] sm:$0xff]
    %v3882 = vld [vmem:[%s12 + $0x8] sm:$0xff]
    %v3883 = vld [vmem:[%s12 + $0x10] sm:$0xff]
    %v3884 = vld [vmem:[%s12 + $0x18] sm:$0xff]
    %v3886 = vsel %vm140, %v3767, 0
    %3888 = vmatprep.subr.mxu0 0.0
    %3889 = vmatpush1.msra.mxu0 %v3833
    %3890 = vmatprep.subr.mxu0 0.0
    %3891 = vmatpush1.msra.mxu0 %v3834
    %3892 = vmatprep.subr.mxu0 0.0
    %3893 = vmatpush1.msra.mxu0 %v3835
    %3894 = vmatprep.subr.mxu0 0.0
    %3895 = vmatpush1.msra.mxu0 %v3836
    %3896 = vmatprep.subr.mxu0 0.0
    %3897 = vmatpush1.msra.mxu0 0.0
    %3898 = vmatprep.subr.mxu0 0.0
    %3899 = vmatpush1.msra.mxu0 0.0
    %3900 = vmatprep.subr.mxu0 0.0
    %3901 = vmatpush1.msra.mxu0 0.0
    %3902 = vmatprep.subr.mxu0 0.0
    %3903 = vmatpush1.msra.mxu0 0.0
    %3904 = vmatprep.subr.mxu0 0.0
    %3905 = vmatpush1.msra.mxu0 0.0
    %3906 = vmatprep.subr.mxu0 0.0
    %3907 = vmatpush1.msra.mxu0 0.0
    %3908 = vmatprep.subr.mxu0 0.0
    %3909 = vmatpush1.msra.mxu0 0.0
    %3910 = vmatprep.subr.mxu0 0.0
    %3911 = vmatpush1.msra.mxu0 0.0
    %3912 = vmatprep.subr.mxu0 0.0
    %3913 = vmatpush1.msra.mxu0 0.0
    %3914 = vmatprep.subr.mxu0 0.0
    %3915 = vmatpush1.msra.mxu0 0.0
    %3916 = vmatprep.subr.mxu0 0.0
    %3917 = vmatpush1.msra.mxu0 0.0
    %3918 = vmatprep.subr.mxu0 0.0
    %3919 = vmatpush1.msra.mxu0 0.0
    %3920 = vmatprep.subr.mxu0 0.0
    %3921 = vmatpush1.msra.mxu0 0.0
    %3922 = vmatprep.subr.mxu0 0.0
    %3923 = vmatpush1.msra.mxu0 0.0
    %3924 = vmatprep.subr.mxu0 0.0
    %3925 = vmatpush1.msra.mxu0 0.0
    %3926 = vmatprep.subr.mxu0 0.0
    %3927 = vmatpush1.msra.mxu0 0.0
    %3928 = vmatprep.subr.mxu0 0.0
    %3929 = vmatpush1.msra.mxu0 0.0
    %3930 = vmatprep.subr.mxu0 0.0
    %3931 = vmatpush1.msra.mxu0 0.0
    %3932 = vmatprep.subr.mxu0 0.0
    %3933 = vmatpush1.msra.mxu0 0.0
    %3934 = vmatprep.subr.mxu0 0.0
    %3935 = vmatpush1.msra.mxu0 0.0
    %3936 = vmatprep.subr.mxu0 0.0
    %3937 = vmatpush1.msra.mxu0 0.0
    %3938 = vmatprep.subr.mxu0 0.0
    %3939 = vmatpush1.msra.mxu0 0.0
    %3940 = vmatprep.subr.mxu0 0.0
    %3941 = vmatpush1.msra.mxu0 0.0
    %3942 = vmatprep.subr.mxu0 0.0
    %3943 = vmatpush1.msra.mxu0 0.0
    %3944 = vmatprep.subr.mxu0 0.0
    %3945 = vmatpush1.msra.mxu0 0.0
    %3946 = vmatprep.subr.mxu0 0.0
    %3947 = vmatpush1.msra.mxu0 0.0
    %3948 = vmatprep.subr.mxu0 0.0
    %3949 = vmatpush1.msra.mxu0 0.0
    %3950 = vmatprep.subr.mxu0 0.0
    %3951 = vmatpush1.msra.mxu0 0.0
    %3952 = vmatprep.mubr.f32.mxu0 0.0
    %3953 = vmatmul.mubr.f32.gmra.mrb[0].mxu0 %v3886
    %v3954 = vpop.f32.mrb[0].mxu0
    %v3955 = vadd.f32 0.0, %v3954
    %v3956 = vpop.f32.mrb[0].mxu0
    %3957 = vdwg.mxu0
    %3958 = vmatprep.subr.mxu0 0.0
    %3959 = vmatpush1.msra.mxu0 %v3837
    %3960 = vmatprep.subr.mxu0 0.0
    %3961 = vmatpush1.msra.mxu0 %v3838
    %3962 = vmatprep.subr.mxu0 0.0
    %3963 = vmatpush1.msra.mxu0 %v3839
    %3964 = vmatprep.subr.mxu0 0.0
    %3965 = vmatpush1.msra.mxu0 %v3840
    %3966 = vmatprep.subr.mxu0 0.0
    %3967 = vmatpush1.msra.mxu0 0.0
    %3968 = vmatprep.subr.mxu0 0.0
    %3969 = vmatpush1.msra.mxu0 0.0
    %3970 = vmatprep.subr.mxu0 0.0
    %3971 = vmatpush1.msra.mxu0 0.0
    %3972 = vmatprep.subr.mxu0 0.0
    %3973 = vmatpush1.msra.mxu0 0.0
    %3974 = vmatprep.subr.mxu0 0.0
    %3975 = vmatpush1.msra.mxu0 0.0
    %3976 = vmatprep.subr.mxu0 0.0
    %3977 = vmatpush1.msra.mxu0 0.0
    %3978 = vmatprep.subr.mxu0 0.0
    %3979 = vmatpush1.msra.mxu0 0.0
    %3980 = vmatprep.subr.mxu0 0.0
    %3981 = vmatpush1.msra.mxu0 0.0
    %3982 = vmatprep.subr.mxu0 0.0
    %3983 = vmatpush1.msra.mxu0 0.0
    %3984 = vmatprep.subr.mxu0 0.0
    %3985 = vmatpush1.msra.mxu0 0.0
    %3986 = vmatprep.subr.mxu0 0.0
    %3987 = vmatpush1.msra.mxu0 0.0
    %3988 = vmatprep.subr.mxu0 0.0
    %3989 = vmatpush1.msra.mxu0 0.0
    %3990 = vmatprep.subr.mxu0 0.0
    %3991 = vmatpush1.msra.mxu0 0.0
    %3992 = vmatprep.subr.mxu0 0.0
    %3993 = vmatpush1.msra.mxu0 0.0
    %3994 = vmatprep.subr.mxu0 0.0
    %3995 = vmatpush1.msra.mxu0 0.0
    %3996 = vmatprep.subr.mxu0 0.0
    %3997 = vmatpush1.msra.mxu0 0.0
    %3998 = vmatprep.subr.mxu0 0.0
    %3999 = vmatpush1.msra.mxu0 0.0
    %4000 = vmatprep.subr.mxu0 0.0
    %4001 = vmatpush1.msra.mxu0 0.0
    %4002 = vmatprep.subr.mxu0 0.0
    %4003 = vmatpush1.msra.mxu0 0.0
    %4004 = vmatprep.subr.mxu0 0.0
    %4005 = vmatpush1.msra.mxu0 0.0
    %4006 = vmatprep.subr.mxu0 0.0
    %4007 = vmatpush1.msra.mxu0 0.0
    %4008 = vmatprep.subr.mxu0 0.0
    %4009 = vmatpush1.msra.mxu0 0.0
    %4010 = vmatprep.subr.mxu0 0.0
    %4011 = vmatpush1.msra.mxu0 0.0
    %4012 = vmatprep.subr.mxu0 0.0
    %4013 = vmatpush1.msra.mxu0 0.0
    %4014 = vmatprep.subr.mxu0 0.0
    %4015 = vmatpush1.msra.mxu0 0.0
    %4016 = vmatprep.subr.mxu0 0.0
    %4017 = vmatpush1.msra.mxu0 0.0
    %4018 = vmatprep.subr.mxu0 0.0
    %4019 = vmatpush1.msra.mxu0 0.0
    %4020 = vmatprep.subr.mxu0 0.0
    %4021 = vmatpush1.msra.mxu0 0.0
    %4022 = vmatprep.mubr.f32.mxu0 0.0
    %4023 = vmatmul.mubr.f32.gmra.mrb[0].mxu0 %v3886
    %v4024 = vpop.f32.mrb[0].mxu0
    %v4025 = vadd.f32 0.0, %v4024
    %v4026 = vpop.f32.mrb[0].mxu0
    %4027 = vdwg.mxu0
    %4028 = vmatprep.subr.mxu0 0.0
    %4029 = vmatpush1.msra.mxu0 %v3841
    %4030 = vmatprep.subr.mxu0 0.0
    %4031 = vmatpush1.msra.mxu0 %v3842
    %4032 = vmatprep.subr.mxu0 0.0
    %4033 = vmatpush1.msra.mxu0 %v3843
    %4034 = vmatprep.subr.mxu0 0.0
    %4035 = vmatpush1.msra.mxu0 %v3844
    %4036 = vmatprep.subr.mxu0 0.0
    %4037 = vmatpush1.msra.mxu0 0.0
    %4038 = vmatprep.subr.mxu0 0.0
    %4039 = vmatpush1.msra.mxu0 0.0
    %4040 = vmatprep.subr.mxu0 0.0
    %4041 = vmatpush1.msra.mxu0 0.0
    %4042 = vmatprep.subr.mxu0 0.0
    %4043 = vmatpush1.msra.mxu0 0.0
    %4044 = vmatprep.subr.mxu0 0.0
    %4045 = vmatpush1.msra.mxu0 0.0
    %4046 = vmatprep.subr.mxu0 0.0
    %4047 = vmatpush1.msra.mxu0 0.0
    %4048 = vmatprep.subr.mxu0 0.0
    %4049 = vmatpush1.msra.mxu0 0.0
    %4050 = vmatprep.subr.mxu0 0.0
    %4051 = vmatpush1.msra.mxu0 0.0
    %4052 = vmatprep.subr.mxu0 0.0
    %4053 = vmatpush1.msra.mxu0 0.0
    %4054 = vmatprep.subr.mxu0 0.0
    %4055 = vmatpush1.msra.mxu0 0.0
    %4056 = vmatprep.subr.mxu0 0.0
    %4057 = vmatpush1.msra.mxu0 0.0
    %4058 = vmatprep.subr.mxu0 0.0
    %4059 = vmatpush1.msra.mxu0 0.0
    %4060 = vmatprep.subr.mxu0 0.0
    %4061 = vmatpush1.msra.mxu0 0.0
    %4062 = vmatprep.subr.mxu0 0.0
    %4063 = vmatpush1.msra.mxu0 0.0
    %4064 = vmatprep.subr.mxu0 0.0
    %4065 = vmatpush1.msra.mxu0 0.0
    %4066 = vmatprep.subr.mxu0 0.0
    %4067 = vmatpush1.msra.mxu0 0.0
    %4068 = vmatprep.subr.mxu0 0.0
    %4069 = vmatpush1.msra.mxu0 0.0
    %4070 = vmatprep.subr.mxu0 0.0
    %4071 = vmatpush1.msra.mxu0 0.0
    %4072 = vmatprep.subr.mxu0 0.0
    %4073 = vmatpush1.msra.mxu0 0.0
    %4074 = vmatprep.subr.mxu0 0.0
    %4075 = vmatpush1.msra.mxu0 0.0
    %4076 = vmatprep.subr.mxu0 0.0
    %4077 = vmatpush1.msra.mxu0 0.0
    %4078 = vmatprep.subr.mxu0 0.0
    %4079 = vmatpush1.msra.mxu0 0.0
    %4080 = vmatprep.subr.mxu0 0.0
    %4081 = vmatpush1.msra.mxu0 0.0
    %4082 = vmatprep.subr.mxu0 0.0
    %4083 = vmatpush1.msra.mxu0 0.0
    %4084 = vmatprep.subr.mxu0 0.0
    %4085 = vmatpush1.msra.mxu0 0.0
    %4086 = vmatprep.subr.mxu0 0.0
    %4087 = vmatpush1.msra.mxu0 0.0
    %4088 = vmatprep.subr.mxu0 0.0
    %4089 = vmatpush1.msra.mxu0 0.0
    %4090 = vmatprep.subr.mxu0 0.0
    %4091 = vmatpush1.msra.mxu0 0.0
    %4092 = vmatprep.mubr.f32.mxu0 0.0
    %4093 = vmatmul.mubr.f32.gmra.mrb[0].mxu0 %v3886
    %v4094 = vpop.f32.mrb[0].mxu0
    %v4095 = vadd.f32 0.0, %v4094
    %v4096 = vpop.f32.mrb[0].mxu0
    %4097 = vdwg.mxu0
    %4098 = vmatprep.subr.mxu0 0.0
    %4099 = vmatpush1.msra.mxu0 %v3845
    %4100 = vmatprep.subr.mxu0 0.0
    %4101 = vmatpush1.msra.mxu0 %v3846
    %4102 = vmatprep.subr.mxu0 0.0
    %4103 = vmatpush1.msra.mxu0 %v3847
    %4104 = vmatprep.subr.mxu0 0.0
    %4105 = vmatpush1.msra.mxu0 %v3848
    %4106 = vmatprep.subr.mxu0 0.0
    %4107 = vmatpush1.msra.mxu0 0.0
    %4108 = vmatprep.subr.mxu0 0.0
    %4109 = vmatpush1.msra.mxu0 0.0
    %4110 = vmatprep.subr.mxu0 0.0
    %4111 = vmatpush1.msra.mxu0 0.0
    %4112 = vmatprep.subr.mxu0 0.0
    %4113 = vmatpush1.msra.mxu0 0.0
    %4114 = vmatprep.subr.mxu0 0.0
    %4115 = vmatpush1.msra.mxu0 0.0
    %4116 = vmatprep.subr.mxu0 0.0
    %4117 = vmatpush1.msra.mxu0 0.0
    %4118 = vmatprep.subr.mxu0 0.0
    %4119 = vmatpush1.msra.mxu0 0.0
    %4120 = vmatprep.subr.mxu0 0.0
    %4121 = vmatpush1.msra.mxu0 0.0
    %4122 = vmatprep.subr.mxu0 0.0
    %4123 = vmatpush1.msra.mxu0 0.0
    %4124 = vmatprep.subr.mxu0 0.0
    %4125 = vmatpush1.msra.mxu0 0.0
    %4126 = vmatprep.subr.mxu0 0.0
    %4127 = vmatpush1.msra.mxu0 0.0
    %4128 = vmatprep.subr.mxu0 0.0
    %4129 = vmatpush1.msra.mxu0 0.0
    %4130 = vmatprep.subr.mxu0 0.0
    %4131 = vmatpush1.msra.mxu0 0.0
    %4132 = vmatprep.subr.mxu0 0.0
    %4133 = vmatpush1.msra.mxu0 0.0
    %4134 = vmatprep.subr.mxu0 0.0
    %4135 = vmatpush1.msra.mxu0 0.0
    %4136 = vmatprep.subr.mxu0 0.0
    %4137 = vmatpush1.msra.mxu0 0.0
    %4138 = vmatprep.subr.mxu0 0.0
    %4139 = vmatpush1.msra.mxu0 0.0
    %4140 = vmatprep.subr.mxu0 0.0
    %4141 = vmatpush1.msra.mxu0 0.0
    %4142 = vmatprep.subr.mxu0 0.0
    %4143 = vmatpush1.msra.mxu0 0.0
    %4144 = vmatprep.subr.mxu0 0.0
    %4145 = vmatpush1.msra.mxu0 0.0
    %4146 = vmatprep.subr.mxu0 0.0
    %4147 = vmatpush1.msra.mxu0 0.0
    %4148 = vmatprep.subr.mxu0 0.0
    %4149 = vmatpush1.msra.mxu0 0.0
    %4150 = vmatprep.subr.mxu0 0.0
    %4151 = vmatpush1.msra.mxu0 0.0
    %4152 = vmatprep.subr.mxu0 0.0
    %4153 = vmatpush1.msra.mxu0 0.0
    %4154 = vmatprep.subr.mxu0 0.0
    %4155 = vmatpush1.msra.mxu0 0.0
    %4156 = vmatprep.subr.mxu0 0.0
    %4157 = vmatpush1.msra.mxu0 0.0
    %4158 = vmatprep.subr.mxu0 0.0
    %4159 = vmatpush1.msra.mxu0 0.0
    %4160 = vmatprep.subr.mxu0 0.0
    %4161 = vmatpush1.msra.mxu0 0.0
    %4162 = vmatprep.mubr.f32.mxu0 0.0
    %4163 = vmatmul.mubr.f32.gmra.mrb[0].mxu0 %v3886
    %v4164 = vpop.f32.mrb[0].mxu0
    %v4165 = vadd.f32 0.0, %v4164
    %v4166 = vpop.f32.mrb[0].mxu0
    %4167 = vdwg.mxu0
    %v4169 = vsel %vm140, %v3768, 0
    %4171 = vmatprep.subr.mxu0 0.0
    %4172 = vmatpush1.msra.mxu0 %v3833
    %4173 = vmatprep.subr.mxu0 0.0
    %4174 = vmatpush1.msra.mxu0 %v3834
    %4175 = vmatprep.subr.mxu0 0.0
    %4176 = vmatpush1.msra.mxu0 %v3835
    %4177 = vmatprep.subr.mxu0 0.0
    %4178 = vmatpush1.msra.mxu0 %v3836
    %4179 = vmatprep.subr.mxu0 0.0
    %4180 = vmatpush1.msra.mxu0 0.0
    %4181 = vmatprep.subr.mxu0 0.0
    %4182 = vmatpush1.msra.mxu0 0.0
    %4183 = vmatprep.subr.mxu0 0.0
    %4184 = vmatpush1.msra.mxu0 0.0
    %4185 = vmatprep.subr.mxu0 0.0
    %4186 = vmatpush1.msra.mxu0 0.0
    %4187 = vmatprep.subr.mxu0 0.0
    %4188 = vmatpush1.msra.mxu0 0.0
    %4189 = vmatprep.subr.mxu0 0.0
    %4190 = vmatpush1.msra.mxu0 0.0
    %4191 = vmatprep.subr.mxu0 0.0
    %4192 = vmatpush1.msra.mxu0 0.0
    %4193 = vmatprep.subr.mxu0 0.0
    %4194 = vmatpush1.msra.mxu0 0.0
    %4195 = vmatprep.subr.mxu0 0.0
    %4196 = vmatpush1.msra.mxu0 0.0
    %4197 = vmatprep.subr.mxu0 0.0
    %4198 = vmatpush1.msra.mxu0 0.0
    %4199 = vmatprep.subr.mxu0 0.0
    %4200 = vmatpush1.msra.mxu0 0.0
    %4201 = vmatprep.subr.mxu0 0.0
    %4202 = vmatpush1.msra.mxu0 0.0
    %4203 = vmatprep.subr.mxu0 0.0
    %4204 = vmatpush1.msra.mxu0 0.0
    %4205 = vmatprep.subr.mxu0 0.0
    %4206 = vmatpush1.msra.mxu0 0.0
    %4207 = vmatprep.subr.mxu0 0.0
    %4208 = vmatpush1.msra.mxu0 0.0
    %4209 = vmatprep.subr.mxu0 0.0
    %4210 = vmatpush1.msra.mxu0 0.0
    %4211 = vmatprep.subr.mxu0 0.0
    %4212 = vmatpush1.msra.mxu0 0.0
    %4213 = vmatprep.subr.mxu0 0.0
    %4214 = vmatpush1.msra.mxu0 0.0
    %4215 = vmatprep.subr.mxu0 0.0
    %4216 = vmatpush1.msra.mxu0 0.0
    %4217 = vmatprep.subr.mxu0 0.0
    %4218 = vmatpush1.msra.mxu0 0.0
    %4219 = vmatprep.subr.mxu0 0.0
    %4220 = vmatpush1.msra.mxu0 0.0
    %4221 = vmatprep.subr.mxu0 0.0
    %4222 = vmatpush1.msra.mxu0 0.0
    %4223 = vmatprep.subr.mxu0 0.0
    %4224 = vmatpush1.msra.mxu0 0.0
    %4225 = vmatprep.subr.mxu0 0.0
    %4226 = vmatpush1.msra.mxu0 0.0
    %4227 = vmatprep.subr.mxu0 0.0
    %4228 = vmatpush1.msra.mxu0 0.0
    %4229 = vmatprep.subr.mxu0 0.0
    %4230 = vmatpush1.msra.mxu0 0.0
    %4231 = vmatprep.subr.mxu0 0.0
    %4232 = vmatpush1.msra.mxu0 0.0
    %4233 = vmatprep.subr.mxu0 0.0
    %4234 = vmatpush1.msra.mxu0 0.0
    %4235 = vmatprep.mubr.f32.mxu0 0.0
    %4236 = vmatmul.mubr.f32.gmra.mrb[0].mxu0 %v4169
    %v4237 = vpop.f32.mrb[0].mxu0
    %v4238 = vadd.f32 0.0, %v4237
    %v4239 = vpop.f32.mrb[0].mxu0
    %4240 = vdwg.mxu0
    %4241 = vmatprep.subr.mxu0 0.0
    %4242 = vmatpush1.msra.mxu0 %v3837
    %4243 = vmatprep.subr.mxu0 0.0
    %4244 = vmatpush1.msra.mxu0 %v3838
    %4245 = vmatprep.subr.mxu0 0.0
    %4246 = vmatpush1.msra.mxu0 %v3839
    %4247 = vmatprep.subr.mxu0 0.0
    %4248 = vmatpush1.msra.mxu0 %v3840
    %4249 = vmatprep.subr.mxu0 0.0
    %4250 = vmatpush1.msra.mxu0 0.0
    %4251 = vmatprep.subr.mxu0 0.0
    %4252 = vmatpush1.msra.mxu0 0.0
    %4253 = vmatprep.subr.mxu0 0.0
    %4254 = vmatpush1.msra.mxu0 0.0
    %4255 = vmatprep.subr.mxu0 0.0
    %4256 = vmatpush1.msra.mxu0 0.0
    %4257 = vmatprep.subr.mxu0 0.0
    %4258 = vmatpush1.msra.mxu0 0.0
    %4259 = vmatprep.subr.mxu0 0.0
    %4260 = vmatpush1.msra.mxu0 0.0
    %4261 = vmatprep.subr.mxu0 0.0
    %4262 = vmatpush1.msra.mxu0 0.0
    %4263 = vmatprep.subr.mxu0 0.0
    %4264 = vmatpush1.msra.mxu0 0.0
    %4265 = vmatprep.subr.mxu0 0.0
    %4266 = vmatpush1.msra.mxu0 0.0
    %4267 = vmatprep.subr.mxu0 0.0
    %4268 = vmatpush1.msra.mxu0 0.0
    %4269 = vmatprep.subr.mxu0 0.0
    %4270 = vmatpush1.msra.mxu0 0.0
    %4271 = vmatprep.subr.mxu0 0.0
    %4272 = vmatpush1.msra.mxu0 0.0
    %4273 = vmatprep.subr.mxu0 0.0
    %4274 = vmatpush1.msra.mxu0 0.0
    %4275 = vmatprep.subr.mxu0 0.0
    %4276 = vmatpush1.msra.mxu0 0.0
    %4277 = vmatprep.subr.mxu0 0.0
    %4278 = vmatpush1.msra.mxu0 0.0
    %4279 = vmatprep.subr.mxu0 0.0
    %4280 = vmatpush1.msra.mxu0 0.0
    %4281 = vmatprep.subr.mxu0 0.0
    %4282 = vmatpush1.msra.mxu0 0.0
    %4283 = vmatprep.subr.mxu0 0.0
    %4284 = vmatpush1.msra.mxu0 0.0
    %4285 = vmatprep.subr.mxu0 0.0
    %4286 = vmatpush1.msra.mxu0 0.0
    %4287 = vmatprep.subr.mxu0 0.0
    %4288 = vmatpush1.msra.mxu0 0.0
    %4289 = vmatprep.subr.mxu0 0.0
    %4290 = vmatpush1.msra.mxu0 0.0
    %4291 = vmatprep.subr.mxu0 0.0
    %4292 = vmatpush1.msra.mxu0 0.0
    %4293 = vmatprep.subr.mxu0 0.0
    %4294 = vmatpush1.msra.mxu0 0.0
    %4295 = vmatprep.subr.mxu0 0.0
    %4296 = vmatpush1.msra.mxu0 0.0
    %4297 = vmatprep.subr.mxu0 0.0
    %4298 = vmatpush1.msra.mxu0 0.0
    %4299 = vmatprep.subr.mxu0 0.0
    %4300 = vmatpush1.msra.mxu0 0.0
    %4301 = vmatprep.subr.mxu0 0.0
    %4302 = vmatpush1.msra.mxu0 0.0
    %4303 = vmatprep.subr.mxu0 0.0
    %4304 = vmatpush1.msra.mxu0 0.0
    %4305 = vmatprep.mubr.f32.mxu0 0.0
    %4306 = vmatmul.mubr.f32.gmra.mrb[0].mxu0 %v4169
    %v4307 = vpop.f32.mrb[0].mxu0
    %v4308 = vadd.f32 0.0, %v4307
    %v4309 = vpop.f32.mrb[0].mxu0
    %4310 = vdwg.mxu0
    %4311 = vmatprep.subr.mxu0 0.0
    %4312 = vmatpush1.msra.mxu0 %v3841
    %4313 = vmatprep.subr.mxu0 0.0
    %4314 = vmatpush1.msra.mxu0 %v3842
    %4315 = vmatprep.subr.mxu0 0.0
    %4316 = vmatpush1.msra.mxu0 %v3843
    %4317 = vmatprep.subr.mxu0 0.0
    %4318 = vmatpush1.msra.mxu0 %v3844
    %4319 = vmatprep.subr.mxu0 0.0
    %4320 = vmatpush1.msra.mxu0 0.0
    %4321 = vmatprep.subr.mxu0 0.0
    %4322 = vmatpush1.msra.mxu0 0.0
    %4323 = vmatprep.subr.mxu0 0.0
    %4324 = vmatpush1.msra.mxu0 0.0
    %4325 = vmatprep.subr.mxu0 0.0
    %4326 = vmatpush1.msra.mxu0 0.0
    %4327 = vmatprep.subr.mxu0 0.0
    %4328 = vmatpush1.msra.mxu0 0.0
    %4329 = vmatprep.subr.mxu0 0.0
    %4330 = vmatpush1.msra.mxu0 0.0
    %4331 = vmatprep.subr.mxu0 0.0
    %4332 = vmatpush1.msra.mxu0 0.0
    %4333 = vmatprep.subr.mxu0 0.0
    %4334 = vmatpush1.msra.mxu0 0.0
    %4335 = vmatprep.subr.mxu0 0.0
    %4336 = vmatpush1.msra.mxu0 0.0
    %4337 = vmatprep.subr.mxu0 0.0
    %4338 = vmatpush1.msra.mxu0 0.0
    %4339 = vmatprep.subr.mxu0 0.0
    %4340 = vmatpush1.msra.mxu0 0.0
    %4341 = vmatprep.subr.mxu0 0.0
    %4342 = vmatpush1.msra.mxu0 0.0
    %4343 = vmatprep.subr.mxu0 0.0
    %4344 = vmatpush1.msra.mxu0 0.0
    %4345 = vmatprep.subr.mxu0 0.0
    %4346 = vmatpush1.msra.mxu0 0.0
    %4347 = vmatprep.subr.mxu0 0.0
    %4348 = vmatpush1.msra.mxu0 0.0
    %4349 = vmatprep.subr.mxu0 0.0
    %4350 = vmatpush1.msra.mxu0 0.0
    %4351 = vmatprep.subr.mxu0 0.0
    %4352 = vmatpush1.msra.mxu0 0.0
    %4353 = vmatprep.subr.mxu0 0.0
    %4354 = vmatpush1.msra.mxu0 0.0
    %4355 = vmatprep.subr.mxu0 0.0
    %4356 = vmatpush1.msra.mxu0 0.0
    %4357 = vmatprep.subr.mxu0 0.0
    %4358 = vmatpush1.msra.mxu0 0.0
    %4359 = vmatprep.subr.mxu0 0.0
    %4360 = vmatpush1.msra.mxu0 0.0
    %4361 = vmatprep.subr.mxu0 0.0
    %4362 = vmatpush1.msra.mxu0 0.0
    %4363 = vmatprep.subr.mxu0 0.0
    %4364 = vmatpush1.msra.mxu0 0.0
    %4365 = vmatprep.subr.mxu0 0.0
    %4366 = vmatpush1.msra.mxu0 0.0
    %4367 = vmatprep.subr.mxu0 0.0
    %4368 = vmatpush1.msra.mxu0 0.0
    %4369 = vmatprep.subr.mxu0 0.0
    %4370 = vmatpush1.msra.mxu0 0.0
    %4371 = vmatprep.subr.mxu0 0.0
    %4372 = vmatpush1.msra.mxu0 0.0
    %4373 = vmatprep.subr.mxu0 0.0
    %4374 = vmatpush1.msra.mxu0 0.0
    %4375 = vmatprep.mubr.f32.mxu0 0.0
    %4376 = vmatmul.mubr.f32.gmra.mrb[0].mxu0 %v4169
    %v4377 = vpop.f32.mrb[0].mxu0
    %v4378 = vadd.f32 0.0, %v4377
    %v4379 = vpop.f32.mrb[0].mxu0
    %4380 = vdwg.mxu0
    %4381 = vmatprep.subr.mxu0 0.0
    %4382 = vmatpush1.msra.mxu0 %v3845
    %4383 = vmatprep.subr.mxu0 0.0
    %4384 = vmatpush1.msra.mxu0 %v3846
    %4385 = vmatprep.subr.mxu0 0.0
    %4386 = vmatpush1.msra.mxu0 %v3847
    %4387 = vmatprep.subr.mxu0 0.0
    %4388 = vmatpush1.msra.mxu0 %v3848
    %4389 = vmatprep.subr.mxu0 0.0
    %4390 = vmatpush1.msra.mxu0 0.0
    %4391 = vmatprep.subr.mxu0 0.0
    %4392 = vmatpush1.msra.mxu0 0.0
    %4393 = vmatprep.subr.mxu0 0.0
    %4394 = vmatpush1.msra.mxu0 0.0
    %4395 = vmatprep.subr.mxu0 0.0
    %4396 = vmatpush1.msra.mxu0 0.0
    %4397 = vmatprep.subr.mxu0 0.0
    %4398 = vmatpush1.msra.mxu0 0.0
    %4399 = vmatprep.subr.mxu0 0.0
    %4400 = vmatpush1.msra.mxu0 0.0
    %4401 = vmatprep.subr.mxu0 0.0
    %4402 = vmatpush1.msra.mxu0 0.0
    %4403 = vmatprep.subr.mxu0 0.0
    %4404 = vmatpush1.msra.mxu0 0.0
    %4405 = vmatprep.subr.mxu0 0.0
    %4406 = vmatpush1.msra.mxu0 0.0
    %4407 = vmatprep.subr.mxu0 0.0
    %4408 = vmatpush1.msra.mxu0 0.0
    %4409 = vmatprep.subr.mxu0 0.0
    %4410 = vmatpush1.msra.mxu0 0.0
    %4411 = vmatprep.subr.mxu0 0.0
    %4412 = vmatpush1.msra.mxu0 0.0
    %4413 = vmatprep.subr.mxu0 0.0
    %4414 = vmatpush1.msra.mxu0 0.0
    %4415 = vmatprep.subr.mxu0 0.0
    %4416 = vmatpush1.msra.mxu0 0.0
    %4417 = vmatprep.subr.mxu0 0.0
    %4418 = vmatpush1.msra.mxu0 0.0
    %4419 = vmatprep.subr.mxu0 0.0
    %4420 = vmatpush1.msra.mxu0 0.0
    %4421 = vmatprep.subr.mxu0 0.0
    %4422 = vmatpush1.msra.mxu0 0.0
    %4423 = vmatprep.subr.mxu0 0.0
    %4424 = vmatpush1.msra.mxu0 0.0
    %4425 = vmatprep.subr.mxu0 0.0
    %4426 = vmatpush1.msra.mxu0 0.0
    %4427 = vmatprep.subr.mxu0 0.0
    %4428 = vmatpush1.msra.mxu0 0.0
    %4429 = vmatprep.subr.mxu0 0.0
    %4430 = vmatpush1.msra.mxu0 0.0
    %4431 = vmatprep.subr.mxu0 0.0
    %4432 = vmatpush1.msra.mxu0 0.0
    %4433 = vmatprep.subr.mxu0 0.0
    %4434 = vmatpush1.msra.mxu0 0.0
    %4435 = vmatprep.subr.mxu0 0.0
    %4436 = vmatpush1.msra.mxu0 0.0
    %4437 = vmatprep.subr.mxu0 0.0
    %4438 = vmatpush1.msra.mxu0 0.0
    %4439 = vmatprep.subr.mxu0 0.0
    %4440 = vmatpush1.msra.mxu0 0.0
    %4441 = vmatprep.subr.mxu0 0.0
    %4442 = vmatpush1.msra.mxu0 0.0
    %4443 = vmatprep.subr.mxu0 0.0
    %4444 = vmatpush1.msra.mxu0 0.0
    %4445 = vmatprep.mubr.f32.mxu0 0.0
    %4446 = vmatmul.mubr.f32.gmra.mrb[0].mxu0 %v4169
    %v4447 = vpop.f32.mrb[0].mxu0
    %v4448 = vadd.f32 0.0, %v4447
    %v4449 = vpop.f32.mrb[0].mxu0
    %4450 = vdwg.mxu0
    %v4452 = vsel %vm140, %v71, 0
    %v4455 = vsel %vm140, %v72, 0
    %4457 = vmatprep.subr.mxu0 0.0
    %4458 = vmatpush1.msra.mxu0 %v3849
    %4459 = vmatprep.subr.mxu0 0.0
    %4460 = vmatpush1.msra.mxu0 %v3850
    %4461 = vmatprep.subr.mxu0 0.0
    %4462 = vmatpush1.msra.mxu0 %v3851
    %4463 = vmatprep.subr.mxu0 0.0
    %4464 = vmatpush1.msra.mxu0 %v3852
    %4465 = vmatprep.subr.mxu0 0.0
    %4466 = vmatpush1.msra.mxu0 0.0
    %4467 = vmatprep.subr.mxu0 0.0
    %4468 = vmatpush1.msra.mxu0 0.0
    %4469 = vmatprep.subr.mxu0 0.0
    %4470 = vmatpush1.msra.mxu0 0.0
    %4471 = vmatprep.subr.mxu0 0.0
    %4472 = vmatpush1.msra.mxu0 0.0
    %4473 = vmatprep.subr.mxu0 0.0
    %4474 = vmatpush1.msra.mxu0 0.0
    %4475 = vmatprep.subr.mxu0 0.0
    %4476 = vmatpush1.msra.mxu0 0.0
    %4477 = vmatprep.subr.mxu0 0.0
    %4478 = vmatpush1.msra.mxu0 0.0
    %4479 = vmatprep.subr.mxu0 0.0
    %4480 = vmatpush1.msra.mxu0 0.0
    %4481 = vmatprep.subr.mxu0 0.0
    %4482 = vmatpush1.msra.mxu0 0.0
    %4483 = vmatprep.subr.mxu0 0.0
    %4484 = vmatpush1.msra.mxu0 0.0
    %4485 = vmatprep.subr.mxu0 0.0
    %4486 = vmatpush1.msra.mxu0 0.0
    %4487 = vmatprep.subr.mxu0 0.0
    %4488 = vmatpush1.msra.mxu0 0.0
    %4489 = vmatprep.subr.mxu0 0.0
    %4490 = vmatpush1.msra.mxu0 0.0
    %4491 = vmatprep.subr.mxu0 0.0
    %4492 = vmatpush1.msra.mxu0 0.0
    %4493 = vmatprep.subr.mxu0 0.0
    %4494 = vmatpush1.msra.mxu0 0.0
    %4495 = vmatprep.subr.mxu0 0.0
    %4496 = vmatpush1.msra.mxu0 0.0
    %4497 = vmatprep.subr.mxu0 0.0
    %4498 = vmatpush1.msra.mxu0 0.0
    %4499 = vmatprep.subr.mxu0 0.0
    %4500 = vmatpush1.msra.mxu0 0.0
    %4501 = vmatprep.subr.mxu0 0.0
    %4502 = vmatpush1.msra.mxu0 0.0
    %4503 = vmatprep.subr.mxu0 0.0
    %4504 = vmatpush1.msra.mxu0 0.0
    %4505 = vmatprep.subr.mxu0 0.0
    %4506 = vmatpush1.msra.mxu0 0.0
    %4507 = vmatprep.subr.mxu0 0.0
    %4508 = vmatpush1.msra.mxu0 0.0
    %4509 = vmatprep.subr.mxu0 0.0
    %4510 = vmatpush1.msra.mxu0 0.0
    %4511 = vmatprep.subr.mxu0 0.0
    %4512 = vmatpush1.msra.mxu0 0.0
    %4513 = vmatprep.subr.mxu0 0.0
    %4514 = vmatpush1.msra.mxu0 0.0
    %4515 = vmatprep.subr.mxu0 0.0
    %4516 = vmatpush1.msra.mxu0 0.0
    %4517 = vmatprep.subr.mxu0 0.0
    %4518 = vmatpush1.msra.mxu0 0.0
    %4519 = vmatprep.subr.mxu0 0.0
    %4520 = vmatpush1.msra.mxu0 0.0
    %4521 = vmatprep.mubr.f32.mxu0 0.0
    %4522 = vmatmul.mubr.f32.gmra.mrb[0].mxu0 %v4452
    %v4523 = vpop.f32.mrb[0].mxu0
    %v4524 = vadd.f32 0.0, %v4523
    %v4525 = vpop.f32.mrb[0].mxu0
    %4526 = vmatprep.mubr.f32.mxu0 0.0
    %4527 = vmatmul.mubr.f32.gmra.mrb[0].mxu0 %v4455
    %v4528 = vpop.f32.mrb[0].mxu0
    %v4529 = vadd.f32 0.0, %v4528
    %v4530 = vpop.f32.mrb[0].mxu0
    %4531 = vdwg.mxu0
    %4532 = vmatprep.subr.mxu0 0.0
    %4533 = vmatpush1.msra.mxu0 %v3853
    %4534 = vmatprep.subr.mxu0 0.0
    %4535 = vmatpush1.msra.mxu0 %v3854
    %4536 = vmatprep.subr.mxu0 0.0
    %4537 = vmatpush1.msra.mxu0 %v3855
    %4538 = vmatprep.subr.mxu0 0.0
    %4539 = vmatpush1.msra.mxu0 %v3856
    %4540 = vmatprep.subr.mxu0 0.0
    %4541 = vmatpush1.msra.mxu0 0.0
    %4542 = vmatprep.subr.mxu0 0.0
    %4543 = vmatpush1.msra.mxu0 0.0
    %4544 = vmatprep.subr.mxu0 0.0
    %4545 = vmatpush1.msra.mxu0 0.0
    %4546 = vmatprep.subr.mxu0 0.0
    %4547 = vmatpush1.msra.mxu0 0.0
    %4548 = vmatprep.subr.mxu0 0.0
    %4549 = vmatpush1.msra.mxu0 0.0
    %4550 = vmatprep.subr.mxu0 0.0
    %4551 = vmatpush1.msra.mxu0 0.0
    %4552 = vmatprep.subr.mxu0 0.0
    %4553 = vmatpush1.msra.mxu0 0.0
    %4554 = vmatprep.subr.mxu0 0.0
    %4555 = vmatpush1.msra.mxu0 0.0
    %4556 = vmatprep.subr.mxu0 0.0
    %4557 = vmatpush1.msra.mxu0 0.0
    %4558 = vmatprep.subr.mxu0 0.0
    %4559 = vmatpush1.msra.mxu0 0.0
    %4560 = vmatprep.subr.mxu0 0.0
    %4561 = vmatpush1.msra.mxu0 0.0
    %4562 = vmatprep.subr.mxu0 0.0
    %4563 = vmatpush1.msra.mxu0 0.0
    %4564 = vmatprep.subr.mxu0 0.0
    %4565 = vmatpush1.msra.mxu0 0.0
    %4566 = vmatprep.subr.mxu0 0.0
    %4567 = vmatpush1.msra.mxu0 0.0
    %4568 = vmatprep.subr.mxu0 0.0
    %4569 = vmatpush1.msra.mxu0 0.0
    %4570 = vmatprep.subr.mxu0 0.0
    %4571 = vmatpush1.msra.mxu0 0.0
    %4572 = vmatprep.subr.mxu0 0.0
    %4573 = vmatpush1.msra.mxu0 0.0
    %4574 = vmatprep.subr.mxu0 0.0
    %4575 = vmatpush1.msra.mxu0 0.0
    %4576 = vmatprep.subr.mxu0 0.0
    %4577 = vmatpush1.msra.mxu0 0.0
    %4578 = vmatprep.subr.mxu0 0.0
    %4579 = vmatpush1.msra.mxu0 0.0
    %4580 = vmatprep.subr.mxu0 0.0
    %4581 = vmatpush1.msra.mxu0 0.0
    %4582 = vmatprep.subr.mxu0 0.0
    %4583 = vmatpush1.msra.mxu0 0.0
    %4584 = vmatprep.subr.mxu0 0.0
    %4585 = vmatpush1.msra.mxu0 0.0
    %4586 = vmatprep.subr.mxu0 0.0
    %4587 = vmatpush1.msra.mxu0 0.0
    %4588 = vmatprep.subr.mxu0 0.0
    %4589 = vmatpush1.msra.mxu0 0.0
    %4590 = vmatprep.subr.mxu0 0.0
    %4591 = vmatpush1.msra.mxu0 0.0
    %4592 = vmatprep.subr.mxu0 0.0
    %4593 = vmatpush1.msra.mxu0 0.0
    %4594 = vmatprep.subr.mxu0 0.0
    %4595 = vmatpush1.msra.mxu0 0.0
    %4596 = vmatprep.mubr.f32.mxu0 0.0
    %4597 = vmatmul.mubr.f32.gmra.mrb[0].mxu0 %v4452
    %v4598 = vpop.f32.mrb[0].mxu0
    %v4599 = vadd.f32 0.0, %v4598
    %v4600 = vpop.f32.mrb[0].mxu0
    %4601 = vmatprep.mubr.f32.mxu0 0.0
    %4602 = vmatmul.mubr.f32.gmra.mrb[0].mxu0 %v4455
    %v4603 = vpop.f32.mrb[0].mxu0
    %v4604 = vadd.f32 0.0, %v4603
    %v4605 = vpop.f32.mrb[0].mxu0
    %4606 = vdwg.mxu0
    %4607 = vmatprep.subr.mxu0 0.0
    %4608 = vmatpush1.msra.mxu0 %v3857
    %4609 = vmatprep.subr.mxu0 0.0
    %4610 = vmatpush1.msra.mxu0 %v3858
    %4611 = vmatprep.subr.mxu0 0.0
    %4612 = vmatpush1.msra.mxu0 %v3859
    %4613 = vmatprep.subr.mxu0 0.0
    %4614 = vmatpush1.msra.mxu0 %v3860
    %4615 = vmatprep.subr.mxu0 0.0
    %4616 = vmatpush1.msra.mxu0 0.0
    %4617 = vmatprep.subr.mxu0 0.0
    %4618 = vmatpush1.msra.mxu0 0.0
    %4619 = vmatprep.subr.mxu0 0.0
    %4620 = vmatpush1.msra.mxu0 0.0
    %4621 = vmatprep.subr.mxu0 0.0
    %4622 = vmatpush1.msra.mxu0 0.0
    %4623 = vmatprep.subr.mxu0 0.0
    %4624 = vmatpush1.msra.mxu0 0.0
    %4625 = vmatprep.subr.mxu0 0.0
    %4626 = vmatpush1.msra.mxu0 0.0
    %4627 = vmatprep.subr.mxu0 0.0
    %4628 = vmatpush1.msra.mxu0 0.0
    %4629 = vmatprep.subr.mxu0 0.0
    %4630 = vmatpush1.msra.mxu0 0.0
    %4631 = vmatprep.subr.mxu0 0.0
    %4632 = vmatpush1.msra.mxu0 0.0
    %4633 = vmatprep.subr.mxu0 0.0
    %4634 = vmatpush1.msra.mxu0 0.0
    %4635 = vmatprep.subr.mxu0 0.0
    %4636 = vmatpush1.msra.mxu0 0.0
    %4637 = vmatprep.subr.mxu0 0.0
    %4638 = vmatpush1.msra.mxu0 0.0
    %4639 = vmatprep.subr.mxu0 0.0
    %4640 = vmatpush1.msra.mxu0 0.0
    %4641 = vmatprep.subr.mxu0 0.0
    %4642 = vmatpush1.msra.mxu0 0.0
    %4643 = vmatprep.subr.mxu0 0.0
    %4644 = vmatpush1.msra.mxu0 0.0
    %4645 = vmatprep.subr.mxu0 0.0
    %4646 = vmatpush1.msra.mxu0 0.0
    %4647 = vmatprep.subr.mxu0 0.0
    %4648 = vmatpush1.msra.mxu0 0.0
    %4649 = vmatprep.subr.mxu0 0.0
    %4650 = vmatpush1.msra.mxu0 0.0
    %4651 = vmatprep.subr.mxu0 0.0
    %4652 = vmatpush1.msra.mxu0 0.0
    %4653 = vmatprep.subr.mxu0 0.0
    %4654 = vmatpush1.msra.mxu0 0.0
    %4655 = vmatprep.subr.mxu0 0.0
    %4656 = vmatpush1.msra.mxu0 0.0
    %4657 = vmatprep.subr.mxu0 0.0
    %4658 = vmatpush1.msra.mxu0 0.0
    %4659 = vmatprep.subr.mxu0 0.0
    %4660 = vmatpush1.msra.mxu0 0.0
    %4661 = vmatprep.subr.mxu0 0.0
    %4662 = vmatpush1.msra.mxu0 0.0
    %4663 = vmatprep.subr.mxu0 0.0
    %4664 = vmatpush1.msra.mxu0 0.0
    %4665 = vmatprep.subr.mxu0 0.0
    %4666 = vmatpush1.msra.mxu0 0.0
    %4667 = vmatprep.subr.mxu0 0.0
    %4668 = vmatpush1.msra.mxu0 0.0
    %4669 = vmatprep.subr.mxu0 0.0
    %4670 = vmatpush1.msra.mxu0 0.0
    %4671 = vmatprep.mubr.f32.mxu0 0.0
    %4672 = vmatmul.mubr.f32.gmra.mrb[0].mxu0 %v4452
    %v4673 = vpop.f32.mrb[0].mxu0
    %v4674 = vadd.f32 0.0, %v4673
    %v4675 = vpop.f32.mrb[0].mxu0
    %4676 = vmatprep.mubr.f32.mxu0 0.0
    %4677 = vmatmul.mubr.f32.gmra.mrb[0].mxu0 %v4455
    %v4678 = vpop.f32.mrb[0].mxu0
    %v4679 = vadd.f32 0.0, %v4678
    %v4680 = vpop.f32.mrb[0].mxu0
    %4681 = vdwg.mxu0
    %4682 = vmatprep.subr.mxu0 0.0
    %4683 = vmatpush1.msra.mxu0 %v3861
    %4684 = vmatprep.subr.mxu0 0.0
    %4685 = vmatpush1.msra.mxu0 %v3862
    %4686 = vmatprep.subr.mxu0 0.0
    %4687 = vmatpush1.msra.mxu0 %v3863
    %4688 = vmatprep.subr.mxu0 0.0
    %4689 = vmatpush1.msra.mxu0 %v3864
    %4690 = vmatprep.subr.mxu0 0.0
    %4691 = vmatpush1.msra.mxu0 0.0
    %4692 = vmatprep.subr.mxu0 0.0
    %4693 = vmatpush1.msra.mxu0 0.0
    %4694 = vmatprep.subr.mxu0 0.0
    %4695 = vmatpush1.msra.mxu0 0.0
    %4696 = vmatprep.subr.mxu0 0.0
    %4697 = vmatpush1.msra.mxu0 0.0
    %4698 = vmatprep.subr.mxu0 0.0
    %4699 = vmatpush1.msra.mxu0 0.0
    %4700 = vmatprep.subr.mxu0 0.0
    %4701 = vmatpush1.msra.mxu0 0.0
    %4702 = vmatprep.subr.mxu0 0.0
    %4703 = vmatpush1.msra.mxu0 0.0
    %4704 = vmatprep.subr.mxu0 0.0
    %4705 = vmatpush1.msra.mxu0 0.0
    %4706 = vmatprep.subr.mxu0 0.0
    %4707 = vmatpush1.msra.mxu0 0.0
    %4708 = vmatprep.subr.mxu0 0.0
    %4709 = vmatpush1.msra.mxu0 0.0
    %4710 = vmatprep.subr.mxu0 0.0
    %4711 = vmatpush1.msra.mxu0 0.0
    %4712 = vmatprep.subr.mxu0 0.0
    %4713 = vmatpush1.msra.mxu0 0.0
    %4714 = vmatprep.subr.mxu0 0.0
    %4715 = vmatpush1.msra.mxu0 0.0
    %4716 = vmatprep.subr.mxu0 0.0
    %4717 = vmatpush1.msra.mxu0 0.0
    %4718 = vmatprep.subr.mxu0 0.0
    %4719 = vmatpush1.msra.mxu0 0.0
    %4720 = vmatprep.subr.mxu0 0.0
    %4721 = vmatpush1.msra.mxu0 0.0
    %4722 = vmatprep.subr.mxu0 0.0
    %4723 = vmatpush1.msra.mxu0 0.0
    %4724 = vmatprep.subr.mxu0 0.0
    %4725 = vmatpush1.msra.mxu0 0.0
    %4726 = vmatprep.subr.mxu0 0.0
    %4727 = vmatpush1.msra.mxu0 0.0
    %4728 = vmatprep.subr.mxu0 0.0
    %4729 = vmatpush1.msra.mxu0 0.0
    %4730 = vmatprep.subr.mxu0 0.0
    %4731 = vmatpush1.msra.mxu0 0.0
    %4732 = vmatprep.subr.mxu0 0.0
    %4733 = vmatpush1.msra.mxu0 0.0
    %4734 = vmatprep.subr.mxu0 0.0
    %4735 = vmatpush1.msra.mxu0 0.0
    %4736 = vmatprep.subr.mxu0 0.0
    %4737 = vmatpush1.msra.mxu0 0.0
    %4738 = vmatprep.subr.mxu0 0.0
    %4739 = vmatpush1.msra.mxu0 0.0
    %4740 = vmatprep.subr.mxu0 0.0
    %4741 = vmatpush1.msra.mxu0 0.0
    %4742 = vmatprep.subr.mxu0 0.0
    %4743 = vmatpush1.msra.mxu0 0.0
    %4744 = vmatprep.subr.mxu0 0.0
    %4745 = vmatpush1.msra.mxu0 0.0
    %4746 = vmatprep.mubr.f32.mxu0 0.0
    %4747 = vmatmul.mubr.f32.gmra.mrb[0].mxu0 %v4452
    %v4748 = vpop.f32.mrb[0].mxu0
    %v4749 = vadd.f32 0.0, %v4748
    %v4750 = vpop.f32.mrb[0].mxu0
    %4751 = vmatprep.mubr.f32.mxu0 0.0
    %4752 = vmatmul.mubr.f32.gmra.mrb[0].mxu0 %v4455
    %v4753 = vpop.f32.mrb[0].mxu0
    %v4754 = vadd.f32 0.0, %v4753
    %v4755 = vpop.f32.mrb[0].mxu0
    %4756 = vdwg.mxu0
    %v4758 = vsel %vm140, %v73, 0
    %v4761 = vsel %vm140, %v74, 0
    %4763 = vmatprep.subr.mxu0 0.0
    %4764 = vmatpush1.msra.mxu0 %v3849
    %4765 = vmatprep.subr.mxu0 0.0
    %4766 = vmatpush1.msra.mxu0 %v3850
    %4767 = vmatprep.subr.mxu0 0.0
    %4768 = vmatpush1.msra.mxu0 %v3851
    %4769 = vmatprep.subr.mxu0 0.0
    %4770 = vmatpush1.msra.mxu0 %v3852
    %4771 = vmatprep.subr.mxu0 0.0
    %4772 = vmatpush1.msra.mxu0 0.0
    %4773 = vmatprep.subr.mxu0 0.0
    %4774 = vmatpush1.msra.mxu0 0.0
    %4775 = vmatprep.subr.mxu0 0.0
    %4776 = vmatpush1.msra.mxu0 0.0
    %4777 = vmatprep.subr.mxu0 0.0
    %4778 = vmatpush1.msra.mxu0 0.0
    %4779 = vmatprep.subr.mxu0 0.0
    %4780 = vmatpush1.msra.mxu0 0.0
    %4781 = vmatprep.subr.mxu0 0.0
    %4782 = vmatpush1.msra.mxu0 0.0
    %4783 = vmatprep.subr.mxu0 0.0
    %4784 = vmatpush1.msra.mxu0 0.0
    %4785 = vmatprep.subr.mxu0 0.0
    %4786 = vmatpush1.msra.mxu0 0.0
    %4787 = vmatprep.subr.mxu0 0.0
    %4788 = vmatpush1.msra.mxu0 0.0
    %4789 = vmatprep.subr.mxu0 0.0
    %4790 = vmatpush1.msra.mxu0 0.0
    %4791 = vmatprep.subr.mxu0 0.0
    %4792 = vmatpush1.msra.mxu0 0.0
    %4793 = vmatprep.subr.mxu0 0.0
    %4794 = vmatpush1.msra.mxu0 0.0
    %4795 = vmatprep.subr.mxu0 0.0
    %4796 = vmatpush1.msra.mxu0 0.0
    %4797 = vmatprep.subr.mxu0 0.0
    %4798 = vmatpush1.msra.mxu0 0.0
    %4799 = vmatprep.subr.mxu0 0.0
    %4800 = vmatpush1.msra.mxu0 0.0
    %4801 = vmatprep.subr.mxu0 0.0
    %4802 = vmatpush1.msra.mxu0 0.0
    %4803 = vmatprep.subr.mxu0 0.0
    %4804 = vmatpush1.msra.mxu0 0.0
    %4805 = vmatprep.subr.mxu0 0.0
    %4806 = vmatpush1.msra.mxu0 0.0
    %4807 = vmatprep.subr.mxu0 0.0
    %4808 = vmatpush1.msra.mxu0 0.0
    %4809 = vmatprep.subr.mxu0 0.0
    %4810 = vmatpush1.msra.mxu0 0.0
    %4811 = vmatprep.subr.mxu0 0.0
    %4812 = vmatpush1.msra.mxu0 0.0
    %4813 = vmatprep.subr.mxu0 0.0
    %4814 = vmatpush1.msra.mxu0 0.0
    %4815 = vmatprep.subr.mxu0 0.0
    %4816 = vmatpush1.msra.mxu0 0.0
    %4817 = vmatprep.subr.mxu0 0.0
    %4818 = vmatpush1.msra.mxu0 0.0
    %4819 = vmatprep.subr.mxu0 0.0
    %4820 = vmatpush1.msra.mxu0 0.0
    %4821 = vmatprep.subr.mxu0 0.0
    %4822 = vmatpush1.msra.mxu0 0.0
    %4823 = vmatprep.subr.mxu0 0.0
    %4824 = vmatpush1.msra.mxu0 0.0
    %4825 = vmatprep.subr.mxu0 0.0
    %4826 = vmatpush1.msra.mxu0 0.0
    %4827 = vmatprep.mubr.f32.mxu0 0.0
    %4828 = vmatmul.mubr.f32.gmra.mrb[0].mxu0 %v4758
    %v4829 = vpop.f32.mrb[0].mxu0
    %v4830 = vadd.f32 0.0, %v4829
    %v4831 = vpop.f32.mrb[0].mxu0
    %4832 = vmatprep.mubr.f32.mxu0 0.0
    %4833 = vmatmul.mubr.f32.gmra.mrb[0].mxu0 %v4761
    %v4834 = vpop.f32.mrb[0].mxu0
    %v4835 = vadd.f32 0.0, %v4834
    %v4836 = vpop.f32.mrb[0].mxu0
    %4837 = vdwg.mxu0
    %4838 = vmatprep.subr.mxu0 0.0
    %4839 = vmatpush1.msra.mxu0 %v3853
    %4840 = vmatprep.subr.mxu0 0.0
    %4841 = vmatpush1.msra.mxu0 %v3854
    %4842 = vmatprep.subr.mxu0 0.0
    %4843 = vmatpush1.msra.mxu0 %v3855
    %4844 = vmatprep.subr.mxu0 0.0
    %4845 = vmatpush1.msra.mxu0 %v3856
    %4846 = vmatprep.subr.mxu0 0.0
    %4847 = vmatpush1.msra.mxu0 0.0
    %4848 = vmatprep.subr.mxu0 0.0
    %4849 = vmatpush1.msra.mxu0 0.0
    %4850 = vmatprep.subr.mxu0 0.0
    %4851 = vmatpush1.msra.mxu0 0.0
    %4852 = vmatprep.subr.mxu0 0.0
    %4853 = vmatpush1.msra.mxu0 0.0
    %4854 = vmatprep.subr.mxu0 0.0
    %4855 = vmatpush1.msra.mxu0 0.0
    %4856 = vmatprep.subr.mxu0 0.0
    %4857 = vmatpush1.msra.mxu0 0.0
    %4858 = vmatprep.subr.mxu0 0.0
    %4859 = vmatpush1.msra.mxu0 0.0
    %4860 = vmatprep.subr.mxu0 0.0
    %4861 = vmatpush1.msra.mxu0 0.0
    %4862 = vmatprep.subr.mxu0 0.0
    %4863 = vmatpush1.msra.mxu0 0.0
    %4864 = vmatprep.subr.mxu0 0.0
    %4865 = vmatpush1.msra.mxu0 0.0
    %4866 = vmatprep.subr.mxu0 0.0
    %4867 = vmatpush1.msra.mxu0 0.0
    %4868 = vmatprep.subr.mxu0 0.0
    %4869 = vmatpush1.msra.mxu0 0.0
    %4870 = vmatprep.subr.mxu0 0.0
    %4871 = vmatpush1.msra.mxu0 0.0
    %4872 = vmatprep.subr.mxu0 0.0
    %4873 = vmatpush1.msra.mxu0 0.0
    %4874 = vmatprep.subr.mxu0 0.0
    %4875 = vmatpush1.msra.mxu0 0.0
    %4876 = vmatprep.subr.mxu0 0.0
    %4877 = vmatpush1.msra.mxu0 0.0
    %4878 = vmatprep.subr.mxu0 0.0
    %4879 = vmatpush1.msra.mxu0 0.0
    %4880 = vmatprep.subr.mxu0 0.0
    %4881 = vmatpush1.msra.mxu0 0.0
    %4882 = vmatprep.subr.mxu0 0.0
    %4883 = vmatpush1.msra.mxu0 0.0
    %4884 = vmatprep.subr.mxu0 0.0
    %4885 = vmatpush1.msra.mxu0 0.0
    %4886 = vmatprep.subr.mxu0 0.0
    %4887 = vmatpush1.msra.mxu0 0.0
    %4888 = vmatprep.subr.mxu0 0.0
    %4889 = vmatpush1.msra.mxu0 0.0
    %4890 = vmatprep.subr.mxu0 0.0
    %4891 = vmatpush1.msra.mxu0 0.0
    %4892 = vmatprep.subr.mxu0 0.0
    %4893 = vmatpush1.msra.mxu0 0.0
    %4894 = vmatprep.subr.mxu0 0.0
    %4895 = vmatpush1.msra.mxu0 0.0
    %4896 = vmatprep.subr.mxu0 0.0
    %4897 = vmatpush1.msra.mxu0 0.0
    %4898 = vmatprep.subr.mxu0 0.0
    %4899 = vmatpush1.msra.mxu0 0.0
    %4900 = vmatprep.subr.mxu0 0.0
    %4901 = vmatpush1.msra.mxu0 0.0
    %4902 = vmatprep.mubr.f32.mxu0 0.0
    %4903 = vmatmul.mubr.f32.gmra.mrb[0].mxu0 %v4758
    %v4904 = vpop.f32.mrb[0].mxu0
    %v4905 = vadd.f32 0.0, %v4904
    %v4906 = vpop.f32.mrb[0].mxu0
    %4907 = vmatprep.mubr.f32.mxu0 0.0
    %4908 = vmatmul.mubr.f32.gmra.mrb[0].mxu0 %v4761
    %v4909 = vpop.f32.mrb[0].mxu0
    %v4910 = vadd.f32 0.0, %v4909
    %v4911 = vpop.f32.mrb[0].mxu0
    %4912 = vdwg.mxu0
    %4913 = vmatprep.subr.mxu0 0.0
    %4914 = vmatpush1.msra.mxu0 %v3857
    %4915 = vmatprep.subr.mxu0 0.0
    %4916 = vmatpush1.msra.mxu0 %v3858
    %4917 = vmatprep.subr.mxu0 0.0
    %4918 = vmatpush1.msra.mxu0 %v3859
    %4919 = vmatprep.subr.mxu0 0.0
    %4920 = vmatpush1.msra.mxu0 %v3860
    %4921 = vmatprep.subr.mxu0 0.0
    %4922 = vmatpush1.msra.mxu0 0.0
    %4923 = vmatprep.subr.mxu0 0.0
    %4924 = vmatpush1.msra.mxu0 0.0
    %4925 = vmatprep.subr.mxu0 0.0
    %4926 = vmatpush1.msra.mxu0 0.0
    %4927 = vmatprep.subr.mxu0 0.0
    %4928 = vmatpush1.msra.mxu0 0.0
    %4929 = vmatprep.subr.mxu0 0.0
    %4930 = vmatpush1.msra.mxu0 0.0
    %4931 = vmatprep.subr.mxu0 0.0
    %4932 = vmatpush1.msra.mxu0 0.0
    %4933 = vmatprep.subr.mxu0 0.0
    %4934 = vmatpush1.msra.mxu0 0.0
    %4935 = vmatprep.subr.mxu0 0.0
    %4936 = vmatpush1.msra.mxu0 0.0
    %4937 = vmatprep.subr.mxu0 0.0
    %4938 = vmatpush1.msra.mxu0 0.0
    %4939 = vmatprep.subr.mxu0 0.0
    %4940 = vmatpush1.msra.mxu0 0.0
    %4941 = vmatprep.subr.mxu0 0.0
    %4942 = vmatpush1.msra.mxu0 0.0
    %4943 = vmatprep.subr.mxu0 0.0
    %4944 = vmatpush1.msra.mxu0 0.0
    %4945 = vmatprep.subr.mxu0 0.0
    %4946 = vmatpush1.msra.mxu0 0.0
    %4947 = vmatprep.subr.mxu0 0.0
    %4948 = vmatpush1.msra.mxu0 0.0
    %4949 = vmatprep.subr.mxu0 0.0
    %4950 = vmatpush1.msra.mxu0 0.0
    %4951 = vmatprep.subr.mxu0 0.0
    %4952 = vmatpush1.msra.mxu0 0.0
    %4953 = vmatprep.subr.mxu0 0.0
    %4954 = vmatpush1.msra.mxu0 0.0
    %4955 = vmatprep.subr.mxu0 0.0
    %4956 = vmatpush1.msra.mxu0 0.0
    %4957 = vmatprep.subr.mxu0 0.0
    %4958 = vmatpush1.msra.mxu0 0.0
    %4959 = vmatprep.subr.mxu0 0.0
    %4960 = vmatpush1.msra.mxu0 0.0
    %4961 = vmatprep.subr.mxu0 0.0
    %4962 = vmatpush1.msra.mxu0 0.0
    %4963 = vmatprep.subr.mxu0 0.0
    %4964 = vmatpush1.msra.mxu0 0.0
    %4965 = vmatprep.subr.mxu0 0.0
    %4966 = vmatpush1.msra.mxu0 0.0
    %4967 = vmatprep.subr.mxu0 0.0
    %4968 = vmatpush1.msra.mxu0 0.0
    %4969 = vmatprep.subr.mxu0 0.0
    %4970 = vmatpush1.msra.mxu0 0.0
    %4971 = vmatprep.subr.mxu0 0.0
    %4972 = vmatpush1.msra.mxu0 0.0
    %4973 = vmatprep.subr.mxu0 0.0
    %4974 = vmatpush1.msra.mxu0 0.0
    %4975 = vmatprep.subr.mxu0 0.0
    %4976 = vmatpush1.msra.mxu0 0.0
    %4977 = vmatprep.mubr.f32.mxu0 0.0
    %4978 = vmatmul.mubr.f32.gmra.mrb[0].mxu0 %v4758
    %v4979 = vpop.f32.mrb[0].mxu0
    %v4980 = vadd.f32 0.0, %v4979
    %v4981 = vpop.f32.mrb[0].mxu0
    %4982 = vmatprep.mubr.f32.mxu0 0.0
    %4983 = vmatmul.mubr.f32.gmra.mrb[0].mxu0 %v4761
    %v4984 = vpop.f32.mrb[0].mxu0
    %v4985 = vadd.f32 0.0, %v4984
    %v4986 = vpop.f32.mrb[0].mxu0
    %4987 = vdwg.mxu0
    %4988 = vmatprep.subr.mxu0 0.0
    %4989 = vmatpush1.msra.mxu0 %v3861
    %4990 = vmatprep.subr.mxu0 0.0
    %4991 = vmatpush1.msra.mxu0 %v3862
    %4992 = vmatprep.subr.mxu0 0.0
    %4993 = vmatpush1.msra.mxu0 %v3863
    %4994 = vmatprep.subr.mxu0 0.0
    %4995 = vmatpush1.msra.mxu0 %v3864
    %4996 = vmatprep.subr.mxu0 0.0
    %4997 = vmatpush1.msra.mxu0 0.0
    %4998 = vmatprep.subr.mxu0 0.0
    %4999 = vmatpush1.msra.mxu0 0.0
    %5000 = vmatprep.subr.mxu0 0.0
    %5001 = vmatpush1.msra.mxu0 0.0
    %5002 = vmatprep.subr.mxu0 0.0
    %5003 = vmatpush1.msra.mxu0 0.0
    %5004 = vmatprep.subr.mxu0 0.0
    %5005 = vmatpush1.msra.mxu0 0.0
    %5006 = vmatprep.subr.mxu0 0.0
    %5007 = vmatpush1.msra.mxu0 0.0
    %5008 = vmatprep.subr.mxu0 0.0
    %5009 = vmatpush1.msra.mxu0 0.0
    %5010 = vmatprep.subr.mxu0 0.0
    %5011 = vmatpush1.msra.mxu0 0.0
    %5012 = vmatprep.subr.mxu0 0.0
    %5013 = vmatpush1.msra.mxu0 0.0
    %5014 = vmatprep.subr.mxu0 0.0
    %5015 = vmatpush1.msra.mxu0 0.0
    %5016 = vmatprep.subr.mxu0 0.0
    %5017 = vmatpush1.msra.mxu0 0.0
    %5018 = vmatprep.subr.mxu0 0.0
    %5019 = vmatpush1.msra.mxu0 0.0
    %5020 = vmatprep.subr.mxu0 0.0
    %5021 = vmatpush1.msra.mxu0 0.0
    %5022 = vmatprep.subr.mxu0 0.0
    %5023 = vmatpush1.msra.mxu0 0.0
    %5024 = vmatprep.subr.mxu0 0.0
    %5025 = vmatpush1.msra.mxu0 0.0
    %5026 = vmatprep.subr.mxu0 0.0
    %5027 = vmatpush1.msra.mxu0 0.0
    %5028 = vmatprep.subr.mxu0 0.0
    %5029 = vmatpush1.msra.mxu0 0.0
    %5030 = vmatprep.subr.mxu0 0.0
    %5031 = vmatpush1.msra.mxu0 0.0
    %5032 = vmatprep.subr.mxu0 0.0
    %5033 = vmatpush1.msra.mxu0 0.0
    %5034 = vmatprep.subr.mxu0 0.0
    %5035 = vmatpush1.msra.mxu0 0.0
    %5036 = vmatprep.subr.mxu0 0.0
    %5037 = vmatpush1.msra.mxu0 0.0
    %5038 = vmatprep.subr.mxu0 0.0
    %5039 = vmatpush1.msra.mxu0 0.0
    %5040 = vmatprep.subr.mxu0 0.0
    %5041 = vmatpush1.msra.mxu0 0.0
    %5042 = vmatprep.subr.mxu0 0.0
    %5043 = vmatpush1.msra.mxu0 0.0
    %5044 = vmatprep.subr.mxu0 0.0
    %5045 = vmatpush1.msra.mxu0 0.0
    %5046 = vmatprep.subr.mxu0 0.0
    %5047 = vmatpush1.msra.mxu0 0.0
    %5048 = vmatprep.subr.mxu0 0.0
    %5049 = vmatpush1.msra.mxu0 0.0
    %5050 = vmatprep.subr.mxu0 0.0
    %5051 = vmatpush1.msra.mxu0 0.0
    %5052 = vmatprep.mubr.f32.mxu0 0.0
    %5053 = vmatmul.mubr.f32.gmra.mrb[0].mxu0 %v4758
    %v5054 = vpop.f32.mrb[0].mxu0
    %v5055 = vadd.f32 0.0, %v5054
    %v5056 = vpop.f32.mrb[0].mxu0
    %5057 = vmatprep.mubr.f32.mxu0 0.0
    %5058 = vmatmul.mubr.f32.gmra.mrb[0].mxu0 %v4761
    %v5059 = vpop.f32.mrb[0].mxu0
    %v5060 = vadd.f32 0.0, %v5059
    %v5061 = vpop.f32.mrb[0].mxu0
    %5062 = vdwg.mxu0
    %5063 = vmatprep.subr.mxu0 0.0
    %5064 = vmatpush1.msra.mxu0 %v3865
    %5065 = vmatprep.subr.mxu0 0.0
    %5066 = vmatpush1.msra.mxu0 %v3866
    %5067 = vmatprep.subr.mxu0 0.0
    %5068 = vmatpush1.msra.mxu0 %v3867
    %5069 = vmatprep.subr.mxu0 0.0
    %5070 = vmatpush1.msra.mxu0 %v3868
    %5071 = vmatprep.subr.mxu0 0.0
    %5072 = vmatpush1.msra.mxu0 0.0
    %5073 = vmatprep.subr.mxu0 0.0
    %5074 = vmatpush1.msra.mxu0 0.0
    %5075 = vmatprep.subr.mxu0 0.0
    %5076 = vmatpush1.msra.mxu0 0.0
    %5077 = vmatprep.subr.mxu0 0.0
    %5078 = vmatpush1.msra.mxu0 0.0
    %5079 = vmatprep.subr.mxu0 0.0
    %5080 = vmatpush1.msra.mxu0 0.0
    %5081 = vmatprep.subr.mxu0 0.0
    %5082 = vmatpush1.msra.mxu0 0.0
    %5083 = vmatprep.subr.mxu0 0.0
    %5084 = vmatpush1.msra.mxu0 0.0
    %5085 = vmatprep.subr.mxu0 0.0
    %5086 = vmatpush1.msra.mxu0 0.0
    %5087 = vmatprep.subr.mxu0 0.0
    %5088 = vmatpush1.msra.mxu0 0.0
    %5089 = vmatprep.subr.mxu0 0.0
    %5090 = vmatpush1.msra.mxu0 0.0
    %5091 = vmatprep.subr.mxu0 0.0
    %5092 = vmatpush1.msra.mxu0 0.0
    %5093 = vmatprep.subr.mxu0 0.0
    %5094 = vmatpush1.msra.mxu0 0.0
    %5095 = vmatprep.subr.mxu0 0.0
    %5096 = vmatpush1.msra.mxu0 0.0
    %5097 = vmatprep.subr.mxu0 0.0
    %5098 = vmatpush1.msra.mxu0 0.0
    %5099 = vmatprep.subr.mxu0 0.0
    %5100 = vmatpush1.msra.mxu0 0.0
    %5101 = vmatprep.subr.mxu0 0.0
    %5102 = vmatpush1.msra.mxu0 0.0
    %5103 = vmatprep.subr.mxu0 0.0
    %5104 = vmatpush1.msra.mxu0 0.0
    %5105 = vmatprep.subr.mxu0 0.0
    %5106 = vmatpush1.msra.mxu0 0.0
    %5107 = vmatprep.subr.mxu0 0.0
    %5108 = vmatpush1.msra.mxu0 0.0
    %5109 = vmatprep.subr.mxu0 0.0
    %5110 = vmatpush1.msra.mxu0 0.0
    %5111 = vmatprep.subr.mxu0 0.0
    %5112 = vmatpush1.msra.mxu0 0.0
    %5113 = vmatprep.subr.mxu0 0.0
    %5114 = vmatpush1.msra.mxu0 0.0
    %5115 = vmatprep.subr.mxu0 0.0
    %5116 = vmatpush1.msra.mxu0 0.0
    %5117 = vmatprep.subr.mxu0 0.0
    %5118 = vmatpush1.msra.mxu0 0.0
    %5119 = vmatprep.subr.mxu0 0.0
    %5120 = vmatpush1.msra.mxu0 0.0
    %5121 = vmatprep.subr.mxu0 0.0
    %5122 = vmatpush1.msra.mxu0 0.0
    %5123 = vmatprep.subr.mxu0 0.0
    %5124 = vmatpush1.msra.mxu0 0.0
    %5125 = vmatprep.subr.mxu0 0.0
    %5126 = vmatpush1.msra.mxu0 0.0
    %5127 = vmatprep.mubr.f32.mxu0 0.0
    %5128 = vmatmul.mubr.f32.gmra.mrb[0].mxu0 %v4452
    %v5129 = vpop.f32.mrb[0].mxu0
    %v5130 = vadd.f32 0.0, %v5129
    %v5131 = vpop.f32.mrb[0].mxu0
    %5132 = vmatprep.mubr.f32.mxu0 0.0
    %5133 = vmatmul.mubr.f32.gmra.mrb[0].mxu0 %v4455
    %v5134 = vpop.f32.mrb[0].mxu0
    %v5135 = vadd.f32 0.0, %v5134
    %v5136 = vpop.f32.mrb[0].mxu0
    %5137 = vdwg.mxu0
    %5138 = vmatprep.subr.mxu0 0.0
    %5139 = vmatpush1.msra.mxu0 %v3869
    %5140 = vmatprep.subr.mxu0 0.0
    %5141 = vmatpush1.msra.mxu0 %v3870
    %5142 = vmatprep.subr.mxu0 0.0
    %5143 = vmatpush1.msra.mxu0 %v3871
    %5144 = vmatprep.subr.mxu0 0.0
    %5145 = vmatpush1.msra.mxu0 %v3872
    %5146 = vmatprep.subr.mxu0 0.0
    %5147 = vmatpush1.msra.mxu0 0.0
    %5148 = vmatprep.subr.mxu0 0.0
    %5149 = vmatpush1.msra.mxu0 0.0
    %5150 = vmatprep.subr.mxu0 0.0
    %5151 = vmatpush1.msra.mxu0 0.0
    %5152 = vmatprep.subr.mxu0 0.0
    %5153 = vmatpush1.msra.mxu0 0.0
    %5154 = vmatprep.subr.mxu0 0.0
    %5155 = vmatpush1.msra.mxu0 0.0
    %5156 = vmatprep.subr.mxu0 0.0
    %5157 = vmatpush1.msra.mxu0 0.0
    %5158 = vmatprep.subr.mxu0 0.0
    %5159 = vmatpush1.msra.mxu0 0.0
    %5160 = vmatprep.subr.mxu0 0.0
    %5161 = vmatpush1.msra.mxu0 0.0
    %5162 = vmatprep.subr.mxu0 0.0
    %5163 = vmatpush1.msra.mxu0 0.0
    %5164 = vmatprep.subr.mxu0 0.0
    %5165 = vmatpush1.msra.mxu0 0.0
    %5166 = vmatprep.subr.mxu0 0.0
    %5167 = vmatpush1.msra.mxu0 0.0
    %5168 = vmatprep.subr.mxu0 0.0
    %5169 = vmatpush1.msra.mxu0 0.0
    %5170 = vmatprep.subr.mxu0 0.0
    %5171 = vmatpush1.msra.mxu0 0.0
    %5172 = vmatprep.subr.mxu0 0.0
    %5173 = vmatpush1.msra.mxu0 0.0
    %5174 = vmatprep.subr.mxu0 0.0
    %5175 = vmatpush1.msra.mxu0 0.0
    %5176 = vmatprep.subr.mxu0 0.0
    %5177 = vmatpush1.msra.mxu0 0.0
    %5178 = vmatprep.subr.mxu0 0.0
    %5179 = vmatpush1.msra.mxu0 0.0
    %5180 = vmatprep.subr.mxu0 0.0
    %5181 = vmatpush1.msra.mxu0 0.0
    %5182 = vmatprep.subr.mxu0 0.0
    %5183 = vmatpush1.msra.mxu0 0.0
    %5184 = vmatprep.subr.mxu0 0.0
    %5185 = vmatpush1.msra.mxu0 0.0
    %5186 = vmatprep.subr.mxu0 0.0
    %5187 = vmatpush1.msra.mxu0 0.0
    %5188 = vmatprep.subr.mxu0 0.0
    %5189 = vmatpush1.msra.mxu0 0.0
    %5190 = vmatprep.subr.mxu0 0.0
    %5191 = vmatpush1.msra.mxu0 0.0
    %5192 = vmatprep.subr.mxu0 0.0
    %5193 = vmatpush1.msra.mxu0 0.0
    %5194 = vmatprep.subr.mxu0 0.0
    %5195 = vmatpush1.msra.mxu0 0.0
    %5196 = vmatprep.subr.mxu0 0.0
    %5197 = vmatpush1.msra.mxu0 0.0
    %5198 = vmatprep.subr.mxu0 0.0
    %5199 = vmatpush1.msra.mxu0 0.0
    %5200 = vmatprep.subr.mxu0 0.0
    %5201 = vmatpush1.msra.mxu0 0.0
    %5202 = vmatprep.mubr.f32.mxu0 0.0
    %5203 = vmatmul.mubr.f32.gmra.mrb[0].mxu0 %v4452
    %v5204 = vpop.f32.mrb[0].mxu0
    %v5205 = vadd.f32 0.0, %v5204
    %v5206 = vpop.f32.mrb[0].mxu0
    %5207 = vmatprep.mubr.f32.mxu0 0.0
    %5208 = vmatmul.mubr.f32.gmra.mrb[0].mxu0 %v4455
    %v5209 = vpop.f32.mrb[0].mxu0
    %v5210 = vadd.f32 0.0, %v5209
    %v5211 = vpop.f32.mrb[0].mxu0
    %5212 = vdwg.mxu0
    %5213 = vmatprep.subr.mxu0 0.0
    %5214 = vmatpush1.msra.mxu0 %v3873
    %5215 = vmatprep.subr.mxu0 0.0
    %5216 = vmatpush1.msra.mxu0 %v3874
    %5217 = vmatprep.subr.mxu0 0.0
    %5218 = vmatpush1.msra.mxu0 %v3875
    %5219 = vmatprep.subr.mxu0 0.0
    %5220 = vmatpush1.msra.mxu0 %v3876
    %5221 = vmatprep.subr.mxu0 0.0
    %5222 = vmatpush1.msra.mxu0 0.0
    %5223 = vmatprep.subr.mxu0 0.0
    %5224 = vmatpush1.msra.mxu0 0.0
    %5225 = vmatprep.subr.mxu0 0.0
    %5226 = vmatpush1.msra.mxu0 0.0
    %5227 = vmatprep.subr.mxu0 0.0
    %5228 = vmatpush1.msra.mxu0 0.0
    %5229 = vmatprep.subr.mxu0 0.0
    %5230 = vmatpush1.msra.mxu0 0.0
    %5231 = vmatprep.subr.mxu0 0.0
    %5232 = vmatpush1.msra.mxu0 0.0
    %5233 = vmatprep.subr.mxu0 0.0
    %5234 = vmatpush1.msra.mxu0 0.0
    %5235 = vmatprep.subr.mxu0 0.0
    %5236 = vmatpush1.msra.mxu0 0.0
    %5237 = vmatprep.subr.mxu0 0.0
    %5238 = vmatpush1.msra.mxu0 0.0
    %5239 = vmatprep.subr.mxu0 0.0
    %5240 = vmatpush1.msra.mxu0 0.0
    %5241 = vmatprep.subr.mxu0 0.0
    %5242 = vmatpush1.msra.mxu0 0.0
    %5243 = vmatprep.subr.mxu0 0.0
    %5244 = vmatpush1.msra.mxu0 0.0
    %5245 = vmatprep.subr.mxu0 0.0
    %5246 = vmatpush1.msra.mxu0 0.0
    %5247 = vmatprep.subr.mxu0 0.0
    %5248 = vmatpush1.msra.mxu0 0.0
    %5249 = vmatprep.subr.mxu0 0.0
    %5250 = vmatpush1.msra.mxu0 0.0
    %5251 = vmatprep.subr.mxu0 0.0
    %5252 = vmatpush1.msra.mxu0 0.0
    %5253 = vmatprep.subr.mxu0 0.0
    %5254 = vmatpush1.msra.mxu0 0.0
    %5255 = vmatprep.subr.mxu0 0.0
    %5256 = vmatpush1.msra.mxu0 0.0
    %5257 = vmatprep.subr.mxu0 0.0
    %5258 = vmatpush1.msra.mxu0 0.0
    %5259 = vmatprep.subr.mxu0 0.0
    %5260 = vmatpush1.msra.mxu0 0.0
    %5261 = vmatprep.subr.mxu0 0.0
    %5262 = vmatpush1.msra.mxu0 0.0
    %5263 = vmatprep.subr.mxu0 0.0
    %5264 = vmatpush1.msra.mxu0 0.0
    %5265 = vmatprep.subr.mxu0 0.0
    %5266 = vmatpush1.msra.mxu0 0.0
    %5267 = vmatprep.subr.mxu0 0.0
    %5268 = vmatpush1.msra.mxu0 0.0
    %5269 = vmatprep.subr.mxu0 0.0
    %5270 = vmatpush1.msra.mxu0 0.0
    %5271 = vmatprep.subr.mxu0 0.0
    %5272 = vmatpush1.msra.mxu0 0.0
    %5273 = vmatprep.subr.mxu0 0.0
    %5274 = vmatpush1.msra.mxu0 0.0
    %5275 = vmatprep.subr.mxu0 0.0
    %5276 = vmatpush1.msra.mxu0 0.0
    %5277 = vmatprep.mubr.f32.mxu0 0.0
    %5278 = vmatmul.mubr.f32.gmra.mrb[0].mxu0 %v4452
    %v5279 = vpop.f32.mrb[0].mxu0
    %v5280 = vadd.f32 0.0, %v5279
    %v5281 = vpop.f32.mrb[0].mxu0
    %5282 = vmatprep.mubr.f32.mxu0 0.0
    %5283 = vmatmul.mubr.f32.gmra.mrb[0].mxu0 %v4455
    %v5284 = vpop.f32.mrb[0].mxu0
    %v5285 = vadd.f32 0.0, %v5284
    %v5286 = vpop.f32.mrb[0].mxu0
    %5287 = vdwg.mxu0
    %5288 = vmatprep.subr.mxu0 0.0
    %5289 = vmatpush1.msra.mxu0 %v3877
    %5290 = vmatprep.subr.mxu0 0.0
    %5291 = vmatpush1.msra.mxu0 %v3878
    %5292 = vmatprep.subr.mxu0 0.0
    %5293 = vmatpush1.msra.mxu0 %v3879
    %5294 = vmatprep.subr.mxu0 0.0
    %5295 = vmatpush1.msra.mxu0 %v3880
    %5296 = vmatprep.subr.mxu0 0.0
    %5297 = vmatpush1.msra.mxu0 0.0
    %5298 = vmatprep.subr.mxu0 0.0
    %5299 = vmatpush1.msra.mxu0 0.0
    %5300 = vmatprep.subr.mxu0 0.0
    %5301 = vmatpush1.msra.mxu0 0.0
    %5302 = vmatprep.subr.mxu0 0.0
    %5303 = vmatpush1.msra.mxu0 0.0
    %5304 = vmatprep.subr.mxu0 0.0
    %5305 = vmatpush1.msra.mxu0 0.0
    %5306 = vmatprep.subr.mxu0 0.0
    %5307 = vmatpush1.msra.mxu0 0.0
    %5308 = vmatprep.subr.mxu0 0.0
    %5309 = vmatpush1.msra.mxu0 0.0
    %5310 = vmatprep.subr.mxu0 0.0
    %5311 = vmatpush1.msra.mxu0 0.0
    %5312 = vmatprep.subr.mxu0 0.0
    %5313 = vmatpush1.msra.mxu0 0.0
    %5314 = vmatprep.subr.mxu0 0.0
    %5315 = vmatpush1.msra.mxu0 0.0
    %5316 = vmatprep.subr.mxu0 0.0
    %5317 = vmatpush1.msra.mxu0 0.0
    %5318 = vmatprep.subr.mxu0 0.0
    %5319 = vmatpush1.msra.mxu0 0.0
    %5320 = vmatprep.subr.mxu0 0.0
    %5321 = vmatpush1.msra.mxu0 0.0
    %5322 = vmatprep.subr.mxu0 0.0
    %5323 = vmatpush1.msra.mxu0 0.0
    %5324 = vmatprep.subr.mxu0 0.0
    %5325 = vmatpush1.msra.mxu0 0.0
    %5326 = vmatprep.subr.mxu0 0.0
    %5327 = vmatpush1.msra.mxu0 0.0
    %5328 = vmatprep.subr.mxu0 0.0
    %5329 = vmatpush1.msra.mxu0 0.0
    %5330 = vmatprep.subr.mxu0 0.0
    %5331 = vmatpush1.msra.mxu0 0.0
    %5332 = vmatprep.subr.mxu0 0.0
    %5333 = vmatpush1.msra.mxu0 0.0
    %5334 = vmatprep.subr.mxu0 0.0
    %5335 = vmatpush1.msra.mxu0 0.0
    %5336 = vmatprep.subr.mxu0 0.0
    %5337 = vmatpush1.msra.mxu0 0.0
    %5338 = vmatprep.subr.mxu0 0.0
    %5339 = vmatpush1.msra.mxu0 0.0
    %5340 = vmatprep.subr.mxu0 0.0
    %5341 = vmatpush1.msra.mxu0 0.0
    %5342 = vmatprep.subr.mxu0 0.0
    %5343 = vmatpush1.msra.mxu0 0.0
    %5344 = vmatprep.subr.mxu0 0.0
    %5345 = vmatpush1.msra.mxu0 0.0
    %5346 = vmatprep.subr.mxu0 0.0
    %5347 = vmatpush1.msra.mxu0 0.0
    %5348 = vmatprep.subr.mxu0 0.0
    %5349 = vmatpush1.msra.mxu0 0.0
    %5350 = vmatprep.subr.mxu0 0.0
    %5351 = vmatpush1.msra.mxu0 0.0
    %5352 = vmatprep.mubr.f32.mxu0 0.0
    %5353 = vmatmul.mubr.f32.gmra.mrb[0].mxu0 %v4452
    %v5354 = vpop.f32.mrb[0].mxu0
    %v5355 = vadd.f32 0.0, %v5354
    %v5356 = vpop.f32.mrb[0].mxu0
    %5357 = vmatprep.mubr.f32.mxu0 0.0
    %5358 = vmatmul.mubr.f32.gmra.mrb[0].mxu0 %v4455
    %v5359 = vpop.f32.mrb[0].mxu0
    %v5360 = vadd.f32 0.0, %v5359
    %v5361 = vpop.f32.mrb[0].mxu0
    %5362 = vdwg.mxu0
    %5363 = vmatprep.subr.mxu0 0.0
    %5364 = vmatpush1.msra.mxu0 %v3865
    %5365 = vmatprep.subr.mxu0 0.0
    %5366 = vmatpush1.msra.mxu0 %v3866
    %5367 = vmatprep.subr.mxu0 0.0
    %5368 = vmatpush1.msra.mxu0 %v3867
    %5369 = vmatprep.subr.mxu0 0.0
    %5370 = vmatpush1.msra.mxu0 %v3868
    %5371 = vmatprep.subr.mxu0 0.0
    %5372 = vmatpush1.msra.mxu0 0.0
    %5373 = vmatprep.subr.mxu0 0.0
    %5374 = vmatpush1.msra.mxu0 0.0
    %5375 = vmatprep.subr.mxu0 0.0
    %5376 = vmatpush1.msra.mxu0 0.0
    %5377 = vmatprep.subr.mxu0 0.0
    %5378 = vmatpush1.msra.mxu0 0.0
    %5379 = vmatprep.subr.mxu0 0.0
    %5380 = vmatpush1.msra.mxu0 0.0
    %5381 = vmatprep.subr.mxu0 0.0
    %5382 = vmatpush1.msra.mxu0 0.0
    %5383 = vmatprep.subr.mxu0 0.0
    %5384 = vmatpush1.msra.mxu0 0.0
    %5385 = vmatprep.subr.mxu0 0.0
    %5386 = vmatpush1.msra.mxu0 0.0
    %5387 = vmatprep.subr.mxu0 0.0
    %5388 = vmatpush1.msra.mxu0 0.0
    %5389 = vmatprep.subr.mxu0 0.0
    %5390 = vmatpush1.msra.mxu0 0.0
    %5391 = vmatprep.subr.mxu0 0.0
    %5392 = vmatpush1.msra.mxu0 0.0
    %5393 = vmatprep.subr.mxu0 0.0
    %5394 = vmatpush1.msra.mxu0 0.0
    %5395 = vmatprep.subr.mxu0 0.0
    %5396 = vmatpush1.msra.mxu0 0.0
    %5397 = vmatprep.subr.mxu0 0.0
    %5398 = vmatpush1.msra.mxu0 0.0
    %5399 = vmatprep.subr.mxu0 0.0
    %5400 = vmatpush1.msra.mxu0 0.0
    %5401 = vmatprep.subr.mxu0 0.0
    %5402 = vmatpush1.msra.mxu0 0.0
    %5403 = vmatprep.subr.mxu0 0.0
    %5404 = vmatpush1.msra.mxu0 0.0
    %5405 = vmatprep.subr.mxu0 0.0
    %5406 = vmatpush1.msra.mxu0 0.0
    %5407 = vmatprep.subr.mxu0 0.0
    %5408 = vmatpush1.msra.mxu0 0.0
    %5409 = vmatprep.subr.mxu0 0.0
    %5410 = vmatpush1.msra.mxu0 0.0
    %5411 = vmatprep.subr.mxu0 0.0
    %5412 = vmatpush1.msra.mxu0 0.0
    %5413 = vmatprep.subr.mxu0 0.0
    %5414 = vmatpush1.msra.mxu0 0.0
    %5415 = vmatprep.subr.mxu0 0.0
    %5416 = vmatpush1.msra.mxu0 0.0
    %5417 = vmatprep.subr.mxu0 0.0
    %5418 = vmatpush1.msra.mxu0 0.0
    %5419 = vmatprep.subr.mxu0 0.0
    %5420 = vmatpush1.msra.mxu0 0.0
    %5421 = vmatprep.subr.mxu0 0.0
    %5422 = vmatpush1.msra.mxu0 0.0
    %5423 = vmatprep.subr.mxu0 0.0
    %5424 = vmatpush1.msra.mxu0 0.0
    %5425 = vmatprep.subr.mxu0 0.0
    %5426 = vmatpush1.msra.mxu0 0.0
    %5427 = vmatprep.mubr.f32.mxu0 0.0
    %5428 = vmatmul.mubr.f32.gmra.mrb[0].mxu0 %v4758
    %v5429 = vpop.f32.mrb[0].mxu0
    %v5430 = vadd.f32 0.0, %v5429
    %v5431 = vpop.f32.mrb[0].mxu0
    %5432 = vmatprep.mubr.f32.mxu0 0.0
    %5433 = vmatmul.mubr.f32.gmra.mrb[0].mxu0 %v4761
    %v5434 = vpop.f32.mrb[0].mxu0
    %v5435 = vadd.f32 0.0, %v5434
    %v5436 = vpop.f32.mrb[0].mxu0
    %5437 = vdwg.mxu0
    %5438 = vmatprep.subr.mxu0 0.0
    %5439 = vmatpush1.msra.mxu0 %v3869
    %5440 = vmatprep.subr.mxu0 0.0
    %5441 = vmatpush1.msra.mxu0 %v3870
    %5442 = vmatprep.subr.mxu0 0.0
    %5443 = vmatpush1.msra.mxu0 %v3871
    %5444 = vmatprep.subr.mxu0 0.0
    %5445 = vmatpush1.msra.mxu0 %v3872
    %5446 = vmatprep.subr.mxu0 0.0
    %5447 = vmatpush1.msra.mxu0 0.0
    %5448 = vmatprep.subr.mxu0 0.0
    %5449 = vmatpush1.msra.mxu0 0.0
    %5450 = vmatprep.subr.mxu0 0.0
    %5451 = vmatpush1.msra.mxu0 0.0
    %5452 = vmatprep.subr.mxu0 0.0
    %5453 = vmatpush1.msra.mxu0 0.0
    %5454 = vmatprep.subr.mxu0 0.0
    %5455 = vmatpush1.msra.mxu0 0.0
    %5456 = vmatprep.subr.mxu0 0.0
    %5457 = vmatpush1.msra.mxu0 0.0
    %5458 = vmatprep.subr.mxu0 0.0
    %5459 = vmatpush1.msra.mxu0 0.0
    %5460 = vmatprep.subr.mxu0 0.0
    %5461 = vmatpush1.msra.mxu0 0.0
    %5462 = vmatprep.subr.mxu0 0.0
    %5463 = vmatpush1.msra.mxu0 0.0
    %5464 = vmatprep.subr.mxu0 0.0
    %5465 = vmatpush1.msra.mxu0 0.0
    %5466 = vmatprep.subr.mxu0 0.0
    %5467 = vmatpush1.msra.mxu0 0.0
    %5468 = vmatprep.subr.mxu0 0.0
    %5469 = vmatpush1.msra.mxu0 0.0
    %5470 = vmatprep.subr.mxu0 0.0
    %5471 = vmatpush1.msra.mxu0 0.0
    %5472 = vmatprep.subr.mxu0 0.0
    %5473 = vmatpush1.msra.mxu0 0.0
    %5474 = vmatprep.subr.mxu0 0.0
    %5475 = vmatpush1.msra.mxu0 0.0
    %5476 = vmatprep.subr.mxu0 0.0
    %5477 = vmatpush1.msra.mxu0 0.0
    %5478 = vmatprep.subr.mxu0 0.0
    %5479 = vmatpush1.msra.mxu0 0.0
    %5480 = vmatprep.subr.mxu0 0.0
    %5481 = vmatpush1.msra.mxu0 0.0
    %5482 = vmatprep.subr.mxu0 0.0
    %5483 = vmatpush1.msra.mxu0 0.0
    %5484 = vmatprep.subr.mxu0 0.0
    %5485 = vmatpush1.msra.mxu0 0.0
    %5486 = vmatprep.subr.mxu0 0.0
    %5487 = vmatpush1.msra.mxu0 0.0
    %5488 = vmatprep.subr.mxu0 0.0
    %5489 = vmatpush1.msra.mxu0 0.0
    %5490 = vmatprep.subr.mxu0 0.0
    %5491 = vmatpush1.msra.mxu0 0.0
    %5492 = vmatprep.subr.mxu0 0.0
    %5493 = vmatpush1.msra.mxu0 0.0
    %5494 = vmatprep.subr.mxu0 0.0
    %5495 = vmatpush1.msra.mxu0 0.0
    %5496 = vmatprep.subr.mxu0 0.0
    %5497 = vmatpush1.msra.mxu0 0.0
    %5498 = vmatprep.subr.mxu0 0.0
    %5499 = vmatpush1.msra.mxu0 0.0
    %5500 = vmatprep.subr.mxu0 0.0
    %5501 = vmatpush1.msra.mxu0 0.0
    %5502 = vmatprep.mubr.f32.mxu0 0.0
    %5503 = vmatmul.mubr.f32.gmra.mrb[0].mxu0 %v4758
    %v5504 = vpop.f32.mrb[0].mxu0
    %v5505 = vadd.f32 0.0, %v5504
    %v5506 = vpop.f32.mrb[0].mxu0
    %5507 = vmatprep.mubr.f32.mxu0 0.0
    %5508 = vmatmul.mubr.f32.gmra.mrb[0].mxu0 %v4761
    %v5509 = vpop.f32.mrb[0].mxu0
    %v5510 = vadd.f32 0.0, %v5509
    %v5511 = vpop.f32.mrb[0].mxu0
    %5512 = vdwg.mxu0
    %5513 = vmatprep.subr.mxu0 0.0
    %5514 = vmatpush1.msra.mxu0 %v3873
    %5515 = vmatprep.subr.mxu0 0.0
    %5516 = vmatpush1.msra.mxu0 %v3874
    %5517 = vmatprep.subr.mxu0 0.0
    %5518 = vmatpush1.msra.mxu0 %v3875
    %5519 = vmatprep.subr.mxu0 0.0
    %5520 = vmatpush1.msra.mxu0 %v3876
    %5521 = vmatprep.subr.mxu0 0.0
    %5522 = vmatpush1.msra.mxu0 0.0
    %5523 = vmatprep.subr.mxu0 0.0
    %5524 = vmatpush1.msra.mxu0 0.0
    %5525 = vmatprep.subr.mxu0 0.0
    %5526 = vmatpush1.msra.mxu0 0.0
    %5527 = vmatprep.subr.mxu0 0.0
    %5528 = vmatpush1.msra.mxu0 0.0
    %5529 = vmatprep.subr.mxu0 0.0
    %5530 = vmatpush1.msra.mxu0 0.0
    %5531 = vmatprep.subr.mxu0 0.0
    %5532 = vmatpush1.msra.mxu0 0.0
    %5533 = vmatprep.subr.mxu0 0.0
    %5534 = vmatpush1.msra.mxu0 0.0
    %5535 = vmatprep.subr.mxu0 0.0
    %5536 = vmatpush1.msra.mxu0 0.0
    %5537 = vmatprep.subr.mxu0 0.0
    %5538 = vmatpush1.msra.mxu0 0.0
    %5539 = vmatprep.subr.mxu0 0.0
    %5540 = vmatpush1.msra.mxu0 0.0
    %5541 = vmatprep.subr.mxu0 0.0
    %5542 = vmatpush1.msra.mxu0 0.0
    %5543 = vmatprep.subr.mxu0 0.0
    %5544 = vmatpush1.msra.mxu0 0.0
    %5545 = vmatprep.subr.mxu0 0.0
    %5546 = vmatpush1.msra.mxu0 0.0
    %5547 = vmatprep.subr.mxu0 0.0
    %5548 = vmatpush1.msra.mxu0 0.0
    %5549 = vmatprep.subr.mxu0 0.0
    %5550 = vmatpush1.msra.mxu0 0.0
    %5551 = vmatprep.subr.mxu0 0.0
    %5552 = vmatpush1.msra.mxu0 0.0
    %5553 = vmatprep.subr.mxu0 0.0
    %5554 = vmatpush1.msra.mxu0 0.0
    %5555 = vmatprep.subr.mxu0 0.0
    %5556 = vmatpush1.msra.mxu0 0.0
    %5557 = vmatprep.subr.mxu0 0.0
    %5558 = vmatpush1.msra.mxu0 0.0
    %5559 = vmatprep.subr.mxu0 0.0
    %5560 = vmatpush1.msra.mxu0 0.0
    %5561 = vmatprep.subr.mxu0 0.0
    %5562 = vmatpush1.msra.mxu0 0.0
    %5563 = vmatprep.subr.mxu0 0.0
    %5564 = vmatpush1.msra.mxu0 0.0
    %5565 = vmatprep.subr.mxu0 0.0
    %5566 = vmatpush1.msra.mxu0 0.0
    %5567 = vmatprep.subr.mxu0 0.0
    %5568 = vmatpush1.msra.mxu0 0.0
    %5569 = vmatprep.subr.mxu0 0.0
    %5570 = vmatpush1.msra.mxu0 0.0
    %5571 = vmatprep.subr.mxu0 0.0
    %5572 = vmatpush1.msra.mxu0 0.0
    %5573 = vmatprep.subr.mxu0 0.0
    %5574 = vmatpush1.msra.mxu0 0.0
    %5575 = vmatprep.subr.mxu0 0.0
    %5576 = vmatpush1.msra.mxu0 0.0
    %5577 = vmatprep.mubr.f32.mxu0 0.0
    %5578 = vmatmul.mubr.f32.gmra.mrb[0].mxu0 %v4758
    %v5579 = vpop.f32.mrb[0].mxu0
    %v5580 = vadd.f32 0.0, %v5579
    %v5581 = vpop.f32.mrb[0].mxu0
    %5582 = vmatprep.mubr.f32.mxu0 0.0
    %5583 = vmatmul.mubr.f32.gmra.mrb[0].mxu0 %v4761
    %v5584 = vpop.f32.mrb[0].mxu0
    %v5585 = vadd.f32 0.0, %v5584
    %v5586 = vpop.f32.mrb[0].mxu0
    %5587 = vdwg.mxu0
    %5588 = vmatprep.subr.mxu0 0.0
    %5589 = vmatpush1.msra.mxu0 %v3877
    %5590 = vmatprep.subr.mxu0 0.0
    %5591 = vmatpush1.msra.mxu0 %v3878
    %5592 = vmatprep.subr.mxu0 0.0
    %5593 = vmatpush1.msra.mxu0 %v3879
    %5594 = vmatprep.subr.mxu0 0.0
    %5595 = vmatpush1.msra.mxu0 %v3880
    %5596 = vmatprep.subr.mxu0 0.0
    %5597 = vmatpush1.msra.mxu0 0.0
    %5598 = vmatprep.subr.mxu0 0.0
    %5599 = vmatpush1.msra.mxu0 0.0
    %5600 = vmatprep.subr.mxu0 0.0
    %5601 = vmatpush1.msra.mxu0 0.0
    %5602 = vmatprep.subr.mxu0 0.0
    %5603 = vmatpush1.msra.mxu0 0.0
    %5604 = vmatprep.subr.mxu0 0.0
    %5605 = vmatpush1.msra.mxu0 0.0
    %5606 = vmatprep.subr.mxu0 0.0
    %5607 = vmatpush1.msra.mxu0 0.0
    %5608 = vmatprep.subr.mxu0 0.0
    %5609 = vmatpush1.msra.mxu0 0.0
    %5610 = vmatprep.subr.mxu0 0.0
    %5611 = vmatpush1.msra.mxu0 0.0
    %5612 = vmatprep.subr.mxu0 0.0
    %5613 = vmatpush1.msra.mxu0 0.0
    %5614 = vmatprep.subr.mxu0 0.0
    %5615 = vmatpush1.msra.mxu0 0.0
    %5616 = vmatprep.subr.mxu0 0.0
    %5617 = vmatpush1.msra.mxu0 0.0
    %5618 = vmatprep.subr.mxu0 0.0
    %5619 = vmatpush1.msra.mxu0 0.0
    %5620 = vmatprep.subr.mxu0 0.0
    %5621 = vmatpush1.msra.mxu0 0.0
    %5622 = vmatprep.subr.mxu0 0.0
    %5623 = vmatpush1.msra.mxu0 0.0
    %5624 = vmatprep.subr.mxu0 0.0
    %5625 = vmatpush1.msra.mxu0 0.0
    %5626 = vmatprep.subr.mxu0 0.0
    %5627 = vmatpush1.msra.mxu0 0.0
    %5628 = vmatprep.subr.mxu0 0.0
    %5629 = vmatpush1.msra.mxu0 0.0
    %5630 = vmatprep.subr.mxu0 0.0
    %5631 = vmatpush1.msra.mxu0 0.0
    %5632 = vmatprep.subr.mxu0 0.0
    %5633 = vmatpush1.msra.mxu0 0.0
    %5634 = vmatprep.subr.mxu0 0.0
    %5635 = vmatpush1.msra.mxu0 0.0
    %5636 = vmatprep.subr.mxu0 0.0
    %5637 = vmatpush1.msra.mxu0 0.0
    %5638 = vmatprep.subr.mxu0 0.0
    %5639 = vmatpush1.msra.mxu0 0.0
    %5640 = vmatprep.subr.mxu0 0.0
    %5641 = vmatpush1.msra.mxu0 0.0
    %5642 = vmatprep.subr.mxu0 0.0
    %5643 = vmatpush1.msra.mxu0 0.0
    %5644 = vmatprep.subr.mxu0 0.0
    %5645 = vmatpush1.msra.mxu0 0.0
    %5646 = vmatprep.subr.mxu0 0.0
    %5647 = vmatpush1.msra.mxu0 0.0
    %5648 = vmatprep.subr.mxu0 0.0
    %5649 = vmatpush1.msra.mxu0 0.0
    %5650 = vmatprep.subr.mxu0 0.0
    %5651 = vmatpush1.msra.mxu0 0.0
    %5652 = vmatprep.mubr.f32.mxu0 0.0
    %5653 = vmatmul.mubr.f32.gmra.mrb[0].mxu0 %v4758
    %v5654 = vpop.f32.mrb[0].mxu0
    %v5655 = vadd.f32 0.0, %v5654
    %v5656 = vpop.f32.mrb[0].mxu0
    %5657 = vmatprep.mubr.f32.mxu0 0.0
    %5658 = vmatmul.mubr.f32.gmra.mrb[0].mxu0 %v4761
    %v5659 = vpop.f32.mrb[0].mxu0
    %v5660 = vadd.f32 0.0, %v5659
    %v5661 = vpop.f32.mrb[0].mxu0
    %5662 = vdwg.mxu0
    %v5664 = vsel %vm1827, %v3955, 0
    %v5667 = vsel %vm1827, %v4524, 0
    %v5670 = vsel %vm1827, %v4529, 0
    %5672 = vmatprep.subr.mxu0 0.0
    %5673 = vmatpush1.xpose.msra.mxu0 %v5667
    %5674 = vmatprep.subr.mxu0 0.0
    %5675 = vmatpush1.xpose.msra.mxu0 %v5670
    %5676 = vmatprep.subr.mxu0 0.0
    %5677 = vmatpush1.xpose.msra.mxu0 0.0
    %5678 = vmatprep.subr.mxu0 0.0
    %5679 = vmatpush1.xpose.msra.mxu0 0.0
    %5680 = vmatprep.subr.mxu0 0.0
    %5681 = vmatpush1.xpose.msra.mxu0 0.0
    %5682 = vmatprep.subr.mxu0 0.0
    %5683 = vmatpush1.xpose.msra.mxu0 0.0
    %5684 = vmatprep.subr.mxu0 0.0
    %5685 = vmatpush1.xpose.msra.mxu0 0.0
    %5686 = vmatprep.subr.mxu0 0.0
    %5687 = vmatpush1.xpose.msra.mxu0 0.0
    %5688 = vmatprep.subr.mxu0 0.0
    %5689 = vmatpush1.xpose.msra.mxu0 0.0
    %5690 = vmatprep.subr.mxu0 0.0
    %5691 = vmatpush1.xpose.msra.mxu0 0.0
    %5692 = vmatprep.subr.mxu0 0.0
    %5693 = vmatpush1.xpose.msra.mxu0 0.0
    %5694 = vmatprep.subr.mxu0 0.0
    %5695 = vmatpush1.xpose.msra.mxu0 0.0
    %5696 = vmatprep.subr.mxu0 0.0
    %5697 = vmatpush1.xpose.msra.mxu0 0.0
    %5698 = vmatprep.subr.mxu0 0.0
    %5699 = vmatpush1.xpose.msra.mxu0 0.0
    %5700 = vmatprep.subr.mxu0 0.0
    %5701 = vmatpush1.xpose.msra.mxu0 0.0
    %5702 = vmatprep.subr.mxu0 0.0
    %5703 = vmatpush1.xpose.msra.mxu0 0.0
    %5704 = vmatprep.subr.mxu0 0.0
    %5705 = vmatpush1.xpose.msra.mxu0 0.0
    %5706 = vmatprep.subr.mxu0 0.0
    %5707 = vmatpush1.xpose.msra.mxu0 0.0
    %5708 = vmatprep.subr.mxu0 0.0
    %5709 = vmatpush1.xpose.msra.mxu0 0.0
    %5710 = vmatprep.subr.mxu0 0.0
    %5711 = vmatpush1.xpose.msra.mxu0 0.0
    %5712 = vmatprep.subr.mxu0 0.0
    %5713 = vmatpush1.xpose.msra.mxu0 0.0
    %5714 = vmatprep.subr.mxu0 0.0
    %5715 = vmatpush1.xpose.msra.mxu0 0.0
    %5716 = vmatprep.subr.mxu0 0.0
    %5717 = vmatpush1.xpose.msra.mxu0 0.0
    %5718 = vmatprep.subr.mxu0 0.0
    %5719 = vmatpush1.xpose.msra.mxu0 0.0
    %5720 = vmatprep.subr.mxu0 0.0
    %5721 = vmatpush1.xpose.msra.mxu0 0.0
    %5722 = vmatprep.subr.mxu0 0.0
    %5723 = vmatpush1.xpose.msra.mxu0 0.0
    %5724 = vmatprep.subr.mxu0 0.0
    %5725 = vmatpush1.xpose.msra.mxu0 0.0
    %5726 = vmatprep.subr.mxu0 0.0
    %5727 = vmatpush1.xpose.msra.mxu0 0.0
    %5728 = vmatprep.subr.mxu0 0.0
    %5729 = vmatpush1.xpose.msra.mxu0 0.0
    %5730 = vmatprep.subr.mxu0 0.0
    %5731 = vmatpush1.xpose.msra.mxu0 0.0
    %5732 = vmatprep.subr.mxu0 0.0
    %5733 = vmatpush1.xpose.msra.mxu0 0.0
    %5734 = vmatprep.subr.mxu0 0.0
    %5735 = vmatpush1.xpose.msra.mxu0 0.0
    %5736 = vmatprep.mubr.f32.mxu0 0.0
    %5737 = vmatmul.mubr.f32.gmra.mrb[0].mxu0 %v5664
    %v5738 = vpop.f32.mrb[0].mxu0
    %v5739 = vadd.f32 0.0, %v5738
    %v5740 = vpop.f32.mrb[0].mxu0
    %5741 = vdwg.mxu0
    %v5743 = vsel %vm1827, %v4025, 0
    %v5746 = vsel %vm1827, %v4599, 0
    %v5749 = vsel %vm1827, %v4604, 0
    %5751 = vmatprep.subr.mxu0 0.0
    %5752 = vmatpush1.xpose.msra.mxu0 %v5746
    %5753 = vmatprep.subr.mxu0 0.0
    %5754 = vmatpush1.xpose.msra.mxu0 %v5749
    %5755 = vmatprep.subr.mxu0 0.0
    %5756 = vmatpush1.xpose.msra.mxu0 0.0
    %5757 = vmatprep.subr.mxu0 0.0
    %5758 = vmatpush1.xpose.msra.mxu0 0.0
    %5759 = vmatprep.subr.mxu0 0.0
    %5760 = vmatpush1.xpose.msra.mxu0 0.0
    %5761 = vmatprep.subr.mxu0 0.0
    %5762 = vmatpush1.xpose.msra.mxu0 0.0
    %5763 = vmatprep.subr.mxu0 0.0
    %5764 = vmatpush1.xpose.msra.mxu0 0.0
    %5765 = vmatprep.subr.mxu0 0.0
    %5766 = vmatpush1.xpose.msra.mxu0 0.0
    %5767 = vmatprep.subr.mxu0 0.0
    %5768 = vmatpush1.xpose.msra.mxu0 0.0
    %5769 = vmatprep.subr.mxu0 0.0
    %5770 = vmatpush1.xpose.msra.mxu0 0.0
    %5771 = vmatprep.subr.mxu0 0.0
    %5772 = vmatpush1.xpose.msra.mxu0 0.0
    %5773 = vmatprep.subr.mxu0 0.0
    %5774 = vmatpush1.xpose.msra.mxu0 0.0
    %5775 = vmatprep.subr.mxu0 0.0
    %5776 = vmatpush1.xpose.msra.mxu0 0.0
    %5777 = vmatprep.subr.mxu0 0.0
    %5778 = vmatpush1.xpose.msra.mxu0 0.0
    %5779 = vmatprep.subr.mxu0 0.0
    %5780 = vmatpush1.xpose.msra.mxu0 0.0
    %5781 = vmatprep.subr.mxu0 0.0
    %5782 = vmatpush1.xpose.msra.mxu0 0.0
    %5783 = vmatprep.subr.mxu0 0.0
    %5784 = vmatpush1.xpose.msra.mxu0 0.0
    %5785 = vmatprep.subr.mxu0 0.0
    %5786 = vmatpush1.xpose.msra.mxu0 0.0
    %5787 = vmatprep.subr.mxu0 0.0
    %5788 = vmatpush1.xpose.msra.mxu0 0.0
    %5789 = vmatprep.subr.mxu0 0.0
    %5790 = vmatpush1.xpose.msra.mxu0 0.0
    %5791 = vmatprep.subr.mxu0 0.0
    %5792 = vmatpush1.xpose.msra.mxu0 0.0
    %5793 = vmatprep.subr.mxu0 0.0
    %5794 = vmatpush1.xpose.msra.mxu0 0.0
    %5795 = vmatprep.subr.mxu0 0.0
    %5796 = vmatpush1.xpose.msra.mxu0 0.0
    %5797 = vmatprep.subr.mxu0 0.0
    %5798 = vmatpush1.xpose.msra.mxu0 0.0
    %5799 = vmatprep.subr.mxu0 0.0
    %5800 = vmatpush1.xpose.msra.mxu0 0.0
    %5801 = vmatprep.subr.mxu0 0.0
    %5802 = vmatpush1.xpose.msra.mxu0 0.0
    %5803 = vmatprep.subr.mxu0 0.0
    %5804 = vmatpush1.xpose.msra.mxu0 0.0
    %5805 = vmatprep.subr.mxu0 0.0
    %5806 = vmatpush1.xpose.msra.mxu0 0.0
    %5807 = vmatprep.subr.mxu0 0.0
    %5808 = vmatpush1.xpose.msra.mxu0 0.0
    %5809 = vmatprep.subr.mxu0 0.0
    %5810 = vmatpush1.xpose.msra.mxu0 0.0
    %5811 = vmatprep.subr.mxu0 0.0
    %5812 = vmatpush1.xpose.msra.mxu0 0.0
    %5813 = vmatprep.subr.mxu0 0.0
    %5814 = vmatpush1.xpose.msra.mxu0 0.0
    %5815 = vmatprep.mubr.f32.mxu0 0.0
    %5816 = vmatmul.mubr.f32.gmra.mrb[0].mxu0 %v5743
    %v5817 = vpop.f32.mrb[0].mxu0
    %v5818 = vadd.f32 0.0, %v5817
    %v5819 = vpop.f32.mrb[0].mxu0
    %5820 = vdwg.mxu0
    %v5822 = vsel %vm1827, %v4095, 0
    %v5825 = vsel %vm1827, %v4674, 0
    %v5828 = vsel %vm1827, %v4679, 0
    %5830 = vmatprep.subr.mxu0 0.0
    %5831 = vmatpush1.xpose.msra.mxu0 %v5825
    %5832 = vmatprep.subr.mxu0 0.0
    %5833 = vmatpush1.xpose.msra.mxu0 %v5828
    %5834 = vmatprep.subr.mxu0 0.0
    %5835 = vmatpush1.xpose.msra.mxu0 0.0
    %5836 = vmatprep.subr.mxu0 0.0
    %5837 = vmatpush1.xpose.msra.mxu0 0.0
    %5838 = vmatprep.subr.mxu0 0.0
    %5839 = vmatpush1.xpose.msra.mxu0 0.0
    %5840 = vmatprep.subr.mxu0 0.0
    %5841 = vmatpush1.xpose.msra.mxu0 0.0
    %5842 = vmatprep.subr.mxu0 0.0
    %5843 = vmatpush1.xpose.msra.mxu0 0.0
    %5844 = vmatprep.subr.mxu0 0.0
    %5845 = vmatpush1.xpose.msra.mxu0 0.0
    %5846 = vmatprep.subr.mxu0 0.0
    %5847 = vmatpush1.xpose.msra.mxu0 0.0
    %5848 = vmatprep.subr.mxu0 0.0
    %5849 = vmatpush1.xpose.msra.mxu0 0.0
    %5850 = vmatprep.subr.mxu0 0.0
    %5851 = vmatpush1.xpose.msra.mxu0 0.0
    %5852 = vmatprep.subr.mxu0 0.0
    %5853 = vmatpush1.xpose.msra.mxu0 0.0
    %5854 = vmatprep.subr.mxu0 0.0
    %5855 = vmatpush1.xpose.msra.mxu0 0.0
    %5856 = vmatprep.subr.mxu0 0.0
    %5857 = vmatpush1.xpose.msra.mxu0 0.0
    %5858 = vmatprep.subr.mxu0 0.0
    %5859 = vmatpush1.xpose.msra.mxu0 0.0
    %5860 = vmatprep.subr.mxu0 0.0
    %5861 = vmatpush1.xpose.msra.mxu0 0.0
    %5862 = vmatprep.subr.mxu0 0.0
    %5863 = vmatpush1.xpose.msra.mxu0 0.0
    %5864 = vmatprep.subr.mxu0 0.0
    %5865 = vmatpush1.xpose.msra.mxu0 0.0
    %5866 = vmatprep.subr.mxu0 0.0
    %5867 = vmatpush1.xpose.msra.mxu0 0.0
    %5868 = vmatprep.subr.mxu0 0.0
    %5869 = vmatpush1.xpose.msra.mxu0 0.0
    %5870 = vmatprep.subr.mxu0 0.0
    %5871 = vmatpush1.xpose.msra.mxu0 0.0
    %5872 = vmatprep.subr.mxu0 0.0
    %5873 = vmatpush1.xpose.msra.mxu0 0.0
    %5874 = vmatprep.subr.mxu0 0.0
    %5875 = vmatpush1.xpose.msra.mxu0 0.0
    %5876 = vmatprep.subr.mxu0 0.0
    %5877 = vmatpush1.xpose.msra.mxu0 0.0
    %5878 = vmatprep.subr.mxu0 0.0
    %5879 = vmatpush1.xpose.msra.mxu0 0.0
    %5880 = vmatprep.subr.mxu0 0.0
    %5881 = vmatpush1.xpose.msra.mxu0 0.0
    %5882 = vmatprep.subr.mxu0 0.0
    %5883 = vmatpush1.xpose.msra.mxu0 0.0
    %5884 = vmatprep.subr.mxu0 0.0
    %5885 = vmatpush1.xpose.msra.mxu0 0.0
    %5886 = vmatprep.subr.mxu0 0.0
    %5887 = vmatpush1.xpose.msra.mxu0 0.0
    %5888 = vmatprep.subr.mxu0 0.0
    %5889 = vmatpush1.xpose.msra.mxu0 0.0
    %5890 = vmatprep.subr.mxu0 0.0
    %5891 = vmatpush1.xpose.msra.mxu0 0.0
    %5892 = vmatprep.subr.mxu0 0.0
    %5893 = vmatpush1.xpose.msra.mxu0 0.0
    %5894 = vmatprep.mubr.f32.mxu0 0.0
    %5895 = vmatmul.mubr.f32.gmra.mrb[0].mxu0 %v5822
    %v5896 = vpop.f32.mrb[0].mxu0
    %v5897 = vadd.f32 0.0, %v5896
    %v5898 = vpop.f32.mrb[0].mxu0
    %5899 = vdwg.mxu0
    %v5901 = vsel %vm1827, %v4165, 0
    %v5904 = vsel %vm1827, %v4749, 0
    %v5907 = vsel %vm1827, %v4754, 0
    %5909 = vmatprep.subr.mxu0 0.0
    %5910 = vmatpush1.xpose.msra.mxu0 %v5904
    %5911 = vmatprep.subr.mxu0 0.0
    %5912 = vmatpush1.xpose.msra.mxu0 %v5907
    %5913 = vmatprep.subr.mxu0 0.0
    %5914 = vmatpush1.xpose.msra.mxu0 0.0
    %5915 = vmatprep.subr.mxu0 0.0
    %5916 = vmatpush1.xpose.msra.mxu0 0.0
    %5917 = vmatprep.subr.mxu0 0.0
    %5918 = vmatpush1.xpose.msra.mxu0 0.0
    %5919 = vmatprep.subr.mxu0 0.0
    %5920 = vmatpush1.xpose.msra.mxu0 0.0
    %5921 = vmatprep.subr.mxu0 0.0
    %5922 = vmatpush1.xpose.msra.mxu0 0.0
    %5923 = vmatprep.subr.mxu0 0.0
    %5924 = vmatpush1.xpose.msra.mxu0 0.0
    %5925 = vmatprep.subr.mxu0 0.0
    %5926 = vmatpush1.xpose.msra.mxu0 0.0
    %5927 = vmatprep.subr.mxu0 0.0
    %5928 = vmatpush1.xpose.msra.mxu0 0.0
    %5929 = vmatprep.subr.mxu0 0.0
    %5930 = vmatpush1.xpose.msra.mxu0 0.0
    %5931 = vmatprep.subr.mxu0 0.0
    %5932 = vmatpush1.xpose.msra.mxu0 0.0
    %5933 = vmatprep.subr.mxu0 0.0
    %5934 = vmatpush1.xpose.msra.mxu0 0.0
    %5935 = vmatprep.subr.mxu0 0.0
    %5936 = vmatpush1.xpose.msra.mxu0 0.0
    %5937 = vmatprep.subr.mxu0 0.0
    %5938 = vmatpush1.xpose.msra.mxu0 0.0
    %5939 = vmatprep.subr.mxu0 0.0
    %5940 = vmatpush1.xpose.msra.mxu0 0.0
    %5941 = vmatprep.subr.mxu0 0.0
    %5942 = vmatpush1.xpose.msra.mxu0 0.0
    %5943 = vmatprep.subr.mxu0 0.0
    %5944 = vmatpush1.xpose.msra.mxu0 0.0
    %5945 = vmatprep.subr.mxu0 0.0
    %5946 = vmatpush1.xpose.msra.mxu0 0.0
    %5947 = vmatprep.subr.mxu0 0.0
    %5948 = vmatpush1.xpose.msra.mxu0 0.0
    %5949 = vmatprep.subr.mxu0 0.0
    %5950 = vmatpush1.xpose.msra.mxu0 0.0
    %5951 = vmatprep.subr.mxu0 0.0
    %5952 = vmatpush1.xpose.msra.mxu0 0.0
    %5953 = vmatprep.subr.mxu0 0.0
    %5954 = vmatpush1.xpose.msra.mxu0 0.0
    %5955 = vmatprep.subr.mxu0 0.0
    %5956 = vmatpush1.xpose.msra.mxu0 0.0
    %5957 = vmatprep.subr.mxu0 0.0
    %5958 = vmatpush1.xpose.msra.mxu0 0.0
    %5959 = vmatprep.subr.mxu0 0.0
    %5960 = vmatpush1.xpose.msra.mxu0 0.0
    %5961 = vmatprep.subr.mxu0 0.0
    %5962 = vmatpush1.xpose.msra.mxu0 0.0
    %5963 = vmatprep.subr.mxu0 0.0
    %5964 = vmatpush1.xpose.msra.mxu0 0.0
    %5965 = vmatprep.subr.mxu0 0.0
    %5966 = vmatpush1.xpose.msra.mxu0 0.0
    %5967 = vmatprep.subr.mxu0 0.0
    %5968 = vmatpush1.xpose.msra.mxu0 0.0
    %5969 = vmatprep.subr.mxu0 0.0
    %5970 = vmatpush1.xpose.msra.mxu0 0.0
    %5971 = vmatprep.subr.mxu0 0.0
    %5972 = vmatpush1.xpose.msra.mxu0 0.0
    %5973 = vmatprep.mubr.f32.mxu0 0.0
    %5974 = vmatmul.mubr.f32.gmra.mrb[0].mxu0 %v5901
    %v5975 = vpop.f32.mrb[0].mxu0
    %v5976 = vadd.f32 0.0, %v5975
    %v5977 = vpop.f32.mrb[0].mxu0
    %5978 = vdwg.mxu0
    %v5980 = vsel %vm1827, %v4238, 0
    %v5983 = vsel %vm1827, %v4830, 0
    %v5986 = vsel %vm1827, %v4835, 0
    %5988 = vmatprep.subr.mxu0 0.0
    %5989 = vmatpush1.xpose.msra.mxu0 %v5983
    %5990 = vmatprep.subr.mxu0 0.0
    %5991 = vmatpush1.xpose.msra.mxu0 %v5986
    %5992 = vmatprep.subr.mxu0 0.0
    %5993 = vmatpush1.xpose.msra.mxu0 0.0
    %5994 = vmatprep.subr.mxu0 0.0
    %5995 = vmatpush1.xpose.msra.mxu0 0.0
    %5996 = vmatprep.subr.mxu0 0.0
    %5997 = vmatpush1.xpose.msra.mxu0 0.0
    %5998 = vmatprep.subr.mxu0 0.0
    %5999 = vmatpush1.xpose.msra.mxu0 0.0
    %6000 = vmatprep.subr.mxu0 0.0
    %6001 = vmatpush1.xpose.msra.mxu0 0.0
    %6002 = vmatprep.subr.mxu0 0.0
    %6003 = vmatpush1.xpose.msra.mxu0 0.0
    %6004 = vmatprep.subr.mxu0 0.0
    %6005 = vmatpush1.xpose.msra.mxu0 0.0
    %6006 = vmatprep.subr.mxu0 0.0
    %6007 = vmatpush1.xpose.msra.mxu0 0.0
    %6008 = vmatprep.subr.mxu0 0.0
    %6009 = vmatpush1.xpose.msra.mxu0 0.0
    %6010 = vmatprep.subr.mxu0 0.0
    %6011 = vmatpush1.xpose.msra.mxu0 0.0
    %6012 = vmatprep.subr.mxu0 0.0
    %6013 = vmatpush1.xpose.msra.mxu0 0.0
    %6014 = vmatprep.subr.mxu0 0.0
    %6015 = vmatpush1.xpose.msra.mxu0 0.0
    %6016 = vmatprep.subr.mxu0 0.0
    %6017 = vmatpush1.xpose.msra.mxu0 0.0
    %6018 = vmatprep.subr.mxu0 0.0
    %6019 = vmatpush1.xpose.msra.mxu0 0.0
    %6020 = vmatprep.subr.mxu0 0.0
    %6021 = vmatpush1.xpose.msra.mxu0 0.0
    %6022 = vmatprep.subr.mxu0 0.0
    %6023 = vmatpush1.xpose.msra.mxu0 0.0
    %6024 = vmatprep.subr.mxu0 0.0
    %6025 = vmatpush1.xpose.msra.mxu0 0.0
    %6026 = vmatprep.subr.mxu0 0.0
    %6027 = vmatpush1.xpose.msra.mxu0 0.0
    %6028 = vmatprep.subr.mxu0 0.0
    %6029 = vmatpush1.xpose.msra.mxu0 0.0
    %6030 = vmatprep.subr.mxu0 0.0
    %6031 = vmatpush1.xpose.msra.mxu0 0.0
    %6032 = vmatprep.subr.mxu0 0.0
    %6033 = vmatpush1.xpose.msra.mxu0 0.0
    %6034 = vmatprep.subr.mxu0 0.0
    %6035 = vmatpush1.xpose.msra.mxu0 0.0
    %6036 = vmatprep.subr.mxu0 0.0
    %6037 = vmatpush1.xpose.msra.mxu0 0.0
    %6038 = vmatprep.subr.mxu0 0.0
    %6039 = vmatpush1.xpose.msra.mxu0 0.0
    %6040 = vmatprep.subr.mxu0 0.0
    %6041 = vmatpush1.xpose.msra.mxu0 0.0
    %6042 = vmatprep.subr.mxu0 0.0
    %6043 = vmatpush1.xpose.msra.mxu0 0.0
    %6044 = vmatprep.subr.mxu0 0.0
    %6045 = vmatpush1.xpose.msra.mxu0 0.0
    %6046 = vmatprep.subr.mxu0 0.0
    %6047 = vmatpush1.xpose.msra.mxu0 0.0
    %6048 = vmatprep.subr.mxu0 0.0
    %6049 = vmatpush1.xpose.msra.mxu0 0.0
    %6050 = vmatprep.subr.mxu0 0.0
    %6051 = vmatpush1.xpose.msra.mxu0 0.0
    %6052 = vmatprep.mubr.f32.mxu0 0.0
    %6053 = vmatmul.mubr.f32.gmra.mrb[0].mxu0 %v5980
    %v6054 = vpop.f32.mrb[0].mxu0
    %v6055 = vadd.f32 0.0, %v6054
    %v6056 = vpop.f32.mrb[0].mxu0
    %6057 = vdwg.mxu0
    %v6059 = vsel %vm1827, %v4308, 0
    %v6062 = vsel %vm1827, %v4905, 0
    %v6065 = vsel %vm1827, %v4910, 0
    %6067 = vmatprep.subr.mxu0 0.0
    %6068 = vmatpush1.xpose.msra.mxu0 %v6062
    %6069 = vmatprep.subr.mxu0 0.0
    %6070 = vmatpush1.xpose.msra.mxu0 %v6065
    %6071 = vmatprep.subr.mxu0 0.0
    %6072 = vmatpush1.xpose.msra.mxu0 0.0
    %6073 = vmatprep.subr.mxu0 0.0
    %6074 = vmatpush1.xpose.msra.mxu0 0.0
    %6075 = vmatprep.subr.mxu0 0.0
    %6076 = vmatpush1.xpose.msra.mxu0 0.0
    %6077 = vmatprep.subr.mxu0 0.0
    %6078 = vmatpush1.xpose.msra.mxu0 0.0
    %6079 = vmatprep.subr.mxu0 0.0
    %6080 = vmatpush1.xpose.msra.mxu0 0.0
    %6081 = vmatprep.subr.mxu0 0.0
    %6082 = vmatpush1.xpose.msra.mxu0 0.0
    %6083 = vmatprep.subr.mxu0 0.0
    %6084 = vmatpush1.xpose.msra.mxu0 0.0
    %6085 = vmatprep.subr.mxu0 0.0
    %6086 = vmatpush1.xpose.msra.mxu0 0.0
    %6087 = vmatprep.subr.mxu0 0.0
    %6088 = vmatpush1.xpose.msra.mxu0 0.0
    %6089 = vmatprep.subr.mxu0 0.0
    %6090 = vmatpush1.xpose.msra.mxu0 0.0
    %6091 = vmatprep.subr.mxu0 0.0
    %6092 = vmatpush1.xpose.msra.mxu0 0.0
    %6093 = vmatprep.subr.mxu0 0.0
    %6094 = vmatpush1.xpose.msra.mxu0 0.0
    %6095 = vmatprep.subr.mxu0 0.0
    %6096 = vmatpush1.xpose.msra.mxu0 0.0
    %6097 = vmatprep.subr.mxu0 0.0
    %6098 = vmatpush1.xpose.msra.mxu0 0.0
    %6099 = vmatprep.subr.mxu0 0.0
    %6100 = vmatpush1.xpose.msra.mxu0 0.0
    %6101 = vmatprep.subr.mxu0 0.0
    %6102 = vmatpush1.xpose.msra.mxu0 0.0
    %6103 = vmatprep.subr.mxu0 0.0
    %6104 = vmatpush1.xpose.msra.mxu0 0.0
    %6105 = vmatprep.subr.mxu0 0.0
    %6106 = vmatpush1.xpose.msra.mxu0 0.0
    %6107 = vmatprep.subr.mxu0 0.0
    %6108 = vmatpush1.xpose.msra.mxu0 0.0
    %6109 = vmatprep.subr.mxu0 0.0
    %6110 = vmatpush1.xpose.msra.mxu0 0.0
    %6111 = vmatprep.subr.mxu0 0.0
    %6112 = vmatpush1.xpose.msra.mxu0 0.0
    %6113 = vmatprep.subr.mxu0 0.0
    %6114 = vmatpush1.xpose.msra.mxu0 0.0
    %6115 = vmatprep.subr.mxu0 0.0
    %6116 = vmatpush1.xpose.msra.mxu0 0.0
    %6117 = vmatprep.subr.mxu0 0.0
    %6118 = vmatpush1.xpose.msra.mxu0 0.0
    %6119 = vmatprep.subr.mxu0 0.0
    %6120 = vmatpush1.xpose.msra.mxu0 0.0
    %6121 = vmatprep.subr.mxu0 0.0
    %6122 = vmatpush1.xpose.msra.mxu0 0.0
    %6123 = vmatprep.subr.mxu0 0.0
    %6124 = vmatpush1.xpose.msra.mxu0 0.0
    %6125 = vmatprep.subr.mxu0 0.0
    %6126 = vmatpush1.xpose.msra.mxu0 0.0
    %6127 = vmatprep.subr.mxu0 0.0
    %6128 = vmatpush1.xpose.msra.mxu0 0.0
    %6129 = vmatprep.subr.mxu0 0.0
    %6130 = vmatpush1.xpose.msra.mxu0 0.0
    %6131 = vmatprep.mubr.f32.mxu0 0.0
    %6132 = vmatmul.mubr.f32.gmra.mrb[0].mxu0 %v6059
    %v6133 = vpop.f32.mrb[0].mxu0
    %v6134 = vadd.f32 0.0, %v6133
    %v6135 = vpop.f32.mrb[0].mxu0
    %6136 = vdwg.mxu0
    %v6138 = vsel %vm1827, %v4378, 0
    %v6141 = vsel %vm1827, %v4980, 0
    %v6144 = vsel %vm1827, %v4985, 0
    %6146 = vmatprep.subr.mxu0 0.0
    %6147 = vmatpush1.xpose.msra.mxu0 %v6141
    %6148 = vmatprep.subr.mxu0 0.0
    %6149 = vmatpush1.xpose.msra.mxu0 %v6144
    %6150 = vmatprep.subr.mxu0 0.0
    %6151 = vmatpush1.xpose.msra.mxu0 0.0
    %6152 = vmatprep.subr.mxu0 0.0
    %6153 = vmatpush1.xpose.msra.mxu0 0.0
    %6154 = vmatprep.subr.mxu0 0.0
    %6155 = vmatpush1.xpose.msra.mxu0 0.0
    %6156 = vmatprep.subr.mxu0 0.0
    %6157 = vmatpush1.xpose.msra.mxu0 0.0
    %6158 = vmatprep.subr.mxu0 0.0
    %6159 = vmatpush1.xpose.msra.mxu0 0.0
    %6160 = vmatprep.subr.mxu0 0.0
    %6161 = vmatpush1.xpose.msra.mxu0 0.0
    %6162 = vmatprep.subr.mxu0 0.0
    %6163 = vmatpush1.xpose.msra.mxu0 0.0
    %6164 = vmatprep.subr.mxu0 0.0
    %6165 = vmatpush1.xpose.msra.mxu0 0.0
    %6166 = vmatprep.subr.mxu0 0.0
    %6167 = vmatpush1.xpose.msra.mxu0 0.0
    %6168 = vmatprep.subr.mxu0 0.0
    %6169 = vmatpush1.xpose.msra.mxu0 0.0
    %6170 = vmatprep.subr.mxu0 0.0
    %6171 = vmatpush1.xpose.msra.mxu0 0.0
    %6172 = vmatprep.subr.mxu0 0.0
    %6173 = vmatpush1.xpose.msra.mxu0 0.0
    %6174 = vmatprep.subr.mxu0 0.0
    %6175 = vmatpush1.xpose.msra.mxu0 0.0
    %6176 = vmatprep.subr.mxu0 0.0
    %6177 = vmatpush1.xpose.msra.mxu0 0.0
    %6178 = vmatprep.subr.mxu0 0.0
    %6179 = vmatpush1.xpose.msra.mxu0 0.0
    %6180 = vmatprep.subr.mxu0 0.0
    %6181 = vmatpush1.xpose.msra.mxu0 0.0
    %6182 = vmatprep.subr.mxu0 0.0
    %6183 = vmatpush1.xpose.msra.mxu0 0.0
    %6184 = vmatprep.subr.mxu0 0.0
    %6185 = vmatpush1.xpose.msra.mxu0 0.0
    %6186 = vmatprep.subr.mxu0 0.0
    %6187 = vmatpush1.xpose.msra.mxu0 0.0
    %6188 = vmatprep.subr.mxu0 0.0
    %6189 = vmatpush1.xpose.msra.mxu0 0.0
    %6190 = vmatprep.subr.mxu0 0.0
    %6191 = vmatpush1.xpose.msra.mxu0 0.0
    %6192 = vmatprep.subr.mxu0 0.0
    %6193 = vmatpush1.xpose.msra.mxu0 0.0
    %6194 = vmatprep.subr.mxu0 0.0
    %6195 = vmatpush1.xpose.msra.mxu0 0.0
    %6196 = vmatprep.subr.mxu0 0.0
    %6197 = vmatpush1.xpose.msra.mxu0 0.0
    %6198 = vmatprep.subr.mxu0 0.0
    %6199 = vmatpush1.xpose.msra.mxu0 0.0
    %6200 = vmatprep.subr.mxu0 0.0
    %6201 = vmatpush1.xpose.msra.mxu0 0.0
    %6202 = vmatprep.subr.mxu0 0.0
    %6203 = vmatpush1.xpose.msra.mxu0 0.0
    %6204 = vmatprep.subr.mxu0 0.0
    %6205 = vmatpush1.xpose.msra.mxu0 0.0
    %6206 = vmatprep.subr.mxu0 0.0
    %6207 = vmatpush1.xpose.msra.mxu0 0.0
    %6208 = vmatprep.subr.mxu0 0.0
    %6209 = vmatpush1.xpose.msra.mxu0 0.0
    %6210 = vmatprep.mubr.f32.mxu0 0.0
    %6211 = vmatmul.mubr.f32.gmra.mrb[0].mxu0 %v6138
    %v6212 = vpop.f32.mrb[0].mxu0
    %v6213 = vadd.f32 0.0, %v6212
    %v6214 = vpop.f32.mrb[0].mxu0
    %6215 = vdwg.mxu0
    %v6217 = vsel %vm1827, %v4448, 0
    %v6220 = vsel %vm1827, %v5055, 0
    %v6223 = vsel %vm1827, %v5060, 0
    %6225 = vmatprep.subr.mxu0 0.0
    %6226 = vmatpush1.xpose.msra.mxu0 %v6220
    %6227 = vmatprep.subr.mxu0 0.0
    %6228 = vmatpush1.xpose.msra.mxu0 %v6223
    %6229 = vmatprep.subr.mxu0 0.0
    %6230 = vmatpush1.xpose.msra.mxu0 0.0
    %6231 = vmatprep.subr.mxu0 0.0
    %6232 = vmatpush1.xpose.msra.mxu0 0.0
    %6233 = vmatprep.subr.mxu0 0.0
    %6234 = vmatpush1.xpose.msra.mxu0 0.0
    %6235 = vmatprep.subr.mxu0 0.0
    %6236 = vmatpush1.xpose.msra.mxu0 0.0
    %6237 = vmatprep.subr.mxu0 0.0
    %6238 = vmatpush1.xpose.msra.mxu0 0.0
    %6239 = vmatprep.subr.mxu0 0.0
    %6240 = vmatpush1.xpose.msra.mxu0 0.0
    %6241 = vmatprep.subr.mxu0 0.0
    %6242 = vmatpush1.xpose.msra.mxu0 0.0
    %6243 = vmatprep.subr.mxu0 0.0
    %6244 = vmatpush1.xpose.msra.mxu0 0.0
    %6245 = vmatprep.subr.mxu0 0.0
    %6246 = vmatpush1.xpose.msra.mxu0 0.0
    %6247 = vmatprep.subr.mxu0 0.0
    %6248 = vmatpush1.xpose.msra.mxu0 0.0
    %6249 = vmatprep.subr.mxu0 0.0
    %6250 = vmatpush1.xpose.msra.mxu0 0.0
    %6251 = vmatprep.subr.mxu0 0.0
    %6252 = vmatpush1.xpose.msra.mxu0 0.0
    %6253 = vmatprep.subr.mxu0 0.0
    %6254 = vmatpush1.xpose.msra.mxu0 0.0
    %6255 = vmatprep.subr.mxu0 0.0
    %6256 = vmatpush1.xpose.msra.mxu0 0.0
    %6257 = vmatprep.subr.mxu0 0.0
    %6258 = vmatpush1.xpose.msra.mxu0 0.0
    %6259 = vmatprep.subr.mxu0 0.0
    %6260 = vmatpush1.xpose.msra.mxu0 0.0
    %6261 = vmatprep.subr.mxu0 0.0
    %6262 = vmatpush1.xpose.msra.mxu0 0.0
    %6263 = vmatprep.subr.mxu0 0.0
    %6264 = vmatpush1.xpose.msra.mxu0 0.0
    %6265 = vmatprep.subr.mxu0 0.0
    %6266 = vmatpush1.xpose.msra.mxu0 0.0
    %6267 = vmatprep.subr.mxu0 0.0
    %6268 = vmatpush1.xpose.msra.mxu0 0.0
    %6269 = vmatprep.subr.mxu0 0.0
    %6270 = vmatpush1.xpose.msra.mxu0 0.0
    %6271 = vmatprep.subr.mxu0 0.0
    %6272 = vmatpush1.xpose.msra.mxu0 0.0
    %6273 = vmatprep.subr.mxu0 0.0
    %6274 = vmatpush1.xpose.msra.mxu0 0.0
    %6275 = vmatprep.subr.mxu0 0.0
    %6276 = vmatpush1.xpose.msra.mxu0 0.0
    %6277 = vmatprep.subr.mxu0 0.0
    %6278 = vmatpush1.xpose.msra.mxu0 0.0
    %6279 = vmatprep.subr.mxu0 0.0
    %6280 = vmatpush1.xpose.msra.mxu0 0.0
    %6281 = vmatprep.subr.mxu0 0.0
    %6282 = vmatpush1.xpose.msra.mxu0 0.0
    %6283 = vmatprep.subr.mxu0 0.0
    %6284 = vmatpush1.xpose.msra.mxu0 0.0
    %6285 = vmatprep.subr.mxu0 0.0
    %6286 = vmatpush1.xpose.msra.mxu0 0.0
    %6287 = vmatprep.subr.mxu0 0.0
    %6288 = vmatpush1.xpose.msra.mxu0 0.0
    %6289 = vmatprep.mubr.f32.mxu0 0.0
    %6290 = vmatmul.mubr.f32.gmra.mrb[0].mxu0 %v6217
    %v6291 = vpop.f32.mrb[0].mxu0
    %v6292 = vadd.f32 0.0, %v6291
    %v6293 = vpop.f32.mrb[0].mxu0
    %6294 = vdwg.mxu0
    %v6295 = vmul.f32 %v5739, 0.35355338
    %v6296 = vmul.f32 %v5818, 0.35355338
    %v6297 = vmul.f32 %v5897, 0.35355338
    %v6298 = vmul.f32 %v5976, 0.35355338
    %v6299 = vmul.f32 %v6055, 0.35355338
    %v6300 = vmul.f32 %v6134, 0.35355338
    %v6301 = vmul.f32 %v6213, 0.35355338
    %v6302 = vmul.f32 %v6292, 0.35355338
    %v6303 = vsel %vm3825, -1000000.0, %v6295
    %v6304 = vsel %vm3826, -1000000.0, %v6296
    %v6305 = vsel %vm3827, -1000000.0, %v6297
    %v6306 = vsel %vm3828, -1000000.0, %v6298
    %v6307 = vsel %vm3829, -1000000.0, %v6299
    %v6308 = vsel %vm3830, -1000000.0, %v6300
    %v6309 = vsel %vm3831, -1000000.0, %v6301
    %v6310 = vsel %vm3832, -1000000.0, %v6302
    %vm6311 = vcmask 97280
    %v6312 = vsel %vm6311, %v6303, -inf
    %6313 = vmax.xlane.f32.xlu0 %v6312
    %v6314 = vpop.xlane.xlu0 %6313
    %v6315 = vsel %vm6311, %v6304, -inf
    %6316 = vmax.xlane.f32.xlu0 %v6315
    %v6317 = vpop.xlane.xlu0 %6316
    %v6318 = vsel %vm6311, %v6305, -inf
    %6319 = vmax.xlane.f32.xlu0 %v6318
    %v6320 = vpop.xlane.xlu0 %6319
    %v6321 = vsel %vm6311, %v6306, -inf
    %6322 = vmax.xlane.f32.xlu0 %v6321
    %v6323 = vpop.xlane.xlu0 %6322
    %v6324 = vsel %vm6311, %v6307, -inf
    %6325 = vmax.xlane.f32.xlu0 %v6324
    %v6326 = vpop.xlane.xlu0 %6325
    %v6327 = vsel %vm6311, %v6308, -inf
    %6328 = vmax.xlane.f32.xlu0 %v6327
    %v6329 = vpop.xlane.xlu0 %6328
    %v6330 = vsel %vm6311, %v6309, -inf
    %6331 = vmax.xlane.f32.xlu0 %v6330
    %v6332 = vpop.xlane.xlu0 %6331
    %v6333 = vsel %vm6311, %v6310, -inf
    %6334 = vmax.xlane.f32.xlu0 %v6333
    %v6335 = vpop.xlane.xlu0 %6334
    %v6336 = vsub.f32 %v6303, %v6314
    %v6337 = vsub.f32 %v6304, %v6317
    %v6338 = vsub.f32 %v6305, %v6320
    %v6339 = vsub.f32 %v6306, %v6323
    %v6340 = vsub.f32 %v6307, %v6326
    %v6341 = vsub.f32 %v6308, %v6329
    %v6342 = vsub.f32 %v6309, %v6332
    %v6343 = vsub.f32 %v6310, %v6335
    %v6344 = vmul.f32 %v6336, 1.442695
    %v6345 = vpow.pop %v6344
    %v6346 = vmul.f32 %v6337, 1.442695
    %v6347 = vpow.pop %v6346
    %v6348 = vmul.f32 %v6338, 1.442695
    %v6349 = vpow.pop %v6348
    %v6350 = vmul.f32 %v6339, 1.442695
    %v6351 = vpow.pop %v6350
    %v6352 = vmul.f32 %v6340, 1.442695
    %v6353 = vpow.pop %v6352
    %v6354 = vmul.f32 %v6341, 1.442695
    %v6355 = vpow.pop %v6354
    %v6356 = vmul.f32 %v6342, 1.442695
    %v6357 = vpow.pop %v6356
    %v6358 = vmul.f32 %v6343, 1.442695
    %v6359 = vpow.pop %v6358
    %v6360 = vsel %vm6311, %v6345, 0.0
    %6361 = vadd.xlane.f32.xlu0 %v6360
    %v6362 = vpop.xlane.xlu0 %6361
    %v6363 = vsel %vm6311, %v6347, 0.0
    %6364 = vadd.xlane.f32.xlu0 %v6363
    %v6365 = vpop.xlane.xlu0 %6364
    %v6366 = vsel %vm6311, %v6349, 0.0
    %6367 = vadd.xlane.f32.xlu0 %v6366
    %v6368 = vpop.xlane.xlu0 %6367
    %v6369 = vsel %vm6311, %v6351, 0.0
    %6370 = vadd.xlane.f32.xlu0 %v6369
    %v6371 = vpop.xlane.xlu0 %6370
    %v6372 = vsel %vm6311, %v6353, 0.0
    %6373 = vadd.xlane.f32.xlu0 %v6372
    %v6374 = vpop.xlane.xlu0 %6373
    %v6375 = vsel %vm6311, %v6355, 0.0
    %6376 = vadd.xlane.f32.xlu0 %v6375
    %v6377 = vpop.xlane.xlu0 %6376
    %v6378 = vsel %vm6311, %v6357, 0.0
    %6379 = vadd.xlane.f32.xlu0 %v6378
    %v6380 = vpop.xlane.xlu0 %6379
    %v6381 = vsel %vm6311, %v6359, 0.0
    %6382 = vadd.xlane.f32.xlu0 %v6381
    %v6383 = vpop.xlane.xlu0 %6382
    %v6384 = vrcp.pop %v6362
    %v6385 = vrcp.pop %v6365
    %v6386 = vrcp.pop %v6368
    %v6387 = vrcp.pop %v6371
    %v6388 = vrcp.pop %v6374
    %v6389 = vrcp.pop %v6377
    %v6390 = vrcp.pop %v6380
    %v6391 = vrcp.pop %v6383
    %v6392 = vmul.f32 %v6345, %v6384
    %v6393 = vmul.f32 %v6347, %v6385
    %v6394 = vmul.f32 %v6349, %v6386
    %v6395 = vmul.f32 %v6351, %v6387
    %v6396 = vmul.f32 %v6353, %v6388
    %v6397 = vmul.f32 %v6355, %v6389
    %v6398 = vmul.f32 %v6357, %v6390
    %v6399 = vmul.f32 %v6359, %v6391
    %v6401 = vsel %vm6311, %v6392, 0
    %vm6403 = vcmask 1043456
    %v6405 = vsel %vm6403, %v5135, 0
    %6407 = vmatprep.subr.mxu0 0.0
    %6408 = vmatpush1.msra.mxu0 %v5130
    %6409 = vmatprep.subr.mxu0 0.0
    %6410 = vmatpush1.msra.mxu0 %v6405
    %6411 = vmatprep.subr.mxu0 0.0
    %6412 = vmatpush1.msra.mxu0 0.0
    %6413 = vmatprep.subr.mxu0 0.0
    %6414 = vmatpush1.msra.mxu0 0.0
    %6415 = vmatprep.subr.mxu0 0.0
    %6416 = vmatpush1.msra.mxu0 0.0
    %6417 = vmatprep.subr.mxu0 0.0
    %6418 = vmatpush1.msra.mxu0 0.0
    %6419 = vmatprep.subr.mxu0 0.0
    %6420 = vmatpush1.msra.mxu0 0.0
    %6421 = vmatprep.subr.mxu0 0.0
    %6422 = vmatpush1.msra.mxu0 0.0
    %6423 = vmatprep.subr.mxu0 0.0
    %6424 = vmatpush1.msra.mxu0 0.0
    %6425 = vmatprep.subr.mxu0 0.0
    %6426 = vmatpush1.msra.mxu0 0.0
    %6427 = vmatprep.subr.mxu0 0.0
    %6428 = vmatpush1.msra.mxu0 0.0
    %6429 = vmatprep.subr.mxu0 0.0
    %6430 = vmatpush1.msra.mxu0 0.0
    %6431 = vmatprep.subr.mxu0 0.0
    %6432 = vmatpush1.msra.mxu0 0.0
    %6433 = vmatprep.subr.mxu0 0.0
    %6434 = vmatpush1.msra.mxu0 0.0
    %6435 = vmatprep.subr.mxu0 0.0
    %6436 = vmatpush1.msra.mxu0 0.0
    %6437 = vmatprep.subr.mxu0 0.0
    %6438 = vmatpush1.msra.mxu0 0.0
    %6439 = vmatprep.subr.mxu0 0.0
    %6440 = vmatpush1.msra.mxu0 0.0
    %6441 = vmatprep.subr.mxu0 0.0
    %6442 = vmatpush1.msra.mxu0 0.0
    %6443 = vmatprep.subr.mxu0 0.0
    %6444 = vmatpush1.msra.mxu0 0.0
    %6445 = vmatprep.subr.mxu0 0.0
    %6446 = vmatpush1.msra.mxu0 0.0
    %6447 = vmatprep.subr.mxu0 0.0
    %6448 = vmatpush1.msra.mxu0 0.0
    %6449 = vmatprep.subr.mxu0 0.0
    %6450 = vmatpush1.msra.mxu0 0.0
    %6451 = vmatprep.subr.mxu0 0.0
    %6452 = vmatpush1.msra.mxu0 0.0
    %6453 = vmatprep.subr.mxu0 0.0
    %6454 = vmatpush1.msra.mxu0 0.0
    %6455 = vmatprep.subr.mxu0 0.0
    %6456 = vmatpush1.msra.mxu0 0.0
    %6457 = vmatprep.subr.mxu0 0.0
    %6458 = vmatpush1.msra.mxu0 0.0
    %6459 = vmatprep.subr.mxu0 0.0
    %6460 = vmatpush1.msra.mxu0 0.0
    %6461 = vmatprep.subr.mxu0 0.0
    %6462 = vmatpush1.msra.mxu0 0.0
    %6463 = vmatprep.subr.mxu0 0.0
    %6464 = vmatpush1.msra.mxu0 0.0
    %6465 = vmatprep.subr.mxu0 0.0
    %6466 = vmatpush1.msra.mxu0 0.0
    %6467 = vmatprep.subr.mxu0 0.0
    %6468 = vmatpush1.msra.mxu0 0.0
    %6469 = vmatprep.subr.mxu0 0.0
    %6470 = vmatpush1.msra.mxu0 0.0
    %6471 = vmatprep.mubr.f32.mxu0 0.0
    %6472 = vmatmul.mubr.f32.gmra.mrb[0].mxu0 %v6401
    %v6473 = vpop.f32.mrb[0].mxu0
    %v6474 = vadd.f32 0.0, %v6473
    %v6475 = vpop.f32.mrb[0].mxu0
    %6476 = vdwg.mxu0
    %v6478 = vsel %vm6311, %v6393, 0
    %v6481 = vsel %vm6403, %v5210, 0
    %6483 = vmatprep.subr.mxu0 0.0
    %6484 = vmatpush1.msra.mxu0 %v5205
    %6485 = vmatprep.subr.mxu0 0.0
    %6486 = vmatpush1.msra.mxu0 %v6481
    %6487 = vmatprep.subr.mxu0 0.0
    %6488 = vmatpush1.msra.mxu0 0.0
    %6489 = vmatprep.subr.mxu0 0.0
    %6490 = vmatpush1.msra.mxu0 0.0
    %6491 = vmatprep.subr.mxu0 0.0
    %6492 = vmatpush1.msra.mxu0 0.0
    %6493 = vmatprep.subr.mxu0 0.0
    %6494 = vmatpush1.msra.mxu0 0.0
    %6495 = vmatprep.subr.mxu0 0.0
    %6496 = vmatpush1.msra.mxu0 0.0
    %6497 = vmatprep.subr.mxu0 0.0
    %6498 = vmatpush1.msra.mxu0 0.0
    %6499 = vmatprep.subr.mxu0 0.0
    %6500 = vmatpush1.msra.mxu0 0.0
    %6501 = vmatprep.subr.mxu0 0.0
    %6502 = vmatpush1.msra.mxu0 0.0
    %6503 = vmatprep.subr.mxu0 0.0
    %6504 = vmatpush1.msra.mxu0 0.0
    %6505 = vmatprep.subr.mxu0 0.0
    %6506 = vmatpush1.msra.mxu0 0.0
    %6507 = vmatprep.subr.mxu0 0.0
    %6508 = vmatpush1.msra.mxu0 0.0
    %6509 = vmatprep.subr.mxu0 0.0
    %6510 = vmatpush1.msra.mxu0 0.0
    %6511 = vmatprep.subr.mxu0 0.0
    %6512 = vmatpush1.msra.mxu0 0.0
    %6513 = vmatprep.subr.mxu0 0.0
    %6514 = vmatpush1.msra.mxu0 0.0
    %6515 = vmatprep.subr.mxu0 0.0
    %6516 = vmatpush1.msra.mxu0 0.0
    %6517 = vmatprep.subr.mxu0 0.0
    %6518 = vmatpush1.msra.mxu0 0.0
    %6519 = vmatprep.subr.mxu0 0.0
    %6520 = vmatpush1.msra.mxu0 0.0
    %6521 = vmatprep.subr.mxu0 0.0
    %6522 = vmatpush1.msra.mxu0 0.0
    %6523 = vmatprep.subr.mxu0 0.0
    %6524 = vmatpush1.msra.mxu0 0.0
    %6525 = vmatprep.subr.mxu0 0.0
    %6526 = vmatpush1.msra.mxu0 0.0
    %6527 = vmatprep.subr.mxu0 0.0
    %6528 = vmatpush1.msra.mxu0 0.0
    %6529 = vmatprep.subr.mxu0 0.0
    %6530 = vmatpush1.msra.mxu0 0.0
    %6531 = vmatprep.subr.mxu0 0.0
    %6532 = vmatpush1.msra.mxu0 0.0
    %6533 = vmatprep.subr.mxu0 0.0
    %6534 = vmatpush1.msra.mxu0 0.0
    %6535 = vmatprep.subr.mxu0 0.0
    %6536 = vmatpush1.msra.mxu0 0.0
    %6537 = vmatprep.subr.mxu0 0.0
    %6538 = vmatpush1.msra.mxu0 0.0
    %6539 = vmatprep.subr.mxu0 0.0
    %6540 = vmatpush1.msra.mxu0 0.0
    %6541 = vmatprep.subr.mxu0 0.0
    %6542 = vmatpush1.msra.mxu0 0.0
    %6543 = vmatprep.subr.mxu0 0.0
    %6544 = vmatpush1.msra.mxu0 0.0
    %6545 = vmatprep.subr.mxu0 0.0
    %6546 = vmatpush1.msra.mxu0 0.0
    %6547 = vmatprep.mubr.f32.mxu0 0.0
    %6548 = vmatmul.mubr.f32.gmra.mrb[0].mxu0 %v6478
    %v6549 = vpop.f32.mrb[0].mxu0
    %v6550 = vadd.f32 0.0, %v6549
    %v6551 = vpop.f32.mrb[0].mxu0
    %6552 = vdwg.mxu0
    %v6554 = vsel %vm6311, %v6394, 0
    %v6557 = vsel %vm6403, %v5285, 0
    %6559 = vmatprep.subr.mxu0 0.0
    %6560 = vmatpush1.msra.mxu0 %v5280
    %6561 = vmatprep.subr.mxu0 0.0
    %6562 = vmatpush1.msra.mxu0 %v6557
    %6563 = vmatprep.subr.mxu0 0.0
    %6564 = vmatpush1.msra.mxu0 0.0
    %6565 = vmatprep.subr.mxu0 0.0
    %6566 = vmatpush1.msra.mxu0 0.0
    %6567 = vmatprep.subr.mxu0 0.0
    %6568 = vmatpush1.msra.mxu0 0.0
    %6569 = vmatprep.subr.mxu0 0.0
    %6570 = vmatpush1.msra.mxu0 0.0
    %6571 = vmatprep.subr.mxu0 0.0
    %6572 = vmatpush1.msra.mxu0 0.0
    %6573 = vmatprep.subr.mxu0 0.0
    %6574 = vmatpush1.msra.mxu0 0.0
    %6575 = vmatprep.subr.mxu0 0.0
    %6576 = vmatpush1.msra.mxu0 0.0
    %6577 = vmatprep.subr.mxu0 0.0
    %6578 = vmatpush1.msra.mxu0 0.0
    %6579 = vmatprep.subr.mxu0 0.0
    %6580 = vmatpush1.msra.mxu0 0.0
    %6581 = vmatprep.subr.mxu0 0.0
    %6582 = vmatpush1.msra.mxu0 0.0
    %6583 = vmatprep.subr.mxu0 0.0
    %6584 = vmatpush1.msra.mxu0 0.0
    %6585 = vmatprep.subr.mxu0 0.0
    %6586 = vmatpush1.msra.mxu0 0.0
    %6587 = vmatprep.subr.mxu0 0.0
    %6588 = vmatpush1.msra.mxu0 0.0
    %6589 = vmatprep.subr.mxu0 0.0
    %6590 = vmatpush1.msra.mxu0 0.0
    %6591 = vmatprep.subr.mxu0 0.0
    %6592 = vmatpush1.msra.mxu0 0.0
    %6593 = vmatprep.subr.mxu0 0.0
    %6594 = vmatpush1.msra.mxu0 0.0
    %6595 = vmatprep.subr.mxu0 0.0
    %6596 = vmatpush1.msra.mxu0 0.0
    %6597 = vmatprep.subr.mxu0 0.0
    %6598 = vmatpush1.msra.mxu0 0.0
    %6599 = vmatprep.subr.mxu0 0.0
    %6600 = vmatpush1.msra.mxu0 0.0
    %6601 = vmatprep.subr.mxu0 0.0
    %6602 = vmatpush1.msra.mxu0 0.0
    %6603 = vmatprep.subr.mxu0 0.0
    %6604 = vmatpush1.msra.mxu0 0.0
    %6605 = vmatprep.subr.mxu0 0.0
    %6606 = vmatpush1.msra.mxu0 0.0
    %6607 = vmatprep.subr.mxu0 0.0
    %6608 = vmatpush1.msra.mxu0 0.0
    %6609 = vmatprep.subr.mxu0 0.0
    %6610 = vmatpush1.msra.mxu0 0.0
    %6611 = vmatprep.subr.mxu0 0.0
    %6612 = vmatpush1.msra.mxu0 0.0
    %6613 = vmatprep.subr.mxu0 0.0
    %6614 = vmatpush1.msra.mxu0 0.0
    %6615 = vmatprep.subr.mxu0 0.0
    %6616 = vmatpush1.msra.mxu0 0.0
    %6617 = vmatprep.subr.mxu0 0.0
    %6618 = vmatpush1.msra.mxu0 0.0
    %6619 = vmatprep.subr.mxu0 0.0
    %6620 = vmatpush1.msra.mxu0 0.0
    %6621 = vmatprep.subr.mxu0 0.0
    %6622 = vmatpush1.msra.mxu0 0.0
    %6623 = vmatprep.mubr.f32.mxu0 0.0
    %6624 = vmatmul.mubr.f32.gmra.mrb[0].mxu0 %v6554
    %v6625 = vpop.f32.mrb[0].mxu0
    %v6626 = vadd.f32 0.0, %v6625
    %v6627 = vpop.f32.mrb[0].mxu0
    %6628 = vdwg.mxu0
    %v6630 = vsel %vm6311, %v6395, 0
    %v6633 = vsel %vm6403, %v5360, 0
    %6635 = vmatprep.subr.mxu0 0.0
    %6636 = vmatpush1.msra.mxu0 %v5355
    %6637 = vmatprep.subr.mxu0 0.0
    %6638 = vmatpush1.msra.mxu0 %v6633
    %6639 = vmatprep.subr.mxu0 0.0
    %6640 = vmatpush1.msra.mxu0 0.0
    %6641 = vmatprep.subr.mxu0 0.0
    %6642 = vmatpush1.msra.mxu0 0.0
    %6643 = vmatprep.subr.mxu0 0.0
    %6644 = vmatpush1.msra.mxu0 0.0
    %6645 = vmatprep.subr.mxu0 0.0
    %6646 = vmatpush1.msra.mxu0 0.0
    %6647 = vmatprep.subr.mxu0 0.0
    %6648 = vmatpush1.msra.mxu0 0.0
    %6649 = vmatprep.subr.mxu0 0.0
    %6650 = vmatpush1.msra.mxu0 0.0
    %6651 = vmatprep.subr.mxu0 0.0
    %6652 = vmatpush1.msra.mxu0 0.0
    %6653 = vmatprep.subr.mxu0 0.0
    %6654 = vmatpush1.msra.mxu0 0.0
    %6655 = vmatprep.subr.mxu0 0.0
    %6656 = vmatpush1.msra.mxu0 0.0
    %6657 = vmatprep.subr.mxu0 0.0
    %6658 = vmatpush1.msra.mxu0 0.0
    %6659 = vmatprep.subr.mxu0 0.0
    %6660 = vmatpush1.msra.mxu0 0.0
    %6661 = vmatprep.subr.mxu0 0.0
    %6662 = vmatpush1.msra.mxu0 0.0
    %6663 = vmatprep.subr.mxu0 0.0
    %6664 = vmatpush1.msra.mxu0 0.0
    %6665 = vmatprep.subr.mxu0 0.0
    %6666 = vmatpush1.msra.mxu0 0.0
    %6667 = vmatprep.subr.mxu0 0.0
    %6668 = vmatpush1.msra.mxu0 0.0
    %6669 = vmatprep.subr.mxu0 0.0
    %6670 = vmatpush1.msra.mxu0 0.0
    %6671 = vmatprep.subr.mxu0 0.0
    %6672 = vmatpush1.msra.mxu0 0.0
    %6673 = vmatprep.subr.mxu0 0.0
    %6674 = vmatpush1.msra.mxu0 0.0
    %6675 = vmatprep.subr.mxu0 0.0
    %6676 = vmatpush1.msra.mxu0 0.0
    %6677 = vmatprep.subr.mxu0 0.0
    %6678 = vmatpush1.msra.mxu0 0.0
    %6679 = vmatprep.subr.mxu0 0.0
    %6680 = vmatpush1.msra.mxu0 0.0
    %6681 = vmatprep.subr.mxu0 0.0
    %6682 = vmatpush1.msra.mxu0 0.0
    %6683 = vmatprep.subr.mxu0 0.0
    %6684 = vmatpush1.msra.mxu0 0.0
    %6685 = vmatprep.subr.mxu0 0.0
    %6686 = vmatpush1.msra.mxu0 0.0
    %6687 = vmatprep.subr.mxu0 0.0
    %6688 = vmatpush1.msra.mxu0 0.0
    %6689 = vmatprep.subr.mxu0 0.0
    %6690 = vmatpush1.msra.mxu0 0.0
    %6691 = vmatprep.subr.mxu0 0.0
    %6692 = vmatpush1.msra.mxu0 0.0
    %6693 = vmatprep.subr.mxu0 0.0
    %6694 = vmatpush1.msra.mxu0 0.0
    %6695 = vmatprep.subr.mxu0 0.0
    %6696 = vmatpush1.msra.mxu0 0.0
    %6697 = vmatprep.subr.mxu0 0.0
    %6698 = vmatpush1.msra.mxu0 0.0
    %6699 = vmatprep.mubr.f32.mxu0 0.0
    %6700 = vmatmul.mubr.f32.gmra.mrb[0].mxu0 %v6630
    %v6701 = vpop.f32.mrb[0].mxu0
    %v6702 = vadd.f32 0.0, %v6701
    %v6703 = vpop.f32.mrb[0].mxu0
    %6704 = vdwg.mxu0
    %v6706 = vsel %vm6311, %v6396, 0
    %v6709 = vsel %vm6403, %v5435, 0
    %6711 = vmatprep.subr.mxu0 0.0
    %6712 = vmatpush1.msra.mxu0 %v5430
    %6713 = vmatprep.subr.mxu0 0.0
    %6714 = vmatpush1.msra.mxu0 %v6709
    %6715 = vmatprep.subr.mxu0 0.0
    %6716 = vmatpush1.msra.mxu0 0.0
    %6717 = vmatprep.subr.mxu0 0.0
    %6718 = vmatpush1.msra.mxu0 0.0
    %6719 = vmatprep.subr.mxu0 0.0
    %6720 = vmatpush1.msra.mxu0 0.0
    %6721 = vmatprep.subr.mxu0 0.0
    %6722 = vmatpush1.msra.mxu0 0.0
    %6723 = vmatprep.subr.mxu0 0.0
    %6724 = vmatpush1.msra.mxu0 0.0
    %6725 = vmatprep.subr.mxu0 0.0
    %6726 = vmatpush1.msra.mxu0 0.0
    %6727 = vmatprep.subr.mxu0 0.0
    %6728 = vmatpush1.msra.mxu0 0.0
    %6729 = vmatprep.subr.mxu0 0.0
    %6730 = vmatpush1.msra.mxu0 0.0
    %6731 = vmatprep.subr.mxu0 0.0
    %6732 = vmatpush1.msra.mxu0 0.0
    %6733 = vmatprep.subr.mxu0 0.0
    %6734 = vmatpush1.msra.mxu0 0.0
    %6735 = vmatprep.subr.mxu0 0.0
    %6736 = vmatpush1.msra.mxu0 0.0
    %6737 = vmatprep.subr.mxu0 0.0
    %6738 = vmatpush1.msra.mxu0 0.0
    %6739 = vmatprep.subr.mxu0 0.0
    %6740 = vmatpush1.msra.mxu0 0.0
    %6741 = vmatprep.subr.mxu0 0.0
    %6742 = vmatpush1.msra.mxu0 0.0
    %6743 = vmatprep.subr.mxu0 0.0
    %6744 = vmatpush1.msra.mxu0 0.0
    %6745 = vmatprep.subr.mxu0 0.0
    %6746 = vmatpush1.msra.mxu0 0.0
    %6747 = vmatprep.subr.mxu0 0.0
    %6748 = vmatpush1.msra.mxu0 0.0
    %6749 = vmatprep.subr.mxu0 0.0
    %6750 = vmatpush1.msra.mxu0 0.0
    %6751 = vmatprep.subr.mxu0 0.0
    %6752 = vmatpush1.msra.mxu0 0.0
    %6753 = vmatprep.subr.mxu0 0.0
    %6754 = vmatpush1.msra.mxu0 0.0
    %6755 = vmatprep.subr.mxu0 0.0
    %6756 = vmatpush1.msra.mxu0 0.0
    %6757 = vmatprep.subr.mxu0 0.0
    %6758 = vmatpush1.msra.mxu0 0.0
    %6759 = vmatprep.subr.mxu0 0.0
    %6760 = vmatpush1.msra.mxu0 0.0
    %6761 = vmatprep.subr.mxu0 0.0
    %6762 = vmatpush1.msra.mxu0 0.0
    %6763 = vmatprep.subr.mxu0 0.0
    %6764 = vmatpush1.msra.mxu0 0.0
    %6765 = vmatprep.subr.mxu0 0.0
    %6766 = vmatpush1.msra.mxu0 0.0
    %6767 = vmatprep.subr.mxu0 0.0
    %6768 = vmatpush1.msra.mxu0 0.0
    %6769 = vmatprep.subr.mxu0 0.0
    %6770 = vmatpush1.msra.mxu0 0.0
    %6771 = vmatprep.subr.mxu0 0.0
    %6772 = vmatpush1.msra.mxu0 0.0
    %6773 = vmatprep.subr.mxu0 0.0
    %6774 = vmatpush1.msra.mxu0 0.0
    %6775 = vmatprep.mubr.f32.mxu0 0.0
    %6776 = vmatmul.mubr.f32.gmra.mrb[0].mxu0 %v6706
    %v6777 = vpop.f32.mrb[0].mxu0
    %v6778 = vadd.f32 0.0, %v6777
    %v6779 = vpop.f32.mrb[0].mxu0
    %6780 = vdwg.mxu0
    %v6782 = vsel %vm6311, %v6397, 0
    %v6785 = vsel %vm6403, %v5510, 0
    %6787 = vmatprep.subr.mxu0 0.0
    %6788 = vmatpush1.msra.mxu0 %v5505
    %6789 = vmatprep.subr.mxu0 0.0
    %6790 = vmatpush1.msra.mxu0 %v6785
    %6791 = vmatprep.subr.mxu0 0.0
    %6792 = vmatpush1.msra.mxu0 0.0
    %6793 = vmatprep.subr.mxu0 0.0
    %6794 = vmatpush1.msra.mxu0 0.0
    %6795 = vmatprep.subr.mxu0 0.0
    %6796 = vmatpush1.msra.mxu0 0.0
    %6797 = vmatprep.subr.mxu0 0.0
    %6798 = vmatpush1.msra.mxu0 0.0
    %6799 = vmatprep.subr.mxu0 0.0
    %6800 = vmatpush1.msra.mxu0 0.0
    %6801 = vmatprep.subr.mxu0 0.0
    %6802 = vmatpush1.msra.mxu0 0.0
    %6803 = vmatprep.subr.mxu0 0.0
    %6804 = vmatpush1.msra.mxu0 0.0
    %6805 = vmatprep.subr.mxu0 0.0
    %6806 = vmatpush1.msra.mxu0 0.0
    %6807 = vmatprep.subr.mxu0 0.0
    %6808 = vmatpush1.msra.mxu0 0.0
    %6809 = vmatprep.subr.mxu0 0.0
    %6810 = vmatpush1.msra.mxu0 0.0
    %6811 = vmatprep.subr.mxu0 0.0
    %6812 = vmatpush1.msra.mxu0 0.0
    %6813 = vmatprep.subr.mxu0 0.0
    %6814 = vmatpush1.msra.mxu0 0.0
    %6815 = vmatprep.subr.mxu0 0.0
    %6816 = vmatpush1.msra.mxu0 0.0
    %6817 = vmatprep.subr.mxu0 0.0
    %6818 = vmatpush1.msra.mxu0 0.0
    %6819 = vmatprep.subr.mxu0 0.0
    %6820 = vmatpush1.msra.mxu0 0.0
    %6821 = vmatprep.subr.mxu0 0.0
    %6822 = vmatpush1.msra.mxu0 0.0
    %6823 = vmatprep.subr.mxu0 0.0
    %6824 = vmatpush1.msra.mxu0 0.0
    %6825 = vmatprep.subr.mxu0 0.0
    %6826 = vmatpush1.msra.mxu0 0.0
    %6827 = vmatprep.subr.mxu0 0.0
    %6828 = vmatpush1.msra.mxu0 0.0
    %6829 = vmatprep.subr.mxu0 0.0
    %6830 = vmatpush1.msra.mxu0 0.0
    %6831 = vmatprep.subr.mxu0 0.0
    %6832 = vmatpush1.msra.mxu0 0.0
    %6833 = vmatprep.subr.mxu0 0.0
    %6834 = vmatpush1.msra.mxu0 0.0
    %6835 = vmatprep.subr.mxu0 0.0
    %6836 = vmatpush1.msra.mxu0 0.0
    %6837 = vmatprep.subr.mxu0 0.0
    %6838 = vmatpush1.msra.mxu0 0.0
    %6839 = vmatprep.subr.mxu0 0.0
    %6840 = vmatpush1.msra.mxu0 0.0
    %6841 = vmatprep.subr.mxu0 0.0
    %6842 = vmatpush1.msra.mxu0 0.0
    %6843 = vmatprep.subr.mxu0 0.0
    %6844 = vmatpush1.msra.mxu0 0.0
    %6845 = vmatprep.subr.mxu0 0.0
    %6846 = vmatpush1.msra.mxu0 0.0
    %6847 = vmatprep.subr.mxu0 0.0
    %6848 = vmatpush1.msra.mxu0 0.0
    %6849 = vmatprep.subr.mxu0 0.0
    %6850 = vmatpush1.msra.mxu0 0.0
    %6851 = vmatprep.mubr.f32.mxu0 0.0
    %6852 = vmatmul.mubr.f32.gmra.mrb[0].mxu0 %v6782
    %v6853 = vpop.f32.mrb[0].mxu0
    %v6854 = vadd.f32 0.0, %v6853
    %v6855 = vpop.f32.mrb[0].mxu0
    %6856 = vdwg.mxu0
    %v6858 = vsel %vm6311, %v6398, 0
    %v6861 = vsel %vm6403, %v5585, 0
    %6863 = vmatprep.subr.mxu0 0.0
    %6864 = vmatpush1.msra.mxu0 %v5580
    %6865 = vmatprep.subr.mxu0 0.0
    %6866 = vmatpush1.msra.mxu0 %v6861
    %6867 = vmatprep.subr.mxu0 0.0
    %6868 = vmatpush1.msra.mxu0 0.0
    %6869 = vmatprep.subr.mxu0 0.0
    %6870 = vmatpush1.msra.mxu0 0.0
    %6871 = vmatprep.subr.mxu0 0.0
    %6872 = vmatpush1.msra.mxu0 0.0
    %6873 = vmatprep.subr.mxu0 0.0
    %6874 = vmatpush1.msra.mxu0 0.0
    %6875 = vmatprep.subr.mxu0 0.0
    %6876 = vmatpush1.msra.mxu0 0.0
    %6877 = vmatprep.subr.mxu0 0.0
    %6878 = vmatpush1.msra.mxu0 0.0
    %6879 = vmatprep.subr.mxu0 0.0
    %6880 = vmatpush1.msra.mxu0 0.0
    %6881 = vmatprep.subr.mxu0 0.0
    %6882 = vmatpush1.msra.mxu0 0.0
    %6883 = vmatprep.subr.mxu0 0.0
    %6884 = vmatpush1.msra.mxu0 0.0
    %6885 = vmatprep.subr.mxu0 0.0
    %6886 = vmatpush1.msra.mxu0 0.0
    %6887 = vmatprep.subr.mxu0 0.0
    %6888 = vmatpush1.msra.mxu0 0.0
    %6889 = vmatprep.subr.mxu0 0.0
    %6890 = vmatpush1.msra.mxu0 0.0
    %6891 = vmatprep.subr.mxu0 0.0
    %6892 = vmatpush1.msra.mxu0 0.0
    %6893 = vmatprep.subr.mxu0 0.0
    %6894 = vmatpush1.msra.mxu0 0.0
    %6895 = vmatprep.subr.mxu0 0.0
    %6896 = vmatpush1.msra.mxu0 0.0
    %6897 = vmatprep.subr.mxu0 0.0
    %6898 = vmatpush1.msra.mxu0 0.0
    %6899 = vmatprep.subr.mxu0 0.0
    %6900 = vmatpush1.msra.mxu0 0.0
    %6901 = vmatprep.subr.mxu0 0.0
    %6902 = vmatpush1.msra.mxu0 0.0
    %6903 = vmatprep.subr.mxu0 0.0
    %6904 = vmatpush1.msra.mxu0 0.0
    %6905 = vmatprep.subr.mxu0 0.0
    %6906 = vmatpush1.msra.mxu0 0.0
    %6907 = vmatprep.subr.mxu0 0.0
    %6908 = vmatpush1.msra.mxu0 0.0
    %6909 = vmatprep.subr.mxu0 0.0
    %6910 = vmatpush1.msra.mxu0 0.0
    %6911 = vmatprep.subr.mxu0 0.0
    %6912 = vmatpush1.msra.mxu0 0.0
    %6913 = vmatprep.subr.mxu0 0.0
    %6914 = vmatpush1.msra.mxu0 0.0
    %6915 = vmatprep.subr.mxu0 0.0
    %6916 = vmatpush1.msra.mxu0 0.0
    %6917 = vmatprep.subr.mxu0 0.0
    %6918 = vmatpush1.msra.mxu0 0.0
    %6919 = vmatprep.subr.mxu0 0.0
    %6920 = vmatpush1.msra.mxu0 0.0
    %6921 = vmatprep.subr.mxu0 0.0
    %6922 = vmatpush1.msra.mxu0 0.0
    %6923 = vmatprep.subr.mxu0 0.0
    %6924 = vmatpush1.msra.mxu0 0.0
    %6925 = vmatprep.subr.mxu0 0.0
    %6926 = vmatpush1.msra.mxu0 0.0
    %6927 = vmatprep.mubr.f32.mxu0 0.0
    %6928 = vmatmul.mubr.f32.gmra.mrb[0].mxu0 %v6858
    %v6929 = vpop.f32.mrb[0].mxu0
    %v6930 = vadd.f32 0.0, %v6929
    %v6931 = vpop.f32.mrb[0].mxu0
    %6932 = vdwg.mxu0
    %v6934 = vsel %vm6311, %v6399, 0
    %v6937 = vsel %vm6403, %v5660, 0
    %6939 = vmatprep.subr.mxu0 0.0
    %6940 = vmatpush1.msra.mxu0 %v5655
    %6941 = vmatprep.subr.mxu0 0.0
    %6942 = vmatpush1.msra.mxu0 %v6937
    %6943 = vmatprep.subr.mxu0 0.0
    %6944 = vmatpush1.msra.mxu0 0.0
    %6945 = vmatprep.subr.mxu0 0.0
    %6946 = vmatpush1.msra.mxu0 0.0
    %6947 = vmatprep.subr.mxu0 0.0
    %6948 = vmatpush1.msra.mxu0 0.0
    %6949 = vmatprep.subr.mxu0 0.0
    %6950 = vmatpush1.msra.mxu0 0.0
    %6951 = vmatprep.subr.mxu0 0.0
    %6952 = vmatpush1.msra.mxu0 0.0
    %6953 = vmatprep.subr.mxu0 0.0
    %6954 = vmatpush1.msra.mxu0 0.0
    %6955 = vmatprep.subr.mxu0 0.0
    %6956 = vmatpush1.msra.mxu0 0.0
    %6957 = vmatprep.subr.mxu0 0.0
    %6958 = vmatpush1.msra.mxu0 0.0
    %6959 = vmatprep.subr.mxu0 0.0
    %6960 = vmatpush1.msra.mxu0 0.0
    %6961 = vmatprep.subr.mxu0 0.0
    %6962 = vmatpush1.msra.mxu0 0.0
    %6963 = vmatprep.subr.mxu0 0.0
    %6964 = vmatpush1.msra.mxu0 0.0
    %6965 = vmatprep.subr.mxu0 0.0
    %6966 = vmatpush1.msra.mxu0 0.0
    %6967 = vmatprep.subr.mxu0 0.0
    %6968 = vmatpush1.msra.mxu0 0.0
    %6969 = vmatprep.subr.mxu0 0.0
    %6970 = vmatpush1.msra.mxu0 0.0
    %6971 = vmatprep.subr.mxu0 0.0
    %6972 = vmatpush1.msra.mxu0 0.0
    %6973 = vmatprep.subr.mxu0 0.0
    %6974 = vmatpush1.msra.mxu0 0.0
    %6975 = vmatprep.subr.mxu0 0.0
    %6976 = vmatpush1.msra.mxu0 0.0
    %6977 = vmatprep.subr.mxu0 0.0
    %6978 = vmatpush1.msra.mxu0 0.0
    %6979 = vmatprep.subr.mxu0 0.0
    %6980 = vmatpush1.msra.mxu0 0.0
    %6981 = vmatprep.subr.mxu0 0.0
    %6982 = vmatpush1.msra.mxu0 0.0
    %6983 = vmatprep.subr.mxu0 0.0
    %6984 = vmatpush1.msra.mxu0 0.0
    %6985 = vmatprep.subr.mxu0 0.0
    %6986 = vmatpush1.msra.mxu0 0.0
    %6987 = vmatprep.subr.mxu0 0.0
    %6988 = vmatpush1.msra.mxu0 0.0
    %6989 = vmatprep.subr.mxu0 0.0
    %6990 = vmatpush1.msra.mxu0 0.0
    %6991 = vmatprep.subr.mxu0 0.0
    %6992 = vmatpush1.msra.mxu0 0.0
    %6993 = vmatprep.subr.mxu0 0.0
    %6994 = vmatpush1.msra.mxu0 0.0
    %6995 = vmatprep.subr.mxu0 0.0
    %6996 = vmatpush1.msra.mxu0 0.0
    %6997 = vmatprep.subr.mxu0 0.0
    %6998 = vmatpush1.msra.mxu0 0.0
    %6999 = vmatprep.subr.mxu0 0.0
    %7000 = vmatpush1.msra.mxu0 0.0
    %7001 = vmatprep.subr.mxu0 0.0
    %7002 = vmatpush1.msra.mxu0 0.0
    %7003 = vmatprep.mubr.f32.mxu0 0.0
    %7004 = vmatmul.mubr.f32.gmra.mrb[0].mxu0 %v6934
    %v7005 = vpop.f32.mrb[0].mxu0
    %v7006 = vadd.f32 0.0, %v7005
    %v7007 = vpop.f32.mrb[0].mxu0
    %7008 = vdwg.mxu0
    %v7010 = vsel %vm1827, %v6474, 0
    %7012 = vmatprep.subr.mxu0 0.0
    %7013 = vmatpush1.msra.mxu0 %v3881
    %7014 = vmatprep.subr.mxu0 0.0
    %7015 = vmatpush1.msra.mxu0 0.0
    %7016 = vmatprep.subr.mxu0 0.0
    %7017 = vmatpush1.msra.mxu0 0.0
    %7018 = vmatprep.subr.mxu0 0.0
    %7019 = vmatpush1.msra.mxu0 0.0
    %7020 = vmatprep.subr.mxu0 0.0
    %7021 = vmatpush1.msra.mxu0 0.0
    %7022 = vmatprep.subr.mxu0 0.0
    %7023 = vmatpush1.msra.mxu0 0.0
    %7024 = vmatprep.subr.mxu0 0.0
    %7025 = vmatpush1.msra.mxu0 0.0
    %7026 = vmatprep.subr.mxu0 0.0
    %7027 = vmatpush1.msra.mxu0 0.0
    %7028 = vmatprep.subr.mxu0 0.0
    %7029 = vmatpush1.msra.mxu0 0.0
    %7030 = vmatprep.subr.mxu0 0.0
    %7031 = vmatpush1.msra.mxu0 0.0
    %7032 = vmatprep.subr.mxu0 0.0
    %7033 = vmatpush1.msra.mxu0 0.0
    %7034 = vmatprep.subr.mxu0 0.0
    %7035 = vmatpush1.msra.mxu0 0.0
    %7036 = vmatprep.subr.mxu0 0.0
    %7037 = vmatpush1.msra.mxu0 0.0
    %7038 = vmatprep.subr.mxu0 0.0
    %7039 = vmatpush1.msra.mxu0 0.0
    %7040 = vmatprep.subr.mxu0 0.0
    %7041 = vmatpush1.msra.mxu0 0.0
    %7042 = vmatprep.subr.mxu0 0.0
    %7043 = vmatpush1.msra.mxu0 0.0
    %7044 = vmatprep.subr.mxu0 0.0
    %7045 = vmatpush1.msra.mxu0 0.0
    %7046 = vmatprep.subr.mxu0 0.0
    %7047 = vmatpush1.msra.mxu0 0.0
    %7048 = vmatprep.subr.mxu0 0.0
    %7049 = vmatpush1.msra.mxu0 0.0
    %7050 = vmatprep.subr.mxu0 0.0
    %7051 = vmatpush1.msra.mxu0 0.0
    %7052 = vmatprep.subr.mxu0 0.0
    %7053 = vmatpush1.msra.mxu0 0.0
    %7054 = vmatprep.subr.mxu0 0.0
    %7055 = vmatpush1.msra.mxu0 0.0
    %7056 = vmatprep.subr.mxu0 0.0
    %7057 = vmatpush1.msra.mxu0 0.0
    %7058 = vmatprep.subr.mxu0 0.0
    %7059 = vmatpush1.msra.mxu0 0.0
    %7060 = vmatprep.subr.mxu0 0.0
    %7061 = vmatpush1.msra.mxu0 0.0
    %7062 = vmatprep.subr.mxu0 0.0
    %7063 = vmatpush1.msra.mxu0 0.0
    %7064 = vmatprep.subr.mxu0 0.0
    %7065 = vmatpush1.msra.mxu0 0.0
    %7066 = vmatprep.subr.mxu0 0.0
    %7067 = vmatpush1.msra.mxu0 0.0
    %7068 = vmatprep.subr.mxu0 0.0
    %7069 = vmatpush1.msra.mxu0 0.0
    %7070 = vmatprep.subr.mxu0 0.0
    %7071 = vmatpush1.msra.mxu0 0.0
    %7072 = vmatprep.subr.mxu0 0.0
    %7073 = vmatpush1.msra.mxu0 0.0
    %7074 = vmatprep.subr.mxu0 0.0
    %7075 = vmatpush1.msra.mxu0 0.0
    %7076 = vmatprep.mubr.f32.mxu0 0.0
    %7077 = vmatmul.mubr.f32.gmra.mrb[0].mxu0 %v7010
    %v7078 = vpop.f32.mrb[0].mxu0
    %v7079 = vadd.f32 0.0, %v7078
    %v7080 = vpop.f32.mrb[0].mxu0
    %7081 = vdwg.mxu0
    %v7083 = vsel %vm1827, %v6550, 0
    %7085 = vmatprep.subr.mxu0 0.0
    %7086 = vmatpush1.msra.mxu0 %v3882
    %7087 = vmatprep.subr.mxu0 0.0
    %7088 = vmatpush1.msra.mxu0 0.0
    %7089 = vmatprep.subr.mxu0 0.0
    %7090 = vmatpush1.msra.mxu0 0.0
    %7091 = vmatprep.subr.mxu0 0.0
    %7092 = vmatpush1.msra.mxu0 0.0
    %7093 = vmatprep.subr.mxu0 0.0
    %7094 = vmatpush1.msra.mxu0 0.0
    %7095 = vmatprep.subr.mxu0 0.0
    %7096 = vmatpush1.msra.mxu0 0.0
    %7097 = vmatprep.subr.mxu0 0.0
    %7098 = vmatpush1.msra.mxu0 0.0
    %7099 = vmatprep.subr.mxu0 0.0
    %7100 = vmatpush1.msra.mxu0 0.0
    %7101 = vmatprep.subr.mxu0 0.0
    %7102 = vmatpush1.msra.mxu0 0.0
    %7103 = vmatprep.subr.mxu0 0.0
    %7104 = vmatpush1.msra.mxu0 0.0
    %7105 = vmatprep.subr.mxu0 0.0
    %7106 = vmatpush1.msra.mxu0 0.0
    %7107 = vmatprep.subr.mxu0 0.0
    %7108 = vmatpush1.msra.mxu0 0.0
    %7109 = vmatprep.subr.mxu0 0.0
    %7110 = vmatpush1.msra.mxu0 0.0
    %7111 = vmatprep.subr.mxu0 0.0
    %7112 = vmatpush1.msra.mxu0 0.0
    %7113 = vmatprep.subr.mxu0 0.0
    %7114 = vmatpush1.msra.mxu0 0.0
    %7115 = vmatprep.subr.mxu0 0.0
    %7116 = vmatpush1.msra.mxu0 0.0
    %7117 = vmatprep.subr.mxu0 0.0
    %7118 = vmatpush1.msra.mxu0 0.0
    %7119 = vmatprep.subr.mxu0 0.0
    %7120 = vmatpush1.msra.mxu0 0.0
    %7121 = vmatprep.subr.mxu0 0.0
    %7122 = vmatpush1.msra.mxu0 0.0
    %7123 = vmatprep.subr.mxu0 0.0
    %7124 = vmatpush1.msra.mxu0 0.0
    %7125 = vmatprep.subr.mxu0 0.0
    %7126 = vmatpush1.msra.mxu0 0.0
    %7127 = vmatprep.subr.mxu0 0.0
    %7128 = vmatpush1.msra.mxu0 0.0
    %7129 = vmatprep.subr.mxu0 0.0
    %7130 = vmatpush1.msra.mxu0 0.0
    %7131 = vmatprep.subr.mxu0 0.0
    %7132 = vmatpush1.msra.mxu0 0.0
    %7133 = vmatprep.subr.mxu0 0.0
    %7134 = vmatpush1.msra.mxu0 0.0
    %7135 = vmatprep.subr.mxu0 0.0
    %7136 = vmatpush1.msra.mxu0 0.0
    %7137 = vmatprep.subr.mxu0 0.0
    %7138 = vmatpush1.msra.mxu0 0.0
    %7139 = vmatprep.subr.mxu0 0.0
    %7140 = vmatpush1.msra.mxu0 0.0
    %7141 = vmatprep.subr.mxu0 0.0
    %7142 = vmatpush1.msra.mxu0 0.0
    %7143 = vmatprep.subr.mxu0 0.0
    %7144 = vmatpush1.msra.mxu0 0.0
    %7145 = vmatprep.subr.mxu0 0.0
    %7146 = vmatpush1.msra.mxu0 0.0
    %7147 = vmatprep.subr.mxu0 0.0
    %7148 = vmatpush1.msra.mxu0 0.0
    %7149 = vmatprep.mubr.f32.mxu0 0.0
    %7150 = vmatmul.mubr.f32.gmra.mrb[0].mxu0 %v7083
    %v7151 = vpop.f32.mrb[0].mxu0
    %v7152 = vadd.f32 0.0, %v7151
    %v7153 = vpop.f32.mrb[0].mxu0
    %7154 = vdwg.mxu0
    %v7156 = vsel %vm1827, %v6626, 0
    %7158 = vmatprep.subr.mxu0 0.0
    %7159 = vmatpush1.msra.mxu0 %v3883
    %7160 = vmatprep.subr.mxu0 0.0
    %7161 = vmatpush1.msra.mxu0 0.0
    %7162 = vmatprep.subr.mxu0 0.0
    %7163 = vmatpush1.msra.mxu0 0.0
    %7164 = vmatprep.subr.mxu0 0.0
    %7165 = vmatpush1.msra.mxu0 0.0
    %7166 = vmatprep.subr.mxu0 0.0
    %7167 = vmatpush1.msra.mxu0 0.0
    %7168 = vmatprep.subr.mxu0 0.0
    %7169 = vmatpush1.msra.mxu0 0.0
    %7170 = vmatprep.subr.mxu0 0.0
    %7171 = vmatpush1.msra.mxu0 0.0
    %7172 = vmatprep.subr.mxu0 0.0
    %7173 = vmatpush1.msra.mxu0 0.0
    %7174 = vmatprep.subr.mxu0 0.0
    %7175 = vmatpush1.msra.mxu0 0.0
    %7176 = vmatprep.subr.mxu0 0.0
    %7177 = vmatpush1.msra.mxu0 0.0
    %7178 = vmatprep.subr.mxu0 0.0
    %7179 = vmatpush1.msra.mxu0 0.0
    %7180 = vmatprep.subr.mxu0 0.0
    %7181 = vmatpush1.msra.mxu0 0.0
    %7182 = vmatprep.subr.mxu0 0.0
    %7183 = vmatpush1.msra.mxu0 0.0
    %7184 = vmatprep.subr.mxu0 0.0
    %7185 = vmatpush1.msra.mxu0 0.0
    %7186 = vmatprep.subr.mxu0 0.0
    %7187 = vmatpush1.msra.mxu0 0.0
    %7188 = vmatprep.subr.mxu0 0.0
    %7189 = vmatpush1.msra.mxu0 0.0
    %7190 = vmatprep.subr.mxu0 0.0
    %7191 = vmatpush1.msra.mxu0 0.0
    %7192 = vmatprep.subr.mxu0 0.0
    %7193 = vmatpush1.msra.mxu0 0.0
    %7194 = vmatprep.subr.mxu0 0.0
    %7195 = vmatpush1.msra.mxu0 0.0
    %7196 = vmatprep.subr.mxu0 0.0
    %7197 = vmatpush1.msra.mxu0 0.0
    %7198 = vmatprep.subr.mxu0 0.0
    %7199 = vmatpush1.msra.mxu0 0.0
    %7200 = vmatprep.subr.mxu0 0.0
    %7201 = vmatpush1.msra.mxu0 0.0
    %7202 = vmatprep.subr.mxu0 0.0
    %7203 = vmatpush1.msra.mxu0 0.0
    %7204 = vmatprep.subr.mxu0 0.0
    %7205 = vmatpush1.msra.mxu0 0.0
    %7206 = vmatprep.subr.mxu0 0.0
    %7207 = vmatpush1.msra.mxu0 0.0
    %7208 = vmatprep.subr.mxu0 0.0
    %7209 = vmatpush1.msra.mxu0 0.0
    %7210 = vmatprep.subr.mxu0 0.0
    %7211 = vmatpush1.msra.mxu0 0.0
    %7212 = vmatprep.subr.mxu0 0.0
    %7213 = vmatpush1.msra.mxu0 0.0
    %7214 = vmatprep.subr.mxu0 0.0
    %7215 = vmatpush1.msra.mxu0 0.0
    %7216 = vmatprep.subr.mxu0 0.0
    %7217 = vmatpush1.msra.mxu0 0.0
    %7218 = vmatprep.subr.mxu0 0.0
    %7219 = vmatpush1.msra.mxu0 0.0
    %7220 = vmatprep.subr.mxu0 0.0
    %7221 = vmatpush1.msra.mxu0 0.0
    %7222 = vmatprep.mubr.f32.mxu0 0.0
    %7223 = vmatmul.mubr.f32.gmra.mrb[0].mxu0 %v7156
    %v7224 = vpop.f32.mrb[0].mxu0
    %v7225 = vadd.f32 0.0, %v7224
    %v7226 = vpop.f32.mrb[0].mxu0
    %7227 = vdwg.mxu0
    %v7229 = vsel %vm1827, %v6702, 0
    %7231 = vmatprep.subr.mxu0 0.0
    %7232 = vmatpush1.msra.mxu0 %v3884
    %7233 = vmatprep.subr.mxu0 0.0
    %7234 = vmatpush1.msra.mxu0 0.0
    %7235 = vmatprep.subr.mxu0 0.0
    %7236 = vmatpush1.msra.mxu0 0.0
    %7237 = vmatprep.subr.mxu0 0.0
    %7238 = vmatpush1.msra.mxu0 0.0
    %7239 = vmatprep.subr.mxu0 0.0
    %7240 = vmatpush1.msra.mxu0 0.0
    %7241 = vmatprep.subr.mxu0 0.0
    %7242 = vmatpush1.msra.mxu0 0.0
    %7243 = vmatprep.subr.mxu0 0.0
    %7244 = vmatpush1.msra.mxu0 0.0
    %7245 = vmatprep.subr.mxu0 0.0
    %7246 = vmatpush1.msra.mxu0 0.0
    %7247 = vmatprep.subr.mxu0 0.0
    %7248 = vmatpush1.msra.mxu0 0.0
    %7249 = vmatprep.subr.mxu0 0.0
    %7250 = vmatpush1.msra.mxu0 0.0
    %7251 = vmatprep.subr.mxu0 0.0
    %7252 = vmatpush1.msra.mxu0 0.0
    %7253 = vmatprep.subr.mxu0 0.0
    %7254 = vmatpush1.msra.mxu0 0.0
    %7255 = vmatprep.subr.mxu0 0.0
    %7256 = vmatpush1.msra.mxu0 0.0
    %7257 = vmatprep.subr.mxu0 0.0
    %7258 = vmatpush1.msra.mxu0 0.0
    %7259 = vmatprep.subr.mxu0 0.0
    %7260 = vmatpush1.msra.mxu0 0.0
    %7261 = vmatprep.subr.mxu0 0.0
    %7262 = vmatpush1.msra.mxu0 0.0
    %7263 = vmatprep.subr.mxu0 0.0
    %7264 = vmatpush1.msra.mxu0 0.0
    %7265 = vmatprep.subr.mxu0 0.0
    %7266 = vmatpush1.msra.mxu0 0.0
    %7267 = vmatprep.subr.mxu0 0.0
    %7268 = vmatpush1.msra.mxu0 0.0
    %7269 = vmatprep.subr.mxu0 0.0
    %7270 = vmatpush1.msra.mxu0 0.0
    %7271 = vmatprep.subr.mxu0 0.0
    %7272 = vmatpush1.msra.mxu0 0.0
    %7273 = vmatprep.subr.mxu0 0.0
    %7274 = vmatpush1.msra.mxu0 0.0
    %7275 = vmatprep.subr.mxu0 0.0
    %7276 = vmatpush1.msra.mxu0 0.0
    %7277 = vmatprep.subr.mxu0 0.0
    %7278 = vmatpush1.msra.mxu0 0.0
    %7279 = vmatprep.subr.mxu0 0.0
    %7280 = vmatpush1.msra.mxu0 0.0
    %7281 = vmatprep.subr.mxu0 0.0
    %7282 = vmatpush1.msra.mxu0 0.0
    %7283 = vmatprep.subr.mxu0 0.0
    %7284 = vmatpush1.msra.mxu0 0.0
    %7285 = vmatprep.subr.mxu0 0.0
    %7286 = vmatpush1.msra.mxu0 0.0
    %7287 = vmatprep.subr.mxu0 0.0
    %7288 = vmatpush1.msra.mxu0 0.0
    %7289 = vmatprep.subr.mxu0 0.0
    %7290 = vmatpush1.msra.mxu0 0.0
    %7291 = vmatprep.subr.mxu0 0.0
    %7292 = vmatpush1.msra.mxu0 0.0
    %7293 = vmatprep.subr.mxu0 0.0
    %7294 = vmatpush1.msra.mxu0 0.0
    %7295 = vmatprep.mubr.f32.mxu0 0.0
    %7296 = vmatmul.mubr.f32.gmra.mrb[0].mxu0 %v7229
    %v7297 = vpop.f32.mrb[0].mxu0
    %v7298 = vadd.f32 0.0, %v7297
    %v7299 = vpop.f32.mrb[0].mxu0
    %7300 = vdwg.mxu0
    %v7302 = vsel %vm1827, %v6778, 0
    %7304 = vmatprep.subr.mxu0 0.0
    %7305 = vmatpush1.msra.mxu0 %v3881
    %7306 = vmatprep.subr.mxu0 0.0
    %7307 = vmatpush1.msra.mxu0 0.0
    %7308 = vmatprep.subr.mxu0 0.0
    %7309 = vmatpush1.msra.mxu0 0.0
    %7310 = vmatprep.subr.mxu0 0.0
    %7311 = vmatpush1.msra.mxu0 0.0
    %7312 = vmatprep.subr.mxu0 0.0
    %7313 = vmatpush1.msra.mxu0 0.0
    %7314 = vmatprep.subr.mxu0 0.0
    %7315 = vmatpush1.msra.mxu0 0.0
    %7316 = vmatprep.subr.mxu0 0.0
    %7317 = vmatpush1.msra.mxu0 0.0
    %7318 = vmatprep.subr.mxu0 0.0
    %7319 = vmatpush1.msra.mxu0 0.0
    %7320 = vmatprep.subr.mxu0 0.0
    %7321 = vmatpush1.msra.mxu0 0.0
    %7322 = vmatprep.subr.mxu0 0.0
    %7323 = vmatpush1.msra.mxu0 0.0
    %7324 = vmatprep.subr.mxu0 0.0
    %7325 = vmatpush1.msra.mxu0 0.0
    %7326 = vmatprep.subr.mxu0 0.0
    %7327 = vmatpush1.msra.mxu0 0.0
    %7328 = vmatprep.subr.mxu0 0.0
    %7329 = vmatpush1.msra.mxu0 0.0
    %7330 = vmatprep.subr.mxu0 0.0
    %7331 = vmatpush1.msra.mxu0 0.0
    %7332 = vmatprep.subr.mxu0 0.0
    %7333 = vmatpush1.msra.mxu0 0.0
    %7334 = vmatprep.subr.mxu0 0.0
    %7335 = vmatpush1.msra.mxu0 0.0
    %7336 = vmatprep.subr.mxu0 0.0
    %7337 = vmatpush1.msra.mxu0 0.0
    %7338 = vmatprep.subr.mxu0 0.0
    %7339 = vmatpush1.msra.mxu0 0.0
    %7340 = vmatprep.subr.mxu0 0.0
    %7341 = vmatpush1.msra.mxu0 0.0
    %7342 = vmatprep.subr.mxu0 0.0
    %7343 = vmatpush1.msra.mxu0 0.0
    %7344 = vmatprep.subr.mxu0 0.0
    %7345 = vmatpush1.msra.mxu0 0.0
    %7346 = vmatprep.subr.mxu0 0.0
    %7347 = vmatpush1.msra.mxu0 0.0
    %7348 = vmatprep.subr.mxu0 0.0
    %7349 = vmatpush1.msra.mxu0 0.0
    %7350 = vmatprep.subr.mxu0 0.0
    %7351 = vmatpush1.msra.mxu0 0.0
    %7352 = vmatprep.subr.mxu0 0.0
    %7353 = vmatpush1.msra.mxu0 0.0
    %7354 = vmatprep.subr.mxu0 0.0
    %7355 = vmatpush1.msra.mxu0 0.0
    %7356 = vmatprep.subr.mxu0 0.0
    %7357 = vmatpush1.msra.mxu0 0.0
    %7358 = vmatprep.subr.mxu0 0.0
    %7359 = vmatpush1.msra.mxu0 0.0
    %7360 = vmatprep.subr.mxu0 0.0
    %7361 = vmatpush1.msra.mxu0 0.0
    %7362 = vmatprep.subr.mxu0 0.0
    %7363 = vmatpush1.msra.mxu0 0.0
    %7364 = vmatprep.subr.mxu0 0.0
    %7365 = vmatpush1.msra.mxu0 0.0
    %7366 = vmatprep.subr.mxu0 0.0
    %7367 = vmatpush1.msra.mxu0 0.0
    %7368 = vmatprep.mubr.f32.mxu0 0.0
    %7369 = vmatmul.mubr.f32.gmra.mrb[0].mxu0 %v7302
    %v7370 = vpop.f32.mrb[0].mxu0
    %v7371 = vadd.f32 0.0, %v7370
    %v7372 = vpop.f32.mrb[0].mxu0
    %7373 = vdwg.mxu0
    %v7375 = vsel %vm1827, %v6854, 0
    %7377 = vmatprep.subr.mxu0 0.0
    %7378 = vmatpush1.msra.mxu0 %v3882
    %7379 = vmatprep.subr.mxu0 0.0
    %7380 = vmatpush1.msra.mxu0 0.0
    %7381 = vmatprep.subr.mxu0 0.0
    %7382 = vmatpush1.msra.mxu0 0.0
    %7383 = vmatprep.subr.mxu0 0.0
    %7384 = vmatpush1.msra.mxu0 0.0
    %7385 = vmatprep.subr.mxu0 0.0
    %7386 = vmatpush1.msra.mxu0 0.0
    %7387 = vmatprep.subr.mxu0 0.0
    %7388 = vmatpush1.msra.mxu0 0.0
    %7389 = vmatprep.subr.mxu0 0.0
    %7390 = vmatpush1.msra.mxu0 0.0
    %7391 = vmatprep.subr.mxu0 0.0
    %7392 = vmatpush1.msra.mxu0 0.0
    %7393 = vmatprep.subr.mxu0 0.0
    %7394 = vmatpush1.msra.mxu0 0.0
    %7395 = vmatprep.subr.mxu0 0.0
    %7396 = vmatpush1.msra.mxu0 0.0
    %7397 = vmatprep.subr.mxu0 0.0
    %7398 = vmatpush1.msra.mxu0 0.0
    %7399 = vmatprep.subr.mxu0 0.0
    %7400 = vmatpush1.msra.mxu0 0.0
    %7401 = vmatprep.subr.mxu0 0.0
    %7402 = vmatpush1.msra.mxu0 0.0
    %7403 = vmatprep.subr.mxu0 0.0
    %7404 = vmatpush1.msra.mxu0 0.0
    %7405 = vmatprep.subr.mxu0 0.0
    %7406 = vmatpush1.msra.mxu0 0.0
    %7407 = vmatprep.subr.mxu0 0.0
    %7408 = vmatpush1.msra.mxu0 0.0
    %7409 = vmatprep.subr.mxu0 0.0
    %7410 = vmatpush1.msra.mxu0 0.0
    %7411 = vmatprep.subr.mxu0 0.0
    %7412 = vmatpush1.msra.mxu0 0.0
    %7413 = vmatprep.subr.mxu0 0.0
    %7414 = vmatpush1.msra.mxu0 0.0
    %7415 = vmatprep.subr.mxu0 0.0
    %7416 = vmatpush1.msra.mxu0 0.0
    %7417 = vmatprep.subr.mxu0 0.0
    %7418 = vmatpush1.msra.mxu0 0.0
    %7419 = vmatprep.subr.mxu0 0.0
    %7420 = vmatpush1.msra.mxu0 0.0
    %7421 = vmatprep.subr.mxu0 0.0
    %7422 = vmatpush1.msra.mxu0 0.0
    %7423 = vmatprep.subr.mxu0 0.0
    %7424 = vmatpush1.msra.mxu0 0.0
    %7425 = vmatprep.subr.mxu0 0.0
    %7426 = vmatpush1.msra.mxu0 0.0
    %7427 = vmatprep.subr.mxu0 0.0
    %7428 = vmatpush1.msra.mxu0 0.0
    %7429 = vmatprep.subr.mxu0 0.0
    %7430 = vmatpush1.msra.mxu0 0.0
    %7431 = vmatprep.subr.mxu0 0.0
    %7432 = vmatpush1.msra.mxu0 0.0
    %7433 = vmatprep.subr.mxu0 0.0
    %7434 = vmatpush1.msra.mxu0 0.0
    %7435 = vmatprep.subr.mxu0 0.0
    %7436 = vmatpush1.msra.mxu0 0.0
    %7437 = vmatprep.subr.mxu0 0.0
    %7438 = vmatpush1.msra.mxu0 0.0
    %7439 = vmatprep.subr.mxu0 0.0
    %7440 = vmatpush1.msra.mxu0 0.0
    %7441 = vmatprep.mubr.f32.mxu0 0.0
    %7442 = vmatmul.mubr.f32.gmra.mrb[0].mxu0 %v7375
    %v7443 = vpop.f32.mrb[0].mxu0
    %v7444 = vadd.f32 0.0, %v7443
    %v7445 = vpop.f32.mrb[0].mxu0
    %7446 = vdwg.mxu0
    %v7448 = vsel %vm1827, %v6930, 0
    %7450 = vmatprep.subr.mxu0 0.0
    %7451 = vmatpush1.msra.mxu0 %v3883
    %7452 = vmatprep.subr.mxu0 0.0
    %7453 = vmatpush1.msra.mxu0 0.0
    %7454 = vmatprep.subr.mxu0 0.0
    %7455 = vmatpush1.msra.mxu0 0.0
    %7456 = vmatprep.subr.mxu0 0.0
    %7457 = vmatpush1.msra.mxu0 0.0
    %7458 = vmatprep.subr.mxu0 0.0
    %7459 = vmatpush1.msra.mxu0 0.0
    %7460 = vmatprep.subr.mxu0 0.0
    %7461 = vmatpush1.msra.mxu0 0.0
    %7462 = vmatprep.subr.mxu0 0.0
    %7463 = vmatpush1.msra.mxu0 0.0
    %7464 = vmatprep.subr.mxu0 0.0
    %7465 = vmatpush1.msra.mxu0 0.0
    %7466 = vmatprep.subr.mxu0 0.0
    %7467 = vmatpush1.msra.mxu0 0.0
    %7468 = vmatprep.subr.mxu0 0.0
    %7469 = vmatpush1.msra.mxu0 0.0
    %7470 = vmatprep.subr.mxu0 0.0
    %7471 = vmatpush1.msra.mxu0 0.0
    %7472 = vmatprep.subr.mxu0 0.0
    %7473 = vmatpush1.msra.mxu0 0.0
    %7474 = vmatprep.subr.mxu0 0.0
    %7475 = vmatpush1.msra.mxu0 0.0
    %7476 = vmatprep.subr.mxu0 0.0
    %7477 = vmatpush1.msra.mxu0 0.0
    %7478 = vmatprep.subr.mxu0 0.0
    %7479 = vmatpush1.msra.mxu0 0.0
    %7480 = vmatprep.subr.mxu0 0.0
    %7481 = vmatpush1.msra.mxu0 0.0
    %7482 = vmatprep.subr.mxu0 0.0
    %7483 = vmatpush1.msra.mxu0 0.0
    %7484 = vmatprep.subr.mxu0 0.0
    %7485 = vmatpush1.msra.mxu0 0.0
    %7486 = vmatprep.subr.mxu0 0.0
    %7487 = vmatpush1.msra.mxu0 0.0
    %7488 = vmatprep.subr.mxu0 0.0
    %7489 = vmatpush1.msra.mxu0 0.0
    %7490 = vmatprep.subr.mxu0 0.0
    %7491 = vmatpush1.msra.mxu0 0.0
    %7492 = vmatprep.subr.mxu0 0.0
    %7493 = vmatpush1.msra.mxu0 0.0
    %7494 = vmatprep.subr.mxu0 0.0
    %7495 = vmatpush1.msra.mxu0 0.0
    %7496 = vmatprep.subr.mxu0 0.0
    %7497 = vmatpush1.msra.mxu0 0.0
    %7498 = vmatprep.subr.mxu0 0.0
    %7499 = vmatpush1.msra.mxu0 0.0
    %7500 = vmatprep.subr.mxu0 0.0
    %7501 = vmatpush1.msra.mxu0 0.0
    %7502 = vmatprep.subr.mxu0 0.0
    %7503 = vmatpush1.msra.mxu0 0.0
    %7504 = vmatprep.subr.mxu0 0.0
    %7505 = vmatpush1.msra.mxu0 0.0
    %7506 = vmatprep.subr.mxu0 0.0
    %7507 = vmatpush1.msra.mxu0 0.0
    %7508 = vmatprep.subr.mxu0 0.0
    %7509 = vmatpush1.msra.mxu0 0.0
    %7510 = vmatprep.subr.mxu0 0.0
    %7511 = vmatpush1.msra.mxu0 0.0
    %7512 = vmatprep.subr.mxu0 0.0
    %7513 = vmatpush1.msra.mxu0 0.0
    %7514 = vmatprep.mubr.f32.mxu0 0.0
    %7515 = vmatmul.mubr.f32.gmra.mrb[0].mxu0 %v7448
    %v7516 = vpop.f32.mrb[0].mxu0
    %v7517 = vadd.f32 0.0, %v7516
    %v7518 = vpop.f32.mrb[0].mxu0
    %7519 = vdwg.mxu0
    %v7521 = vsel %vm1827, %v7006, 0
    %7523 = vmatprep.subr.mxu0 0.0
    %7524 = vmatpush1.msra.mxu0 %v3884
    %7525 = vmatprep.subr.mxu0 0.0
    %7526 = vmatpush1.msra.mxu0 0.0
    %7527 = vmatprep.subr.mxu0 0.0
    %7528 = vmatpush1.msra.mxu0 0.0
    %7529 = vmatprep.subr.mxu0 0.0
    %7530 = vmatpush1.msra.mxu0 0.0
    %7531 = vmatprep.subr.mxu0 0.0
    %7532 = vmatpush1.msra.mxu0 0.0
    %7533 = vmatprep.subr.mxu0 0.0
    %7534 = vmatpush1.msra.mxu0 0.0
    %7535 = vmatprep.subr.mxu0 0.0
    %7536 = vmatpush1.msra.mxu0 0.0
    %7537 = vmatprep.subr.mxu0 0.0
    %7538 = vmatpush1.msra.mxu0 0.0
    %7539 = vmatprep.subr.mxu0 0.0
    %7540 = vmatpush1.msra.mxu0 0.0
    %7541 = vmatprep.subr.mxu0 0.0
    %7542 = vmatpush1.msra.mxu0 0.0
    %7543 = vmatprep.subr.mxu0 0.0
    %7544 = vmatpush1.msra.mxu0 0.0
    %7545 = vmatprep.subr.mxu0 0.0
    %7546 = vmatpush1.msra.mxu0 0.0
    %7547 = vmatprep.subr.mxu0 0.0
    %7548 = vmatpush1.msra.mxu0 0.0
    %7549 = vmatprep.subr.mxu0 0.0
    %7550 = vmatpush1.msra.mxu0 0.0
    %7551 = vmatprep.subr.mxu0 0.0
    %7552 = vmatpush1.msra.mxu0 0.0
    %7553 = vmatprep.subr.mxu0 0.0
    %7554 = vmatpush1.msra.mxu0 0.0
    %7555 = vmatprep.subr.mxu0 0.0
    %7556 = vmatpush1.msra.mxu0 0.0
    %7557 = vmatprep.subr.mxu0 0.0
    %7558 = vmatpush1.msra.mxu0 0.0
    %7559 = vmatprep.subr.mxu0 0.0
    %7560 = vmatpush1.msra.mxu0 0.0
    %7561 = vmatprep.subr.mxu0 0.0
    %7562 = vmatpush1.msra.mxu0 0.0
    %7563 = vmatprep.subr.mxu0 0.0
    %7564 = vmatpush1.msra.mxu0 0.0
    %7565 = vmatprep.subr.mxu0 0.0
    %7566 = vmatpush1.msra.mxu0 0.0
    %7567 = vmatprep.subr.mxu0 0.0
    %7568 = vmatpush1.msra.mxu0 0.0
    %7569 = vmatprep.subr.mxu0 0.0
    %7570 = vmatpush1.msra.mxu0 0.0
    %7571 = vmatprep.subr.mxu0 0.0
    %7572 = vmatpush1.msra.mxu0 0.0
    %7573 = vmatprep.subr.mxu0 0.0
    %7574 = vmatpush1.msra.mxu0 0.0
    %7575 = vmatprep.subr.mxu0 0.0
    %7576 = vmatpush1.msra.mxu0 0.0
    %7577 = vmatprep.subr.mxu0 0.0
    %7578 = vmatpush1.msra.mxu0 0.0
    %7579 = vmatprep.subr.mxu0 0.0
    %7580 = vmatpush1.msra.mxu0 0.0
    %7581 = vmatprep.subr.mxu0 0.0
    %7582 = vmatpush1.msra.mxu0 0.0
    %7583 = vmatprep.subr.mxu0 0.0
    %7584 = vmatpush1.msra.mxu0 0.0
    %7585 = vmatprep.subr.mxu0 0.0
    %7586 = vmatpush1.msra.mxu0 0.0
    %7587 = vmatprep.mubr.f32.mxu0 0.0
    %7588 = vmatmul.mubr.f32.gmra.mrb[0].mxu0 %v7521
    %v7589 = vpop.f32.mrb[0].mxu0
    %v7590 = vadd.f32 0.0, %v7589
    %v7591 = vpop.f32.mrb[0].mxu0
    %7592 = vdwg.mxu0
    %v7593 = vsel %vm140, %v7079, 0.0
    %v7594 = vsel %vm140, %v7152, 0.0
    %v7595 = vadd.f32 %v7593, %v7594
    %v7596 = vsel %vm140, %v7225, 0.0
    %v7597 = vadd.f32 %v7595, %v7596
    %v7598 = vsel %vm140, %v7298, 0.0
    %v7599 = vadd.f32 %v7597, %v7598
    %v7600 = vsel %vm140, %v7371, 0.0
    %v7601 = vsel %vm140, %v7444, 0.0
    %v7602 = vadd.f32 %v7600, %v7601
    %v7603 = vsel %vm140, %v7517, 0.0
    %v7604 = vadd.f32 %v7602, %v7603
    %v7605 = vsel %vm140, %v7590, 0.0
    %v7606 = vadd.f32 %v7604, %v7605
    %v7607 = vadd.f32 %v7599, %v3767
    %v7608 = vadd.f32 %v7606, %v3768
    %v7609 = vld [vmem:[%s13] sm:$0x1]
    %v7610 = vld [vmem:[%s14] sm:$0x1]
    %v7611 = vsel %vm140, %v7607, 0.0
    %7612 = vadd.xlane.f32.xlu0 %v7611
    %v7613 = vpop.xlane.xlu0 %7612
    %v7614 = vsel %vm140, %v7608, 0.0
    %7615 = vadd.xlane.f32.xlu0 %v7614
    %v7616 = vpop.xlane.xlu0 %7615
    %v7617 = vmul.f32 %v7613, %v3732
    %v7618 = vmul.f32 %v7616, %v3732
    %v7619 = vsub.f32 %v7607, %v7617
    %v7620 = vsub.f32 %v7608, %v7618
    %v7621 = vmul.f32 %v7619, %v7619
    %v7622 = vmul.f32 %v7620, %v7620
    %v7623 = vsel %vm140, %v7621, 0.0
    %7624 = vadd.xlane.f32.xlu0 %v7623
    %v7625 = vpop.xlane.xlu0 %7624
    %v7626 = vsel %vm140, %v7622, 0.0
    %7627 = vadd.xlane.f32.xlu0 %v7626
    %v7628 = vpop.xlane.xlu0 %7627
    %v7629 = vmul.f32 %v7625, %v3732
    %v7630 = vmul.f32 %v7628, %v3732
    %v7631 = vadd.f32 %v7629, 1e-05
    %v7632 = vadd.f32 %v7630, 1e-05
    %v7633 = vrsqrt.pop %v7631
    %v7634 = vrsqrt.pop %v7632
    %v7635 = vmul.f32 %v7619, %v7633
    %v7636 = vmul.f32 %v7620, %v7634
    %v7638 = vlaneseq
    %v7639 = vshrl.u32 %v7638, 7
    %v7640 = vsub.s32 0, %v7639
    %v7641 = vrot.slane %v7609, %v7640
    %v7643 = vmul.f32 %v7635, %v7641
    %v7644 = vmul.f32 %v7636, %v7641
    %v7646 = vlaneseq
    %v7647 = vshrl.u32 %v7646, 7
    %v7648 = vsub.s32 0, %v7647
    %v7649 = vrot.slane %v7610, %v7648
    %v7651 = vadd.f32 %v7643, %v7649
    %v7652 = vadd.f32 %v7644, %v7649
    %v7653 = vld [vmem:[%s15] sm:$0xff]
    %v7654 = vld [vmem:[%s15 + $0x8] sm:$0xff]
    %v7655 = vld [vmem:[%s15 + $0x10] sm:$0xff]
    %v7656 = vld [vmem:[%s15 + $0x18] sm:$0xff]
    %v7657 = vld [vmem:[%s16] sm:$0x1]
    %v7659 = vlaneseq
    %v7660 = vshrl.u32 %v7659, 7
    %v7661 = vsub.s32 0, %v7660
    %v7662 = vrot.slane %v7657, %v7661
    %v7665 = vsel %vm140, %v7651, 0
    %7667 = vmatprep.subr.mxu0 0.0
    %7668 = vmatpush1.msra.mxu0 %v7653
    %7669 = vmatprep.subr.mxu0 0.0
    %7670 = vmatpush1.msra.mxu0 %v7654
    %7671 = vmatprep.subr.mxu0 0.0
    %7672 = vmatpush1.msra.mxu0 %v7655
    %7673 = vmatprep.subr.mxu0 0.0
    %7674 = vmatpush1.msra.mxu0 %v7656
    %7675 = vmatprep.subr.mxu0 0.0
    %7676 = vmatpush1.msra.mxu0 0.0
    %7677 = vmatprep.subr.mxu0 0.0
    %7678 = vmatpush1.msra.mxu0 0.0
    %7679 = vmatprep.subr.mxu0 0.0
    %7680 = vmatpush1.msra.mxu0 0.0
    %7681 = vmatprep.subr.mxu0 0.0
    %7682 = vmatpush1.msra.mxu0 0.0
    %7683 = vmatprep.subr.mxu0 0.0
    %7684 = vmatpush1.msra.mxu0 0.0
    %7685 = vmatprep.subr.mxu0 0.0
    %7686 = vmatpush1.msra.mxu0 0.0
    %7687 = vmatprep.subr.mxu0 0.0
    %7688 = vmatpush1.msra.mxu0 0.0
    %7689 = vmatprep.subr.mxu0 0.0
    %7690 = vmatpush1.msra.mxu0 0.0
    %7691 = vmatprep.subr.mxu0 0.0
    %7692 = vmatpush1.msra.mxu0 0.0
    %7693 = vmatprep.subr.mxu0 0.0
    %7694 = vmatpush1.msra.mxu0 0.0
    %7695 = vmatprep.subr.mxu0 0.0
    %7696 = vmatpush1.msra.mxu0 0.0
    %7697 = vmatprep.subr.mxu0 0.0
    %7698 = vmatpush1.msra.mxu0 0.0
    %7699 = vmatprep.subr.mxu0 0.0
    %7700 = vmatpush1.msra.mxu0 0.0
    %7701 = vmatprep.subr.mxu0 0.0
    %7702 = vmatpush1.msra.mxu0 0.0
    %7703 = vmatprep.subr.mxu0 0.0
    %7704 = vmatpush1.msra.mxu0 0.0
    %7705 = vmatprep.subr.mxu0 0.0
    %7706 = vmatpush1.msra.mxu0 0.0
    %7707 = vmatprep.subr.mxu0 0.0
    %7708 = vmatpush1.msra.mxu0 0.0
    %7709 = vmatprep.subr.mxu0 0.0
    %7710 = vmatpush1.msra.mxu0 0.0
    %7711 = vmatprep.subr.mxu0 0.0
    %7712 = vmatpush1.msra.mxu0 0.0
    %7713 = vmatprep.subr.mxu0 0.0
    %7714 = vmatpush1.msra.mxu0 0.0
    %7715 = vmatprep.subr.mxu0 0.0
    %7716 = vmatpush1.msra.mxu0 0.0
    %7717 = vmatprep.subr.mxu0 0.0
    %7718 = vmatpush1.msra.mxu0 0.0
    %7719 = vmatprep.subr.mxu0 0.0
    %7720 = vmatpush1.msra.mxu0 0.0
    %7721 = vmatprep.subr.mxu0 0.0
    %7722 = vmatpush1.msra.mxu0 0.0
    %7723 = vmatprep.subr.mxu0 0.0
    %7724 = vmatpush1.msra.mxu0 0.0
    %7725 = vmatprep.subr.mxu0 0.0
    %7726 = vmatpush1.msra.mxu0 0.0
    %7727 = vmatprep.subr.mxu0 0.0
    %7728 = vmatpush1.msra.mxu0 0.0
    %7729 = vmatprep.subr.mxu0 0.0
    %7730 = vmatpush1.msra.mxu0 0.0
    %7731 = vmatprep.mubr.f32.mxu0 0.0
    %7732 = vmatmul.mubr.f32.gmra.mrb[0].mxu0 %v7665
    %v7733 = vpop.f32.mrb[0].mxu0
    %v7734 = vadd.f32 %v7662, %v7733
    %v7735 = vpop.f32.mrb[0].mxu0
    %7736 = vdwg.mxu0
    %v7738 = vsel %vm140, %v7652, 0
    %7740 = vmatprep.subr.mxu0 0.0
    %7741 = vmatpush1.msra.mxu0 %v7653
    %7742 = vmatprep.subr.mxu0 0.0
    %7743 = vmatpush1.msra.mxu0 %v7654
    %7744 = vmatprep.subr.mxu0 0.0
    %7745 = vmatpush1.msra.mxu0 %v7655
    %7746 = vmatprep.subr.mxu0 0.0
    %7747 = vmatpush1.msra.mxu0 %v7656
    %7748 = vmatprep.subr.mxu0 0.0
    %7749 = vmatpush1.msra.mxu0 0.0
    %7750 = vmatprep.subr.mxu0 0.0
    %7751 = vmatpush1.msra.mxu0 0.0
    %7752 = vmatprep.subr.mxu0 0.0
    %7753 = vmatpush1.msra.mxu0 0.0
    %7754 = vmatprep.subr.mxu0 0.0
    %7755 = vmatpush1.msra.mxu0 0.0
    %7756 = vmatprep.subr.mxu0 0.0
    %7757 = vmatpush1.msra.mxu0 0.0
    %7758 = vmatprep.subr.mxu0 0.0
    %7759 = vmatpush1.msra.mxu0 0.0
    %7760 = vmatprep.subr.mxu0 0.0
    %7761 = vmatpush1.msra.mxu0 0.0
    %7762 = vmatprep.subr.mxu0 0.0
    %7763 = vmatpush1.msra.mxu0 0.0
    %7764 = vmatprep.subr.mxu0 0.0
    %7765 = vmatpush1.msra.mxu0 0.0
    %7766 = vmatprep.subr.mxu0 0.0
    %7767 = vmatpush1.msra.mxu0 0.0
    %7768 = vmatprep.subr.mxu0 0.0
    %7769 = vmatpush1.msra.mxu0 0.0
    %7770 = vmatprep.subr.mxu0 0.0
    %7771 = vmatpush1.msra.mxu0 0.0
    %7772 = vmatprep.subr.mxu0 0.0
    %7773 = vmatpush1.msra.mxu0 0.0
    %7774 = vmatprep.subr.mxu0 0.0
    %7775 = vmatpush1.msra.mxu0 0.0
    %7776 = vmatprep.subr.mxu0 0.0
    %7777 = vmatpush1.msra.mxu0 0.0
    %7778 = vmatprep.subr.mxu0 0.0
    %7779 = vmatpush1.msra.mxu0 0.0
    %7780 = vmatprep.subr.mxu0 0.0
    %7781 = vmatpush1.msra.mxu0 0.0
    %7782 = vmatprep.subr.mxu0 0.0
    %7783 = vmatpush1.msra.mxu0 0.0
    %7784 = vmatprep.subr.mxu0 0.0
    %7785 = vmatpush1.msra.mxu0 0.0
    %7786 = vmatprep.subr.mxu0 0.0
    %7787 = vmatpush1.msra.mxu0 0.0
    %7788 = vmatprep.subr.mxu0 0.0
    %7789 = vmatpush1.msra.mxu0 0.0
    %7790 = vmatprep.subr.mxu0 0.0
    %7791 = vmatpush1.msra.mxu0 0.0
    %7792 = vmatprep.subr.mxu0 0.0
    %7793 = vmatpush1.msra.mxu0 0.0
    %7794 = vmatprep.subr.mxu0 0.0
    %7795 = vmatpush1.msra.mxu0 0.0
    %7796 = vmatprep.subr.mxu0 0.0
    %7797 = vmatpush1.msra.mxu0 0.0
    %7798 = vmatprep.subr.mxu0 0.0
    %7799 = vmatpush1.msra.mxu0 0.0
    %7800 = vmatprep.subr.mxu0 0.0
    %7801 = vmatpush1.msra.mxu0 0.0
    %7802 = vmatprep.subr.mxu0 0.0
    %7803 = vmatpush1.msra.mxu0 0.0
    %7804 = vmatprep.mubr.f32.mxu0 0.0
    %7805 = vmatmul.mubr.f32.gmra.mrb[0].mxu0 %v7738
    %v7806 = vpop.f32.mrb[0].mxu0
    %v7807 = vadd.f32 %v7662, %v7806
    %v7808 = vpop.f32.mrb[0].mxu0
    %7809 = vdwg.mxu0
    %v7810 = vmax.f32 %v7734, 0.0
    %v7811 = vmax.f32 %v7807, 0.0
    %v7812 = vld [vmem:[%s17] sm:$0xff]
    %v7813 = vld [vmem:[%s17 + $0x8] sm:$0xff]
    %v7814 = vld [vmem:[%s17 + $0x10] sm:$0xff]
    %v7815 = vld [vmem:[%s17 + $0x18] sm:$0xff]
    %v7816 = vld [vmem:[%s17 + $0x20] sm:$0xff]
    %v7817 = vld [vmem:[%s17 + $0x28] sm:$0xff]
    %v7818 = vld [vmem:[%s17 + $0x30] sm:$0xff]
    %v7819 = vld [vmem:[%s17 + $0x38] sm:$0xff]
    %v7820 = vld [vmem:[%s18] sm:$0x1]
    %v7822 = vlaneseq
    %v7823 = vshrl.u32 %v7822, 7
    %v7824 = vsub.s32 0, %v7823
    %v7825 = vrot.slane %v7820, %v7824
    %vm7827 = vcmask 523264
    %v7829 = vsel %vm7827, %v7810, 0
    %7831 = vmatprep.subr.mxu0 0.0
    %7832 = vmatpush1.msra.mxu0 %v7812
    %7833 = vmatprep.subr.mxu0 0.0
    %7834 = vmatpush1.msra.mxu0 %v7813
    %7835 = vmatprep.subr.mxu0 0.0
    %7836 = vmatpush1.msra.mxu0 %v7814
    %7837 = vmatprep.subr.mxu0 0.0
    %7838 = vmatpush1.msra.mxu0 %v7815
    %7839 = vmatprep.subr.mxu0 0.0
    %7840 = vmatpush1.msra.mxu0 %v7816
    %7841 = vmatprep.subr.mxu0 0.0
    %7842 = vmatpush1.msra.mxu0 %v7817
    %7843 = vmatprep.subr.mxu0 0.0
    %7844 = vmatpush1.msra.mxu0 %v7818
    %7845 = vmatprep.subr.mxu0 0.0
    %7846 = vmatpush1.msra.mxu0 %v7819
    %7847 = vmatprep.subr.mxu0 0.0
    %7848 = vmatpush1.msra.mxu0 0.0
    %7849 = vmatprep.subr.mxu0 0.0
    %7850 = vmatpush1.msra.mxu0 0.0
    %7851 = vmatprep.subr.mxu0 0.0
    %7852 = vmatpush1.msra.mxu0 0.0
    %7853 = vmatprep.subr.mxu0 0.0
    %7854 = vmatpush1.msra.mxu0 0.0
    %7855 = vmatprep.subr.mxu0 0.0
    %7856 = vmatpush1.msra.mxu0 0.0
    %7857 = vmatprep.subr.mxu0 0.0
    %7858 = vmatpush1.msra.mxu0 0.0
    %7859 = vmatprep.subr.mxu0 0.0
    %7860 = vmatpush1.msra.mxu0 0.0
    %7861 = vmatprep.subr.mxu0 0.0
    %7862 = vmatpush1.msra.mxu0 0.0
    %7863 = vmatprep.subr.mxu0 0.0
    %7864 = vmatpush1.msra.mxu0 0.0
    %7865 = vmatprep.subr.mxu0 0.0
    %7866 = vmatpush1.msra.mxu0 0.0
    %7867 = vmatprep.subr.mxu0 0.0
    %7868 = vmatpush1.msra.mxu0 0.0
    %7869 = vmatprep.subr.mxu0 0.0
    %7870 = vmatpush1.msra.mxu0 0.0
    %7871 = vmatprep.subr.mxu0 0.0
    %7872 = vmatpush1.msra.mxu0 0.0
    %7873 = vmatprep.subr.mxu0 0.0
    %7874 = vmatpush1.msra.mxu0 0.0
    %7875 = vmatprep.subr.mxu0 0.0
    %7876 = vmatpush1.msra.mxu0 0.0
    %7877 = vmatprep.subr.mxu0 0.0
    %7878 = vmatpush1.msra.mxu0 0.0
    %7879 = vmatprep.subr.mxu0 0.0
    %7880 = vmatpush1.msra.mxu0 0.0
    %7881 = vmatprep.subr.mxu0 0.0
    %7882 = vmatpush1.msra.mxu0 0.0
    %7883 = vmatprep.subr.mxu0 0.0
    %7884 = vmatpush1.msra.mxu0 0.0
    %7885 = vmatprep.subr.mxu0 0.0
    %7886 = vmatpush1.msra.mxu0 0.0
    %7887 = vmatprep.subr.mxu0 0.0
    %7888 = vmatpush1.msra.mxu0 0.0
    %7889 = vmatprep.subr.mxu0 0.0
    %7890 = vmatpush1.msra.mxu0 0.0
    %7891 = vmatprep.subr.mxu0 0.0
    %7892 = vmatpush1.msra.mxu0 0.0
    %7893 = vmatprep.subr.mxu0 0.0
    %7894 = vmatpush1.msra.mxu0 0.0
    %7895 = vmatprep.mubr.f32.mxu0 0.0
    %7896 = vmatmul.mubr.f32.gmra.mrb[0].mxu0 %v7829
    %v7897 = vpop.f32.mrb[0].mxu0
    %v7898 = vadd.f32 %v7825, %v7897
    %v7899 = vpop.f32.mrb[0].mxu0
    %7900 = vdwg.mxu0
    %v7902 = vsel %vm7827, %v7811, 0
    %7904 = vmatprep.subr.mxu0 0.0
    %7905 = vmatpush1.msra.mxu0 %v7812
    %7906 = vmatprep.subr.mxu0 0.0
    %7907 = vmatpush1.msra.mxu0 %v7813
    %7908 = vmatprep.subr.mxu0 0.0
    %7909 = vmatpush1.msra.mxu0 %v7814
    %7910 = vmatprep.subr.mxu0 0.0
    %7911 = vmatpush1.msra.mxu0 %v7815
    %7912 = vmatprep.subr.mxu0 0.0
    %7913 = vmatpush1.msra.mxu0 %v7816
    %7914 = vmatprep.subr.mxu0 0.0
    %7915 = vmatpush1.msra.mxu0 %v7817
    %7916 = vmatprep.subr.mxu0 0.0
    %7917 = vmatpush1.msra.mxu0 %v7818
    %7918 = vmatprep.subr.mxu0 0.0
    %7919 = vmatpush1.msra.mxu0 %v7819
    %7920 = vmatprep.subr.mxu0 0.0
    %7921 = vmatpush1.msra.mxu0 0.0
    %7922 = vmatprep.subr.mxu0 0.0
    %7923 = vmatpush1.msra.mxu0 0.0
    %7924 = vmatprep.subr.mxu0 0.0
    %7925 = vmatpush1.msra.mxu0 0.0
    %7926 = vmatprep.subr.mxu0 0.0
    %7927 = vmatpush1.msra.mxu0 0.0
    %7928 = vmatprep.subr.mxu0 0.0
    %7929 = vmatpush1.msra.mxu0 0.0
    %7930 = vmatprep.subr.mxu0 0.0
    %7931 = vmatpush1.msra.mxu0 0.0
    %7932 = vmatprep.subr.mxu0 0.0
    %7933 = vmatpush1.msra.mxu0 0.0
    %7934 = vmatprep.subr.mxu0 0.0
    %7935 = vmatpush1.msra.mxu0 0.0
    %7936 = vmatprep.subr.mxu0 0.0
    %7937 = vmatpush1.msra.mxu0 0.0
    %7938 = vmatprep.subr.mxu0 0.0
    %7939 = vmatpush1.msra.mxu0 0.0
    %7940 = vmatprep.subr.mxu0 0.0
    %7941 = vmatpush1.msra.mxu0 0.0
    %7942 = vmatprep.subr.mxu0 0.0
    %7943 = vmatpush1.msra.mxu0 0.0
    %7944 = vmatprep.subr.mxu0 0.0
    %7945 = vmatpush1.msra.mxu0 0.0
    %7946 = vmatprep.subr.mxu0 0.0
    %7947 = vmatpush1.msra.mxu0 0.0
    %7948 = vmatprep.subr.mxu0 0.0
    %7949 = vmatpush1.msra.mxu0 0.0
    %7950 = vmatprep.subr.mxu0 0.0
    %7951 = vmatpush1.msra.mxu0 0.0
    %7952 = vmatprep.subr.mxu0 0.0
    %7953 = vmatpush1.msra.mxu0 0.0
    %7954 = vmatprep.subr.mxu0 0.0
    %7955 = vmatpush1.msra.mxu0 0.0
    %7956 = vmatprep.subr.mxu0 0.0
    %7957 = vmatpush1.msra.mxu0 0.0
    %7958 = vmatprep.subr.mxu0 0.0
    %7959 = vmatpush1.msra.mxu0 0.0
    %7960 = vmatprep.subr.mxu0 0.0
    %7961 = vmatpush1.msra.mxu0 0.0
    %7962 = vmatprep.subr.mxu0 0.0
    %7963 = vmatpush1.msra.mxu0 0.0
    %7964 = vmatprep.subr.mxu0 0.0
    %7965 = vmatpush1.msra.mxu0 0.0
    %7966 = vmatprep.subr.mxu0 0.0
    %7967 = vmatpush1.msra.mxu0 0.0
    %7968 = vmatprep.mubr.f32.mxu0 0.0
    %7969 = vmatmul.mubr.f32.gmra.mrb[0].mxu0 %v7902
    %v7970 = vpop.f32.mrb[0].mxu0
    %v7971 = vadd.f32 %v7825, %v7970
    %v7972 = vpop.f32.mrb[0].mxu0
    %7973 = vdwg.mxu0
    %v7974 = vadd.f32 %v7898, %v7651
    %v7975 = vadd.f32 %v7971, %v7652
    %v7976 = vld [vmem:[%s19] sm:$0x1]
    %v7977 = vld [vmem:[%s20] sm:$0x1]
    %v7978 = vsel %vm140, %v7974, 0.0
    %7979 = vadd.xlane.f32.xlu0 %v7978
    %v7980 = vpop.xlane.xlu0 %7979
    %v7981 = vsel %vm140, %v7975, 0.0
    %7982 = vadd.xlane.f32.xlu0 %v7981
    %v7983 = vpop.xlane.xlu0 %7982
    %v7984 = vmul.f32 %v7980, %v3732
    %v7985 = vmul.f32 %v7983, %v3732
    %v7986 = vsub.f32 %v7974, %v7984
    %v7987 = vsub.f32 %v7975, %v7985
    %v7988 = vmul.f32 %v7986, %v7986
    %v7989 = vmul.f32 %v7987, %v7987
    %v7990 = vsel %vm140, %v7988, 0.0
    %7991 = vadd.xlane.f32.xlu0 %v7990
    %v7992 = vpop.xlane.xlu0 %7991
    %v7993 = vsel %vm140, %v7989, 0.0
    %7994 = vadd.xlane.f32.xlu0 %v7993
    %v7995 = vpop.xlane.xlu0 %7994
    %v7996 = vmul.f32 %v7992, %v3732
    %v7997 = vmul.f32 %v7995, %v3732
    %v7998 = vadd.f32 %v7996, 1e-05
    %v7999 = vadd.f32 %v7997, 1e-05
    %v8000 = vrsqrt.pop %v7998
    %v8001 = vrsqrt.pop %v7999
    %v8002 = vmul.f32 %v7986, %v8000
    %v8003 = vmul.f32 %v7987, %v8001
    %v8005 = vlaneseq
    %v8006 = vshrl.u32 %v8005, 7
    %v8007 = vsub.s32 0, %v8006
    %v8008 = vrot.slane %v7976, %v8007
    %v8010 = vmul.f32 %v8002, %v8008
    %v8011 = vmul.f32 %v8003, %v8008
    %v8013 = vlaneseq
    %v8014 = vshrl.u32 %v8013, 7
    %v8015 = vsub.s32 0, %v8014
    %v8016 = vrot.slane %v7977, %v8015
    %v8018 = vadd.f32 %v8010, %v8016
    %v8019 = vadd.f32 %v8011, %v8016
    %8020 = vst.msk [vmem:[#allocation2] sm:$0xff] %vm140, %v8018
    %8021 = vst.msk [vmem:[#allocation2 + $0x8] sm:$0xff] %vm140, %v8019
    // Predicated region
    $region86: #{tpu_custom_call.1} parent=1 // pred_check
      _
    $region87: #{tpu_custom_call.1} parent=1 // pred_check_branch
      %8023 = sbr.rel (0) target = $region89
    $region88: #{tpu_custom_call.1} parent=1 // pred_region
      %s8025 = ssub.s32 256, 256
      %8026 = vsyncadd [#allocation3], %s8025
      %s8027 = sshll.u32 [#allocation2], 4
      %s8028 = int_to_ptr.vmem [resolvable:$true] %s8027
      %8033 = dma.vmem_to_hbm [thread:$0]  %s8028, 256, %s21, [#allocation3], 128, 128, 8
    $region89: #{tpu_custom_call.1} parent=1 // pred_fallthru
      _
    // Predicated region
    $region90: #{tpu_custom_call.1} parent=1 // pred_check
      _
    $region91: #{tpu_custom_call.1} parent=1 // pred_check_branch
      %8035 = sbr.rel (0) target = $region93
    $region92: #{tpu_custom_call.1} parent=1 // pred_region
      %8036 = dma.done [#allocation3], 256
    $region93: #{tpu_custom_call.1} parent=1 // pred_fallthru
      _
    %8037 = vsyncpa [#allocation3], 1

</llo_original>
